<compile_context>
chip_gen: v5e
topology: v5e:2x2
jax: 0.10.0
libtpu: 0.0.40
codegen_flags: <defaults>
</compile_context>

<pallas_src>
import functools

import numpy as np
import jax
import jax.numpy as jnp
from jax import lax
from jax.experimental import pallas as pl
from jax.experimental.pallas import tpu as pltpu

K = 5          # LeNet conv kernel size
COUT1 = 6      # conv1 output channels
COUT1P = 8     # conv1 channels padded to a full sublane tile
COUT2 = 16     # conv2 output channels
BLOCK_B = 8    # samples per grid step (B*COUT1P=64 MXU rows, grid>=2 for v7x)


# ----------------------------------------------------------------------------
# Fused LeNet kernel (one grid step == BLOCK_B samples)
# ----------------------------------------------------------------------------
def _lenet_kernel(x_ref, w1_ref, b1_ref, g1_ref, w2_ref, b2_ref,
                  wf1_ref, bf1_ref, wf2_ref, bf2_ref, wf3_ref, bf3_ref,
                  out_ref,
                  x_scr, im1_scr, a1_scr, p1_scr, im2_scr, a2_scr,
                  *, w0, p1w, hw):
    """Static shapes:
      x_ref  : (B, cin, H*W)                 f32 input block
      w1_ref : (8, 25*cin)      f32          conv1 weights, tap-major, padded
      b1_ref : (8, 1)           f32
      g1_ref : (wide1-1-w0, p1_pad)  bf16    one-hot pool1 selection matrix
      w2_ref : (16, 200)        bf16         conv2 weights, tap-major, padded
      b2_ref : (16, 1)          f32
      wf1_ref: (16, wide2-1-p1w, 120) bf16   fc1 weights w/ pool2-select folded
      bf1_ref: (1, 120) f32,  wf2_ref: (120, 84) bf16, bf2_ref: (1, 84) f32
      wf3_ref: (84, C)  bf16, bf3_ref: (1, C)  f32
      out_ref: (B, C)           f32
      scratches: x_scr  (B, cin, H*W+4) f32   zero-padded flat image
                 im1_scr(B, 25*cin, wide1) f32   conv1 im2col
                 a1_scr (B, 8, wide1)  bf16      conv1 activations
                 p1_scr (B, 8, p1_pad) bf16      pool1 output (flat, padded)
                 im2_scr(B, 200, wide2) bf16     conv2 im2col
                 a2_scr (B, 16, wide2) bf16      conv2 activations
    """
    f32 = jnp.float32
    bf16 = jnp.bfloat16
    B, cin, _ = x_scr.shape
    cout1p = a1_scr.shape[1]
    cout2 = a2_scr.shape[1]
    wide1 = a1_scr.shape[2]
    wide2 = a2_scr.shape[2]
    p1_pad = p1_scr.shape[2]
    nf1 = bf1_ref.shape[1]

    # ---- stage input into a zero-padded flat VMEM image ---------------------
    x_scr[:, :, :hw] = x_ref[...]
    x_scr[:, :, hw:] = jnp.zeros((B, cin, K - 1), f32)

    # ---- conv1: in-kernel im2col (25 shifted flat rows) + 1 MXU dot / sample
    for i in range(K):
        for j in range(K):
            t = i * K + j
            off = i * w0 + j
            im1_scr[:, t * cin:(t + 1) * cin, :] = x_scr[:, :, off:off + wide1]
    for b in range(B):
        y = jnp.dot(w1_ref[...], im1_scr[b], preferred_element_type=f32)
        a1_scr[b] = jnp.maximum(y + b1_ref[...], 0.0).astype(bf16)

    # ---- maxpool1: two shifted maxima (VPU) + ONE bf16 selection matmul -----
    a1 = a1_scr[...].reshape(B * cout1p, wide1)
    m = jnp.maximum(a1[:, :wide1 - 1], a1[:, 1:])
    m = jnp.maximum(m[:, :wide1 - 1 - w0], m[:, w0:])          # (B*8, wide1-1-w0)
    p1 = jnp.dot(m, g1_ref[...], preferred_element_type=f32)   # (B*8, p1_pad)
    p1_scr[...] = p1.astype(bf16).reshape(B, cout1p, p1_pad)

    # ---- conv2: im2col over the 8-padded channels + 1 MXU dot / sample ------
    for i in range(K):
        for j in range(K):
            t = i * K + j
            off = i * p1w + j
            im2_scr[:, t * cout1p:(t + 1) * cout1p, :] = \
                p1_scr[:, :, off:off + wide2]
    for b in range(B):
        y = jnp.dot(w2_ref[...], im2_scr[b], preferred_element_type=f32)
        a2_scr[b] = jnp.maximum(y + b2_ref[...], 0.0).astype(bf16)

    # ---- maxpool2: shifted maxima only (selection folded into fc1 weights) --
    a2 = a2_scr[...]                                            # (B, 16, wide2)
    m2 = jnp.maximum(a2[:, :, :wide2 - 1], a2[:, :, 1:])
    m2 = jnp.maximum(m2[:, :, :wide2 - 1 - p1w], m2[:, :, p1w:])  # (B,16,·)

    # ---- fc1 (pool2 selection + NCHW flatten folded into wf1) + ReLU --------
    h = jnp.zeros((B, nf1), f32)
    for c in range(cout2):
        h = h + jnp.dot(m2[:, c, :], wf1_ref[c], preferred_element_type=f32)
    h = jnp.maximum(h + bf1_ref[...], 0.0).astype(bf16)

    # ---- fc2 + ReLU, fc3 -----------------------------------------------------
    h = jnp.dot(h, wf2_ref[...], preferred_element_type=f32) + bf2_ref[...]
    h = jnp.maximum(h, 0.0).astype(bf16)
    logits = jnp.dot(h, wf3_ref[...], preferred_element_type=f32) + bf3_ref[...]
    out_ref[...] = logits.astype(out_ref.dtype)


# ----------------------------------------------------------------------------
# One-time parameter preparation (outside jit)
# ----------------------------------------------------------------------------
def prepare_params(params, input_size=28):
    """Convert torch-layout params to the fused-kernel layout (done once)."""
    c1w = np.asarray(params["conv1_w"], np.float32)   # (6, cin, 5, 5)
    c2w = np.asarray(params["conv2_w"], np.float32)   # (16, 6, 5, 5)
    cout1, cin = c1w.shape[0], c1w.shape[1]
    cout2 = c2w.shape[0]
    assert cout1 == COUT1 and cout2 == COUT2

    w0 = input_size
    ho1 = w0 - K + 1
    assert ho1 % 2 == 0
    p1w = ho1 // 2
    ho2 = p1w - K + 1
    assert ho2 % 2 == 0
    p2w = ho2 // 2
    wide1 = ho1 * w0
    wide2 = ho2 * p1w
    p1_pad = p1w * p1w + K - 1        # + zero cols so conv2's widest shift fits
    m_w1 = wide1 - 1 - w0             # width after pool1 shifted maxima
    m_w2 = wide2 - 1 - p1w            # width after pool2 shifted maxima
    s_len = p2w * p2w

    # conv1 weights, tap-major: w1p[o, (i*5+j)*cin + ci], rows padded 6->8
    w1p = np.zeros((COUT1P, K * K * cin), np.float32)
    w1p[:cout1] = c1w.transpose(0, 2, 3, 1).reshape(cout1, K * K * cin)
    b1p = np.zeros((COUT1P, 1), np.float32)
    b1p[:cout1, 0] = np.asarray(params["conv1_b"], np.float32)

    # pool1 one-hot selector: column q=ph*p1w+pw picks flat src 2*ph*w0+2*pw
    g1 = np.zeros((m_w1, p1_pad), np.float32)
    for ph in range(p1w):
        for pw in range(p1w):
            g1[2 * ph * w0 + 2 * pw, ph * p1w + pw] = 1.0

    # conv2 weights, tap-major over the 8-padded channels: (16, 25*8)
    w2t = np.zeros((cout2, K, K, COUT1P), np.float32)
    w2t[:, :, :, :cout1] = c2w.transpose(0, 2, 3, 1)
    w2p = w2t.reshape(cout2, K * K * COUT1P)
    b2p = np.asarray(params["conv2_b"], np.float32).reshape(cout2, 1)

    # fc1 weights with pool2 selection + NCHW flatten folded in:
    # wf1e[c, 2*ph*p1w+2*pw, j] = fc1_w[j, c*s_len + ph*p2w + pw]
    f1 = np.asarray(params["fc1_w"], np.float32)      # (120, cout2*s_len)
    nf1 = f1.shape[0]
    assert f1.shape[1] == cout2 * s_len
    f1r = f1.reshape(nf1, cout2, p2w, p2w)
    wf1e = np.zeros((cout2, m_w2, nf1), np.float32)
    for ph in range(p2w):
        for pw in range(p2w):
            s = 2 * ph * p1w + 2 * pw
            wf1e[:, s, :] = f1r[:, :, ph, pw].transpose(1, 0)

    return {
        "w1": jnp.asarray(w1p),                                   # f32 (tiny dot)
        "b1": jnp.asarray(b1p),
        "g1": jnp.asarray(g1, jnp.bfloat16),
        "w2": jnp.asarray(w2p, jnp.bfloat16),
        "b2": jnp.asarray(b2p),
        "wf1": jnp.asarray(wf1e, jnp.bfloat16),
        "bf1": jnp.asarray(np.asarray(params["fc1_b"], np.float32).reshape(1, -1)),
        "wf2": jnp.asarray(np.asarray(params["fc2_w"], np.float32).T, jnp.bfloat16),
        "bf2": jnp.asarray(np.asarray(params["fc2_b"], np.float32).reshape(1, -1)),
        "wf3": jnp.asarray(np.asarray(params["fc3_w"], np.float32).T, jnp.bfloat16),
        "bf3": jnp.asarray(np.asarray(params["fc3_b"], np.float32).reshape(1, -1)),
    }


# ----------------------------------------------------------------------------
# Fused forward pass
# ----------------------------------------------------------------------------
def _full_spec(a):
    zeros = (0,) * a.ndim
    return pl.BlockSpec(a.shape, lambda i, _z=zeros: _z)


@jax.jit
def lenet_forward(prep, x):
    n, cin, h0, w0 = x.shape
    assert h0 == w0, "square inputs only"
    ho1 = h0 - K + 1
    p1w = ho1 // 2
    ho2 = p1w - K + 1
    wide1 = ho1 * w0
    wide2 = ho2 * p1w
    p1_pad = p1w * p1w + K - 1
    hw = h0 * w0
    hwp = hw + K - 1
    num_classes = prep["wf3"].shape[1]

    B = BLOCK_B
    n_pad = ((n + B - 1) // B) * B
    xf = x.reshape(n, cin, hw).astype(jnp.float32)
    if n_pad != n:
        xf = jnp.pad(xf, ((0, n_pad - n), (0, 0), (0, 0)))

    kernel = functools.partial(_lenet_kernel, w0=w0, p1w=p1w, hw=hw)
    weights = [prep[k] for k in ("w1", "b1", "g1", "w2", "b2",
                                 "wf1", "bf1", "wf2", "bf2", "wf3", "bf3")]

    out = pl.pallas_call(
        kernel,
        out_shape=jax.ShapeDtypeStruct((n_pad, num_classes), jnp.float32),
        grid=(n_pad // B,),
        in_specs=[pl.BlockSpec((B, cin, hw), lambda i: (i, 0, 0))]
                 + [_full_spec(w) for w in weights],
        out_specs=pl.BlockSpec((B, num_classes), lambda i: (i, 0)),
        scratch_shapes=[
            pltpu.VMEM((B, cin, hwp), jnp.float32),               # x_scr
            pltpu.VMEM((B, K * K * cin, wide1), jnp.float32),     # im1_scr
            pltpu.VMEM((B, COUT1P, wide1), jnp.bfloat16),         # a1_scr
            pltpu.VMEM((B, COUT1P, p1_pad), jnp.bfloat16),        # p1_scr
            pltpu.VMEM((B, K * K * COUT1P, wide2), jnp.bfloat16),  # im2_scr
            pltpu.VMEM((B, COUT2, wide2), jnp.bfloat16),          # a2_scr
        ],
        compiler_params=pltpu.CompilerParams(
            dimension_semantics=("parallel",)),   # v7x: 2 TCs share the steps
    )(xf, *weights)
    return out[:n]


# ----------------------------------------------------------------------------
# Parameter init (torch layout) and pure-JAX reference
# ----------------------------------------------------------------------------
def init_lenet_params(key, num_classes=10, input_size=28, input_channel=1):
    feat = 16 * (input_size // 4 - 3) ** 2
    keys = jax.random.split(key, 10)
    scale = 0.1
    return {
        "conv1_w": scale * jax.random.normal(keys[0], (6, input_channel, 5, 5), jnp.float32),
        "conv1_b": scale * jax.random.normal(keys[1], (6,), jnp.float32),
        "conv2_w": scale * jax.random.normal(keys[2], (16, 6, 5, 5), jnp.float32),
        "conv2_b": scale * jax.random.normal(keys[3], (16,), jnp.float32),
        "fc1_w": scale * jax.random.normal(keys[4], (120, feat), jnp.float32),
        "fc1_b": scale * jax.random.normal(keys[5], (120,), jnp.float32),
        "fc2_w": scale * jax.random.normal(keys[6], (84, 120), jnp.float32),
        "fc2_b": scale * jax.random.normal(keys[7], (84,), jnp.float32),
        "fc3_w": scale * jax.random.normal(keys[8], (num_classes, 84), jnp.float32),
        "fc3_b": scale * jax.random.normal(keys[9], (num_classes,), jnp.float32),
    }


def lenet_reference(params, x):
    """Pure-JAX reference matching the PyTorch forward (sigma=None)."""
    dn = ("NCHW", "OIHW", "NCHW")
    hp = lax.Precision.HIGHEST

    def conv(inp, w, b):
        y = lax.conv_general_dilated(inp, w, (1, 1), "VALID",
                                     dimension_numbers=dn, precision=hp)
        return y + b[None, :, None, None]

    out = jax.nn.relu(conv(x, params["conv1_w"], params["conv1_b"]))
    out = lax.reduce_window(out, -jnp.inf, lax.max, (1, 1, 2, 2), (1, 1, 2, 2), "VALID")
    out = jax.nn.relu(conv(out, params["conv2_w"], params["conv2_b"]))
    out = lax.reduce_window(out, -jnp.inf, lax.max, (1, 1, 2, 2), (1, 1, 2, 2), "VALID")
    out = out.reshape(out.shape[0], -1)
    out = jax.nn.relu(jnp.dot(out, params["fc1_w"].T, precision=hp) + params["fc1_b"])
    out = jax.nn.relu(jnp.dot(out, params["fc2_w"].T, precision=hp) + params["fc2_b"])
    return jnp.dot(out, params["fc3_w"].T, precision=hp) + params["fc3_b"]


if __name__ == "__main__":
    num_classes = 10
    input_size = 28
    input_channel = 1
    batch = 16   # 2 grid steps of BLOCK_B=8 samples each

    key = jax.random.PRNGKey(0)
    pkey, xkey = jax.random.split(key)
    params = init_lenet_params(pkey, num_classes=num_classes,
                               input_size=input_size, input_channel=input_channel)
    prep = prepare_params(params, input_size=input_size)
    x = jax.random.normal(xkey, (batch, input_channel, input_size, input_size),
                          dtype=jnp.float32)

    logits = lenet_forward(prep, x)
    jax.block_until_ready(logits)
    assert logits.shape == (batch, num_classes)

    ref = lenet_reference(params, x)
    np.testing.assert_allclose(np.asarray(logits), np.asarray(ref),
                               rtol=5e-2, atol=5e-2)
    print("KERNEL_OK")
</pallas_src>

<mosaic_0001>
module attributes {stable_mosaic.version = 11 : i64} {
  func.func @_lenet_kernel(%arg0: i32, %arg1: memref<8x1x784xf32, #tpu.memory_space<vmem>>, %arg2: memref<8x25xf32, #tpu.memory_space<vmem>>, %arg3: memref<8x1xf32, #tpu.memory_space<vmem>>, %arg4: memref<643x148xbf16, #tpu.memory_space<vmem>>, %arg5: memref<16x200xbf16, #tpu.memory_space<vmem>>, %arg6: memref<16x1xf32, #tpu.memory_space<vmem>>, %arg7: memref<16x83x120xbf16, #tpu.memory_space<vmem>>, %arg8: memref<1x120xf32, #tpu.memory_space<vmem>>, %arg9: memref<120x84xbf16, #tpu.memory_space<vmem>>, %arg10: memref<1x84xf32, #tpu.memory_space<vmem>>, %arg11: memref<84x10xbf16, #tpu.memory_space<vmem>>, %arg12: memref<1x10xf32, #tpu.memory_space<vmem>>, %arg13: memref<8x10xf32, #tpu.memory_space<vmem>>, %arg14: memref<8x1x788xf32, #tpu.memory_space<vmem>>, %arg15: memref<8x25x672xf32, #tpu.memory_space<vmem>>, %arg16: memref<8x8x672xbf16, #tpu.memory_space<vmem>>, %arg17: memref<8x8x148xbf16, #tpu.memory_space<vmem>>, %arg18: memref<8x200x96xbf16, #tpu.memory_space<vmem>>, %arg19: memref<8x16x96xbf16, #tpu.memory_space<vmem>>) attributes {dimension_semantics = [#tpu.dimension_semantics<parallel>], iteration_bounds = array<i64: 2>, scalar_prefetch = 0 : i64, scratch_operands = 6 : i64, tpu.core_type = #tpu.core_type<tc>, window_params = [{transform_indices = @transform_0, window_bounds = array<i64: 8, 1, 784>}, {pipeline_mode = #tpu.pipeline_mode<synchronous>, transform_indices = @transform_1, window_bounds = array<i64: 8, 25>}, {pipeline_mode = #tpu.pipeline_mode<synchronous>, transform_indices = @transform_2, window_bounds = array<i64: 8, 1>}, {pipeline_mode = #tpu.pipeline_mode<synchronous>, transform_indices = @transform_3, window_bounds = array<i64: 643, 148>}, {pipeline_mode = #tpu.pipeline_mode<synchronous>, transform_indices = @transform_4, window_bounds = array<i64: 16, 200>}, {pipeline_mode = #tpu.pipeline_mode<synchronous>, transform_indices = @transform_5, window_bounds = array<i64: 16, 1>}, {pipeline_mode = #tpu.pipeline_mode<synchronous>, transform_indices = @transform_6, window_bounds = array<i64: 16, 83, 120>}, {pipeline_mode = #tpu.pipeline_mode<synchronous>, transform_indices = @transform_7, window_bounds = array<i64: 1, 120>}, {pipeline_mode = #tpu.pipeline_mode<synchronous>, transform_indices = @transform_8, window_bounds = array<i64: 120, 84>}, {pipeline_mode = #tpu.pipeline_mode<synchronous>, transform_indices = @transform_9, window_bounds = array<i64: 1, 84>}, {pipeline_mode = #tpu.pipeline_mode<synchronous>, transform_indices = @transform_10, window_bounds = array<i64: 84, 10>}, {pipeline_mode = #tpu.pipeline_mode<synchronous>, transform_indices = @transform_11, window_bounds = array<i64: 1, 10>}, {transform_indices = @transform_12, window_bounds = array<i64: 8, 10>}]} {
    %c0 = arith.constant 0 : index
    %c0_0 = arith.constant 0 : index
    %c0_1 = arith.constant 0 : index
    %0 = vector.load %arg1[%c0, %c0_0, %c0_1] : memref<8x1x784xf32, #tpu.memory_space<vmem>>, vector<8x1x784xf32>
    %c0_2 = arith.constant 0 : index
    %c0_3 = arith.constant 0 : index
    %c0_4 = arith.constant 0 : index
    %1 = vector.load %arg14[%c0_2, %c0_3, %c0_4] : memref<8x1x788xf32, #tpu.memory_space<vmem>>, vector<8x1x784xf32>
    tpu.vector_store %arg14[%c0_2, %c0_3, %c0_4], %0 {strides = array<i32>} : memref<8x1x788xf32, #tpu.memory_space<vmem>>, vector<8x1x784xf32>,
    %cst = arith.constant 0.000000e+00 : f32
    %2 = vector.broadcast %cst : f32 to vector<8x1x4xf32>
    %c0_5 = arith.constant 0 : index
    %c0_6 = arith.constant 0 : index
    %c784 = arith.constant 784 : index
    %3 = vector.load %arg14[%c0_5, %c0_6, %c784] : memref<8x1x788xf32, #tpu.memory_space<vmem>>, vector<8x1x4xf32>
    tpu.vector_store %arg14[%c0_5, %c0_6, %c784], %2 {strides = array<i32>} : memref<8x1x788xf32, #tpu.memory_space<vmem>>, vector<8x1x4xf32>,
    %c0_7 = arith.constant 0 : index
    %c0_8 = arith.constant 0 : index
    %c0_9 = arith.constant 0 : index
    %4 = vector.load %arg14[%c0_7, %c0_8, %c0_9] : memref<8x1x788xf32, #tpu.memory_space<vmem>>, vector<8x1x672xf32>
    %c0_10 = arith.constant 0 : index
    %c0_11 = arith.constant 0 : index
    %c0_12 = arith.constant 0 : index
    %5 = vector.load %arg15[%c0_10, %c0_11, %c0_12] : memref<8x25x672xf32, #tpu.memory_space<vmem>>, vector<8x1x672xf32>
    tpu.vector_store %arg15[%c0_10, %c0_11, %c0_12], %4 {strides = array<i32>} : memref<8x25x672xf32, #tpu.memory_space<vmem>>, vector<8x1x672xf32>,
    %c0_13 = arith.constant 0 : index
    %c0_14 = arith.constant 0 : index
    %c1 = arith.constant 1 : index
    %6 = vector.load %arg14[%c0_13, %c0_14, %c1] : memref<8x1x788xf32, #tpu.memory_space<vmem>>, vector<8x1x672xf32>
    %c0_15 = arith.constant 0 : index
    %c1_16 = arith.constant 1 : index
    %c0_17 = arith.constant 0 : index
    %7 = vector.load %arg15[%c0_15, %c1_16, %c0_17] : memref<8x25x672xf32, #tpu.memory_space<vmem>>, vector<8x1x672xf32>
    tpu.vector_store %arg15[%c0_15, %c1_16, %c0_17], %6 {strides = array<i32>} : memref<8x25x672xf32, #tpu.memory_space<vmem>>, vector<8x1x672xf32>,
    %c0_18 = arith.constant 0 : index
    %c0_19 = arith.constant 0 : index
    %c2 = arith.constant 2 : index
    %8 = vector.load %arg14[%c0_18, %c0_19, %c2] : memref<8x1x788xf32, #tpu.memory_space<vmem>>, vector<8x1x672xf32>
    %c0_20 = arith.constant 0 : index
    %c2_21 = arith.constant 2 : index
    %c0_22 = arith.constant 0 : index
    %9 = vector.load %arg15[%c0_20, %c2_21, %c0_22] : memref<8x25x672xf32, #tpu.memory_space<vmem>>, vector<8x1x672xf32>
    tpu.vector_store %arg15[%c0_20, %c2_21, %c0_22], %8 {strides = array<i32>} : memref<8x25x672xf32, #tpu.memory_space<vmem>>, vector<8x1x672xf32>,
    %c0_23 = arith.constant 0 : index
    %c0_24 = arith.constant 0 : index
    %c3 = arith.constant 3 : index
    %10 = vector.load %arg14[%c0_23, %c0_24, %c3] : memref<8x1x788xf32, #tpu.memory_space<vmem>>, vector<8x1x672xf32>
    %c0_25 = arith.constant 0 : index
    %c3_26 = arith.constant 3 : index
    %c0_27 = arith.constant 0 : index
    %11 = vector.load %arg15[%c0_25, %c3_26, %c0_27] : memref<8x25x672xf32, #tpu.memory_space<vmem>>, vector<8x1x672xf32>
    tpu.vector_store %arg15[%c0_25, %c3_26, %c0_27], %10 {strides = array<i32>} : memref<8x25x672xf32, #tpu.memory_space<vmem>>, vector<8x1x672xf32>,
    %c0_28 = arith.constant 0 : index
    %c0_29 = arith.constant 0 : index
    %c4 = arith.constant 4 : index
    %12 = vector.load %arg14[%c0_28, %c0_29, %c4] : memref<8x1x788xf32, #tpu.memory_space<vmem>>, vector<8x1x672xf32>
    %c0_30 = arith.constant 0 : index
    %c4_31 = arith.constant 4 : index
    %c0_32 = arith.constant 0 : index
    %13 = vector.load %arg15[%c0_30, %c4_31, %c0_32] : memref<8x25x672xf32, #tpu.memory_space<vmem>>, vector<8x1x672xf32>
    tpu.vector_store %arg15[%c0_30, %c4_31, %c0_32], %12 {strides = array<i32>} : memref<8x25x672xf32, #tpu.memory_space<vmem>>, vector<8x1x672xf32>,
    %c0_33 = arith.constant 0 : index
    %c0_34 = arith.constant 0 : index
    %c28 = arith.constant 28 : index
    %14 = vector.load %arg14[%c0_33, %c0_34, %c28] : memref<8x1x788xf32, #tpu.memory_space<vmem>>, vector<8x1x672xf32>
    %c0_35 = arith.constant 0 : index
    %c5 = arith.constant 5 : index
    %c0_36 = arith.constant 0 : index
    %15 = vector.load %arg15[%c0_35, %c5, %c0_36] : memref<8x25x672xf32, #tpu.memory_space<vmem>>, vector<8x1x672xf32>
    tpu.vector_store %arg15[%c0_35, %c5, %c0_36], %14 {strides = array<i32>} : memref<8x25x672xf32, #tpu.memory_space<vmem>>, vector<8x1x672xf32>,
    %c0_37 = arith.constant 0 : index
    %c0_38 = arith.constant 0 : index
    %c29 = arith.constant 29 : index
    %16 = vector.load %arg14[%c0_37, %c0_38, %c29] : memref<8x1x788xf32, #tpu.memory_space<vmem>>, vector<8x1x672xf32>
    %c0_39 = arith.constant 0 : index
    %c6 = arith.constant 6 : index
    %c0_40 = arith.constant 0 : index
    %17 = vector.load %arg15[%c0_39, %c6, %c0_40] : memref<8x25x672xf32, #tpu.memory_space<vmem>>, vector<8x1x672xf32>
    tpu.vector_store %arg15[%c0_39, %c6, %c0_40], %16 {strides = array<i32>} : memref<8x25x672xf32, #tpu.memory_space<vmem>>, vector<8x1x672xf32>,
    %c0_41 = arith.constant 0 : index
    %c0_42 = arith.constant 0 : index
    %c30 = arith.constant 30 : index
    %18 = vector.load %arg14[%c0_41, %c0_42, %c30] : memref<8x1x788xf32, #tpu.memory_space<vmem>>, vector<8x1x672xf32>
    %c0_43 = arith.constant 0 : index
    %c7 = arith.constant 7 : index
    %c0_44 = arith.constant 0 : index
    %19 = vector.load %arg15[%c0_43, %c7, %c0_44] : memref<8x25x672xf32, #tpu.memory_space<vmem>>, vector<8x1x672xf32>
    tpu.vector_store %arg15[%c0_43, %c7, %c0_44], %18 {strides = array<i32>} : memref<8x25x672xf32, #tpu.memory_space<vmem>>, vector<8x1x672xf32>,
    %c0_45 = arith.constant 0 : index
    %c0_46 = arith.constant 0 : index
    %c31 = arith.constant 31 : index
    %20 = vector.load %arg14[%c0_45, %c0_46, %c31] : memref<8x1x788xf32, #tpu.memory_space<vmem>>, vector<8x1x672xf32>
    %c0_47 = arith.constant 0 : index
    %c8 = arith.constant 8 : index
    %c0_48 = arith.constant 0 : index
    %21 = vector.load %arg15[%c0_47, %c8, %c0_48] : memref<8x25x672xf32, #tpu.memory_space<vmem>>, vector<8x1x672xf32>
    tpu.vector_store %arg15[%c0_47, %c8, %c0_48], %20 {strides = array<i32>} : memref<8x25x672xf32, #tpu.memory_space<vmem>>, vector<8x1x672xf32>,
    %c0_49 = arith.constant 0 : index
    %c0_50 = arith.constant 0 : index
    %c32 = arith.constant 32 : index
    %22 = vector.load %arg14[%c0_49, %c0_50, %c32] : memref<8x1x788xf32, #tpu.memory_space<vmem>>, vector<8x1x672xf32>
    %c0_51 = arith.constant 0 : index
    %c9 = arith.constant 9 : index
    %c0_52 = arith.constant 0 : index
    %23 = vector.load %arg15[%c0_51, %c9, %c0_52] : memref<8x25x672xf32, #tpu.memory_space<vmem>>, vector<8x1x672xf32>
    tpu.vector_store %arg15[%c0_51, %c9, %c0_52], %22 {strides = array<i32>} : memref<8x25x672xf32, #tpu.memory_space<vmem>>, vector<8x1x672xf32>,
    %c0_53 = arith.constant 0 : index
    %c0_54 = arith.constant 0 : index
    %c56 = arith.constant 56 : index
    %24 = vector.load %arg14[%c0_53, %c0_54, %c56] : memref<8x1x788xf32, #tpu.memory_space<vmem>>, vector<8x1x672xf32>
    %c0_55 = arith.constant 0 : index
    %c10 = arith.constant 10 : index
    %c0_56 = arith.constant 0 : index
    %25 = vector.load %arg15[%c0_55, %c10, %c0_56] : memref<8x25x672xf32, #tpu.memory_space<vmem>>, vector<8x1x672xf32>
    tpu.vector_store %arg15[%c0_55, %c10, %c0_56], %24 {strides = array<i32>} : memref<8x25x672xf32, #tpu.memory_space<vmem>>, vector<8x1x672xf32>,
    %c0_57 = arith.constant 0 : index
    %c0_58 = arith.constant 0 : index
    %c57 = arith.constant 57 : index
    %26 = vector.load %arg14[%c0_57, %c0_58, %c57] : memref<8x1x788xf32, #tpu.memory_space<vmem>>, vector<8x1x672xf32>
    %c0_59 = arith.constant 0 : index
    %c11 = arith.constant 11 : index
    %c0_60 = arith.constant 0 : index
    %27 = vector.load %arg15[%c0_59, %c11, %c0_60] : memref<8x25x672xf32, #tpu.memory_space<vmem>>, vector<8x1x672xf32>
    tpu.vector_store %arg15[%c0_59, %c11, %c0_60], %26 {strides = array<i32>} : memref<8x25x672xf32, #tpu.memory_space<vmem>>, vector<8x1x672xf32>,
    %c0_61 = arith.constant 0 : index
    %c0_62 = arith.constant 0 : index
    %c58 = arith.constant 58 : index
    %28 = vector.load %arg14[%c0_61, %c0_62, %c58] : memref<8x1x788xf32, #tpu.memory_space<vmem>>, vector<8x1x672xf32>
    %c0_63 = arith.constant 0 : index
    %c12 = arith.constant 12 : index
    %c0_64 = arith.constant 0 : index
    %29 = vector.load %arg15[%c0_63, %c12, %c0_64] : memref<8x25x672xf32, #tpu.memory_space<vmem>>, vector<8x1x672xf32>
    tpu.vector_store %arg15[%c0_63, %c12, %c0_64], %28 {strides = array<i32>} : memref<8x25x672xf32, #tpu.memory_space<vmem>>, vector<8x1x672xf32>,
    %c0_65 = arith.constant 0 : index
    %c0_66 = arith.constant 0 : index
    %c59 = arith.constant 59 : index
    %30 = vector.load %arg14[%c0_65, %c0_66, %c59] : memref<8x1x788xf32, #tpu.memory_space<vmem>>, vector<8x1x672xf32>
    %c0_67 = arith.constant 0 : index
    %c13 = arith.constant 13 : index
    %c0_68 = arith.constant 0 : index
    %31 = vector.load %arg15[%c0_67, %c13, %c0_68] : memref<8x25x672xf32, #tpu.memory_space<vmem>>, vector<8x1x672xf32>
    tpu.vector_store %arg15[%c0_67, %c13, %c0_68], %30 {strides = array<i32>} : memref<8x25x672xf32, #tpu.memory_space<vmem>>, vector<8x1x672xf32>,
    %c0_69 = arith.constant 0 : index
    %c0_70 = arith.constant 0 : index
    %c60 = arith.constant 60 : index
    %32 = vector.load %arg14[%c0_69, %c0_70, %c60] : memref<8x1x788xf32, #tpu.memory_space<vmem>>, vector<8x1x672xf32>
    %c0_71 = arith.constant 0 : index
    %c14 = arith.constant 14 : index
    %c0_72 = arith.constant 0 : index
    %33 = vector.load %arg15[%c0_71, %c14, %c0_72] : memref<8x25x672xf32, #tpu.memory_space<vmem>>, vector<8x1x672xf32>
    tpu.vector_store %arg15[%c0_71, %c14, %c0_72], %32 {strides = array<i32>} : memref<8x25x672xf32, #tpu.memory_space<vmem>>, vector<8x1x672xf32>,
    %c0_73 = arith.constant 0 : index
    %c0_74 = arith.constant 0 : index
    %c84 = arith.constant 84 : index
    %34 = vector.load %arg14[%c0_73, %c0_74, %c84] : memref<8x1x788xf32, #tpu.memory_space<vmem>>, vector<8x1x672xf32>
    %c0_75 = arith.constant 0 : index
    %c15 = arith.constant 15 : index
    %c0_76 = arith.constant 0 : index
    %35 = vector.load %arg15[%c0_75, %c15, %c0_76] : memref<8x25x672xf32, #tpu.memory_space<vmem>>, vector<8x1x672xf32>
    tpu.vector_store %arg15[%c0_75, %c15, %c0_76], %34 {strides = array<i32>} : memref<8x25x672xf32, #tpu.memory_space<vmem>>, vector<8x1x672xf32>,
    %c0_77 = arith.constant 0 : index
    %c0_78 = arith.constant 0 : index
    %c85 = arith.constant 85 : index
    %36 = vector.load %arg14[%c0_77, %c0_78, %c85] : memref<8x1x788xf32, #tpu.memory_space<vmem>>, vector<8x1x672xf32>
    %c0_79 = arith.constant 0 : index
    %c16 = arith.constant 16 : index
    %c0_80 = arith.constant 0 : index
    %37 = vector.load %arg15[%c0_79, %c16, %c0_80] : memref<8x25x672xf32, #tpu.memory_space<vmem>>, vector<8x1x672xf32>
    tpu.vector_store %arg15[%c0_79, %c16, %c0_80], %36 {strides = array<i32>} : memref<8x25x672xf32, #tpu.memory_space<vmem>>, vector<8x1x672xf32>,
    %c0_81 = arith.constant 0 : index
    %c0_82 = arith.constant 0 : index
    %c86 = arith.constant 86 : index
    %38 = vector.load %arg14[%c0_81, %c0_82, %c86] : memref<8x1x788xf32, #tpu.memory_space<vmem>>, vector<8x1x672xf32>
    %c0_83 = arith.constant 0 : index
    %c17 = arith.constant 17 : index
    %c0_84 = arith.constant 0 : index
    %39 = vector.load %arg15[%c0_83, %c17, %c0_84] : memref<8x25x672xf32, #tpu.memory_space<vmem>>, vector<8x1x672xf32>
    tpu.vector_store %arg15[%c0_83, %c17, %c0_84], %38 {strides = array<i32>} : memref<8x25x672xf32, #tpu.memory_space<vmem>>, vector<8x1x672xf32>,
    %c0_85 = arith.constant 0 : index
    %c0_86 = arith.constant 0 : index
    %c87 = arith.constant 87 : index
    %40 = vector.load %arg14[%c0_85, %c0_86, %c87] : memref<8x1x788xf32, #tpu.memory_space<vmem>>, vector<8x1x672xf32>
    %c0_87 = arith.constant 0 : index
    %c18 = arith.constant 18 : index
    %c0_88 = arith.constant 0 : index
    %41 = vector.load %arg15[%c0_87, %c18, %c0_88] : memref<8x25x672xf32, #tpu.memory_space<vmem>>, vector<8x1x672xf32>
    tpu.vector_store %arg15[%c0_87, %c18, %c0_88], %40 {strides = array<i32>} : memref<8x25x672xf32, #tpu.memory_space<vmem>>, vector<8x1x672xf32>,
    %c0_89 = arith.constant 0 : index
    %c0_90 = arith.constant 0 : index
    %c88 = arith.constant 88 : index
    %42 = vector.load %arg14[%c0_89, %c0_90, %c88] : memref<8x1x788xf32, #tpu.memory_space<vmem>>, vector<8x1x672xf32>
    %c0_91 = arith.constant 0 : index
    %c19 = arith.constant 19 : index
    %c0_92 = arith.constant 0 : index
    %43 = vector.load %arg15[%c0_91, %c19, %c0_92] : memref<8x25x672xf32, #tpu.memory_space<vmem>>, vector<8x1x672xf32>
    tpu.vector_store %arg15[%c0_91, %c19, %c0_92], %42 {strides = array<i32>} : memref<8x25x672xf32, #tpu.memory_space<vmem>>, vector<8x1x672xf32>,
    %c0_93 = arith.constant 0 : index
    %c0_94 = arith.constant 0 : index
    %c112 = arith.constant 112 : index
    %44 = vector.load %arg14[%c0_93, %c0_94, %c112] : memref<8x1x788xf32, #tpu.memory_space<vmem>>, vector<8x1x672xf32>
    %c0_95 = arith.constant 0 : index
    %c20 = arith.constant 20 : index
    %c0_96 = arith.constant 0 : index
    %45 = vector.load %arg15[%c0_95, %c20, %c0_96] : memref<8x25x672xf32, #tpu.memory_space<vmem>>, vector<8x1x672xf32>
    tpu.vector_store %arg15[%c0_95, %c20, %c0_96], %44 {strides = array<i32>} : memref<8x25x672xf32, #tpu.memory_space<vmem>>, vector<8x1x672xf32>,
    %c0_97 = arith.constant 0 : index
    %c0_98 = arith.constant 0 : index
    %c113 = arith.constant 113 : index
    %46 = vector.load %arg14[%c0_97, %c0_98, %c113] : memref<8x1x788xf32, #tpu.memory_space<vmem>>, vector<8x1x672xf32>
    %c0_99 = arith.constant 0 : index
    %c21 = arith.constant 21 : index
    %c0_100 = arith.constant 0 : index
    %47 = vector.load %arg15[%c0_99, %c21, %c0_100] : memref<8x25x672xf32, #tpu.memory_space<vmem>>, vector<8x1x672xf32>
    tpu.vector_store %arg15[%c0_99, %c21, %c0_100], %46 {strides = array<i32>} : memref<8x25x672xf32, #tpu.memory_space<vmem>>, vector<8x1x672xf32>,
    %c0_101 = arith.constant 0 : index
    %c0_102 = arith.constant 0 : index
    %c114 = arith.constant 114 : index
    %48 = vector.load %arg14[%c0_101, %c0_102, %c114] : memref<8x1x788xf32, #tpu.memory_space<vmem>>, vector<8x1x672xf32>
    %c0_103 = arith.constant 0 : index
    %c22 = arith.constant 22 : index
    %c0_104 = arith.constant 0 : index
    %49 = vector.load %arg15[%c0_103, %c22, %c0_104] : memref<8x25x672xf32, #tpu.memory_space<vmem>>, vector<8x1x672xf32>
    tpu.vector_store %arg15[%c0_103, %c22, %c0_104], %48 {strides = array<i32>} : memref<8x25x672xf32, #tpu.memory_space<vmem>>, vector<8x1x672xf32>,
    %c0_105 = arith.constant 0 : index
    %c0_106 = arith.constant 0 : index
    %c115 = arith.constant 115 : index
    %50 = vector.load %arg14[%c0_105, %c0_106, %c115] : memref<8x1x788xf32, #tpu.memory_space<vmem>>, vector<8x1x672xf32>
    %c0_107 = arith.constant 0 : index
    %c23 = arith.constant 23 : index
    %c0_108 = arith.constant 0 : index
    %51 = vector.load %arg15[%c0_107, %c23, %c0_108] : memref<8x25x672xf32, #tpu.memory_space<vmem>>, vector<8x1x672xf32>
    tpu.vector_store %arg15[%c0_107, %c23, %c0_108], %50 {strides = array<i32>} : memref<8x25x672xf32, #tpu.memory_space<vmem>>, vector<8x1x672xf32>,
    %c0_109 = arith.constant 0 : index
    %c0_110 = arith.constant 0 : index
    %c116 = arith.constant 116 : index
    %52 = vector.load %arg14[%c0_109, %c0_110, %c116] : memref<8x1x788xf32, #tpu.memory_space<vmem>>, vector<8x1x672xf32>
    %c0_111 = arith.constant 0 : index
    %c24 = arith.constant 24 : index
    %c0_112 = arith.constant 0 : index
    %53 = vector.load %arg15[%c0_111, %c24, %c0_112] : memref<8x25x672xf32, #tpu.memory_space<vmem>>, vector<8x1x672xf32>
    tpu.vector_store %arg15[%c0_111, %c24, %c0_112], %52 {strides = array<i32>} : memref<8x25x672xf32, #tpu.memory_space<vmem>>, vector<8x1x672xf32>,
    %c0_113 = arith.constant 0 : index
    %c0_114 = arith.constant 0 : index
    %54 = vector.load %arg2[%c0_113, %c0_114] : memref<8x25xf32, #tpu.memory_space<vmem>>, vector<8x25xf32>
    %c0_115 = arith.constant 0 : index
    %c0_116 = arith.constant 0 : index
    %c0_117 = arith.constant 0 : index
    %55 = vector.load %arg15[%c0_115, %c0_116, %c0_117] : memref<8x25x672xf32, #tpu.memory_space<vmem>>, vector<1x25x672xf32>
    %56 = vector.shape_cast %55 : vector<1x25x672xf32> to vector<25x672xf32>
    %cst_118 = arith.constant dense<0.000000e+00> : vector<8x672xf32>
    %57 = tpu.matmul %54, %56, %cst_118 {dimension_numbers = #tpu.dot_dimension_numbers<[1], [0], [0], [1], [0, 0, 1, 1], [], []>} : vector<8x25xf32>, vector<25x672xf32>, vector<8x672xf32> -> vector<8x672xf32>
    %c0_119 = arith.constant 0 : index
    %c0_120 = arith.constant 0 : index
    %58 = vector.load %arg3[%c0_119, %c0_120] : memref<8x1xf32, #tpu.memory_space<vmem>>, vector<8x1xf32>
    %59 = vector.broadcast %58 : vector<8x1xf32> to vector<8x672xf32>
    %60 = arith.addf %57, %59 : vector<8x672xf32>
    %cst_121 = arith.constant 0.000000e+00 : f32
    %61 = vector.broadcast %cst_121 : f32 to vector<8x672xf32>
    %62 = arith.maximumf %60, %61 : vector<8x672xf32>
    %63 = arith.truncf %62 : vector<8x672xf32> to vector<8x672xbf16>
    %c0_122 = arith.constant 0 : index
    %c0_123 = arith.constant 0 : index
    %c0_124 = arith.constant 0 : index
    %64 = vector.load %arg16[%c0_122, %c0_123, %c0_124] : memref<8x8x672xbf16, #tpu.memory_space<vmem>>, vector<1x8x672xbf16>
    %65 = vector.shape_cast %64 : vector<1x8x672xbf16> to vector<8x672xbf16>
    %66 = vector.shape_cast %63 : vector<8x672xbf16> to vector<1x8x672xbf16>
    tpu.vector_store %arg16[%c0_122, %c0_123, %c0_124], %66 {strides = array<i32>} : memref<8x8x672xbf16, #tpu.memory_space<vmem>>, vector<1x8x672xbf16>,
    %c0_125 = arith.constant 0 : index
    %c0_126 = arith.constant 0 : index
    %67 = vector.load %arg2[%c0_125, %c0_126] : memref<8x25xf32, #tpu.memory_space<vmem>>, vector<8x25xf32>
    %c1_127 = arith.constant 1 : index
    %c0_128 = arith.constant 0 : index
    %c0_129 = arith.constant 0 : index
    %68 = vector.load %arg15[%c1_127, %c0_128, %c0_129] : memref<8x25x672xf32, #tpu.memory_space<vmem>>, vector<1x25x672xf32>
    %69 = vector.shape_cast %68 : vector<1x25x672xf32> to vector<25x672xf32>
    %cst_130 = arith.constant dense<0.000000e+00> : vector<8x672xf32>
    %70 = tpu.matmul %67, %69, %cst_130 {dimension_numbers = #tpu.dot_dimension_numbers<[1], [0], [0], [1], [0, 0, 1, 1], [], []>} : vector<8x25xf32>, vector<25x672xf32>, vector<8x672xf32> -> vector<8x672xf32>
    %c0_131 = arith.constant 0 : index
    %c0_132 = arith.constant 0 : index
    %71 = vector.load %arg3[%c0_131, %c0_132] : memref<8x1xf32, #tpu.memory_space<vmem>>, vector<8x1xf32>
    %72 = vector.broadcast %71 : vector<8x1xf32> to vector<8x672xf32>
    %73 = arith.addf %70, %72 : vector<8x672xf32>
    %cst_133 = arith.constant 0.000000e+00 : f32
    %74 = vector.broadcast %cst_133 : f32 to vector<8x672xf32>
    %75 = arith.maximumf %73, %74 : vector<8x672xf32>
    %76 = arith.truncf %75 : vector<8x672xf32> to vector<8x672xbf16>
    %c1_134 = arith.constant 1 : index
    %c0_135 = arith.constant 0 : index
    %c0_136 = arith.constant 0 : index
    %77 = vector.load %arg16[%c1_134, %c0_135, %c0_136] : memref<8x8x672xbf16, #tpu.memory_space<vmem>>, vector<1x8x672xbf16>
    %78 = vector.shape_cast %77 : vector<1x8x672xbf16> to vector<8x672xbf16>
    %79 = vector.shape_cast %76 : vector<8x672xbf16> to vector<1x8x672xbf16>
    tpu.vector_store %arg16[%c1_134, %c0_135, %c0_136], %79 {strides = array<i32>} : memref<8x8x672xbf16, #tpu.memory_space<vmem>>, vector<1x8x672xbf16>,
    %c0_137 = arith.constant 0 : index
    %c0_138 = arith.constant 0 : index
    %80 = vector.load %arg2[%c0_137, %c0_138] : memref<8x25xf32, #tpu.memory_space<vmem>>, vector<8x25xf32>
    %c2_139 = arith.constant 2 : index
    %c0_140 = arith.constant 0 : index
    %c0_141 = arith.constant 0 : index
    %81 = vector.load %arg15[%c2_139, %c0_140, %c0_141] : memref<8x25x672xf32, #tpu.memory_space<vmem>>, vector<1x25x672xf32>
    %82 = vector.shape_cast %81 : vector<1x25x672xf32> to vector<25x672xf32>
    %cst_142 = arith.constant dense<0.000000e+00> : vector<8x672xf32>
    %83 = tpu.matmul %80, %82, %cst_142 {dimension_numbers = #tpu.dot_dimension_numbers<[1], [0], [0], [1], [0, 0, 1, 1], [], []>} : vector<8x25xf32>, vector<25x672xf32>, vector<8x672xf32> -> vector<8x672xf32>
    %c0_143 = arith.constant 0 : index
    %c0_144 = arith.constant 0 : index
    %84 = vector.load %arg3[%c0_143, %c0_144] : memref<8x1xf32, #tpu.memory_space<vmem>>, vector<8x1xf32>
    %85 = vector.broadcast %84 : vector<8x1xf32> to vector<8x672xf32>
    %86 = arith.addf %83, %85 : vector<8x672xf32>
    %cst_145 = arith.constant 0.000000e+00 : f32
    %87 = vector.broadcast %cst_145 : f32 to vector<8x672xf32>
    %88 = arith.maximumf %86, %87 : vector<8x672xf32>
    %89 = arith.truncf %88 : vector<8x672xf32> to vector<8x672xbf16>
    %c2_146 = arith.constant 2 : index
    %c0_147 = arith.constant 0 : index
    %c0_148 = arith.constant 0 : index
    %90 = vector.load %arg16[%c2_146, %c0_147, %c0_148] : memref<8x8x672xbf16, #tpu.memory_space<vmem>>, vector<1x8x672xbf16>
    %91 = vector.shape_cast %90 : vector<1x8x672xbf16> to vector<8x672xbf16>
    %92 = vector.shape_cast %89 : vector<8x672xbf16> to vector<1x8x672xbf16>
    tpu.vector_store %arg16[%c2_146, %c0_147, %c0_148], %92 {strides = array<i32>} : memref<8x8x672xbf16, #tpu.memory_space<vmem>>, vector<1x8x672xbf16>,
    %c0_149 = arith.constant 0 : index
    %c0_150 = arith.constant 0 : index
    %93 = vector.load %arg2[%c0_149, %c0_150] : memref<8x25xf32, #tpu.memory_space<vmem>>, vector<8x25xf32>
    %c3_151 = arith.constant 3 : index
    %c0_152 = arith.constant 0 : index
    %c0_153 = arith.constant 0 : index
    %94 = vector.load %arg15[%c3_151, %c0_152, %c0_153] : memref<8x25x672xf32, #tpu.memory_space<vmem>>, vector<1x25x672xf32>
    %95 = vector.shape_cast %94 : vector<1x25x672xf32> to vector<25x672xf32>
    %cst_154 = arith.constant dense<0.000000e+00> : vector<8x672xf32>
    %96 = tpu.matmul %93, %95, %cst_154 {dimension_numbers = #tpu.dot_dimension_numbers<[1], [0], [0], [1], [0, 0, 1, 1], [], []>} : vector<8x25xf32>, vector<25x672xf32>, vector<8x672xf32> -> vector<8x672xf32>
    %c0_155 = arith.constant 0 : index
    %c0_156 = arith.constant 0 : index
    %97 = vector.load %arg3[%c0_155, %c0_156] : memref<8x1xf32, #tpu.memory_space<vmem>>, vector<8x1xf32>
    %98 = vector.broadcast %97 : vector<8x1xf32> to vector<8x672xf32>
    %99 = arith.addf %96, %98 : vector<8x672xf32>
    %cst_157 = arith.constant 0.000000e+00 : f32
    %100 = vector.broadcast %cst_157 : f32 to vector<8x672xf32>
    %101 = arith.maximumf %99, %100 : vector<8x672xf32>
    %102 = arith.truncf %101 : vector<8x672xf32> to vector<8x672xbf16>
    %c3_158 = arith.constant 3 : index
    %c0_159 = arith.constant 0 : index
    %c0_160 = arith.constant 0 : index
    %103 = vector.load %arg16[%c3_158, %c0_159, %c0_160] : memref<8x8x672xbf16, #tpu.memory_space<vmem>>, vector<1x8x672xbf16>
    %104 = vector.shape_cast %103 : vector<1x8x672xbf16> to vector<8x672xbf16>
    %105 = vector.shape_cast %102 : vector<8x672xbf16> to vector<1x8x672xbf16>
    tpu.vector_store %arg16[%c3_158, %c0_159, %c0_160], %105 {strides = array<i32>} : memref<8x8x672xbf16, #tpu.memory_space<vmem>>, vector<1x8x672xbf16>,
    %c0_161 = arith.constant 0 : index
    %c0_162 = arith.constant 0 : index
    %106 = vector.load %arg2[%c0_161, %c0_162] : memref<8x25xf32, #tpu.memory_space<vmem>>, vector<8x25xf32>
    %c4_163 = arith.constant 4 : index
    %c0_164 = arith.constant 0 : index
    %c0_165 = arith.constant 0 : index
    %107 = vector.load %arg15[%c4_163, %c0_164, %c0_165] : memref<8x25x672xf32, #tpu.memory_space<vmem>>, vector<1x25x672xf32>
    %108 = vector.shape_cast %107 : vector<1x25x672xf32> to vector<25x672xf32>
    %cst_166 = arith.constant dense<0.000000e+00> : vector<8x672xf32>
    %109 = tpu.matmul %106, %108, %cst_166 {dimension_numbers = #tpu.dot_dimension_numbers<[1], [0], [0], [1], [0, 0, 1, 1], [], []>} : vector<8x25xf32>, vector<25x672xf32>, vector<8x672xf32> -> vector<8x672xf32>
    %c0_167 = arith.constant 0 : index
    %c0_168 = arith.constant 0 : index
    %110 = vector.load %arg3[%c0_167, %c0_168] : memref<8x1xf32, #tpu.memory_space<vmem>>, vector<8x1xf32>
    %111 = vector.broadcast %110 : vector<8x1xf32> to vector<8x672xf32>
    %112 = arith.addf %109, %111 : vector<8x672xf32>
    %cst_169 = arith.constant 0.000000e+00 : f32
    %113 = vector.broadcast %cst_169 : f32 to vector<8x672xf32>
    %114 = arith.maximumf %112, %113 : vector<8x672xf32>
    %115 = arith.truncf %114 : vector<8x672xf32> to vector<8x672xbf16>
    %c4_170 = arith.constant 4 : index
    %c0_171 = arith.constant 0 : index
    %c0_172 = arith.constant 0 : index
    %116 = vector.load %arg16[%c4_170, %c0_171, %c0_172] : memref<8x8x672xbf16, #tpu.memory_space<vmem>>, vector<1x8x672xbf16>
    %117 = vector.shape_cast %116 : vector<1x8x672xbf16> to vector<8x672xbf16>
    %118 = vector.shape_cast %115 : vector<8x672xbf16> to vector<1x8x672xbf16>
    tpu.vector_store %arg16[%c4_170, %c0_171, %c0_172], %118 {strides = array<i32>} : memref<8x8x672xbf16, #tpu.memory_space<vmem>>, vector<1x8x672xbf16>,
    %c0_173 = arith.constant 0 : index
    %c0_174 = arith.constant 0 : index
    %119 = vector.load %arg2[%c0_173, %c0_174] : memref<8x25xf32, #tpu.memory_space<vmem>>, vector<8x25xf32>
    %c5_175 = arith.constant 5 : index
    %c0_176 = arith.constant 0 : index
    %c0_177 = arith.constant 0 : index
    %120 = vector.load %arg15[%c5_175, %c0_176, %c0_177] : memref<8x25x672xf32, #tpu.memory_space<vmem>>, vector<1x25x672xf32>
    %121 = vector.shape_cast %120 : vector<1x25x672xf32> to vector<25x672xf32>
    %cst_178 = arith.constant dense<0.000000e+00> : vector<8x672xf32>
    %122 = tpu.matmul %119, %121, %cst_178 {dimension_numbers = #tpu.dot_dimension_numbers<[1], [0], [0], [1], [0, 0, 1, 1], [], []>} : vector<8x25xf32>, vector<25x672xf32>, vector<8x672xf32> -> vector<8x672xf32>
    %c0_179 = arith.constant 0 : index
    %c0_180 = arith.constant 0 : index
    %123 = vector.load %arg3[%c0_179, %c0_180] : memref<8x1xf32, #tpu.memory_space<vmem>>, vector<8x1xf32>
    %124 = vector.broadcast %123 : vector<8x1xf32> to vector<8x672xf32>
    %125 = arith.addf %122, %124 : vector<8x672xf32>
    %cst_181 = arith.constant 0.000000e+00 : f32
    %126 = vector.broadcast %cst_181 : f32 to vector<8x672xf32>
    %127 = arith.maximumf %125, %126 : vector<8x672xf32>
    %128 = arith.truncf %127 : vector<8x672xf32> to vector<8x672xbf16>
    %c5_182 = arith.constant 5 : index
    %c0_183 = arith.constant 0 : index
    %c0_184 = arith.constant 0 : index
    %129 = vector.load %arg16[%c5_182, %c0_183, %c0_184] : memref<8x8x672xbf16, #tpu.memory_space<vmem>>, vector<1x8x672xbf16>
    %130 = vector.shape_cast %129 : vector<1x8x672xbf16> to vector<8x672xbf16>
    %131 = vector.shape_cast %128 : vector<8x672xbf16> to vector<1x8x672xbf16>
    tpu.vector_store %arg16[%c5_182, %c0_183, %c0_184], %131 {strides = array<i32>} : memref<8x8x672xbf16, #tpu.memory_space<vmem>>, vector<1x8x672xbf16>,
    %c0_185 = arith.constant 0 : index
    %c0_186 = arith.constant 0 : index
    %132 = vector.load %arg2[%c0_185, %c0_186] : memref<8x25xf32, #tpu.memory_space<vmem>>, vector<8x25xf32>
    %c6_187 = arith.constant 6 : index
    %c0_188 = arith.constant 0 : index
    %c0_189 = arith.constant 0 : index
    %133 = vector.load %arg15[%c6_187, %c0_188, %c0_189] : memref<8x25x672xf32, #tpu.memory_space<vmem>>, vector<1x25x672xf32>
    %134 = vector.shape_cast %133 : vector<1x25x672xf32> to vector<25x672xf32>
    %cst_190 = arith.constant dense<0.000000e+00> : vector<8x672xf32>
    %135 = tpu.matmul %132, %134, %cst_190 {dimension_numbers = #tpu.dot_dimension_numbers<[1], [0], [0], [1], [0, 0, 1, 1], [], []>} : vector<8x25xf32>, vector<25x672xf32>, vector<8x672xf32> -> vector<8x672xf32>
    %c0_191 = arith.constant 0 : index
    %c0_192 = arith.constant 0 : index
    %136 = vector.load %arg3[%c0_191, %c0_192] : memref<8x1xf32, #tpu.memory_space<vmem>>, vector<8x1xf32>
    %137 = vector.broadcast %136 : vector<8x1xf32> to vector<8x672xf32>
    %138 = arith.addf %135, %137 : vector<8x672xf32>
    %cst_193 = arith.constant 0.000000e+00 : f32
    %139 = vector.broadcast %cst_193 : f32 to vector<8x672xf32>
    %140 = arith.maximumf %138, %139 : vector<8x672xf32>
    %141 = arith.truncf %140 : vector<8x672xf32> to vector<8x672xbf16>
    %c6_194 = arith.constant 6 : index
    %c0_195 = arith.constant 0 : index
    %c0_196 = arith.constant 0 : index
    %142 = vector.load %arg16[%c6_194, %c0_195, %c0_196] : memref<8x8x672xbf16, #tpu.memory_space<vmem>>, vector<1x8x672xbf16>
    %143 = vector.shape_cast %142 : vector<1x8x672xbf16> to vector<8x672xbf16>
    %144 = vector.shape_cast %141 : vector<8x672xbf16> to vector<1x8x672xbf16>
    tpu.vector_store %arg16[%c6_194, %c0_195, %c0_196], %144 {strides = array<i32>} : memref<8x8x672xbf16, #tpu.memory_space<vmem>>, vector<1x8x672xbf16>,
    %c0_197 = arith.constant 0 : index
    %c0_198 = arith.constant 0 : index
    %145 = vector.load %arg2[%c0_197, %c0_198] : memref<8x25xf32, #tpu.memory_space<vmem>>, vector<8x25xf32>
    %c7_199 = arith.constant 7 : index
    %c0_200 = arith.constant 0 : index
    %c0_201 = arith.constant 0 : index
    %146 = vector.load %arg15[%c7_199, %c0_200, %c0_201] : memref<8x25x672xf32, #tpu.memory_space<vmem>>, vector<1x25x672xf32>
    %147 = vector.shape_cast %146 : vector<1x25x672xf32> to vector<25x672xf32>
    %cst_202 = arith.constant dense<0.000000e+00> : vector<8x672xf32>
    %148 = tpu.matmul %145, %147, %cst_202 {dimension_numbers = #tpu.dot_dimension_numbers<[1], [0], [0], [1], [0, 0, 1, 1], [], []>} : vector<8x25xf32>, vector<25x672xf32>, vector<8x672xf32> -> vector<8x672xf32>
    %c0_203 = arith.constant 0 : index
    %c0_204 = arith.constant 0 : index
    %149 = vector.load %arg3[%c0_203, %c0_204] : memref<8x1xf32, #tpu.memory_space<vmem>>, vector<8x1xf32>
    %150 = vector.broadcast %149 : vector<8x1xf32> to vector<8x672xf32>
    %151 = arith.addf %148, %150 : vector<8x672xf32>
    %cst_205 = arith.constant 0.000000e+00 : f32
    %152 = vector.broadcast %cst_205 : f32 to vector<8x672xf32>
    %153 = arith.maximumf %151, %152 : vector<8x672xf32>
    %154 = arith.truncf %153 : vector<8x672xf32> to vector<8x672xbf16>
    %c7_206 = arith.constant 7 : index
    %c0_207 = arith.constant 0 : index
    %c0_208 = arith.constant 0 : index
    %155 = vector.load %arg16[%c7_206, %c0_207, %c0_208] : memref<8x8x672xbf16, #tpu.memory_space<vmem>>, vector<1x8x672xbf16>
    %156 = vector.shape_cast %155 : vector<1x8x672xbf16> to vector<8x672xbf16>
    %157 = vector.shape_cast %154 : vector<8x672xbf16> to vector<1x8x672xbf16>
    tpu.vector_store %arg16[%c7_206, %c0_207, %c0_208], %157 {strides = array<i32>} : memref<8x8x672xbf16, #tpu.memory_space<vmem>>, vector<1x8x672xbf16>,
    %c0_209 = arith.constant 0 : index
    %c0_210 = arith.constant 0 : index
    %c0_211 = arith.constant 0 : index
    %158 = vector.load %arg16[%c0_209, %c0_210, %c0_211] : memref<8x8x672xbf16, #tpu.memory_space<vmem>>, vector<8x8x672xbf16>
    %159 = vector.shape_cast %158 : vector<8x8x672xbf16> to vector<64x672xbf16>
    %160 = vector.extract_strided_slice %159 {offsets = [0, 0], sizes = [64, 671], strides = [1, 1]} : vector<64x672xbf16> to vector<64x671xbf16>
    %161 = vector.extract_strided_slice %159 {offsets = [0, 1], sizes = [64, 671], strides = [1, 1]} : vector<64x672xbf16> to vector<64x671xbf16>
    %162 = arith.maximumf %160, %161 : vector<64x671xbf16>
    %163 = vector.extract_strided_slice %162 {offsets = [0, 0], sizes = [64, 643], strides = [1, 1]} : vector<64x671xbf16> to vector<64x643xbf16>
    %164 = vector.extract_strided_slice %162 {offsets = [0, 28], sizes = [64, 643], strides = [1, 1]} : vector<64x671xbf16> to vector<64x643xbf16>
    %165 = arith.maximumf %163, %164 : vector<64x643xbf16>
    %c0_212 = arith.constant 0 : index
    %c0_213 = arith.constant 0 : index
    %166 = vector.load %arg4[%c0_212, %c0_213] : memref<643x148xbf16, #tpu.memory_space<vmem>>, vector<643x148xbf16>
    %cst_214 = arith.constant dense<0.000000e+00> : vector<64x148xf32>
    %167 = tpu.matmul %165, %166, %cst_214 {dimension_numbers = #tpu.dot_dimension_numbers<[1], [0], [0], [1], [0, 0, 1, 1], [], []>} : vector<64x643xbf16>, vector<643x148xbf16>, vector<64x148xf32> -> vector<64x148xf32>
    %168 = arith.truncf %167 : vector<64x148xf32> to vector<64x148xbf16>
    %169 = vector.shape_cast %168 : vector<64x148xbf16> to vector<8x8x148xbf16>
    %c0_215 = arith.constant 0 : index
    %c0_216 = arith.constant 0 : index
    %c0_217 = arith.constant 0 : index
    %170 = vector.load %arg17[%c0_215, %c0_216, %c0_217] : memref<8x8x148xbf16, #tpu.memory_space<vmem>>, vector<8x8x148xbf16>
    tpu.vector_store %arg17[%c0_215, %c0_216, %c0_217], %169 {strides = array<i32>} : memref<8x8x148xbf16, #tpu.memory_space<vmem>>, vector<8x8x148xbf16>,
    %c0_218 = arith.constant 0 : index
    %c0_219 = arith.constant 0 : index
    %c0_220 = arith.constant 0 : index
    %171 = vector.load %arg17[%c0_218, %c0_219, %c0_220] : memref<8x8x148xbf16, #tpu.memory_space<vmem>>, vector<8x8x96xbf16>
    %c0_221 = arith.constant 0 : index
    %c0_222 = arith.constant 0 : index
    %c0_223 = arith.constant 0 : index
    %172 = vector.load %arg18[%c0_221, %c0_222, %c0_223] : memref<8x200x96xbf16, #tpu.memory_space<vmem>>, vector<8x8x96xbf16>
    tpu.vector_store %arg18[%c0_221, %c0_222, %c0_223], %171 {strides = array<i32>} : memref<8x200x96xbf16, #tpu.memory_space<vmem>>, vector<8x8x96xbf16>,
    %c0_224 = arith.constant 0 : index
    %c0_225 = arith.constant 0 : index
    %c1_226 = arith.constant 1 : index
    %173 = vector.load %arg17[%c0_224, %c0_225, %c1_226] : memref<8x8x148xbf16, #tpu.memory_space<vmem>>, vector<8x8x96xbf16>
    %c0_227 = arith.constant 0 : index
    %c8_228 = arith.constant 8 : index
    %c0_229 = arith.constant 0 : index
    %174 = vector.load %arg18[%c0_227, %c8_228, %c0_229] : memref<8x200x96xbf16, #tpu.memory_space<vmem>>, vector<8x8x96xbf16>
    tpu.vector_store %arg18[%c0_227, %c8_228, %c0_229], %173 {strides = array<i32>} : memref<8x200x96xbf16, #tpu.memory_space<vmem>>, vector<8x8x96xbf16>,
    %c0_230 = arith.constant 0 : index
    %c0_231 = arith.constant 0 : index
    %c2_232 = arith.constant 2 : index
    %175 = vector.load %arg17[%c0_230, %c0_231, %c2_232] : memref<8x8x148xbf16, #tpu.memory_space<vmem>>, vector<8x8x96xbf16>
    %c0_233 = arith.constant 0 : index
    %c16_234 = arith.constant 16 : index
    %c0_235 = arith.constant 0 : index
    %176 = vector.load %arg18[%c0_233, %c16_234, %c0_235] : memref<8x200x96xbf16, #tpu.memory_space<vmem>>, vector<8x8x96xbf16>
    tpu.vector_store %arg18[%c0_233, %c16_234, %c0_235], %175 {strides = array<i32>} : memref<8x200x96xbf16, #tpu.memory_space<vmem>>, vector<8x8x96xbf16>,
    %c0_236 = arith.constant 0 : index
    %c0_237 = arith.constant 0 : index
    %c3_238 = arith.constant 3 : index
    %177 = vector.load %arg17[%c0_236, %c0_237, %c3_238] : memref<8x8x148xbf16, #tpu.memory_space<vmem>>, vector<8x8x96xbf16>
    %c0_239 = arith.constant 0 : index
    %c24_240 = arith.constant 24 : index
    %c0_241 = arith.constant 0 : index
    %178 = vector.load %arg18[%c0_239, %c24_240, %c0_241] : memref<8x200x96xbf16, #tpu.memory_space<vmem>>, vector<8x8x96xbf16>
    tpu.vector_store %arg18[%c0_239, %c24_240, %c0_241], %177 {strides = array<i32>} : memref<8x200x96xbf16, #tpu.memory_space<vmem>>, vector<8x8x96xbf16>,
    %c0_242 = arith.constant 0 : index
    %c0_243 = arith.constant 0 : index
    %c4_244 = arith.constant 4 : index
    %179 = vector.load %arg17[%c0_242, %c0_243, %c4_244] : memref<8x8x148xbf16, #tpu.memory_space<vmem>>, vector<8x8x96xbf16>
    %c0_245 = arith.constant 0 : index
    %c32_246 = arith.constant 32 : index
    %c0_247 = arith.constant 0 : index
    %180 = vector.load %arg18[%c0_245, %c32_246, %c0_247] : memref<8x200x96xbf16, #tpu.memory_space<vmem>>, vector<8x8x96xbf16>
    tpu.vector_store %arg18[%c0_245, %c32_246, %c0_247], %179 {strides = array<i32>} : memref<8x200x96xbf16, #tpu.memory_space<vmem>>, vector<8x8x96xbf16>,
    %c0_248 = arith.constant 0 : index
    %c0_249 = arith.constant 0 : index
    %c12_250 = arith.constant 12 : index
    %181 = vector.load %arg17[%c0_248, %c0_249, %c12_250] : memref<8x8x148xbf16, #tpu.memory_space<vmem>>, vector<8x8x96xbf16>
    %c0_251 = arith.constant 0 : index
    %c40 = arith.constant 40 : index
    %c0_252 = arith.constant 0 : index
    %182 = vector.load %arg18[%c0_251, %c40, %c0_252] : memref<8x200x96xbf16, #tpu.memory_space<vmem>>, vector<8x8x96xbf16>
    tpu.vector_store %arg18[%c0_251, %c40, %c0_252], %181 {strides = array<i32>} : memref<8x200x96xbf16, #tpu.memory_space<vmem>>, vector<8x8x96xbf16>,
    %c0_253 = arith.constant 0 : index
    %c0_254 = arith.constant 0 : index
    %c13_255 = arith.constant 13 : index
    %183 = vector.load %arg17[%c0_253, %c0_254, %c13_255] : memref<8x8x148xbf16, #tpu.memory_space<vmem>>, vector<8x8x96xbf16>
    %c0_256 = arith.constant 0 : index
    %c48 = arith.constant 48 : index
    %c0_257 = arith.constant 0 : index
    %184 = vector.load %arg18[%c0_256, %c48, %c0_257] : memref<8x200x96xbf16, #tpu.memory_space<vmem>>, vector<8x8x96xbf16>
    tpu.vector_store %arg18[%c0_256, %c48, %c0_257], %183 {strides = array<i32>} : memref<8x200x96xbf16, #tpu.memory_space<vmem>>, vector<8x8x96xbf16>,
    %c0_258 = arith.constant 0 : index
    %c0_259 = arith.constant 0 : index
    %c14_260 = arith.constant 14 : index
    %185 = vector.load %arg17[%c0_258, %c0_259, %c14_260] : memref<8x8x148xbf16, #tpu.memory_space<vmem>>, vector<8x8x96xbf16>
    %c0_261 = arith.constant 0 : index
    %c56_262 = arith.constant 56 : index
    %c0_263 = arith.constant 0 : index
    %186 = vector.load %arg18[%c0_261, %c56_262, %c0_263] : memref<8x200x96xbf16, #tpu.memory_space<vmem>>, vector<8x8x96xbf16>
    tpu.vector_store %arg18[%c0_261, %c56_262, %c0_263], %185 {strides = array<i32>} : memref<8x200x96xbf16, #tpu.memory_space<vmem>>, vector<8x8x96xbf16>,
    %c0_264 = arith.constant 0 : index
    %c0_265 = arith.constant 0 : index
    %c15_266 = arith.constant 15 : index
    %187 = vector.load %arg17[%c0_264, %c0_265, %c15_266] : memref<8x8x148xbf16, #tpu.memory_space<vmem>>, vector<8x8x96xbf16>
    %c0_267 = arith.constant 0 : index
    %c64 = arith.constant 64 : index
    %c0_268 = arith.constant 0 : index
    %188 = vector.load %arg18[%c0_267, %c64, %c0_268] : memref<8x200x96xbf16, #tpu.memory_space<vmem>>, vector<8x8x96xbf16>
    tpu.vector_store %arg18[%c0_267, %c64, %c0_268], %187 {strides = array<i32>} : memref<8x200x96xbf16, #tpu.memory_space<vmem>>, vector<8x8x96xbf16>,
    %c0_269 = arith.constant 0 : index
    %c0_270 = arith.constant 0 : index
    %c16_271 = arith.constant 16 : index
    %189 = vector.load %arg17[%c0_269, %c0_270, %c16_271] : memref<8x8x148xbf16, #tpu.memory_space<vmem>>, vector<8x8x96xbf16>
    %c0_272 = arith.constant 0 : index
    %c72 = arith.constant 72 : index
    %c0_273 = arith.constant 0 : index
    %190 = vector.load %arg18[%c0_272, %c72, %c0_273] : memref<8x200x96xbf16, #tpu.memory_space<vmem>>, vector<8x8x96xbf16>
    tpu.vector_store %arg18[%c0_272, %c72, %c0_273], %189 {strides = array<i32>} : memref<8x200x96xbf16, #tpu.memory_space<vmem>>, vector<8x8x96xbf16>,
    %c0_274 = arith.constant 0 : index
    %c0_275 = arith.constant 0 : index
    %c24_276 = arith.constant 24 : index
    %191 = vector.load %arg17[%c0_274, %c0_275, %c24_276] : memref<8x8x148xbf16, #tpu.memory_space<vmem>>, vector<8x8x96xbf16>
    %c0_277 = arith.constant 0 : index
    %c80 = arith.constant 80 : index
    %c0_278 = arith.constant 0 : index
    %192 = vector.load %arg18[%c0_277, %c80, %c0_278] : memref<8x200x96xbf16, #tpu.memory_space<vmem>>, vector<8x8x96xbf16>
    tpu.vector_store %arg18[%c0_277, %c80, %c0_278], %191 {strides = array<i32>} : memref<8x200x96xbf16, #tpu.memory_space<vmem>>, vector<8x8x96xbf16>,
    %c0_279 = arith.constant 0 : index
    %c0_280 = arith.constant 0 : index
    %c25 = arith.constant 25 : index
    %193 = vector.load %arg17[%c0_279, %c0_280, %c25] : memref<8x8x148xbf16, #tpu.memory_space<vmem>>, vector<8x8x96xbf16>
    %c0_281 = arith.constant 0 : index
    %c88_282 = arith.constant 88 : index
    %c0_283 = arith.constant 0 : index
    %194 = vector.load %arg18[%c0_281, %c88_282, %c0_283] : memref<8x200x96xbf16, #tpu.memory_space<vmem>>, vector<8x8x96xbf16>
    tpu.vector_store %arg18[%c0_281, %c88_282, %c0_283], %193 {strides = array<i32>} : memref<8x200x96xbf16, #tpu.memory_space<vmem>>, vector<8x8x96xbf16>,
    %c0_284 = arith.constant 0 : index
    %c0_285 = arith.constant 0 : index
    %c26 = arith.constant 26 : index
    %195 = vector.load %arg17[%c0_284, %c0_285, %c26] : memref<8x8x148xbf16, #tpu.memory_space<vmem>>, vector<8x8x96xbf16>
    %c0_286 = arith.constant 0 : index
    %c96 = arith.constant 96 : index
    %c0_287 = arith.constant 0 : index
    %196 = vector.load %arg18[%c0_286, %c96, %c0_287] : memref<8x200x96xbf16, #tpu.memory_space<vmem>>, vector<8x8x96xbf16>
    tpu.vector_store %arg18[%c0_286, %c96, %c0_287], %195 {strides = array<i32>} : memref<8x200x96xbf16, #tpu.memory_space<vmem>>, vector<8x8x96xbf16>,
    %c0_288 = arith.constant 0 : index
    %c0_289 = arith.constant 0 : index
    %c27 = arith.constant 27 : index
    %197 = vector.load %arg17[%c0_288, %c0_289, %c27] : memref<8x8x148xbf16, #tpu.memory_space<vmem>>, vector<8x8x96xbf16>
    %c0_290 = arith.constant 0 : index
    %c104 = arith.constant 104 : index
    %c0_291 = arith.constant 0 : index
    %198 = vector.load %arg18[%c0_290, %c104, %c0_291] : memref<8x200x96xbf16, #tpu.memory_space<vmem>>, vector<8x8x96xbf16>
    tpu.vector_store %arg18[%c0_290, %c104, %c0_291], %197 {strides = array<i32>} : memref<8x200x96xbf16, #tpu.memory_space<vmem>>, vector<8x8x96xbf16>,
    %c0_292 = arith.constant 0 : index
    %c0_293 = arith.constant 0 : index
    %c28_294 = arith.constant 28 : index
    %199 = vector.load %arg17[%c0_292, %c0_293, %c28_294] : memref<8x8x148xbf16, #tpu.memory_space<vmem>>, vector<8x8x96xbf16>
    %c0_295 = arith.constant 0 : index
    %c112_296 = arith.constant 112 : index
    %c0_297 = arith.constant 0 : index
    %200 = vector.load %arg18[%c0_295, %c112_296, %c0_297] : memref<8x200x96xbf16, #tpu.memory_space<vmem>>, vector<8x8x96xbf16>
    tpu.vector_store %arg18[%c0_295, %c112_296, %c0_297], %199 {strides = array<i32>} : memref<8x200x96xbf16, #tpu.memory_space<vmem>>, vector<8x8x96xbf16>,
    %c0_298 = arith.constant 0 : index
    %c0_299 = arith.constant 0 : index
    %c36 = arith.constant 36 : index
    %201 = vector.load %arg17[%c0_298, %c0_299, %c36] : memref<8x8x148xbf16, #tpu.memory_space<vmem>>, vector<8x8x96xbf16>
    %c0_300 = arith.constant 0 : index
    %c120 = arith.constant 120 : index
    %c0_301 = arith.constant 0 : index
    %202 = vector.load %arg18[%c0_300, %c120, %c0_301] : memref<8x200x96xbf16, #tpu.memory_space<vmem>>, vector<8x8x96xbf16>
    tpu.vector_store %arg18[%c0_300, %c120, %c0_301], %201 {strides = array<i32>} : memref<8x200x96xbf16, #tpu.memory_space<vmem>>, vector<8x8x96xbf16>,
    %c0_302 = arith.constant 0 : index
    %c0_303 = arith.constant 0 : index
    %c37 = arith.constant 37 : index
    %203 = vector.load %arg17[%c0_302, %c0_303, %c37] : memref<8x8x148xbf16, #tpu.memory_space<vmem>>, vector<8x8x96xbf16>
    %c0_304 = arith.constant 0 : index
    %c128 = arith.constant 128 : index
    %c0_305 = arith.constant 0 : index
    %204 = vector.load %arg18[%c0_304, %c128, %c0_305] : memref<8x200x96xbf16, #tpu.memory_space<vmem>>, vector<8x8x96xbf16>
    tpu.vector_store %arg18[%c0_304, %c128, %c0_305], %203 {strides = array<i32>} : memref<8x200x96xbf16, #tpu.memory_space<vmem>>, vector<8x8x96xbf16>,
    %c0_306 = arith.constant 0 : index
    %c0_307 = arith.constant 0 : index
    %c38 = arith.constant 38 : index
    %205 = vector.load %arg17[%c0_306, %c0_307, %c38] : memref<8x8x148xbf16, #tpu.memory_space<vmem>>, vector<8x8x96xbf16>
    %c0_308 = arith.constant 0 : index
    %c136 = arith.constant 136 : index
    %c0_309 = arith.constant 0 : index
    %206 = vector.load %arg18[%c0_308, %c136, %c0_309] : memref<8x200x96xbf16, #tpu.memory_space<vmem>>, vector<8x8x96xbf16>
    tpu.vector_store %arg18[%c0_308, %c136, %c0_309], %205 {strides = array<i32>} : memref<8x200x96xbf16, #tpu.memory_space<vmem>>, vector<8x8x96xbf16>,
    %c0_310 = arith.constant 0 : index
    %c0_311 = arith.constant 0 : index
    %c39 = arith.constant 39 : index
    %207 = vector.load %arg17[%c0_310, %c0_311, %c39] : memref<8x8x148xbf16, #tpu.memory_space<vmem>>, vector<8x8x96xbf16>
    %c0_312 = arith.constant 0 : index
    %c144 = arith.constant 144 : index
    %c0_313 = arith.constant 0 : index
    %208 = vector.load %arg18[%c0_312, %c144, %c0_313] : memref<8x200x96xbf16, #tpu.memory_space<vmem>>, vector<8x8x96xbf16>
    tpu.vector_store %arg18[%c0_312, %c144, %c0_313], %207 {strides = array<i32>} : memref<8x200x96xbf16, #tpu.memory_space<vmem>>, vector<8x8x96xbf16>,
    %c0_314 = arith.constant 0 : index
    %c0_315 = arith.constant 0 : index
    %c40_316 = arith.constant 40 : index
    %209 = vector.load %arg17[%c0_314, %c0_315, %c40_316] : memref<8x8x148xbf16, #tpu.memory_space<vmem>>, vector<8x8x96xbf16>
    %c0_317 = arith.constant 0 : index
    %c152 = arith.constant 152 : index
    %c0_318 = arith.constant 0 : index
    %210 = vector.load %arg18[%c0_317, %c152, %c0_318] : memref<8x200x96xbf16, #tpu.memory_space<vmem>>, vector<8x8x96xbf16>
    tpu.vector_store %arg18[%c0_317, %c152, %c0_318], %209 {strides = array<i32>} : memref<8x200x96xbf16, #tpu.memory_space<vmem>>, vector<8x8x96xbf16>,
    %c0_319 = arith.constant 0 : index
    %c0_320 = arith.constant 0 : index
    %c48_321 = arith.constant 48 : index
    %211 = vector.load %arg17[%c0_319, %c0_320, %c48_321] : memref<8x8x148xbf16, #tpu.memory_space<vmem>>, vector<8x8x96xbf16>
    %c0_322 = arith.constant 0 : index
    %c160 = arith.constant 160 : index
    %c0_323 = arith.constant 0 : index
    %212 = vector.load %arg18[%c0_322, %c160, %c0_323] : memref<8x200x96xbf16, #tpu.memory_space<vmem>>, vector<8x8x96xbf16>
    tpu.vector_store %arg18[%c0_322, %c160, %c0_323], %211 {strides = array<i32>} : memref<8x200x96xbf16, #tpu.memory_space<vmem>>, vector<8x8x96xbf16>,
    %c0_324 = arith.constant 0 : index
    %c0_325 = arith.constant 0 : index
    %c49 = arith.constant 49 : index
    %213 = vector.load %arg17[%c0_324, %c0_325, %c49] : memref<8x8x148xbf16, #tpu.memory_space<vmem>>, vector<8x8x96xbf16>
    %c0_326 = arith.constant 0 : index
    %c168 = arith.constant 168 : index
    %c0_327 = arith.constant 0 : index
    %214 = vector.load %arg18[%c0_326, %c168, %c0_327] : memref<8x200x96xbf16, #tpu.memory_space<vmem>>, vector<8x8x96xbf16>
    tpu.vector_store %arg18[%c0_326, %c168, %c0_327], %213 {strides = array<i32>} : memref<8x200x96xbf16, #tpu.memory_space<vmem>>, vector<8x8x96xbf16>,
    %c0_328 = arith.constant 0 : index
    %c0_329 = arith.constant 0 : index
    %c50 = arith.constant 50 : index
    %215 = vector.load %arg17[%c0_328, %c0_329, %c50] : memref<8x8x148xbf16, #tpu.memory_space<vmem>>, vector<8x8x96xbf16>
    %c0_330 = arith.constant 0 : index
    %c176 = arith.constant 176 : index
    %c0_331 = arith.constant 0 : index
    %216 = vector.load %arg18[%c0_330, %c176, %c0_331] : memref<8x200x96xbf16, #tpu.memory_space<vmem>>, vector<8x8x96xbf16>
    tpu.vector_store %arg18[%c0_330, %c176, %c0_331], %215 {strides = array<i32>} : memref<8x200x96xbf16, #tpu.memory_space<vmem>>, vector<8x8x96xbf16>,
    %c0_332 = arith.constant 0 : index
    %c0_333 = arith.constant 0 : index
    %c51 = arith.constant 51 : index
    %217 = vector.load %arg17[%c0_332, %c0_333, %c51] : memref<8x8x148xbf16, #tpu.memory_space<vmem>>, vector<8x8x96xbf16>
    %c0_334 = arith.constant 0 : index
    %c184 = arith.constant 184 : index
    %c0_335 = arith.constant 0 : index
    %218 = vector.load %arg18[%c0_334, %c184, %c0_335] : memref<8x200x96xbf16, #tpu.memory_space<vmem>>, vector<8x8x96xbf16>
    tpu.vector_store %arg18[%c0_334, %c184, %c0_335], %217 {strides = array<i32>} : memref<8x200x96xbf16, #tpu.memory_space<vmem>>, vector<8x8x96xbf16>,
    %c0_336 = arith.constant 0 : index
    %c0_337 = arith.constant 0 : index
    %c52 = arith.constant 52 : index
    %219 = vector.load %arg17[%c0_336, %c0_337, %c52] : memref<8x8x148xbf16, #tpu.memory_space<vmem>>, vector<8x8x96xbf16>
    %c0_338 = arith.constant 0 : index
    %c192 = arith.constant 192 : index
    %c0_339 = arith.constant 0 : index
    %220 = vector.load %arg18[%c0_338, %c192, %c0_339] : memref<8x200x96xbf16, #tpu.memory_space<vmem>>, vector<8x8x96xbf16>
    tpu.vector_store %arg18[%c0_338, %c192, %c0_339], %219 {strides = array<i32>} : memref<8x200x96xbf16, #tpu.memory_space<vmem>>, vector<8x8x96xbf16>,
    %c0_340 = arith.constant 0 : index
    %c0_341 = arith.constant 0 : index
    %221 = vector.load %arg5[%c0_340, %c0_341] : memref<16x200xbf16, #tpu.memory_space<vmem>>, vector<16x200xbf16>
    %c0_342 = arith.constant 0 : index
    %c0_343 = arith.constant 0 : index
    %c0_344 = arith.constant 0 : index
    %222 = vector.load %arg18[%c0_342, %c0_343, %c0_344] : memref<8x200x96xbf16, #tpu.memory_space<vmem>>, vector<1x200x96xbf16>
    %223 = vector.shape_cast %222 : vector<1x200x96xbf16> to vector<200x96xbf16>
    %cst_345 = arith.constant dense<0.000000e+00> : vector<16x96xf32>
    %224 = tpu.matmul %221, %223, %cst_345 {dimension_numbers = #tpu.dot_dimension_numbers<[1], [0], [0], [1], [0, 0, 1, 1], [], []>} : vector<16x200xbf16>, vector<200x96xbf16>, vector<16x96xf32> -> vector<16x96xf32>
    %c0_346 = arith.constant 0 : index
    %c0_347 = arith.constant 0 : index
    %225 = vector.load %arg6[%c0_346, %c0_347] : memref<16x1xf32, #tpu.memory_space<vmem>>, vector<16x1xf32>
    %226 = vector.broadcast %225 : vector<16x1xf32> to vector<16x96xf32>
    %227 = arith.addf %224, %226 : vector<16x96xf32>
    %cst_348 = arith.constant 0.000000e+00 : f32
    %228 = vector.broadcast %cst_348 : f32 to vector<16x96xf32>
    %229 = arith.maximumf %227, %228 : vector<16x96xf32>
    %230 = arith.truncf %229 : vector<16x96xf32> to vector<16x96xbf16>
    %c0_349 = arith.constant 0 : index
    %c0_350 = arith.constant 0 : index
    %c0_351 = arith.constant 0 : index
    %231 = vector.load %arg19[%c0_349, %c0_350, %c0_351] : memref<8x16x96xbf16, #tpu.memory_space<vmem>>, vector<1x16x96xbf16>
    %232 = vector.shape_cast %231 : vector<1x16x96xbf16> to vector<16x96xbf16>
    %233 = vector.shape_cast %230 : vector<16x96xbf16> to vector<1x16x96xbf16>
    tpu.vector_store %arg19[%c0_349, %c0_350, %c0_351], %233 {strides = array<i32>} : memref<8x16x96xbf16, #tpu.memory_space<vmem>>, vector<1x16x96xbf16>,
    %c0_352 = arith.constant 0 : index
    %c0_353 = arith.constant 0 : index
    %234 = vector.load %arg5[%c0_352, %c0_353] : memref<16x200xbf16, #tpu.memory_space<vmem>>, vector<16x200xbf16>
    %c1_354 = arith.constant 1 : index
    %c0_355 = arith.constant 0 : index
    %c0_356 = arith.constant 0 : index
    %235 = vector.load %arg18[%c1_354, %c0_355, %c0_356] : memref<8x200x96xbf16, #tpu.memory_space<vmem>>, vector<1x200x96xbf16>
    %236 = vector.shape_cast %235 : vector<1x200x96xbf16> to vector<200x96xbf16>
    %cst_357 = arith.constant dense<0.000000e+00> : vector<16x96xf32>
    %237 = tpu.matmul %234, %236, %cst_357 {dimension_numbers = #tpu.dot_dimension_numbers<[1], [0], [0], [1], [0, 0, 1, 1], [], []>} : vector<16x200xbf16>, vector<200x96xbf16>, vector<16x96xf32> -> vector<16x96xf32>
    %c0_358 = arith.constant 0 : index
    %c0_359 = arith.constant 0 : index
    %238 = vector.load %arg6[%c0_358, %c0_359] : memref<16x1xf32, #tpu.memory_space<vmem>>, vector<16x1xf32>
    %239 = vector.broadcast %238 : vector<16x1xf32> to vector<16x96xf32>
    %240 = arith.addf %237, %239 : vector<16x96xf32>
    %cst_360 = arith.constant 0.000000e+00 : f32
    %241 = vector.broadcast %cst_360 : f32 to vector<16x96xf32>
    %242 = arith.maximumf %240, %241 : vector<16x96xf32>
    %243 = arith.truncf %242 : vector<16x96xf32> to vector<16x96xbf16>
    %c1_361 = arith.constant 1 : index
    %c0_362 = arith.constant 0 : index
    %c0_363 = arith.constant 0 : index
    %244 = vector.load %arg19[%c1_361, %c0_362, %c0_363] : memref<8x16x96xbf16, #tpu.memory_space<vmem>>, vector<1x16x96xbf16>
    %245 = vector.shape_cast %244 : vector<1x16x96xbf16> to vector<16x96xbf16>
    %246 = vector.shape_cast %243 : vector<16x96xbf16> to vector<1x16x96xbf16>
    tpu.vector_store %arg19[%c1_361, %c0_362, %c0_363], %246 {strides = array<i32>} : memref<8x16x96xbf16, #tpu.memory_space<vmem>>, vector<1x16x96xbf16>,
    %c0_364 = arith.constant 0 : index
    %c0_365 = arith.constant 0 : index
    %247 = vector.load %arg5[%c0_364, %c0_365] : memref<16x200xbf16, #tpu.memory_space<vmem>>, vector<16x200xbf16>
    %c2_366 = arith.constant 2 : index
    %c0_367 = arith.constant 0 : index
    %c0_368 = arith.constant 0 : index
    %248 = vector.load %arg18[%c2_366, %c0_367, %c0_368] : memref<8x200x96xbf16, #tpu.memory_space<vmem>>, vector<1x200x96xbf16>
    %249 = vector.shape_cast %248 : vector<1x200x96xbf16> to vector<200x96xbf16>
    %cst_369 = arith.constant dense<0.000000e+00> : vector<16x96xf32>
    %250 = tpu.matmul %247, %249, %cst_369 {dimension_numbers = #tpu.dot_dimension_numbers<[1], [0], [0], [1], [0, 0, 1, 1], [], []>} : vector<16x200xbf16>, vector<200x96xbf16>, vector<16x96xf32> -> vector<16x96xf32>
    %c0_370 = arith.constant 0 : index
    %c0_371 = arith.constant 0 : index
    %251 = vector.load %arg6[%c0_370, %c0_371] : memref<16x1xf32, #tpu.memory_space<vmem>>, vector<16x1xf32>
    %252 = vector.broadcast %251 : vector<16x1xf32> to vector<16x96xf32>
    %253 = arith.addf %250, %252 : vector<16x96xf32>
    %cst_372 = arith.constant 0.000000e+00 : f32
    %254 = vector.broadcast %cst_372 : f32 to vector<16x96xf32>
    %255 = arith.maximumf %253, %254 : vector<16x96xf32>
    %256 = arith.truncf %255 : vector<16x96xf32> to vector<16x96xbf16>
    %c2_373 = arith.constant 2 : index
    %c0_374 = arith.constant 0 : index
    %c0_375 = arith.constant 0 : index
    %257 = vector.load %arg19[%c2_373, %c0_374, %c0_375] : memref<8x16x96xbf16, #tpu.memory_space<vmem>>, vector<1x16x96xbf16>
    %258 = vector.shape_cast %257 : vector<1x16x96xbf16> to vector<16x96xbf16>
    %259 = vector.shape_cast %256 : vector<16x96xbf16> to vector<1x16x96xbf16>
    tpu.vector_store %arg19[%c2_373, %c0_374, %c0_375], %259 {strides = array<i32>} : memref<8x16x96xbf16, #tpu.memory_space<vmem>>, vector<1x16x96xbf16>,
    %c0_376 = arith.constant 0 : index
    %c0_377 = arith.constant 0 : index
    %260 = vector.load %arg5[%c0_376, %c0_377] : memref<16x200xbf16, #tpu.memory_space<vmem>>, vector<16x200xbf16>
    %c3_378 = arith.constant 3 : index
    %c0_379 = arith.constant 0 : index
    %c0_380 = arith.constant 0 : index
    %261 = vector.load %arg18[%c3_378, %c0_379, %c0_380] : memref<8x200x96xbf16, #tpu.memory_space<vmem>>, vector<1x200x96xbf16>
    %262 = vector.shape_cast %261 : vector<1x200x96xbf16> to vector<200x96xbf16>
    %cst_381 = arith.constant dense<0.000000e+00> : vector<16x96xf32>
    %263 = tpu.matmul %260, %262, %cst_381 {dimension_numbers = #tpu.dot_dimension_numbers<[1], [0], [0], [1], [0, 0, 1, 1], [], []>} : vector<16x200xbf16>, vector<200x96xbf16>, vector<16x96xf32> -> vector<16x96xf32>
    %c0_382 = arith.constant 0 : index
    %c0_383 = arith.constant 0 : index
    %264 = vector.load %arg6[%c0_382, %c0_383] : memref<16x1xf32, #tpu.memory_space<vmem>>, vector<16x1xf32>
    %265 = vector.broadcast %264 : vector<16x1xf32> to vector<16x96xf32>
    %266 = arith.addf %263, %265 : vector<16x96xf32>
    %cst_384 = arith.constant 0.000000e+00 : f32
    %267 = vector.broadcast %cst_384 : f32 to vector<16x96xf32>
    %268 = arith.maximumf %266, %267 : vector<16x96xf32>
    %269 = arith.truncf %268 : vector<16x96xf32> to vector<16x96xbf16>
    %c3_385 = arith.constant 3 : index
    %c0_386 = arith.constant 0 : index
    %c0_387 = arith.constant 0 : index
    %270 = vector.load %arg19[%c3_385, %c0_386, %c0_387] : memref<8x16x96xbf16, #tpu.memory_space<vmem>>, vector<1x16x96xbf16>
    %271 = vector.shape_cast %270 : vector<1x16x96xbf16> to vector<16x96xbf16>
    %272 = vector.shape_cast %269 : vector<16x96xbf16> to vector<1x16x96xbf16>
    tpu.vector_store %arg19[%c3_385, %c0_386, %c0_387], %272 {strides = array<i32>} : memref<8x16x96xbf16, #tpu.memory_space<vmem>>, vector<1x16x96xbf16>,
    %c0_388 = arith.constant 0 : index
    %c0_389 = arith.constant 0 : index
    %273 = vector.load %arg5[%c0_388, %c0_389] : memref<16x200xbf16, #tpu.memory_space<vmem>>, vector<16x200xbf16>
    %c4_390 = arith.constant 4 : index
    %c0_391 = arith.constant 0 : index
    %c0_392 = arith.constant 0 : index
    %274 = vector.load %arg18[%c4_390, %c0_391, %c0_392] : memref<8x200x96xbf16, #tpu.memory_space<vmem>>, vector<1x200x96xbf16>
    %275 = vector.shape_cast %274 : vector<1x200x96xbf16> to vector<200x96xbf16>
    %cst_393 = arith.constant dense<0.000000e+00> : vector<16x96xf32>
    %276 = tpu.matmul %273, %275, %cst_393 {dimension_numbers = #tpu.dot_dimension_numbers<[1], [0], [0], [1], [0, 0, 1, 1], [], []>} : vector<16x200xbf16>, vector<200x96xbf16>, vector<16x96xf32> -> vector<16x96xf32>
    %c0_394 = arith.constant 0 : index
    %c0_395 = arith.constant 0 : index
    %277 = vector.load %arg6[%c0_394, %c0_395] : memref<16x1xf32, #tpu.memory_space<vmem>>, vector<16x1xf32>
    %278 = vector.broadcast %277 : vector<16x1xf32> to vector<16x96xf32>
    %279 = arith.addf %276, %278 : vector<16x96xf32>
    %cst_396 = arith.constant 0.000000e+00 : f32
    %280 = vector.broadcast %cst_396 : f32 to vector<16x96xf32>
    %281 = arith.maximumf %279, %280 : vector<16x96xf32>
    %282 = arith.truncf %281 : vector<16x96xf32> to vector<16x96xbf16>
    %c4_397 = arith.constant 4 : index
    %c0_398 = arith.constant 0 : index
    %c0_399 = arith.constant 0 : index
    %283 = vector.load %arg19[%c4_397, %c0_398, %c0_399] : memref<8x16x96xbf16, #tpu.memory_space<vmem>>, vector<1x16x96xbf16>
    %284 = vector.shape_cast %283 : vector<1x16x96xbf16> to vector<16x96xbf16>
    %285 = vector.shape_cast %282 : vector<16x96xbf16> to vector<1x16x96xbf16>
    tpu.vector_store %arg19[%c4_397, %c0_398, %c0_399], %285 {strides = array<i32>} : memref<8x16x96xbf16, #tpu.memory_space<vmem>>, vector<1x16x96xbf16>,
    %c0_400 = arith.constant 0 : index
    %c0_401 = arith.constant 0 : index
    %286 = vector.load %arg5[%c0_400, %c0_401] : memref<16x200xbf16, #tpu.memory_space<vmem>>, vector<16x200xbf16>
    %c5_402 = arith.constant 5 : index
    %c0_403 = arith.constant 0 : index
    %c0_404 = arith.constant 0 : index
    %287 = vector.load %arg18[%c5_402, %c0_403, %c0_404] : memref<8x200x96xbf16, #tpu.memory_space<vmem>>, vector<1x200x96xbf16>
    %288 = vector.shape_cast %287 : vector<1x200x96xbf16> to vector<200x96xbf16>
    %cst_405 = arith.constant dense<0.000000e+00> : vector<16x96xf32>
    %289 = tpu.matmul %286, %288, %cst_405 {dimension_numbers = #tpu.dot_dimension_numbers<[1], [0], [0], [1], [0, 0, 1, 1], [], []>} : vector<16x200xbf16>, vector<200x96xbf16>, vector<16x96xf32> -> vector<16x96xf32>
    %c0_406 = arith.constant 0 : index
    %c0_407 = arith.constant 0 : index
    %290 = vector.load %arg6[%c0_406, %c0_407] : memref<16x1xf32, #tpu.memory_space<vmem>>, vector<16x1xf32>
    %291 = vector.broadcast %290 : vector<16x1xf32> to vector<16x96xf32>
    %292 = arith.addf %289, %291 : vector<16x96xf32>
    %cst_408 = arith.constant 0.000000e+00 : f32
    %293 = vector.broadcast %cst_408 : f32 to vector<16x96xf32>
    %294 = arith.maximumf %292, %293 : vector<16x96xf32>
    %295 = arith.truncf %294 : vector<16x96xf32> to vector<16x96xbf16>
    %c5_409 = arith.constant 5 : index
    %c0_410 = arith.constant 0 : index
    %c0_411 = arith.constant 0 : index
    %296 = vector.load %arg19[%c5_409, %c0_410, %c0_411] : memref<8x16x96xbf16, #tpu.memory_space<vmem>>, vector<1x16x96xbf16>
    %297 = vector.shape_cast %296 : vector<1x16x96xbf16> to vector<16x96xbf16>
    %298 = vector.shape_cast %295 : vector<16x96xbf16> to vector<1x16x96xbf16>
    tpu.vector_store %arg19[%c5_409, %c0_410, %c0_411], %298 {strides = array<i32>} : memref<8x16x96xbf16, #tpu.memory_space<vmem>>, vector<1x16x96xbf16>,
    %c0_412 = arith.constant 0 : index
    %c0_413 = arith.constant 0 : index
    %299 = vector.load %arg5[%c0_412, %c0_413] : memref<16x200xbf16, #tpu.memory_space<vmem>>, vector<16x200xbf16>
    %c6_414 = arith.constant 6 : index
    %c0_415 = arith.constant 0 : index
    %c0_416 = arith.constant 0 : index
    %300 = vector.load %arg18[%c6_414, %c0_415, %c0_416] : memref<8x200x96xbf16, #tpu.memory_space<vmem>>, vector<1x200x96xbf16>
    %301 = vector.shape_cast %300 : vector<1x200x96xbf16> to vector<200x96xbf16>
    %cst_417 = arith.constant dense<0.000000e+00> : vector<16x96xf32>
    %302 = tpu.matmul %299, %301, %cst_417 {dimension_numbers = #tpu.dot_dimension_numbers<[1], [0], [0], [1], [0, 0, 1, 1], [], []>} : vector<16x200xbf16>, vector<200x96xbf16>, vector<16x96xf32> -> vector<16x96xf32>
    %c0_418 = arith.constant 0 : index
    %c0_419 = arith.constant 0 : index
    %303 = vector.load %arg6[%c0_418, %c0_419] : memref<16x1xf32, #tpu.memory_space<vmem>>, vector<16x1xf32>
    %304 = vector.broadcast %303 : vector<16x1xf32> to vector<16x96xf32>
    %305 = arith.addf %302, %304 : vector<16x96xf32>
    %cst_420 = arith.constant 0.000000e+00 : f32
    %306 = vector.broadcast %cst_420 : f32 to vector<16x96xf32>
    %307 = arith.maximumf %305, %306 : vector<16x96xf32>
    %308 = arith.truncf %307 : vector<16x96xf32> to vector<16x96xbf16>
    %c6_421 = arith.constant 6 : index
    %c0_422 = arith.constant 0 : index
    %c0_423 = arith.constant 0 : index
    %309 = vector.load %arg19[%c6_421, %c0_422, %c0_423] : memref<8x16x96xbf16, #tpu.memory_space<vmem>>, vector<1x16x96xbf16>
    %310 = vector.shape_cast %309 : vector<1x16x96xbf16> to vector<16x96xbf16>
    %311 = vector.shape_cast %308 : vector<16x96xbf16> to vector<1x16x96xbf16>
    tpu.vector_store %arg19[%c6_421, %c0_422, %c0_423], %311 {strides = array<i32>} : memref<8x16x96xbf16, #tpu.memory_space<vmem>>, vector<1x16x96xbf16>,
    %c0_424 = arith.constant 0 : index
    %c0_425 = arith.constant 0 : index
    %312 = vector.load %arg5[%c0_424, %c0_425] : memref<16x200xbf16, #tpu.memory_space<vmem>>, vector<16x200xbf16>
    %c7_426 = arith.constant 7 : index
    %c0_427 = arith.constant 0 : index
    %c0_428 = arith.constant 0 : index
    %313 = vector.load %arg18[%c7_426, %c0_427, %c0_428] : memref<8x200x96xbf16, #tpu.memory_space<vmem>>, vector<1x200x96xbf16>
    %314 = vector.shape_cast %313 : vector<1x200x96xbf16> to vector<200x96xbf16>
    %cst_429 = arith.constant dense<0.000000e+00> : vector<16x96xf32>
    %315 = tpu.matmul %312, %314, %cst_429 {dimension_numbers = #tpu.dot_dimension_numbers<[1], [0], [0], [1], [0, 0, 1, 1], [], []>} : vector<16x200xbf16>, vector<200x96xbf16>, vector<16x96xf32> -> vector<16x96xf32>
    %c0_430 = arith.constant 0 : index
    %c0_431 = arith.constant 0 : index
    %316 = vector.load %arg6[%c0_430, %c0_431] : memref<16x1xf32, #tpu.memory_space<vmem>>, vector<16x1xf32>
    %317 = vector.broadcast %316 : vector<16x1xf32> to vector<16x96xf32>
    %318 = arith.addf %315, %317 : vector<16x96xf32>
    %cst_432 = arith.constant 0.000000e+00 : f32
    %319 = vector.broadcast %cst_432 : f32 to vector<16x96xf32>
    %320 = arith.maximumf %318, %319 : vector<16x96xf32>
    %321 = arith.truncf %320 : vector<16x96xf32> to vector<16x96xbf16>
    %c7_433 = arith.constant 7 : index
    %c0_434 = arith.constant 0 : index
    %c0_435 = arith.constant 0 : index
    %322 = vector.load %arg19[%c7_433, %c0_434, %c0_435] : memref<8x16x96xbf16, #tpu.memory_space<vmem>>, vector<1x16x96xbf16>
    %323 = vector.shape_cast %322 : vector<1x16x96xbf16> to vector<16x96xbf16>
    %324 = vector.shape_cast %321 : vector<16x96xbf16> to vector<1x16x96xbf16>
    tpu.vector_store %arg19[%c7_433, %c0_434, %c0_435], %324 {strides = array<i32>} : memref<8x16x96xbf16, #tpu.memory_space<vmem>>, vector<1x16x96xbf16>,
    %c0_436 = arith.constant 0 : index
    %c0_437 = arith.constant 0 : index
    %c0_438 = arith.constant 0 : index
    %325 = vector.load %arg19[%c0_436, %c0_437, %c0_438] : memref<8x16x96xbf16, #tpu.memory_space<vmem>>, vector<8x16x96xbf16>
    %326 = vector.extract_strided_slice %325 {offsets = [0, 0, 0], sizes = [8, 16, 95], strides = [1, 1, 1]} : vector<8x16x96xbf16> to vector<8x16x95xbf16>
    %327 = vector.extract_strided_slice %325 {offsets = [0, 0, 1], sizes = [8, 16, 95], strides = [1, 1, 1]} : vector<8x16x96xbf16> to vector<8x16x95xbf16>
    %328 = arith.maximumf %326, %327 : vector<8x16x95xbf16>
    %329 = vector.extract_strided_slice %328 {offsets = [0, 0, 0], sizes = [8, 16, 83], strides = [1, 1, 1]} : vector<8x16x95xbf16> to vector<8x16x83xbf16>
    %330 = vector.extract_strided_slice %328 {offsets = [0, 0, 12], sizes = [8, 16, 83], strides = [1, 1, 1]} : vector<8x16x95xbf16> to vector<8x16x83xbf16>
    %331 = arith.maximumf %329, %330 : vector<8x16x83xbf16>
    %cst_439 = arith.constant 0.000000e+00 : f32
    %332 = vector.broadcast %cst_439 : f32 to vector<8x120xf32>
    %333 = vector.extract_strided_slice %331 {offsets = [0, 0, 0], sizes = [8, 1, 83], strides = [1, 1, 1]} : vector<8x16x83xbf16> to vector<8x1x83xbf16>
    %334 = vector.shape_cast %333 : vector<8x1x83xbf16> to vector<8x83xbf16>
    %c0_440 = arith.constant 0 : index
    %c0_441 = arith.constant 0 : index
    %c0_442 = arith.constant 0 : index
    %335 = vector.load %arg7[%c0_440, %c0_441, %c0_442] : memref<16x83x120xbf16, #tpu.memory_space<vmem>>, vector<1x83x120xbf16>
    %336 = vector.shape_cast %335 : vector<1x83x120xbf16> to vector<83x120xbf16>
    %cst_443 = arith.constant dense<0.000000e+00> : vector<8x120xf32>
    %337 = tpu.matmul %334, %336, %cst_443 {dimension_numbers = #tpu.dot_dimension_numbers<[1], [0], [0], [1], [0, 0, 1, 1], [], []>} : vector<8x83xbf16>, vector<83x120xbf16>, vector<8x120xf32> -> vector<8x120xf32>
    %338 = arith.addf %332, %337 : vector<8x120xf32>
    %339 = vector.extract_strided_slice %331 {offsets = [0, 1, 0], sizes = [8, 1, 83], strides = [1, 1, 1]} : vector<8x16x83xbf16> to vector<8x1x83xbf16>
    %340 = vector.shape_cast %339 : vector<8x1x83xbf16> to vector<8x83xbf16>
    %c1_444 = arith.constant 1 : index
    %c0_445 = arith.constant 0 : index
    %c0_446 = arith.constant 0 : index
    %341 = vector.load %arg7[%c1_444, %c0_445, %c0_446] : memref<16x83x120xbf16, #tpu.memory_space<vmem>>, vector<1x83x120xbf16>
    %342 = vector.shape_cast %341 : vector<1x83x120xbf16> to vector<83x120xbf16>
    %cst_447 = arith.constant dense<0.000000e+00> : vector<8x120xf32>
    %343 = tpu.matmul %340, %342, %cst_447 {dimension_numbers = #tpu.dot_dimension_numbers<[1], [0], [0], [1], [0, 0, 1, 1], [], []>} : vector<8x83xbf16>, vector<83x120xbf16>, vector<8x120xf32> -> vector<8x120xf32>
    %344 = arith.addf %338, %343 : vector<8x120xf32>
    %345 = vector.extract_strided_slice %331 {offsets = [0, 2, 0], sizes = [8, 1, 83], strides = [1, 1, 1]} : vector<8x16x83xbf16> to vector<8x1x83xbf16>
    %346 = vector.shape_cast %345 : vector<8x1x83xbf16> to vector<8x83xbf16>
    %c2_448 = arith.constant 2 : index
    %c0_449 = arith.constant 0 : index
    %c0_450 = arith.constant 0 : index
    %347 = vector.load %arg7[%c2_448, %c0_449, %c0_450] : memref<16x83x120xbf16, #tpu.memory_space<vmem>>, vector<1x83x120xbf16>
    %348 = vector.shape_cast %347 : vector<1x83x120xbf16> to vector<83x120xbf16>
    %cst_451 = arith.constant dense<0.000000e+00> : vector<8x120xf32>
    %349 = tpu.matmul %346, %348, %cst_451 {dimension_numbers = #tpu.dot_dimension_numbers<[1], [0], [0], [1], [0, 0, 1, 1], [], []>} : vector<8x83xbf16>, vector<83x120xbf16>, vector<8x120xf32> -> vector<8x120xf32>
    %350 = arith.addf %344, %349 : vector<8x120xf32>
    %351 = vector.extract_strided_slice %331 {offsets = [0, 3, 0], sizes = [8, 1, 83], strides = [1, 1, 1]} : vector<8x16x83xbf16> to vector<8x1x83xbf16>
    %352 = vector.shape_cast %351 : vector<8x1x83xbf16> to vector<8x83xbf16>
    %c3_452 = arith.constant 3 : index
    %c0_453 = arith.constant 0 : index
    %c0_454 = arith.constant 0 : index
    %353 = vector.load %arg7[%c3_452, %c0_453, %c0_454] : memref<16x83x120xbf16, #tpu.memory_space<vmem>>, vector<1x83x120xbf16>
    %354 = vector.shape_cast %353 : vector<1x83x120xbf16> to vector<83x120xbf16>
    %cst_455 = arith.constant dense<0.000000e+00> : vector<8x120xf32>
    %355 = tpu.matmul %352, %354, %cst_455 {dimension_numbers = #tpu.dot_dimension_numbers<[1], [0], [0], [1], [0, 0, 1, 1], [], []>} : vector<8x83xbf16>, vector<83x120xbf16>, vector<8x120xf32> -> vector<8x120xf32>
    %356 = arith.addf %350, %355 : vector<8x120xf32>
    %357 = vector.extract_strided_slice %331 {offsets = [0, 4, 0], sizes = [8, 1, 83], strides = [1, 1, 1]} : vector<8x16x83xbf16> to vector<8x1x83xbf16>
    %358 = vector.shape_cast %357 : vector<8x1x83xbf16> to vector<8x83xbf16>
    %c4_456 = arith.constant 4 : index
    %c0_457 = arith.constant 0 : index
    %c0_458 = arith.constant 0 : index
    %359 = vector.load %arg7[%c4_456, %c0_457, %c0_458] : memref<16x83x120xbf16, #tpu.memory_space<vmem>>, vector<1x83x120xbf16>
    %360 = vector.shape_cast %359 : vector<1x83x120xbf16> to vector<83x120xbf16>
    %cst_459 = arith.constant dense<0.000000e+00> : vector<8x120xf32>
    %361 = tpu.matmul %358, %360, %cst_459 {dimension_numbers = #tpu.dot_dimension_numbers<[1], [0], [0], [1], [0, 0, 1, 1], [], []>} : vector<8x83xbf16>, vector<83x120xbf16>, vector<8x120xf32> -> vector<8x120xf32>
    %362 = arith.addf %356, %361 : vector<8x120xf32>
    %363 = vector.extract_strided_slice %331 {offsets = [0, 5, 0], sizes = [8, 1, 83], strides = [1, 1, 1]} : vector<8x16x83xbf16> to vector<8x1x83xbf16>
    %364 = vector.shape_cast %363 : vector<8x1x83xbf16> to vector<8x83xbf16>
    %c5_460 = arith.constant 5 : index
    %c0_461 = arith.constant 0 : index
    %c0_462 = arith.constant 0 : index
    %365 = vector.load %arg7[%c5_460, %c0_461, %c0_462] : memref<16x83x120xbf16, #tpu.memory_space<vmem>>, vector<1x83x120xbf16>
    %366 = vector.shape_cast %365 : vector<1x83x120xbf16> to vector<83x120xbf16>
    %cst_463 = arith.constant dense<0.000000e+00> : vector<8x120xf32>
    %367 = tpu.matmul %364, %366, %cst_463 {dimension_numbers = #tpu.dot_dimension_numbers<[1], [0], [0], [1], [0, 0, 1, 1], [], []>} : vector<8x83xbf16>, vector<83x120xbf16>, vector<8x120xf32> -> vector<8x120xf32>
    %368 = arith.addf %362, %367 : vector<8x120xf32>
    %369 = vector.extract_strided_slice %331 {offsets = [0, 6, 0], sizes = [8, 1, 83], strides = [1, 1, 1]} : vector<8x16x83xbf16> to vector<8x1x83xbf16>
    %370 = vector.shape_cast %369 : vector<8x1x83xbf16> to vector<8x83xbf16>
    %c6_464 = arith.constant 6 : index
    %c0_465 = arith.constant 0 : index
    %c0_466 = arith.constant 0 : index
    %371 = vector.load %arg7[%c6_464, %c0_465, %c0_466] : memref<16x83x120xbf16, #tpu.memory_space<vmem>>, vector<1x83x120xbf16>
    %372 = vector.shape_cast %371 : vector<1x83x120xbf16> to vector<83x120xbf16>
    %cst_467 = arith.constant dense<0.000000e+00> : vector<8x120xf32>
    %373 = tpu.matmul %370, %372, %cst_467 {dimension_numbers = #tpu.dot_dimension_numbers<[1], [0], [0], [1], [0, 0, 1, 1], [], []>} : vector<8x83xbf16>, vector<83x120xbf16>, vector<8x120xf32> -> vector<8x120xf32>
    %374 = arith.addf %368, %373 : vector<8x120xf32>
    %375 = vector.extract_strided_slice %331 {offsets = [0, 7, 0], sizes = [8, 1, 83], strides = [1, 1, 1]} : vector<8x16x83xbf16> to vector<8x1x83xbf16>
    %376 = vector.shape_cast %375 : vector<8x1x83xbf16> to vector<8x83xbf16>
    %c7_468 = arith.constant 7 : index
    %c0_469 = arith.constant 0 : index
    %c0_470 = arith.constant 0 : index
    %377 = vector.load %arg7[%c7_468, %c0_469, %c0_470] : memref<16x83x120xbf16, #tpu.memory_space<vmem>>, vector<1x83x120xbf16>
    %378 = vector.shape_cast %377 : vector<1x83x120xbf16> to vector<83x120xbf16>
    %cst_471 = arith.constant dense<0.000000e+00> : vector<8x120xf32>
    %379 = tpu.matmul %376, %378, %cst_471 {dimension_numbers = #tpu.dot_dimension_numbers<[1], [0], [0], [1], [0, 0, 1, 1], [], []>} : vector<8x83xbf16>, vector<83x120xbf16>, vector<8x120xf32> -> vector<8x120xf32>
    %380 = arith.addf %374, %379 : vector<8x120xf32>
    %381 = vector.extract_strided_slice %331 {offsets = [0, 8, 0], sizes = [8, 1, 83], strides = [1, 1, 1]} : vector<8x16x83xbf16> to vector<8x1x83xbf16>
    %382 = vector.shape_cast %381 : vector<8x1x83xbf16> to vector<8x83xbf16>
    %c8_472 = arith.constant 8 : index
    %c0_473 = arith.constant 0 : index
    %c0_474 = arith.constant 0 : index
    %383 = vector.load %arg7[%c8_472, %c0_473, %c0_474] : memref<16x83x120xbf16, #tpu.memory_space<vmem>>, vector<1x83x120xbf16>
    %384 = vector.shape_cast %383 : vector<1x83x120xbf16> to vector<83x120xbf16>
    %cst_475 = arith.constant dense<0.000000e+00> : vector<8x120xf32>
    %385 = tpu.matmul %382, %384, %cst_475 {dimension_numbers = #tpu.dot_dimension_numbers<[1], [0], [0], [1], [0, 0, 1, 1], [], []>} : vector<8x83xbf16>, vector<83x120xbf16>, vector<8x120xf32> -> vector<8x120xf32>
    %386 = arith.addf %380, %385 : vector<8x120xf32>
    %387 = vector.extract_strided_slice %331 {offsets = [0, 9, 0], sizes = [8, 1, 83], strides = [1, 1, 1]} : vector<8x16x83xbf16> to vector<8x1x83xbf16>
    %388 = vector.shape_cast %387 : vector<8x1x83xbf16> to vector<8x83xbf16>
    %c9_476 = arith.constant 9 : index
    %c0_477 = arith.constant 0 : index
    %c0_478 = arith.constant 0 : index
    %389 = vector.load %arg7[%c9_476, %c0_477, %c0_478] : memref<16x83x120xbf16, #tpu.memory_space<vmem>>, vector<1x83x120xbf16>
    %390 = vector.shape_cast %389 : vector<1x83x120xbf16> to vector<83x120xbf16>
    %cst_479 = arith.constant dense<0.000000e+00> : vector<8x120xf32>
    %391 = tpu.matmul %388, %390, %cst_479 {dimension_numbers = #tpu.dot_dimension_numbers<[1], [0], [0], [1], [0, 0, 1, 1], [], []>} : vector<8x83xbf16>, vector<83x120xbf16>, vector<8x120xf32> -> vector<8x120xf32>
    %392 = arith.addf %386, %391 : vector<8x120xf32>
    %393 = vector.extract_strided_slice %331 {offsets = [0, 10, 0], sizes = [8, 1, 83], strides = [1, 1, 1]} : vector<8x16x83xbf16> to vector<8x1x83xbf16>
    %394 = vector.shape_cast %393 : vector<8x1x83xbf16> to vector<8x83xbf16>
    %c10_480 = arith.constant 10 : index
    %c0_481 = arith.constant 0 : index
    %c0_482 = arith.constant 0 : index
    %395 = vector.load %arg7[%c10_480, %c0_481, %c0_482] : memref<16x83x120xbf16, #tpu.memory_space<vmem>>, vector<1x83x120xbf16>
    %396 = vector.shape_cast %395 : vector<1x83x120xbf16> to vector<83x120xbf16>
    %cst_483 = arith.constant dense<0.000000e+00> : vector<8x120xf32>
    %397 = tpu.matmul %394, %396, %cst_483 {dimension_numbers = #tpu.dot_dimension_numbers<[1], [0], [0], [1], [0, 0, 1, 1], [], []>} : vector<8x83xbf16>, vector<83x120xbf16>, vector<8x120xf32> -> vector<8x120xf32>
    %398 = arith.addf %392, %397 : vector<8x120xf32>
    %399 = vector.extract_strided_slice %331 {offsets = [0, 11, 0], sizes = [8, 1, 83], strides = [1, 1, 1]} : vector<8x16x83xbf16> to vector<8x1x83xbf16>
    %400 = vector.shape_cast %399 : vector<8x1x83xbf16> to vector<8x83xbf16>
    %c11_484 = arith.constant 11 : index
    %c0_485 = arith.constant 0 : index
    %c0_486 = arith.constant 0 : index
    %401 = vector.load %arg7[%c11_484, %c0_485, %c0_486] : memref<16x83x120xbf16, #tpu.memory_space<vmem>>, vector<1x83x120xbf16>
    %402 = vector.shape_cast %401 : vector<1x83x120xbf16> to vector<83x120xbf16>
    %cst_487 = arith.constant dense<0.000000e+00> : vector<8x120xf32>
    %403 = tpu.matmul %400, %402, %cst_487 {dimension_numbers = #tpu.dot_dimension_numbers<[1], [0], [0], [1], [0, 0, 1, 1], [], []>} : vector<8x83xbf16>, vector<83x120xbf16>, vector<8x120xf32> -> vector<8x120xf32>
    %404 = arith.addf %398, %403 : vector<8x120xf32>
    %405 = vector.extract_strided_slice %331 {offsets = [0, 12, 0], sizes = [8, 1, 83], strides = [1, 1, 1]} : vector<8x16x83xbf16> to vector<8x1x83xbf16>
    %406 = vector.shape_cast %405 : vector<8x1x83xbf16> to vector<8x83xbf16>
    %c12_488 = arith.constant 12 : index
    %c0_489 = arith.constant 0 : index
    %c0_490 = arith.constant 0 : index
    %407 = vector.load %arg7[%c12_488, %c0_489, %c0_490] : memref<16x83x120xbf16, #tpu.memory_space<vmem>>, vector<1x83x120xbf16>
    %408 = vector.shape_cast %407 : vector<1x83x120xbf16> to vector<83x120xbf16>
    %cst_491 = arith.constant dense<0.000000e+00> : vector<8x120xf32>
    %409 = tpu.matmul %406, %408, %cst_491 {dimension_numbers = #tpu.dot_dimension_numbers<[1], [0], [0], [1], [0, 0, 1, 1], [], []>} : vector<8x83xbf16>, vector<83x120xbf16>, vector<8x120xf32> -> vector<8x120xf32>
    %410 = arith.addf %404, %409 : vector<8x120xf32>
    %411 = vector.extract_strided_slice %331 {offsets = [0, 13, 0], sizes = [8, 1, 83], strides = [1, 1, 1]} : vector<8x16x83xbf16> to vector<8x1x83xbf16>
    %412 = vector.shape_cast %411 : vector<8x1x83xbf16> to vector<8x83xbf16>
    %c13_492 = arith.constant 13 : index
    %c0_493 = arith.constant 0 : index
    %c0_494 = arith.constant 0 : index
    %413 = vector.load %arg7[%c13_492, %c0_493, %c0_494] : memref<16x83x120xbf16, #tpu.memory_space<vmem>>, vector<1x83x120xbf16>
    %414 = vector.shape_cast %413 : vector<1x83x120xbf16> to vector<83x120xbf16>
    %cst_495 = arith.constant dense<0.000000e+00> : vector<8x120xf32>
    %415 = tpu.matmul %412, %414, %cst_495 {dimension_numbers = #tpu.dot_dimension_numbers<[1], [0], [0], [1], [0, 0, 1, 1], [], []>} : vector<8x83xbf16>, vector<83x120xbf16>, vector<8x120xf32> -> vector<8x120xf32>
    %416 = arith.addf %410, %415 : vector<8x120xf32>
    %417 = vector.extract_strided_slice %331 {offsets = [0, 14, 0], sizes = [8, 1, 83], strides = [1, 1, 1]} : vector<8x16x83xbf16> to vector<8x1x83xbf16>
    %418 = vector.shape_cast %417 : vector<8x1x83xbf16> to vector<8x83xbf16>
    %c14_496 = arith.constant 14 : index
    %c0_497 = arith.constant 0 : index
    %c0_498 = arith.constant 0 : index
    %419 = vector.load %arg7[%c14_496, %c0_497, %c0_498] : memref<16x83x120xbf16, #tpu.memory_space<vmem>>, vector<1x83x120xbf16>
    %420 = vector.shape_cast %419 : vector<1x83x120xbf16> to vector<83x120xbf16>
    %cst_499 = arith.constant dense<0.000000e+00> : vector<8x120xf32>
    %421 = tpu.matmul %418, %420, %cst_499 {dimension_numbers = #tpu.dot_dimension_numbers<[1], [0], [0], [1], [0, 0, 1, 1], [], []>} : vector<8x83xbf16>, vector<83x120xbf16>, vector<8x120xf32> -> vector<8x120xf32>
    %422 = arith.addf %416, %421 : vector<8x120xf32>
    %423 = vector.extract_strided_slice %331 {offsets = [0, 15, 0], sizes = [8, 1, 83], strides = [1, 1, 1]} : vector<8x16x83xbf16> to vector<8x1x83xbf16>
    %424 = vector.shape_cast %423 : vector<8x1x83xbf16> to vector<8x83xbf16>
    %c15_500 = arith.constant 15 : index
    %c0_501 = arith.constant 0 : index
    %c0_502 = arith.constant 0 : index
    %425 = vector.load %arg7[%c15_500, %c0_501, %c0_502] : memref<16x83x120xbf16, #tpu.memory_space<vmem>>, vector<1x83x120xbf16>
    %426 = vector.shape_cast %425 : vector<1x83x120xbf16> to vector<83x120xbf16>
    %cst_503 = arith.constant dense<0.000000e+00> : vector<8x120xf32>
    %427 = tpu.matmul %424, %426, %cst_503 {dimension_numbers = #tpu.dot_dimension_numbers<[1], [0], [0], [1], [0, 0, 1, 1], [], []>} : vector<8x83xbf16>, vector<83x120xbf16>, vector<8x120xf32> -> vector<8x120xf32>
    %428 = arith.addf %422, %427 : vector<8x120xf32>
    %c0_504 = arith.constant 0 : index
    %c0_505 = arith.constant 0 : index
    %429 = vector.load %arg8[%c0_504, %c0_505] : memref<1x120xf32, #tpu.memory_space<vmem>>, vector<1x120xf32>
    %430 = vector.broadcast %429 : vector<1x120xf32> to vector<8x120xf32>
    %431 = arith.addf %428, %430 : vector<8x120xf32>
    %cst_506 = arith.constant 0.000000e+00 : f32
    %432 = vector.broadcast %cst_506 : f32 to vector<8x120xf32>
    %433 = arith.maximumf %431, %432 : vector<8x120xf32>
    %434 = arith.truncf %433 : vector<8x120xf32> to vector<8x120xbf16>
    %c0_507 = arith.constant 0 : index
    %c0_508 = arith.constant 0 : index
    %435 = vector.load %arg9[%c0_507, %c0_508] : memref<120x84xbf16, #tpu.memory_space<vmem>>, vector<120x84xbf16>
    %cst_509 = arith.constant dense<0.000000e+00> : vector<8x84xf32>
    %436 = tpu.matmul %434, %435, %cst_509 {dimension_numbers = #tpu.dot_dimension_numbers<[1], [0], [0], [1], [0, 0, 1, 1], [], []>} : vector<8x120xbf16>, vector<120x84xbf16>, vector<8x84xf32> -> vector<8x84xf32>
    %c0_510 = arith.constant 0 : index
    %c0_511 = arith.constant 0 : index
    %437 = vector.load %arg10[%c0_510, %c0_511] : memref<1x84xf32, #tpu.memory_space<vmem>>, vector<1x84xf32>
    %438 = vector.broadcast %437 : vector<1x84xf32> to vector<8x84xf32>
    %439 = arith.addf %436, %438 : vector<8x84xf32>
    %cst_512 = arith.constant 0.000000e+00 : f32
    %440 = vector.broadcast %cst_512 : f32 to vector<8x84xf32>
    %441 = arith.maximumf %439, %440 : vector<8x84xf32>
    %442 = arith.truncf %441 : vector<8x84xf32> to vector<8x84xbf16>
    %c0_513 = arith.constant 0 : index
    %c0_514 = arith.constant 0 : index
    %443 = vector.load %arg11[%c0_513, %c0_514] : memref<84x10xbf16, #tpu.memory_space<vmem>>, vector<84x10xbf16>
    %cst_515 = arith.constant dense<0.000000e+00> : vector<8x10xf32>
    %444 = tpu.matmul %442, %443, %cst_515 {dimension_numbers = #tpu.dot_dimension_numbers<[1], [0], [0], [1], [0, 0, 1, 1], [], []>} : vector<8x84xbf16>, vector<84x10xbf16>, vector<8x10xf32> -> vector<8x10xf32>
    %c0_516 = arith.constant 0 : index
    %c0_517 = arith.constant 0 : index
    %445 = vector.load %arg12[%c0_516, %c0_517] : memref<1x10xf32, #tpu.memory_space<vmem>>, vector<1x10xf32>
    %446 = vector.broadcast %445 : vector<1x10xf32> to vector<8x10xf32>
    %447 = arith.addf %444, %446 : vector<8x10xf32>
    %c0_518 = arith.constant 0 : index
    %c0_519 = arith.constant 0 : index
    %448 = vector.load %arg13[%c0_518, %c0_519] : memref<8x10xf32, #tpu.memory_space<vmem>>, vector<8x10xf32>
    tpu.vector_store %arg13[%c0_518, %c0_519], %447 {strides = array<i32>} : memref<8x10xf32, #tpu.memory_space<vmem>>, vector<8x10xf32>,
    return
  }
  func.func @transform_0(%arg0: i32) -> (i32, i32, i32) {
    %c0_i32 = arith.constant 0 : i32
    %c0_i32_0 = arith.constant 0 : i32
    %c0_i32_1 = arith.constant 0 : i32
    return %arg0, %c0_i32, %c0_i32_0 : i32, i32, i32
  }
  func.func @transform_1(%arg0: i32) -> (i32, i32) {
    %c0_i32 = arith.constant 0 : i32
    %c0_i32_0 = arith.constant 0 : i32
    %c0_i32_1 = arith.constant 0 : i32
    return %c0_i32, %c0_i32_0 : i32, i32
  }
  func.func @transform_2(%arg0: i32) -> (i32, i32) {
    %c0_i32 = arith.constant 0 : i32
    %c0_i32_0 = arith.constant 0 : i32
    %c0_i32_1 = arith.constant 0 : i32
    return %c0_i32, %c0_i32_0 : i32, i32
  }
  func.func @transform_3(%arg0: i32) -> (i32, i32) {
    %c0_i32 = arith.constant 0 : i32
    %c0_i32_0 = arith.constant 0 : i32
    %c0_i32_1 = arith.constant 0 : i32
    return %c0_i32, %c0_i32_0 : i32, i32
  }
  func.func @transform_4(%arg0: i32) -> (i32, i32) {
    %c0_i32 = arith.constant 0 : i32
    %c0_i32_0 = arith.constant 0 : i32
    %c0_i32_1 = arith.constant 0 : i32
    return %c0_i32, %c0_i32_0 : i32, i32
  }
  func.func @transform_5(%arg0: i32) -> (i32, i32) {
    %c0_i32 = arith.constant 0 : i32
    %c0_i32_0 = arith.constant 0 : i32
    %c0_i32_1 = arith.constant 0 : i32
    return %c0_i32, %c0_i32_0 : i32, i32
  }
  func.func @transform_6(%arg0: i32) -> (i32, i32, i32) {
    %c0_i32 = arith.constant 0 : i32
    %c0_i32_0 = arith.constant 0 : i32
    %c0_i32_1 = arith.constant 0 : i32
    %c0_i32_2 = arith.constant 0 : i32
    return %c0_i32, %c0_i32_0, %c0_i32_1 : i32, i32, i32
  }
  func.func @transform_7(%arg0: i32) -> (i32, i32) {
    %c0_i32 = arith.constant 0 : i32
    %c0_i32_0 = arith.constant 0 : i32
    %c0_i32_1 = arith.constant 0 : i32
    return %c0_i32, %c0_i32_0 : i32, i32
  }
  func.func @transform_8(%arg0: i32) -> (i32, i32) {
    %c0_i32 = arith.constant 0 : i32
    %c0_i32_0 = arith.constant 0 : i32
    %c0_i32_1 = arith.constant 0 : i32
    return %c0_i32, %c0_i32_0 : i32, i32
  }
  func.func @transform_9(%arg0: i32) -> (i32, i32) {
    %c0_i32 = arith.constant 0 : i32
    %c0_i32_0 = arith.constant 0 : i32
    %c0_i32_1 = arith.constant 0 : i32
    return %c0_i32, %c0_i32_0 : i32, i32
  }
  func.func @transform_10(%arg0: i32) -> (i32, i32) {
    %c0_i32 = arith.constant 0 : i32
    %c0_i32_0 = arith.constant 0 : i32
    %c0_i32_1 = arith.constant 0 : i32
    return %c0_i32, %c0_i32_0 : i32, i32
  }
  func.func @transform_11(%arg0: i32) -> (i32, i32) {
    %c0_i32 = arith.constant 0 : i32
    %c0_i32_0 = arith.constant 0 : i32
    %c0_i32_1 = arith.constant 0 : i32
    return %c0_i32, %c0_i32_0 : i32, i32
  }
  func.func @transform_12(%arg0: i32) -> (i32, i32) {
    %c0_i32 = arith.constant 0 : i32
    %c0_i32_0 = arith.constant 0 : i32
    return %arg0, %c0_i32 : i32, i32
  }
}

</mosaic_0001>

<llo_original>
// kernel: lenet_forward.1
$region0: #{lenet_forward.1}
  #allocation0 [shape = 'u32[]', space=smem, size = 0x4, offset = 0x4, fixed_abs, tag = 'smem constant byte address 0x4 - core index']
  #allocation1 [shape = 'u32[72,128]{1,0:T(1,128)}', space=vmem, size = 0x9000, scoped, tag = 'internal scratch']
  #allocation2 [shape = 'f32[8,1,788]{2,1,0:T(1,128)}', space=vmem, size = 0x7000, scoped, tag = 'scratch operand']
  #allocation3 [shape = 'f32[8,25,672]{2,1,0:T(8,128)}', space=vmem, size = 0xc0000, scoped, tag = 'scratch operand']
  #allocation4 [shape = 'bf16[8,8,672]{2,1,0:T(8,128)(2,1)}', space=vmem, size = 0x18000, scoped, tag = 'scratch operand']
  #allocation5 [shape = 'bf16[8,8,148]{2,1,0:T(8,128)(2,1)}', space=vmem, size = 0x8000, scoped, tag = 'scratch operand']
  #allocation6 [shape = 'bf16[8,200,96]{2,1,0:T(8,128)(2,1)}', space=vmem, size = 0x64000, scoped, tag = 'scratch operand']
  #allocation7 [shape = 'bf16[8,16,96]{2,1,0:T(8,128)(2,1)}', space=vmem, size = 0x8000, scoped, tag = 'scratch operand']
  %s0 = inlined_call_operand.vmem [shape: f32[16,1,784], index: 0, kind: input, shape index: {}]
  %s1 = inlined_call_operand.vmem [shape: f32[8,25], index: 1, kind: input, shape index: {}]
  %s2 = inlined_call_operand.vmem [shape: f32[8,1], index: 2, kind: input, shape index: {}]
  %s3 = inlined_call_operand.vmem [shape: bf16[643,148], index: 3, kind: input, shape index: {}]
  %s4 = inlined_call_operand.vmem [shape: bf16[16,200], index: 4, kind: input, shape index: {}]
  %s5 = inlined_call_operand.vmem [shape: f32[16,1], index: 5, kind: input, shape index: {}]
  %s6 = inlined_call_operand.vmem [shape: bf16[16,83,120], index: 6, kind: input, shape index: {}]
  %s7 = inlined_call_operand.vmem [shape: f32[1,120], index: 7, kind: input, shape index: {}]
  %s8 = inlined_call_operand.vmem [shape: bf16[120,84], index: 8, kind: input, shape index: {}]
  %s9 = inlined_call_operand.vmem [shape: f32[1,84], index: 9, kind: input, shape index: {}]
  %s10 = inlined_call_operand.vmem [shape: bf16[84,10], index: 10, kind: input, shape index: {}]
  %s11 = inlined_call_operand.vmem [shape: f32[1,10], index: 11, kind: input, shape index: {}]
  %s12 = inlined_call_operand.hbm [shape: f32[16,10], index: 12, kind: output, shape index: {}]
  %s13 = sld [smem:[#allocation0]]
  $region81: #{lenet_forward.1} parent=0
    _
  %s15 = ssub.s32 1, %s13
  %s16 = scalar_select 0, %s15, %s13
  $region1: #{lenet_forward.1} parent=0
    #allocation8 [shape = 'u8[8192]{0}', space=vmem, size = 0x2000, scoped, tag = 'output window, operand 0']
    #allocation9 [shape = 's32[2]{0}', space=sflag, size = 0x8, scoped, tag = 'scoped memory for lenet_forward.1']
    %17 = vsyncpa [#allocation9], 0
    %s18 = scalar_lea.sflag [#allocation9], 1
    %19 = vsyncpa %s18, 0
    loop: start=0, step=1, limit=4
    $region2: #{lenet_forward.1} parent=1 // loop_pre_header
      _
    $region3: #{lenet_forward.1} parent=1 // loop_header
      %s21 = sphi 0, %s25
      %p22 = scmp.ge.s32.totalorder %s21, 4
      %s31 = sphi 0, %s33
      %s34 = sphi 0, %s31
      %s35 = sphi 0, %s34
      %s51 = sphi 0, %s35
      %s55 = sphi 0, %s55
      %s57 = sphi 0, %s55
      %s58 = sphi 0, %s57
      %s72 = sphi 0, %s58
      %s76 = sphi 0, %s76
      %s78 = sphi 0, %s76
      %s79 = sphi 0, %s78
      %s93 = sphi 0, %s79
      %s97 = sphi 0, %s97
      %s99 = sphi 0, %s97
      %s100 = sphi 0, %s99
      %s114 = sphi 0, %s100
      %s118 = sphi 0, %s118
      %s120 = sphi 0, %s118
      %s121 = sphi 0, %s120
      %s135 = sphi 0, %s121
      %s139 = sphi 0, %s139
      %s141 = sphi 0, %s139
      %s142 = sphi 0, %s141
      %s156 = sphi 0, %s142
      %s160 = sphi 0, %s160
      %s162 = sphi 0, %s160
      %s163 = sphi 0, %s162
      %s177 = sphi 0, %s163
      %s181 = sphi 0, %s181
      %s183 = sphi 0, %s181
      %s184 = sphi 0, %s183
      %s198 = sphi 0, %s184
      %s202 = sphi 0, %s202
      %s204 = sphi 0, %s202
      %s205 = sphi 0, %s204
      %s219 = sphi 0, %s205
      %s223 = sphi 0, %s223
      %s225 = sphi 0, %s223
      %s226 = sphi 0, %s225
      %s240 = sphi 0, %s226
      %s244 = sphi 0, %s244
      %s246 = sphi 0, %s244
      %s247 = sphi 0, %s246
      %s261 = sphi 0, %s247
      %s265 = sphi 0, %s265
      %s267 = sphi 0, %s265
      %s268 = sphi 0, %s267
      %s282 = sphi 0, %s268
      %s288 = sphi 0, %s290
      %s291 = sphi 0, %s288
      %s292 = sphi 0, %s291
      %s308 = sphi 0, %s292
    $region4: #{lenet_forward.1} parent=1 // loop_header_branch
      %24 = sbr.rel (%p22) target = $region8
    $region5: #{lenet_forward.1} parent=1 // loop_body
      %s26 = ssub.s32 %s21, 1
      %s27 = ssub.s32 %s21, 2
      %s28 = sadd.s32 %s21, 1
      %s29 = ssub.s32 %s21, %s28
      %p30 = scmp.eq.s32.totalorder %s29, 0
      %s32 = sadd.s32 %s31, 1
      %s33 = scalar_select %p30, %s31, %s32
      %p36 = pneg %p30
      %p37 = scmp.eq.s32.totalorder %s21, 1
      %p38 = por %p36, %p37
      %p39 = scmp.ne.s32.totalorder %s31, %s34
      %p40 = scmp.eq.s32.totalorder %s21, 0
      %p41 = por %p39, %p40
      %p42 = scmp.ne.s32.totalorder %s31, %s34
      %p43 = scmp.eq.s32.totalorder %s26, 1
      %p44 = por %p42, %p43
      %p45 = scmp.ne.s32.totalorder %s34, %s35
      %p46 = scmp.eq.s32.totalorder %s26, 0
      %p47 = por %p45, %p46
      %p48 = scmp.ne.s32.totalorder %s34, %s35
      %p49 = scmp.eq.s32.totalorder %s27, 1
      %p50 = por %p48, %p49
      %p52 = scmp.ne.s32.totalorder %s35, %s51
      %p53 = scmp.eq.s32.totalorder %s27, 0
      %p54 = por %p52, %p53
      %s56 = sadd.s32 %s55, 1
      %p59 = scmp.eq.s32.totalorder %s21, 1
      %p60 = scmp.ne.s32.totalorder %s55, %s57
      %p61 = scmp.eq.s32.totalorder %s21, 0
      %p62 = por %p60, %p61
      %p63 = scmp.ne.s32.totalorder %s55, %s57
      %p64 = scmp.eq.s32.totalorder %s26, 1
      %p65 = por %p63, %p64
      %p66 = scmp.ne.s32.totalorder %s57, %s58
      %p67 = scmp.eq.s32.totalorder %s26, 0
      %p68 = por %p66, %p67
      %p69 = scmp.ne.s32.totalorder %s57, %s58
      %p70 = scmp.eq.s32.totalorder %s27, 1
      %p71 = por %p69, %p70
      %p73 = scmp.ne.s32.totalorder %s58, %s72
      %p74 = scmp.eq.s32.totalorder %s27, 0
      %p75 = por %p73, %p74
      %s77 = sadd.s32 %s76, 1
      %p80 = scmp.eq.s32.totalorder %s21, 1
      %p81 = scmp.ne.s32.totalorder %s76, %s78
      %p82 = scmp.eq.s32.totalorder %s21, 0
      %p83 = por %p81, %p82
      %p84 = scmp.ne.s32.totalorder %s76, %s78
      %p85 = scmp.eq.s32.totalorder %s26, 1
      %p86 = por %p84, %p85
      %p87 = scmp.ne.s32.totalorder %s78, %s79
      %p88 = scmp.eq.s32.totalorder %s26, 0
      %p89 = por %p87, %p88
      %p90 = scmp.ne.s32.totalorder %s78, %s79
      %p91 = scmp.eq.s32.totalorder %s27, 1
      %p92 = por %p90, %p91
      %p94 = scmp.ne.s32.totalorder %s79, %s93
      %p95 = scmp.eq.s32.totalorder %s27, 0
      %p96 = por %p94, %p95
      %s98 = sadd.s32 %s97, 1
      %p101 = scmp.eq.s32.totalorder %s21, 1
      %p102 = scmp.ne.s32.totalorder %s97, %s99
      %p103 = scmp.eq.s32.totalorder %s21, 0
      %p104 = por %p102, %p103
      %p105 = scmp.ne.s32.totalorder %s97, %s99
      %p106 = scmp.eq.s32.totalorder %s26, 1
      %p107 = por %p105, %p106
      %p108 = scmp.ne.s32.totalorder %s99, %s100
      %p109 = scmp.eq.s32.totalorder %s26, 0
      %p110 = por %p108, %p109
      %p111 = scmp.ne.s32.totalorder %s99, %s100
      %p112 = scmp.eq.s32.totalorder %s27, 1
      %p113 = por %p111, %p112
      %p115 = scmp.ne.s32.totalorder %s100, %s114
      %p116 = scmp.eq.s32.totalorder %s27, 0
      %p117 = por %p115, %p116
      %s119 = sadd.s32 %s118, 1
      %p122 = scmp.eq.s32.totalorder %s21, 1
      %p123 = scmp.ne.s32.totalorder %s118, %s120
      %p124 = scmp.eq.s32.totalorder %s21, 0
      %p125 = por %p123, %p124
      %p126 = scmp.ne.s32.totalorder %s118, %s120
      %p127 = scmp.eq.s32.totalorder %s26, 1
      %p128 = por %p126, %p127
      %p129 = scmp.ne.s32.totalorder %s120, %s121
      %p130 = scmp.eq.s32.totalorder %s26, 0
      %p131 = por %p129, %p130
      %p132 = scmp.ne.s32.totalorder %s120, %s121
      %p133 = scmp.eq.s32.totalorder %s27, 1
      %p134 = por %p132, %p133
      %p136 = scmp.ne.s32.totalorder %s121, %s135
      %p137 = scmp.eq.s32.totalorder %s27, 0
      %p138 = por %p136, %p137
      %s140 = sadd.s32 %s139, 1
      %p143 = scmp.eq.s32.totalorder %s21, 1
      %p144 = scmp.ne.s32.totalorder %s139, %s141
      %p145 = scmp.eq.s32.totalorder %s21, 0
      %p146 = por %p144, %p145
      %p147 = scmp.ne.s32.totalorder %s139, %s141
      %p148 = scmp.eq.s32.totalorder %s26, 1
      %p149 = por %p147, %p148
      %p150 = scmp.ne.s32.totalorder %s141, %s142
      %p151 = scmp.eq.s32.totalorder %s26, 0
      %p152 = por %p150, %p151
      %p153 = scmp.ne.s32.totalorder %s141, %s142
      %p154 = scmp.eq.s32.totalorder %s27, 1
      %p155 = por %p153, %p154
      %p157 = scmp.ne.s32.totalorder %s142, %s156
      %p158 = scmp.eq.s32.totalorder %s27, 0
      %p159 = por %p157, %p158
      %s161 = sadd.s32 %s160, 1
      %p164 = scmp.eq.s32.totalorder %s21, 1
      %p165 = scmp.ne.s32.totalorder %s160, %s162
      %p166 = scmp.eq.s32.totalorder %s21, 0
      %p167 = por %p165, %p166
      %p168 = scmp.ne.s32.totalorder %s160, %s162
      %p169 = scmp.eq.s32.totalorder %s26, 1
      %p170 = por %p168, %p169
      %p171 = scmp.ne.s32.totalorder %s162, %s163
      %p172 = scmp.eq.s32.totalorder %s26, 0
      %p173 = por %p171, %p172
      %p174 = scmp.ne.s32.totalorder %s162, %s163
      %p175 = scmp.eq.s32.totalorder %s27, 1
      %p176 = por %p174, %p175
      %p178 = scmp.ne.s32.totalorder %s163, %s177
      %p179 = scmp.eq.s32.totalorder %s27, 0
      %p180 = por %p178, %p179
      %s182 = sadd.s32 %s181, 1
      %p185 = scmp.eq.s32.totalorder %s21, 1
      %p186 = scmp.ne.s32.totalorder %s181, %s183
      %p187 = scmp.eq.s32.totalorder %s21, 0
      %p188 = por %p186, %p187
      %p189 = scmp.ne.s32.totalorder %s181, %s183
      %p190 = scmp.eq.s32.totalorder %s26, 1
      %p191 = por %p189, %p190
      %p192 = scmp.ne.s32.totalorder %s183, %s184
      %p193 = scmp.eq.s32.totalorder %s26, 0
      %p194 = por %p192, %p193
      %p195 = scmp.ne.s32.totalorder %s183, %s184
      %p196 = scmp.eq.s32.totalorder %s27, 1
      %p197 = por %p195, %p196
      %p199 = scmp.ne.s32.totalorder %s184, %s198
      %p200 = scmp.eq.s32.totalorder %s27, 0
      %p201 = por %p199, %p200
      %s203 = sadd.s32 %s202, 1
      %p206 = scmp.eq.s32.totalorder %s21, 1
      %p207 = scmp.ne.s32.totalorder %s202, %s204
      %p208 = scmp.eq.s32.totalorder %s21, 0
      %p209 = por %p207, %p208
      %p210 = scmp.ne.s32.totalorder %s202, %s204
      %p211 = scmp.eq.s32.totalorder %s26, 1
      %p212 = por %p210, %p211
      %p213 = scmp.ne.s32.totalorder %s204, %s205
      %p214 = scmp.eq.s32.totalorder %s26, 0
      %p215 = por %p213, %p214
      %p216 = scmp.ne.s32.totalorder %s204, %s205
      %p217 = scmp.eq.s32.totalorder %s27, 1
      %p218 = por %p216, %p217
      %p220 = scmp.ne.s32.totalorder %s205, %s219
      %p221 = scmp.eq.s32.totalorder %s27, 0
      %p222 = por %p220, %p221
      %s224 = sadd.s32 %s223, 1
      %p227 = scmp.eq.s32.totalorder %s21, 1
      %p228 = scmp.ne.s32.totalorder %s223, %s225
      %p229 = scmp.eq.s32.totalorder %s21, 0
      %p230 = por %p228, %p229
      %p231 = scmp.ne.s32.totalorder %s223, %s225
      %p232 = scmp.eq.s32.totalorder %s26, 1
      %p233 = por %p231, %p232
      %p234 = scmp.ne.s32.totalorder %s225, %s226
      %p235 = scmp.eq.s32.totalorder %s26, 0
      %p236 = por %p234, %p235
      %p237 = scmp.ne.s32.totalorder %s225, %s226
      %p238 = scmp.eq.s32.totalorder %s27, 1
      %p239 = por %p237, %p238
      %p241 = scmp.ne.s32.totalorder %s226, %s240
      %p242 = scmp.eq.s32.totalorder %s27, 0
      %p243 = por %p241, %p242
      %s245 = sadd.s32 %s244, 1
      %p248 = scmp.eq.s32.totalorder %s21, 1
      %p249 = scmp.ne.s32.totalorder %s244, %s246
      %p250 = scmp.eq.s32.totalorder %s21, 0
      %p251 = por %p249, %p250
      %p252 = scmp.ne.s32.totalorder %s244, %s246
      %p253 = scmp.eq.s32.totalorder %s26, 1
      %p254 = por %p252, %p253
      %p255 = scmp.ne.s32.totalorder %s246, %s247
      %p256 = scmp.eq.s32.totalorder %s26, 0
      %p257 = por %p255, %p256
      %p258 = scmp.ne.s32.totalorder %s246, %s247
      %p259 = scmp.eq.s32.totalorder %s27, 1
      %p260 = por %p258, %p259
      %p262 = scmp.ne.s32.totalorder %s247, %s261
      %p263 = scmp.eq.s32.totalorder %s27, 0
      %p264 = por %p262, %p263
      %s266 = sadd.s32 %s265, 1
      %p269 = scmp.eq.s32.totalorder %s21, 1
      %p270 = scmp.ne.s32.totalorder %s265, %s267
      %p271 = scmp.eq.s32.totalorder %s21, 0
      %p272 = por %p270, %p271
      %p273 = scmp.ne.s32.totalorder %s265, %s267
      %p274 = scmp.eq.s32.totalorder %s26, 1
      %p275 = por %p273, %p274
      %p276 = scmp.ne.s32.totalorder %s267, %s268
      %p277 = scmp.eq.s32.totalorder %s26, 0
      %p278 = por %p276, %p277
      %p279 = scmp.ne.s32.totalorder %s267, %s268
      %p280 = scmp.eq.s32.totalorder %s27, 1
      %p281 = por %p279, %p280
      %p283 = scmp.ne.s32.totalorder %s268, %s282
      %p284 = scmp.eq.s32.totalorder %s27, 0
      %p285 = por %p283, %p284
      %s286 = ssub.s32 %s21, %s28
      %p287 = scmp.eq.s32.totalorder %s286, 0
      %s289 = sadd.s32 %s288, 1
      %s290 = scalar_select %p287, %s288, %s289
      %p293 = pneg %p287
      %p294 = scmp.eq.s32.totalorder %s21, 1
      %p295 = por %p293, %p294
      %p296 = scmp.ne.s32.totalorder %s288, %s291
      %p297 = scmp.eq.s32.totalorder %s21, 0
      %p298 = por %p296, %p297
      %p299 = scmp.ne.s32.totalorder %s288, %s291
      %p300 = scmp.eq.s32.totalorder %s26, 1
      %p301 = por %p299, %p300
      %p302 = scmp.ne.s32.totalorder %s291, %s292
      %p303 = scmp.eq.s32.totalorder %s26, 0
      %p304 = por %p302, %p303
      %p305 = scmp.ne.s32.totalorder %s291, %s292
      %p306 = scmp.eq.s32.totalorder %s27, 1
      %p307 = por %p305, %p306
      %p309 = scmp.ne.s32.totalorder %s292, %s308
      %p310 = scmp.eq.s32.totalorder %s27, 0
      %p311 = por %p309, %p310
      %p312 = scmp.le.s32.totalorder 1, %s21
      %p313 = scmp.lt.s32.totalorder %s21, 3
      %p314 = pnand %p312, %p313
      %p315 = pneg %p314
      // Predicated region
      $region9: #{lenet_forward.1} parent=5 // pred_check
        _
      $region10: #{lenet_forward.1} parent=5 // pred_check_branch
        %317 = sbr.rel (%p314) target = $region12
      $region11: #{lenet_forward.1} parent=5 // pred_region
        %s318 = ssub.s32 %s21, 1
        // Predicated region
        $region13: #{lenet_forward.1} parent=11 // pred_check
          %p319 = pneg %p68
        $region14: #{lenet_forward.1} parent=11 // pred_check_branch
          %321 = sbr.rel (%p319) target = $region16
        $region15: #{lenet_forward.1} parent=11 // pred_region
          _
        $region16: #{lenet_forward.1} parent=11 // pred_fallthru
          _
        // Predicated region
        $region17: #{lenet_forward.1} parent=11 // pred_check
          %p322 = pneg %p89
        $region18: #{lenet_forward.1} parent=11 // pred_check_branch
          %324 = sbr.rel (%p322) target = $region20
        $region19: #{lenet_forward.1} parent=11 // pred_region
          _
        $region20: #{lenet_forward.1} parent=11 // pred_fallthru
          _
        // Predicated region
        $region21: #{lenet_forward.1} parent=11 // pred_check
          %p325 = pneg %p110
        $region22: #{lenet_forward.1} parent=11 // pred_check_branch
          %327 = sbr.rel (%p325) target = $region24
        $region23: #{lenet_forward.1} parent=11 // pred_region
          _
        $region24: #{lenet_forward.1} parent=11 // pred_fallthru
          _
        // Predicated region
        $region25: #{lenet_forward.1} parent=11 // pred_check
          %p328 = pneg %p131
        $region26: #{lenet_forward.1} parent=11 // pred_check_branch
          %330 = sbr.rel (%p328) target = $region28
        $region27: #{lenet_forward.1} parent=11 // pred_region
          _
        $region28: #{lenet_forward.1} parent=11 // pred_fallthru
          _
        // Predicated region
        $region29: #{lenet_forward.1} parent=11 // pred_check
          %p331 = pneg %p152
        $region30: #{lenet_forward.1} parent=11 // pred_check_branch
          %333 = sbr.rel (%p331) target = $region32
        $region31: #{lenet_forward.1} parent=11 // pred_region
          _
        $region32: #{lenet_forward.1} parent=11 // pred_fallthru
          _
        // Predicated region
        $region33: #{lenet_forward.1} parent=11 // pred_check
          %p334 = pneg %p173
        $region34: #{lenet_forward.1} parent=11 // pred_check_branch
          %336 = sbr.rel (%p334) target = $region36
        $region35: #{lenet_forward.1} parent=11 // pred_region
          _
        $region36: #{lenet_forward.1} parent=11 // pred_fallthru
          _
        // Predicated region
        $region37: #{lenet_forward.1} parent=11 // pred_check
          %p337 = pneg %p194
        $region38: #{lenet_forward.1} parent=11 // pred_check_branch
          %339 = sbr.rel (%p337) target = $region40
        $region39: #{lenet_forward.1} parent=11 // pred_region
          _
        $region40: #{lenet_forward.1} parent=11 // pred_fallthru
          _
        // Predicated region
        $region41: #{lenet_forward.1} parent=11 // pred_check
          %p340 = pneg %p215
        $region42: #{lenet_forward.1} parent=11 // pred_check_branch
          %342 = sbr.rel (%p340) target = $region44
        $region43: #{lenet_forward.1} parent=11 // pred_region
          _
        $region44: #{lenet_forward.1} parent=11 // pred_fallthru
          _
        // Predicated region
        $region45: #{lenet_forward.1} parent=11 // pred_check
          %p343 = pneg %p236
        $region46: #{lenet_forward.1} parent=11 // pred_check_branch
          %345 = sbr.rel (%p343) target = $region48
        $region47: #{lenet_forward.1} parent=11 // pred_region
          _
        $region48: #{lenet_forward.1} parent=11 // pred_fallthru
          _
        // Predicated region
        $region49: #{lenet_forward.1} parent=11 // pred_check
          %p346 = pneg %p257
        $region50: #{lenet_forward.1} parent=11 // pred_check_branch
          %348 = sbr.rel (%p346) target = $region52
        $region51: #{lenet_forward.1} parent=11 // pred_region
          _
        $region52: #{lenet_forward.1} parent=11 // pred_fallthru
          _
        // Predicated region
        $region53: #{lenet_forward.1} parent=11 // pred_check
          %p349 = pneg %p278
        $region54: #{lenet_forward.1} parent=11 // pred_check_branch
          %351 = sbr.rel (%p349) target = $region56
        $region55: #{lenet_forward.1} parent=11 // pred_region
          _
        $region56: #{lenet_forward.1} parent=11 // pred_fallthru
          _
      $region12: #{lenet_forward.1} parent=5 // pred_fallthru
        _
      %p352 = scmp.lt.s32.totalorder %s21, 2
      // Predicated region
      $region57: #{lenet_forward.1} parent=5 // pred_check
        %p353 = pneg %p352
      $region58: #{lenet_forward.1} parent=5 // pred_check_branch
        %355 = sbr.rel (%p353) target = $region60
      $region59: #{lenet_forward.1} parent=5 // pred_region
        // Predicated region
        $region61: #{lenet_forward.1} parent=59 // pred_check
          %p356 = pneg %p41
        $region62: #{lenet_forward.1} parent=59 // pred_check_branch
          %358 = sbr.rel (%p356) target = $region64
        $region63: #{lenet_forward.1} parent=59 // pred_region
          %s359 = smul.u32 8, %s21
          %p360 = scmp.lt.s32.totalorder %s359, 15
          %s361 = scalar_select %p360, %s359, 15
          %s362 = smul.addr %s361, 7
          %s363 = scalar_lea.vmem %s0, %s362
          %s364 = smul.u32 8, %s21
        $region64: #{lenet_forward.1} parent=59 // pred_fallthru
          _
      $region60: #{lenet_forward.1} parent=5 // pred_fallthru
        _
      %p365 = scmp.le.s32.totalorder 1, %s21
      %p366 = scmp.lt.s32.totalorder %s21, 3
      %p367 = pnand %p365, %p366
      %p368 = pneg %p367
      // Predicated region
      $region65: #{lenet_forward.1} parent=5 // pred_check
        _
      $region66: #{lenet_forward.1} parent=5 // pred_check_branch
        %370 = sbr.rel (%p367) target = $region68
      $region67: #{lenet_forward.1} parent=5 // pred_region
        %s371 = ssub.s32 %s21, 1
        %s372 = smul.u32 8, %s26
        %p373 = scmp.lt.s32.totalorder %s372, 15
        %s374 = scalar_select %p373, %s372, 15
        %s375 = smul.addr %s374, 7
        %s376 = scalar_lea.vmem %s0, %s375
        %p377 = pneg %p47
        %p378 = pneg %p44
        %p379 = pneg %p68
        %p380 = pneg %p65
        %p381 = pneg %p89
        %p382 = pneg %p86
        %p383 = pneg %p110
        %p384 = pneg %p107
        %p385 = pneg %p131
        %p386 = pneg %p128
        %p387 = pneg %p152
        %p388 = pneg %p149
        %p389 = pneg %p173
        %p390 = pneg %p170
        %p391 = pneg %p194
        %p392 = pneg %p191
        %p393 = pneg %p215
        %p394 = pneg %p212
        %p395 = pneg %p236
        %p396 = pneg %p233
        %p397 = pneg %p257
        %p398 = pneg %p254
        %p399 = pneg %p278
        %p400 = pneg %p275
        %p401 = pneg %p304
        %p402 = pneg %p301
        %s403 = sand.u32 %s291, 1
        %s404 = scalar_lea.sflag [#allocation9], %s403
        %s405 = sand.u32 %s291, 1
        %s406 = smul.addr %s405, 8
        %s407 = scalar_lea.vmem [#allocation8], %s406
        %s408 = smul.u32 8, %s26
        %p409 = scmp.lt.s32.totalorder %s408, 15
        %s410 = scalar_select %p409, %s408, 15
        %s411 = smul.addr %s410, 7
        %s412 = scalar_lea.vmem %s0, %s411
        %s413 = smul.u32 8, %s26
        %v415 = vld [vmem:[%s412] sm:$0x7f]
        %v416 = vld [vmem:[%s412 + $0x7] sm:$0x7f]
        %v417 = vld [vmem:[%s412 + $0xe] sm:$0x7f]
        %v418 = vld [vmem:[%s412 + $0x15] sm:$0x7f]
        %v419 = vld [vmem:[%s412 + $0x1c] sm:$0x7f]
        %v420 = vld [vmem:[%s412 + $0x23] sm:$0x7f]
        %v421 = vld [vmem:[%s412 + $0x2a] sm:$0x7f]
        %v422 = vld [vmem:[%s412 + $0x31] sm:$0x7f]
        %v423 = vlaneseq
        %vm424 = vcmp.ge.s32.totalorder %v423, 0
        %vm425 = vcmp.lt.s32.totalorder %v423, 784
        %vm426 = vmand %vm424, %vm425
        %427 = vst.msk [vmem:[#allocation2] sm:$0x7f] %vm426, %v415
        %428 = vst.msk [vmem:[#allocation2 + $0x7] sm:$0x7f] %vm426, %v416
        %429 = vst.msk [vmem:[#allocation2 + $0xe] sm:$0x7f] %vm426, %v417
        %430 = vst.msk [vmem:[#allocation2 + $0x15] sm:$0x7f] %vm426, %v418
        %431 = vst.msk [vmem:[#allocation2 + $0x1c] sm:$0x7f] %vm426, %v419
        %432 = vst.msk [vmem:[#allocation2 + $0x23] sm:$0x7f] %vm426, %v420
        %433 = vst.msk [vmem:[#allocation2 + $0x2a] sm:$0x7f] %vm426, %v421
        %434 = vst.msk [vmem:[#allocation2 + $0x31] sm:$0x7f] %vm426, %v422
        %vm435 = vcmp.ge.s32.totalorder %v423, 16
        %vm436 = vcmp.lt.s32.totalorder %v423, 20
        %vm437 = vmand %vm435, %vm436
        %438 = vst.msk [vmem:[#allocation2 + $0x6] sm:$0x1] %vm437, 0.0
        %439 = vst.msk [vmem:[#allocation2 + $0xd] sm:$0x1] %vm437, 0.0
        %440 = vst.msk [vmem:[#allocation2 + $0x14] sm:$0x1] %vm437, 0.0
        %441 = vst.msk [vmem:[#allocation2 + $0x1b] sm:$0x1] %vm437, 0.0
        %442 = vst.msk [vmem:[#allocation2 + $0x22] sm:$0x1] %vm437, 0.0
        %443 = vst.msk [vmem:[#allocation2 + $0x29] sm:$0x1] %vm437, 0.0
        %444 = vst.msk [vmem:[#allocation2 + $0x30] sm:$0x1] %vm437, 0.0
        %445 = vst.msk [vmem:[#allocation2 + $0x37] sm:$0x1] %vm437, 0.0
        %v446 = vld [vmem:[#allocation2] sm:$0x3f]
        %v447 = vld [vmem:[#allocation2 + $0x7] sm:$0x3f]
        %v448 = vld [vmem:[#allocation2 + $0xe] sm:$0x3f]
        %v449 = vld [vmem:[#allocation2 + $0x15] sm:$0x3f]
        %v450 = vld [vmem:[#allocation2 + $0x1c] sm:$0x3f]
        %v451 = vld [vmem:[#allocation2 + $0x23] sm:$0x3f]
        %v452 = vld [vmem:[#allocation2 + $0x2a] sm:$0x3f]
        %v453 = vld [vmem:[#allocation2 + $0x31] sm:$0x3f]
        %vm454 = vcmp.lt.s32.totalorder %v423, 672
        %vm455 = vmand %vm424, %vm454
        %456 = vst.msk [vmem:[#allocation3] ss:$8 sm:$0xf] %vm455, %v446
        %457 = vst.msk [vmem:[#allocation3] ss:$8 sm:$0x30] %vm455, %v446
        %s458 = scalar_lea.vmem [#allocation3], 192
        %459 = vst.msk [vmem:[%s458] ss:$8 sm:$0xf] %vm455, %v447
        %460 = vst.msk [vmem:[%s458] ss:$8 sm:$0x30] %vm455, %v447
        %s461 = scalar_lea.vmem [#allocation3], 384
        %462 = vst.msk [vmem:[%s461] ss:$8 sm:$0xf] %vm455, %v448
        %463 = vst.msk [vmem:[%s461] ss:$8 sm:$0x30] %vm455, %v448
        %s464 = scalar_lea.vmem [#allocation3], 576
        %465 = vst.msk [vmem:[%s464] ss:$8 sm:$0xf] %vm455, %v449
        %466 = vst.msk [vmem:[%s464] ss:$8 sm:$0x30] %vm455, %v449
        %s467 = scalar_lea.vmem [#allocation3], 768
        %468 = vst.msk [vmem:[%s467] ss:$8 sm:$0xf] %vm455, %v450
        %469 = vst.msk [vmem:[%s467] ss:$8 sm:$0x30] %vm455, %v450
        %s470 = scalar_lea.vmem [#allocation3], 960
        %471 = vst.msk [vmem:[%s470] ss:$8 sm:$0xf] %vm455, %v451
        %472 = vst.msk [vmem:[%s470] ss:$8 sm:$0x30] %vm455, %v451
        %s473 = scalar_lea.vmem [#allocation3], 1152
        %474 = vst.msk [vmem:[%s473] ss:$8 sm:$0xf] %vm455, %v452
        %475 = vst.msk [vmem:[%s473] ss:$8 sm:$0x30] %vm455, %v452
        %s476 = scalar_lea.vmem [#allocation3], 1344
        %477 = vst.msk [vmem:[%s476] ss:$8 sm:$0xf] %vm455, %v453
        %478 = vst.msk [vmem:[%s476] ss:$8 sm:$0x30] %vm455, %v453
        %v479 = vld [vmem:[#allocation2] sm:$0x3f]
        %v480 = vld [vmem:[#allocation2 + $0x7] sm:$0x3f]
        %v481 = vld [vmem:[#allocation2 + $0xe] sm:$0x3f]
        %v482 = vld [vmem:[#allocation2 + $0x15] sm:$0x3f]
        %v483 = vld [vmem:[#allocation2 + $0x1c] sm:$0x3f]
        %v484 = vld [vmem:[#allocation2 + $0x23] sm:$0x3f]
        %v485 = vld [vmem:[#allocation2 + $0x2a] sm:$0x3f]
        %v486 = vld [vmem:[#allocation2 + $0x31] sm:$0x3f]
        %495 = vrot.lane.b32.xlu0 %v479, 127
        %v496 = vpop.permute.xlu0 %495
        %497 = vrot.lane.b32.xlu0 %v480, 127
        %v498 = vpop.permute.xlu0 %497
        %499 = vrot.lane.b32.xlu0 %v481, 127
        %v500 = vpop.permute.xlu0 %499
        %501 = vrot.lane.b32.xlu0 %v482, 127
        %v502 = vpop.permute.xlu0 %501
        %503 = vrot.lane.b32.xlu0 %v483, 127
        %v504 = vpop.permute.xlu0 %503
        %505 = vrot.lane.b32.xlu0 %v484, 127
        %v506 = vpop.permute.xlu0 %505
        %507 = vrot.lane.b32.xlu0 %v485, 127
        %v508 = vpop.permute.xlu0 %507
        %509 = vrot.lane.b32.xlu0 %v486, 127
        %v510 = vpop.permute.xlu0 %509
        %v511 = vrot.slane %v496, 1
        %v512 = vrot.slane %v498, 1
        %v513 = vrot.slane %v500, 1
        %v514 = vrot.slane %v502, 1
        %v515 = vrot.slane %v504, 1
        %v516 = vrot.slane %v506, 1
        %v517 = vrot.slane %v508, 1
        %v518 = vrot.slane %v510, 1
        %vm519 = vcmask 1039360
        %v520 = vsel %vm519, %v496, %v511
        %v521 = vsel %vm519, %v498, %v512
        %v522 = vsel %vm519, %v500, %v513
        %v523 = vsel %vm519, %v502, %v514
        %v524 = vsel %vm519, %v504, %v515
        %v525 = vsel %vm519, %v506, %v516
        %v526 = vsel %vm519, %v508, %v517
        %v527 = vsel %vm519, %v510, %v518
        %s536 = scalar_lea.vmem [#allocation3], 1
        %537 = vst.msk [vmem:[%s536] ss:$8 sm:$0xf] %vm455, %v520
        %538 = vst.msk [vmem:[%s536] ss:$8 sm:$0x30] %vm455, %v520
        %s539 = scalar_lea.vmem [#allocation3], 193
        %540 = vst.msk [vmem:[%s539] ss:$8 sm:$0xf] %vm455, %v521
        %541 = vst.msk [vmem:[%s539] ss:$8 sm:$0x30] %vm455, %v521
        %s542 = scalar_lea.vmem [#allocation3], 385
        %543 = vst.msk [vmem:[%s542] ss:$8 sm:$0xf] %vm455, %v522
        %544 = vst.msk [vmem:[%s542] ss:$8 sm:$0x30] %vm455, %v522
        %s545 = scalar_lea.vmem [#allocation3], 577
        %546 = vst.msk [vmem:[%s545] ss:$8 sm:$0xf] %vm455, %v523
        %547 = vst.msk [vmem:[%s545] ss:$8 sm:$0x30] %vm455, %v523
        %s548 = scalar_lea.vmem [#allocation3], 769
        %549 = vst.msk [vmem:[%s548] ss:$8 sm:$0xf] %vm455, %v524
        %550 = vst.msk [vmem:[%s548] ss:$8 sm:$0x30] %vm455, %v524
        %s551 = scalar_lea.vmem [#allocation3], 961
        %552 = vst.msk [vmem:[%s551] ss:$8 sm:$0xf] %vm455, %v525
        %553 = vst.msk [vmem:[%s551] ss:$8 sm:$0x30] %vm455, %v525
        %s554 = scalar_lea.vmem [#allocation3], 1153
        %555 = vst.msk [vmem:[%s554] ss:$8 sm:$0xf] %vm455, %v526
        %556 = vst.msk [vmem:[%s554] ss:$8 sm:$0x30] %vm455, %v526
        %s557 = scalar_lea.vmem [#allocation3], 1345
        %558 = vst.msk [vmem:[%s557] ss:$8 sm:$0xf] %vm455, %v527
        %559 = vst.msk [vmem:[%s557] ss:$8 sm:$0x30] %vm455, %v527
        %v560 = vld [vmem:[#allocation2] sm:$0x3f]
        %v561 = vld [vmem:[#allocation2 + $0x7] sm:$0x3f]
        %v562 = vld [vmem:[#allocation2 + $0xe] sm:$0x3f]
        %v563 = vld [vmem:[#allocation2 + $0x15] sm:$0x3f]
        %v564 = vld [vmem:[#allocation2 + $0x1c] sm:$0x3f]
        %v565 = vld [vmem:[#allocation2 + $0x23] sm:$0x3f]
        %v566 = vld [vmem:[#allocation2 + $0x2a] sm:$0x3f]
        %v567 = vld [vmem:[#allocation2 + $0x31] sm:$0x3f]
        %576 = vrot.lane.b32.xlu0 %v560, 126
        %v577 = vpop.permute.xlu0 %576
        %578 = vrot.lane.b32.xlu0 %v561, 126
        %v579 = vpop.permute.xlu0 %578
        %580 = vrot.lane.b32.xlu0 %v562, 126
        %v581 = vpop.permute.xlu0 %580
        %582 = vrot.lane.b32.xlu0 %v563, 126
        %v583 = vpop.permute.xlu0 %582
        %584 = vrot.lane.b32.xlu0 %v564, 126
        %v585 = vpop.permute.xlu0 %584
        %586 = vrot.lane.b32.xlu0 %v565, 126
        %v587 = vpop.permute.xlu0 %586
        %588 = vrot.lane.b32.xlu0 %v566, 126
        %v589 = vpop.permute.xlu0 %588
        %590 = vrot.lane.b32.xlu0 %v567, 126
        %v591 = vpop.permute.xlu0 %590
        %v592 = vrot.slane %v577, 1
        %v593 = vrot.slane %v579, 1
        %v594 = vrot.slane %v581, 1
        %v595 = vrot.slane %v583, 1
        %v596 = vrot.slane %v585, 1
        %v597 = vrot.slane %v587, 1
        %v598 = vrot.slane %v589, 1
        %v599 = vrot.slane %v591, 1
        %vm600 = vcmask 1031168
        %v601 = vsel %vm600, %v577, %v592
        %v602 = vsel %vm600, %v579, %v593
        %v603 = vsel %vm600, %v581, %v594
        %v604 = vsel %vm600, %v583, %v595
        %v605 = vsel %vm600, %v585, %v596
        %v606 = vsel %vm600, %v587, %v597
        %v607 = vsel %vm600, %v589, %v598
        %v608 = vsel %vm600, %v591, %v599
        %s617 = scalar_lea.vmem [#allocation3], 2
        %618 = vst.msk [vmem:[%s617] ss:$8 sm:$0xf] %vm455, %v601
        %619 = vst.msk [vmem:[%s617] ss:$8 sm:$0x30] %vm455, %v601
        %s620 = scalar_lea.vmem [#allocation3], 194
        %621 = vst.msk [vmem:[%s620] ss:$8 sm:$0xf] %vm455, %v602
        %622 = vst.msk [vmem:[%s620] ss:$8 sm:$0x30] %vm455, %v602
        %s623 = scalar_lea.vmem [#allocation3], 386
        %624 = vst.msk [vmem:[%s623] ss:$8 sm:$0xf] %vm455, %v603
        %625 = vst.msk [vmem:[%s623] ss:$8 sm:$0x30] %vm455, %v603
        %s626 = scalar_lea.vmem [#allocation3], 578
        %627 = vst.msk [vmem:[%s626] ss:$8 sm:$0xf] %vm455, %v604
        %628 = vst.msk [vmem:[%s626] ss:$8 sm:$0x30] %vm455, %v604
        %s629 = scalar_lea.vmem [#allocation3], 770
        %630 = vst.msk [vmem:[%s629] ss:$8 sm:$0xf] %vm455, %v605
        %631 = vst.msk [vmem:[%s629] ss:$8 sm:$0x30] %vm455, %v605
        %s632 = scalar_lea.vmem [#allocation3], 962
        %633 = vst.msk [vmem:[%s632] ss:$8 sm:$0xf] %vm455, %v606
        %634 = vst.msk [vmem:[%s632] ss:$8 sm:$0x30] %vm455, %v606
        %s635 = scalar_lea.vmem [#allocation3], 1154
        %636 = vst.msk [vmem:[%s635] ss:$8 sm:$0xf] %vm455, %v607
        %637 = vst.msk [vmem:[%s635] ss:$8 sm:$0x30] %vm455, %v607
        %s638 = scalar_lea.vmem [#allocation3], 1346
        %639 = vst.msk [vmem:[%s638] ss:$8 sm:$0xf] %vm455, %v608
        %640 = vst.msk [vmem:[%s638] ss:$8 sm:$0x30] %vm455, %v608
        %v641 = vld [vmem:[#allocation2] sm:$0x3f]
        %v642 = vld [vmem:[#allocation2 + $0x7] sm:$0x3f]
        %v643 = vld [vmem:[#allocation2 + $0xe] sm:$0x3f]
        %v644 = vld [vmem:[#allocation2 + $0x15] sm:$0x3f]
        %v645 = vld [vmem:[#allocation2 + $0x1c] sm:$0x3f]
        %v646 = vld [vmem:[#allocation2 + $0x23] sm:$0x3f]
        %v647 = vld [vmem:[#allocation2 + $0x2a] sm:$0x3f]
        %v648 = vld [vmem:[#allocation2 + $0x31] sm:$0x3f]
        %657 = vrot.lane.b32.xlu0 %v641, 125
        %v658 = vpop.permute.xlu0 %657
        %659 = vrot.lane.b32.xlu0 %v642, 125
        %v660 = vpop.permute.xlu0 %659
        %661 = vrot.lane.b32.xlu0 %v643, 125
        %v662 = vpop.permute.xlu0 %661
        %663 = vrot.lane.b32.xlu0 %v644, 125
        %v664 = vpop.permute.xlu0 %663
        %665 = vrot.lane.b32.xlu0 %v645, 125
        %v666 = vpop.permute.xlu0 %665
        %667 = vrot.lane.b32.xlu0 %v646, 125
        %v668 = vpop.permute.xlu0 %667
        %669 = vrot.lane.b32.xlu0 %v647, 125
        %v670 = vpop.permute.xlu0 %669
        %671 = vrot.lane.b32.xlu0 %v648, 125
        %v672 = vpop.permute.xlu0 %671
        %v673 = vrot.slane %v658, 1
        %v674 = vrot.slane %v660, 1
        %v675 = vrot.slane %v662, 1
        %v676 = vrot.slane %v664, 1
        %v677 = vrot.slane %v666, 1
        %v678 = vrot.slane %v668, 1
        %v679 = vrot.slane %v670, 1
        %v680 = vrot.slane %v672, 1
        %vm681 = vcmask 1022976
        %v682 = vsel %vm681, %v658, %v673
        %v683 = vsel %vm681, %v660, %v674
        %v684 = vsel %vm681, %v662, %v675
        %v685 = vsel %vm681, %v664, %v676
        %v686 = vsel %vm681, %v666, %v677
        %v687 = vsel %vm681, %v668, %v678
        %v688 = vsel %vm681, %v670, %v679
        %v689 = vsel %vm681, %v672, %v680
        %s698 = scalar_lea.vmem [#allocation3], 3
        %699 = vst.msk [vmem:[%s698] ss:$8 sm:$0xf] %vm455, %v682
        %700 = vst.msk [vmem:[%s698] ss:$8 sm:$0x30] %vm455, %v682
        %s701 = scalar_lea.vmem [#allocation3], 195
        %702 = vst.msk [vmem:[%s701] ss:$8 sm:$0xf] %vm455, %v683
        %703 = vst.msk [vmem:[%s701] ss:$8 sm:$0x30] %vm455, %v683
        %s704 = scalar_lea.vmem [#allocation3], 387
        %705 = vst.msk [vmem:[%s704] ss:$8 sm:$0xf] %vm455, %v684
        %706 = vst.msk [vmem:[%s704] ss:$8 sm:$0x30] %vm455, %v684
        %s707 = scalar_lea.vmem [#allocation3], 579
        %708 = vst.msk [vmem:[%s707] ss:$8 sm:$0xf] %vm455, %v685
        %709 = vst.msk [vmem:[%s707] ss:$8 sm:$0x30] %vm455, %v685
        %s710 = scalar_lea.vmem [#allocation3], 771
        %711 = vst.msk [vmem:[%s710] ss:$8 sm:$0xf] %vm455, %v686
        %712 = vst.msk [vmem:[%s710] ss:$8 sm:$0x30] %vm455, %v686
        %s713 = scalar_lea.vmem [#allocation3], 963
        %714 = vst.msk [vmem:[%s713] ss:$8 sm:$0xf] %vm455, %v687
        %715 = vst.msk [vmem:[%s713] ss:$8 sm:$0x30] %vm455, %v687
        %s716 = scalar_lea.vmem [#allocation3], 1155
        %717 = vst.msk [vmem:[%s716] ss:$8 sm:$0xf] %vm455, %v688
        %718 = vst.msk [vmem:[%s716] ss:$8 sm:$0x30] %vm455, %v688
        %s719 = scalar_lea.vmem [#allocation3], 1347
        %720 = vst.msk [vmem:[%s719] ss:$8 sm:$0xf] %vm455, %v689
        %721 = vst.msk [vmem:[%s719] ss:$8 sm:$0x30] %vm455, %v689
        %v722 = vld [vmem:[#allocation2] sm:$0x3f]
        %v723 = vld [vmem:[#allocation2 + $0x7] sm:$0x3f]
        %v724 = vld [vmem:[#allocation2 + $0xe] sm:$0x3f]
        %v725 = vld [vmem:[#allocation2 + $0x15] sm:$0x3f]
        %v726 = vld [vmem:[#allocation2 + $0x1c] sm:$0x3f]
        %v727 = vld [vmem:[#allocation2 + $0x23] sm:$0x3f]
        %v728 = vld [vmem:[#allocation2 + $0x2a] sm:$0x3f]
        %v729 = vld [vmem:[#allocation2 + $0x31] sm:$0x3f]
        %738 = vrot.lane.b32.xlu0 %v722, 124
        %v739 = vpop.permute.xlu0 %738
        %740 = vrot.lane.b32.xlu0 %v723, 124
        %v741 = vpop.permute.xlu0 %740
        %742 = vrot.lane.b32.xlu0 %v724, 124
        %v743 = vpop.permute.xlu0 %742
        %744 = vrot.lane.b32.xlu0 %v725, 124
        %v745 = vpop.permute.xlu0 %744
        %746 = vrot.lane.b32.xlu0 %v726, 124
        %v747 = vpop.permute.xlu0 %746
        %748 = vrot.lane.b32.xlu0 %v727, 124
        %v749 = vpop.permute.xlu0 %748
        %750 = vrot.lane.b32.xlu0 %v728, 124
        %v751 = vpop.permute.xlu0 %750
        %752 = vrot.lane.b32.xlu0 %v729, 124
        %v753 = vpop.permute.xlu0 %752
        %v754 = vrot.slane %v739, 1
        %v755 = vrot.slane %v741, 1
        %v756 = vrot.slane %v743, 1
        %v757 = vrot.slane %v745, 1
        %v758 = vrot.slane %v747, 1
        %v759 = vrot.slane %v749, 1
        %v760 = vrot.slane %v751, 1
        %v761 = vrot.slane %v753, 1
        %vm762 = vcmask 1014784
        %v763 = vsel %vm762, %v739, %v754
        %v764 = vsel %vm762, %v741, %v755
        %v765 = vsel %vm762, %v743, %v756
        %v766 = vsel %vm762, %v745, %v757
        %v767 = vsel %vm762, %v747, %v758
        %v768 = vsel %vm762, %v749, %v759
        %v769 = vsel %vm762, %v751, %v760
        %v770 = vsel %vm762, %v753, %v761
        %s779 = scalar_lea.vmem [#allocation3], 4
        %780 = vst.msk [vmem:[%s779] ss:$8 sm:$0xf] %vm455, %v763
        %781 = vst.msk [vmem:[%s779] ss:$8 sm:$0x30] %vm455, %v763
        %s782 = scalar_lea.vmem [#allocation3], 196
        %783 = vst.msk [vmem:[%s782] ss:$8 sm:$0xf] %vm455, %v764
        %784 = vst.msk [vmem:[%s782] ss:$8 sm:$0x30] %vm455, %v764
        %s785 = scalar_lea.vmem [#allocation3], 388
        %786 = vst.msk [vmem:[%s785] ss:$8 sm:$0xf] %vm455, %v765
        %787 = vst.msk [vmem:[%s785] ss:$8 sm:$0x30] %vm455, %v765
        %s788 = scalar_lea.vmem [#allocation3], 580
        %789 = vst.msk [vmem:[%s788] ss:$8 sm:$0xf] %vm455, %v766
        %790 = vst.msk [vmem:[%s788] ss:$8 sm:$0x30] %vm455, %v766
        %s791 = scalar_lea.vmem [#allocation3], 772
        %792 = vst.msk [vmem:[%s791] ss:$8 sm:$0xf] %vm455, %v767
        %793 = vst.msk [vmem:[%s791] ss:$8 sm:$0x30] %vm455, %v767
        %s794 = scalar_lea.vmem [#allocation3], 964
        %795 = vst.msk [vmem:[%s794] ss:$8 sm:$0xf] %vm455, %v768
        %796 = vst.msk [vmem:[%s794] ss:$8 sm:$0x30] %vm455, %v768
        %s797 = scalar_lea.vmem [#allocation3], 1156
        %798 = vst.msk [vmem:[%s797] ss:$8 sm:$0xf] %vm455, %v769
        %799 = vst.msk [vmem:[%s797] ss:$8 sm:$0x30] %vm455, %v769
        %s800 = scalar_lea.vmem [#allocation3], 1348
        %801 = vst.msk [vmem:[%s800] ss:$8 sm:$0xf] %vm455, %v770
        %802 = vst.msk [vmem:[%s800] ss:$8 sm:$0x30] %vm455, %v770
        %v803 = vld [vmem:[#allocation2] sm:$0x3f]
        %v804 = vld [vmem:[#allocation2 + $0x7] sm:$0x3f]
        %v805 = vld [vmem:[#allocation2 + $0xe] sm:$0x3f]
        %v806 = vld [vmem:[#allocation2 + $0x15] sm:$0x3f]
        %v807 = vld [vmem:[#allocation2 + $0x1c] sm:$0x3f]
        %v808 = vld [vmem:[#allocation2 + $0x23] sm:$0x3f]
        %v809 = vld [vmem:[#allocation2 + $0x2a] sm:$0x3f]
        %v810 = vld [vmem:[#allocation2 + $0x31] sm:$0x3f]
        %819 = vrot.lane.b32.xlu0 %v803, 100
        %v820 = vpop.permute.xlu0 %819
        %821 = vrot.lane.b32.xlu0 %v804, 100
        %v822 = vpop.permute.xlu0 %821
        %823 = vrot.lane.b32.xlu0 %v805, 100
        %v824 = vpop.permute.xlu0 %823
        %825 = vrot.lane.b32.xlu0 %v806, 100
        %v826 = vpop.permute.xlu0 %825
        %827 = vrot.lane.b32.xlu0 %v807, 100
        %v828 = vpop.permute.xlu0 %827
        %829 = vrot.lane.b32.xlu0 %v808, 100
        %v830 = vpop.permute.xlu0 %829
        %831 = vrot.lane.b32.xlu0 %v809, 100
        %v832 = vpop.permute.xlu0 %831
        %833 = vrot.lane.b32.xlu0 %v810, 100
        %v834 = vpop.permute.xlu0 %833
        %v835 = vrot.slane %v820, 1
        %v836 = vrot.slane %v822, 1
        %v837 = vrot.slane %v824, 1
        %v838 = vrot.slane %v826, 1
        %v839 = vrot.slane %v828, 1
        %v840 = vrot.slane %v830, 1
        %v841 = vrot.slane %v832, 1
        %v842 = vrot.slane %v834, 1
        %vm843 = vcmask 818176
        %v844 = vsel %vm843, %v820, %v835
        %v845 = vsel %vm843, %v822, %v836
        %v846 = vsel %vm843, %v824, %v837
        %v847 = vsel %vm843, %v826, %v838
        %v848 = vsel %vm843, %v828, %v839
        %v849 = vsel %vm843, %v830, %v840
        %v850 = vsel %vm843, %v832, %v841
        %v851 = vsel %vm843, %v834, %v842
        %s860 = scalar_lea.vmem [#allocation3], 5
        %861 = vst.msk [vmem:[%s860] ss:$8 sm:$0xf] %vm455, %v844
        %862 = vst.msk [vmem:[%s860] ss:$8 sm:$0x30] %vm455, %v844
        %s863 = scalar_lea.vmem [#allocation3], 197
        %864 = vst.msk [vmem:[%s863] ss:$8 sm:$0xf] %vm455, %v845
        %865 = vst.msk [vmem:[%s863] ss:$8 sm:$0x30] %vm455, %v845
        %s866 = scalar_lea.vmem [#allocation3], 389
        %867 = vst.msk [vmem:[%s866] ss:$8 sm:$0xf] %vm455, %v846
        %868 = vst.msk [vmem:[%s866] ss:$8 sm:$0x30] %vm455, %v846
        %s869 = scalar_lea.vmem [#allocation3], 581
        %870 = vst.msk [vmem:[%s869] ss:$8 sm:$0xf] %vm455, %v847
        %871 = vst.msk [vmem:[%s869] ss:$8 sm:$0x30] %vm455, %v847
        %s872 = scalar_lea.vmem [#allocation3], 773
        %873 = vst.msk [vmem:[%s872] ss:$8 sm:$0xf] %vm455, %v848
        %874 = vst.msk [vmem:[%s872] ss:$8 sm:$0x30] %vm455, %v848
        %s875 = scalar_lea.vmem [#allocation3], 965
        %876 = vst.msk [vmem:[%s875] ss:$8 sm:$0xf] %vm455, %v849
        %877 = vst.msk [vmem:[%s875] ss:$8 sm:$0x30] %vm455, %v849
        %s878 = scalar_lea.vmem [#allocation3], 1157
        %879 = vst.msk [vmem:[%s878] ss:$8 sm:$0xf] %vm455, %v850
        %880 = vst.msk [vmem:[%s878] ss:$8 sm:$0x30] %vm455, %v850
        %s881 = scalar_lea.vmem [#allocation3], 1349
        %882 = vst.msk [vmem:[%s881] ss:$8 sm:$0xf] %vm455, %v851
        %883 = vst.msk [vmem:[%s881] ss:$8 sm:$0x30] %vm455, %v851
        %v884 = vld [vmem:[#allocation2] sm:$0x3f]
        %v885 = vld [vmem:[#allocation2 + $0x7] sm:$0x3f]
        %v886 = vld [vmem:[#allocation2 + $0xe] sm:$0x3f]
        %v887 = vld [vmem:[#allocation2 + $0x15] sm:$0x3f]
        %v888 = vld [vmem:[#allocation2 + $0x1c] sm:$0x3f]
        %v889 = vld [vmem:[#allocation2 + $0x23] sm:$0x3f]
        %v890 = vld [vmem:[#allocation2 + $0x2a] sm:$0x3f]
        %v891 = vld [vmem:[#allocation2 + $0x31] sm:$0x3f]
        %900 = vrot.lane.b32.xlu0 %v884, 99
        %v901 = vpop.permute.xlu0 %900
        %902 = vrot.lane.b32.xlu0 %v885, 99
        %v903 = vpop.permute.xlu0 %902
        %904 = vrot.lane.b32.xlu0 %v886, 99
        %v905 = vpop.permute.xlu0 %904
        %906 = vrot.lane.b32.xlu0 %v887, 99
        %v907 = vpop.permute.xlu0 %906
        %908 = vrot.lane.b32.xlu0 %v888, 99
        %v909 = vpop.permute.xlu0 %908
        %910 = vrot.lane.b32.xlu0 %v889, 99
        %v911 = vpop.permute.xlu0 %910
        %912 = vrot.lane.b32.xlu0 %v890, 99
        %v913 = vpop.permute.xlu0 %912
        %914 = vrot.lane.b32.xlu0 %v891, 99
        %v915 = vpop.permute.xlu0 %914
        %v916 = vrot.slane %v901, 1
        %v917 = vrot.slane %v903, 1
        %v918 = vrot.slane %v905, 1
        %v919 = vrot.slane %v907, 1
        %v920 = vrot.slane %v909, 1
        %v921 = vrot.slane %v911, 1
        %v922 = vrot.slane %v913, 1
        %v923 = vrot.slane %v915, 1
        %vm924 = vcmask 809984
        %v925 = vsel %vm924, %v901, %v916
        %v926 = vsel %vm924, %v903, %v917
        %v927 = vsel %vm924, %v905, %v918
        %v928 = vsel %vm924, %v907, %v919
        %v929 = vsel %vm924, %v909, %v920
        %v930 = vsel %vm924, %v911, %v921
        %v931 = vsel %vm924, %v913, %v922
        %v932 = vsel %vm924, %v915, %v923
        %s941 = scalar_lea.vmem [#allocation3], 6
        %942 = vst.msk [vmem:[%s941] ss:$8 sm:$0xf] %vm455, %v925
        %943 = vst.msk [vmem:[%s941] ss:$8 sm:$0x30] %vm455, %v925
        %s944 = scalar_lea.vmem [#allocation3], 198
        %945 = vst.msk [vmem:[%s944] ss:$8 sm:$0xf] %vm455, %v926
        %946 = vst.msk [vmem:[%s944] ss:$8 sm:$0x30] %vm455, %v926
        %s947 = scalar_lea.vmem [#allocation3], 390
        %948 = vst.msk [vmem:[%s947] ss:$8 sm:$0xf] %vm455, %v927
        %949 = vst.msk [vmem:[%s947] ss:$8 sm:$0x30] %vm455, %v927
        %s950 = scalar_lea.vmem [#allocation3], 582
        %951 = vst.msk [vmem:[%s950] ss:$8 sm:$0xf] %vm455, %v928
        %952 = vst.msk [vmem:[%s950] ss:$8 sm:$0x30] %vm455, %v928
        %s953 = scalar_lea.vmem [#allocation3], 774
        %954 = vst.msk [vmem:[%s953] ss:$8 sm:$0xf] %vm455, %v929
        %955 = vst.msk [vmem:[%s953] ss:$8 sm:$0x30] %vm455, %v929
        %s956 = scalar_lea.vmem [#allocation3], 966
        %957 = vst.msk [vmem:[%s956] ss:$8 sm:$0xf] %vm455, %v930
        %958 = vst.msk [vmem:[%s956] ss:$8 sm:$0x30] %vm455, %v930
        %s959 = scalar_lea.vmem [#allocation3], 1158
        %960 = vst.msk [vmem:[%s959] ss:$8 sm:$0xf] %vm455, %v931
        %961 = vst.msk [vmem:[%s959] ss:$8 sm:$0x30] %vm455, %v931
        %s962 = scalar_lea.vmem [#allocation3], 1350
        %963 = vst.msk [vmem:[%s962] ss:$8 sm:$0xf] %vm455, %v932
        %964 = vst.msk [vmem:[%s962] ss:$8 sm:$0x30] %vm455, %v932
        %v965 = vld [vmem:[#allocation2] sm:$0x3f]
        %v966 = vld [vmem:[#allocation2 + $0x7] sm:$0x3f]
        %v967 = vld [vmem:[#allocation2 + $0xe] sm:$0x3f]
        %v968 = vld [vmem:[#allocation2 + $0x15] sm:$0x3f]
        %v969 = vld [vmem:[#allocation2 + $0x1c] sm:$0x3f]
        %v970 = vld [vmem:[#allocation2 + $0x23] sm:$0x3f]
        %v971 = vld [vmem:[#allocation2 + $0x2a] sm:$0x3f]
        %v972 = vld [vmem:[#allocation2 + $0x31] sm:$0x3f]
        %981 = vrot.lane.b32.xlu0 %v965, 98
        %v982 = vpop.permute.xlu0 %981
        %983 = vrot.lane.b32.xlu0 %v966, 98
        %v984 = vpop.permute.xlu0 %983
        %985 = vrot.lane.b32.xlu0 %v967, 98
        %v986 = vpop.permute.xlu0 %985
        %987 = vrot.lane.b32.xlu0 %v968, 98
        %v988 = vpop.permute.xlu0 %987
        %989 = vrot.lane.b32.xlu0 %v969, 98
        %v990 = vpop.permute.xlu0 %989
        %991 = vrot.lane.b32.xlu0 %v970, 98
        %v992 = vpop.permute.xlu0 %991
        %993 = vrot.lane.b32.xlu0 %v971, 98
        %v994 = vpop.permute.xlu0 %993
        %995 = vrot.lane.b32.xlu0 %v972, 98
        %v996 = vpop.permute.xlu0 %995
        %v997 = vrot.slane %v982, 1
        %v998 = vrot.slane %v984, 1
        %v999 = vrot.slane %v986, 1
        %v1000 = vrot.slane %v988, 1
        %v1001 = vrot.slane %v990, 1
        %v1002 = vrot.slane %v992, 1
        %v1003 = vrot.slane %v994, 1
        %v1004 = vrot.slane %v996, 1
        %vm1005 = vcmask 801792
        %v1006 = vsel %vm1005, %v982, %v997
        %v1007 = vsel %vm1005, %v984, %v998
        %v1008 = vsel %vm1005, %v986, %v999
        %v1009 = vsel %vm1005, %v988, %v1000
        %v1010 = vsel %vm1005, %v990, %v1001
        %v1011 = vsel %vm1005, %v992, %v1002
        %v1012 = vsel %vm1005, %v994, %v1003
        %v1013 = vsel %vm1005, %v996, %v1004
        %s1022 = scalar_lea.vmem [#allocation3], 7
        %1023 = vst.msk [vmem:[%s1022] ss:$8 sm:$0xf] %vm455, %v1006
        %1024 = vst.msk [vmem:[%s1022] ss:$8 sm:$0x30] %vm455, %v1006
        %s1025 = scalar_lea.vmem [#allocation3], 199
        %1026 = vst.msk [vmem:[%s1025] ss:$8 sm:$0xf] %vm455, %v1007
        %1027 = vst.msk [vmem:[%s1025] ss:$8 sm:$0x30] %vm455, %v1007
        %s1028 = scalar_lea.vmem [#allocation3], 391
        %1029 = vst.msk [vmem:[%s1028] ss:$8 sm:$0xf] %vm455, %v1008
        %1030 = vst.msk [vmem:[%s1028] ss:$8 sm:$0x30] %vm455, %v1008
        %s1031 = scalar_lea.vmem [#allocation3], 583
        %1032 = vst.msk [vmem:[%s1031] ss:$8 sm:$0xf] %vm455, %v1009
        %1033 = vst.msk [vmem:[%s1031] ss:$8 sm:$0x30] %vm455, %v1009
        %s1034 = scalar_lea.vmem [#allocation3], 775
        %1035 = vst.msk [vmem:[%s1034] ss:$8 sm:$0xf] %vm455, %v1010
        %1036 = vst.msk [vmem:[%s1034] ss:$8 sm:$0x30] %vm455, %v1010
        %s1037 = scalar_lea.vmem [#allocation3], 967
        %1038 = vst.msk [vmem:[%s1037] ss:$8 sm:$0xf] %vm455, %v1011
        %1039 = vst.msk [vmem:[%s1037] ss:$8 sm:$0x30] %vm455, %v1011
        %s1040 = scalar_lea.vmem [#allocation3], 1159
        %1041 = vst.msk [vmem:[%s1040] ss:$8 sm:$0xf] %vm455, %v1012
        %1042 = vst.msk [vmem:[%s1040] ss:$8 sm:$0x30] %vm455, %v1012
        %s1043 = scalar_lea.vmem [#allocation3], 1351
        %1044 = vst.msk [vmem:[%s1043] ss:$8 sm:$0xf] %vm455, %v1013
        %1045 = vst.msk [vmem:[%s1043] ss:$8 sm:$0x30] %vm455, %v1013
        %v1046 = vld [vmem:[#allocation2] sm:$0x3f]
        %v1047 = vld [vmem:[#allocation2 + $0x7] sm:$0x3f]
        %v1048 = vld [vmem:[#allocation2 + $0xe] sm:$0x3f]
        %v1049 = vld [vmem:[#allocation2 + $0x15] sm:$0x3f]
        %v1050 = vld [vmem:[#allocation2 + $0x1c] sm:$0x3f]
        %v1051 = vld [vmem:[#allocation2 + $0x23] sm:$0x3f]
        %v1052 = vld [vmem:[#allocation2 + $0x2a] sm:$0x3f]
        %v1053 = vld [vmem:[#allocation2 + $0x31] sm:$0x3f]
        %1062 = vrot.lane.b32.xlu0 %v1046, 97
        %v1063 = vpop.permute.xlu0 %1062
        %1064 = vrot.lane.b32.xlu0 %v1047, 97
        %v1065 = vpop.permute.xlu0 %1064
        %1066 = vrot.lane.b32.xlu0 %v1048, 97
        %v1067 = vpop.permute.xlu0 %1066
        %1068 = vrot.lane.b32.xlu0 %v1049, 97
        %v1069 = vpop.permute.xlu0 %1068
        %1070 = vrot.lane.b32.xlu0 %v1050, 97
        %v1071 = vpop.permute.xlu0 %1070
        %1072 = vrot.lane.b32.xlu0 %v1051, 97
        %v1073 = vpop.permute.xlu0 %1072
        %1074 = vrot.lane.b32.xlu0 %v1052, 97
        %v1075 = vpop.permute.xlu0 %1074
        %1076 = vrot.lane.b32.xlu0 %v1053, 97
        %v1077 = vpop.permute.xlu0 %1076
        %v1078 = vrot.slane %v1063, 1
        %v1079 = vrot.slane %v1065, 1
        %v1080 = vrot.slane %v1067, 1
        %v1081 = vrot.slane %v1069, 1
        %v1082 = vrot.slane %v1071, 1
        %v1083 = vrot.slane %v1073, 1
        %v1084 = vrot.slane %v1075, 1
        %v1085 = vrot.slane %v1077, 1
        %vm1086 = vcmask 793600
        %v1087 = vsel %vm1086, %v1063, %v1078
        %v1088 = vsel %vm1086, %v1065, %v1079
        %v1089 = vsel %vm1086, %v1067, %v1080
        %v1090 = vsel %vm1086, %v1069, %v1081
        %v1091 = vsel %vm1086, %v1071, %v1082
        %v1092 = vsel %vm1086, %v1073, %v1083
        %v1093 = vsel %vm1086, %v1075, %v1084
        %v1094 = vsel %vm1086, %v1077, %v1085
        %s1103 = scalar_lea.vmem [#allocation3], 48
        %1104 = vst.msk [vmem:[%s1103] ss:$8 sm:$0xf] %vm455, %v1087
        %1105 = vst.msk [vmem:[%s1103] ss:$8 sm:$0x30] %vm455, %v1087
        %s1106 = scalar_lea.vmem [#allocation3], 240
        %1107 = vst.msk [vmem:[%s1106] ss:$8 sm:$0xf] %vm455, %v1088
        %1108 = vst.msk [vmem:[%s1106] ss:$8 sm:$0x30] %vm455, %v1088
        %s1109 = scalar_lea.vmem [#allocation3], 432
        %1110 = vst.msk [vmem:[%s1109] ss:$8 sm:$0xf] %vm455, %v1089
        %1111 = vst.msk [vmem:[%s1109] ss:$8 sm:$0x30] %vm455, %v1089
        %s1112 = scalar_lea.vmem [#allocation3], 624
        %1113 = vst.msk [vmem:[%s1112] ss:$8 sm:$0xf] %vm455, %v1090
        %1114 = vst.msk [vmem:[%s1112] ss:$8 sm:$0x30] %vm455, %v1090
        %s1115 = scalar_lea.vmem [#allocation3], 816
        %1116 = vst.msk [vmem:[%s1115] ss:$8 sm:$0xf] %vm455, %v1091
        %1117 = vst.msk [vmem:[%s1115] ss:$8 sm:$0x30] %vm455, %v1091
        %s1118 = scalar_lea.vmem [#allocation3], 1008
        %1119 = vst.msk [vmem:[%s1118] ss:$8 sm:$0xf] %vm455, %v1092
        %1120 = vst.msk [vmem:[%s1118] ss:$8 sm:$0x30] %vm455, %v1092
        %s1121 = scalar_lea.vmem [#allocation3], 1200
        %1122 = vst.msk [vmem:[%s1121] ss:$8 sm:$0xf] %vm455, %v1093
        %1123 = vst.msk [vmem:[%s1121] ss:$8 sm:$0x30] %vm455, %v1093
        %s1124 = scalar_lea.vmem [#allocation3], 1392
        %1125 = vst.msk [vmem:[%s1124] ss:$8 sm:$0xf] %vm455, %v1094
        %1126 = vst.msk [vmem:[%s1124] ss:$8 sm:$0x30] %vm455, %v1094
        %v1127 = vld [vmem:[#allocation2] sm:$0x3f]
        %v1128 = vld [vmem:[#allocation2 + $0x7] sm:$0x3f]
        %v1129 = vld [vmem:[#allocation2 + $0xe] sm:$0x3f]
        %v1130 = vld [vmem:[#allocation2 + $0x15] sm:$0x3f]
        %v1131 = vld [vmem:[#allocation2 + $0x1c] sm:$0x3f]
        %v1132 = vld [vmem:[#allocation2 + $0x23] sm:$0x3f]
        %v1133 = vld [vmem:[#allocation2 + $0x2a] sm:$0x3f]
        %v1134 = vld [vmem:[#allocation2 + $0x31] sm:$0x3f]
        %1143 = vrot.lane.b32.xlu0 %v1127, 96
        %v1144 = vpop.permute.xlu0 %1143
        %1145 = vrot.lane.b32.xlu0 %v1128, 96
        %v1146 = vpop.permute.xlu0 %1145
        %1147 = vrot.lane.b32.xlu0 %v1129, 96
        %v1148 = vpop.permute.xlu0 %1147
        %1149 = vrot.lane.b32.xlu0 %v1130, 96
        %v1150 = vpop.permute.xlu0 %1149
        %1151 = vrot.lane.b32.xlu0 %v1131, 96
        %v1152 = vpop.permute.xlu0 %1151
        %1153 = vrot.lane.b32.xlu0 %v1132, 96
        %v1154 = vpop.permute.xlu0 %1153
        %1155 = vrot.lane.b32.xlu0 %v1133, 96
        %v1156 = vpop.permute.xlu0 %1155
        %1157 = vrot.lane.b32.xlu0 %v1134, 96
        %v1158 = vpop.permute.xlu0 %1157
        %v1159 = vrot.slane %v1144, 1
        %v1160 = vrot.slane %v1146, 1
        %v1161 = vrot.slane %v1148, 1
        %v1162 = vrot.slane %v1150, 1
        %v1163 = vrot.slane %v1152, 1
        %v1164 = vrot.slane %v1154, 1
        %v1165 = vrot.slane %v1156, 1
        %v1166 = vrot.slane %v1158, 1
        %vm1167 = vcmask 785408
        %v1168 = vsel %vm1167, %v1144, %v1159
        %v1169 = vsel %vm1167, %v1146, %v1160
        %v1170 = vsel %vm1167, %v1148, %v1161
        %v1171 = vsel %vm1167, %v1150, %v1162
        %v1172 = vsel %vm1167, %v1152, %v1163
        %v1173 = vsel %vm1167, %v1154, %v1164
        %v1174 = vsel %vm1167, %v1156, %v1165
        %v1175 = vsel %vm1167, %v1158, %v1166
        %s1184 = scalar_lea.vmem [#allocation3], 49
        %1185 = vst.msk [vmem:[%s1184] ss:$8 sm:$0xf] %vm455, %v1168
        %1186 = vst.msk [vmem:[%s1184] ss:$8 sm:$0x30] %vm455, %v1168
        %s1187 = scalar_lea.vmem [#allocation3], 241
        %1188 = vst.msk [vmem:[%s1187] ss:$8 sm:$0xf] %vm455, %v1169
        %1189 = vst.msk [vmem:[%s1187] ss:$8 sm:$0x30] %vm455, %v1169
        %s1190 = scalar_lea.vmem [#allocation3], 433
        %1191 = vst.msk [vmem:[%s1190] ss:$8 sm:$0xf] %vm455, %v1170
        %1192 = vst.msk [vmem:[%s1190] ss:$8 sm:$0x30] %vm455, %v1170
        %s1193 = scalar_lea.vmem [#allocation3], 625
        %1194 = vst.msk [vmem:[%s1193] ss:$8 sm:$0xf] %vm455, %v1171
        %1195 = vst.msk [vmem:[%s1193] ss:$8 sm:$0x30] %vm455, %v1171
        %s1196 = scalar_lea.vmem [#allocation3], 817
        %1197 = vst.msk [vmem:[%s1196] ss:$8 sm:$0xf] %vm455, %v1172
        %1198 = vst.msk [vmem:[%s1196] ss:$8 sm:$0x30] %vm455, %v1172
        %s1199 = scalar_lea.vmem [#allocation3], 1009
        %1200 = vst.msk [vmem:[%s1199] ss:$8 sm:$0xf] %vm455, %v1173
        %1201 = vst.msk [vmem:[%s1199] ss:$8 sm:$0x30] %vm455, %v1173
        %s1202 = scalar_lea.vmem [#allocation3], 1201
        %1203 = vst.msk [vmem:[%s1202] ss:$8 sm:$0xf] %vm455, %v1174
        %1204 = vst.msk [vmem:[%s1202] ss:$8 sm:$0x30] %vm455, %v1174
        %s1205 = scalar_lea.vmem [#allocation3], 1393
        %1206 = vst.msk [vmem:[%s1205] ss:$8 sm:$0xf] %vm455, %v1175
        %1207 = vst.msk [vmem:[%s1205] ss:$8 sm:$0x30] %vm455, %v1175
        %v1208 = vld [vmem:[#allocation2] sm:$0x3f]
        %v1209 = vld [vmem:[#allocation2 + $0x7] sm:$0x3f]
        %v1210 = vld [vmem:[#allocation2 + $0xe] sm:$0x3f]
        %v1211 = vld [vmem:[#allocation2 + $0x15] sm:$0x3f]
        %v1212 = vld [vmem:[#allocation2 + $0x1c] sm:$0x3f]
        %v1213 = vld [vmem:[#allocation2 + $0x23] sm:$0x3f]
        %v1214 = vld [vmem:[#allocation2 + $0x2a] sm:$0x3f]
        %v1215 = vld [vmem:[#allocation2 + $0x31] sm:$0x3f]
        %1224 = vrot.lane.b32.xlu0 %v1208, 72
        %v1225 = vpop.permute.xlu0 %1224
        %1226 = vrot.lane.b32.xlu0 %v1209, 72
        %v1227 = vpop.permute.xlu0 %1226
        %1228 = vrot.lane.b32.xlu0 %v1210, 72
        %v1229 = vpop.permute.xlu0 %1228
        %1230 = vrot.lane.b32.xlu0 %v1211, 72
        %v1231 = vpop.permute.xlu0 %1230
        %1232 = vrot.lane.b32.xlu0 %v1212, 72
        %v1233 = vpop.permute.xlu0 %1232
        %1234 = vrot.lane.b32.xlu0 %v1213, 72
        %v1235 = vpop.permute.xlu0 %1234
        %1236 = vrot.lane.b32.xlu0 %v1214, 72
        %v1237 = vpop.permute.xlu0 %1236
        %1238 = vrot.lane.b32.xlu0 %v1215, 72
        %v1239 = vpop.permute.xlu0 %1238
        %v1240 = vrot.slane %v1225, 1
        %v1241 = vrot.slane %v1227, 1
        %v1242 = vrot.slane %v1229, 1
        %v1243 = vrot.slane %v1231, 1
        %v1244 = vrot.slane %v1233, 1
        %v1245 = vrot.slane %v1235, 1
        %v1246 = vrot.slane %v1237, 1
        %v1247 = vrot.slane %v1239, 1
        %vm1248 = vcmask 588800
        %v1249 = vsel %vm1248, %v1225, %v1240
        %v1250 = vsel %vm1248, %v1227, %v1241
        %v1251 = vsel %vm1248, %v1229, %v1242
        %v1252 = vsel %vm1248, %v1231, %v1243
        %v1253 = vsel %vm1248, %v1233, %v1244
        %v1254 = vsel %vm1248, %v1235, %v1245
        %v1255 = vsel %vm1248, %v1237, %v1246
        %v1256 = vsel %vm1248, %v1239, %v1247
        %s1265 = scalar_lea.vmem [#allocation3], 50
        %1266 = vst.msk [vmem:[%s1265] ss:$8 sm:$0xf] %vm455, %v1249
        %1267 = vst.msk [vmem:[%s1265] ss:$8 sm:$0x30] %vm455, %v1249
        %s1268 = scalar_lea.vmem [#allocation3], 242
        %1269 = vst.msk [vmem:[%s1268] ss:$8 sm:$0xf] %vm455, %v1250
        %1270 = vst.msk [vmem:[%s1268] ss:$8 sm:$0x30] %vm455, %v1250
        %s1271 = scalar_lea.vmem [#allocation3], 434
        %1272 = vst.msk [vmem:[%s1271] ss:$8 sm:$0xf] %vm455, %v1251
        %1273 = vst.msk [vmem:[%s1271] ss:$8 sm:$0x30] %vm455, %v1251
        %s1274 = scalar_lea.vmem [#allocation3], 626
        %1275 = vst.msk [vmem:[%s1274] ss:$8 sm:$0xf] %vm455, %v1252
        %1276 = vst.msk [vmem:[%s1274] ss:$8 sm:$0x30] %vm455, %v1252
        %s1277 = scalar_lea.vmem [#allocation3], 818
        %1278 = vst.msk [vmem:[%s1277] ss:$8 sm:$0xf] %vm455, %v1253
        %1279 = vst.msk [vmem:[%s1277] ss:$8 sm:$0x30] %vm455, %v1253
        %s1280 = scalar_lea.vmem [#allocation3], 1010
        %1281 = vst.msk [vmem:[%s1280] ss:$8 sm:$0xf] %vm455, %v1254
        %1282 = vst.msk [vmem:[%s1280] ss:$8 sm:$0x30] %vm455, %v1254
        %s1283 = scalar_lea.vmem [#allocation3], 1202
        %1284 = vst.msk [vmem:[%s1283] ss:$8 sm:$0xf] %vm455, %v1255
        %1285 = vst.msk [vmem:[%s1283] ss:$8 sm:$0x30] %vm455, %v1255
        %s1286 = scalar_lea.vmem [#allocation3], 1394
        %1287 = vst.msk [vmem:[%s1286] ss:$8 sm:$0xf] %vm455, %v1256
        %1288 = vst.msk [vmem:[%s1286] ss:$8 sm:$0x30] %vm455, %v1256
        %v1289 = vld [vmem:[#allocation2] sm:$0x3f]
        %v1290 = vld [vmem:[#allocation2 + $0x7] sm:$0x3f]
        %v1291 = vld [vmem:[#allocation2 + $0xe] sm:$0x3f]
        %v1292 = vld [vmem:[#allocation2 + $0x15] sm:$0x3f]
        %v1293 = vld [vmem:[#allocation2 + $0x1c] sm:$0x3f]
        %v1294 = vld [vmem:[#allocation2 + $0x23] sm:$0x3f]
        %v1295 = vld [vmem:[#allocation2 + $0x2a] sm:$0x3f]
        %v1296 = vld [vmem:[#allocation2 + $0x31] sm:$0x3f]
        %1305 = vrot.lane.b32.xlu0 %v1289, 71
        %v1306 = vpop.permute.xlu0 %1305
        %1307 = vrot.lane.b32.xlu0 %v1290, 71
        %v1308 = vpop.permute.xlu0 %1307
        %1309 = vrot.lane.b32.xlu0 %v1291, 71
        %v1310 = vpop.permute.xlu0 %1309
        %1311 = vrot.lane.b32.xlu0 %v1292, 71
        %v1312 = vpop.permute.xlu0 %1311
        %1313 = vrot.lane.b32.xlu0 %v1293, 71
        %v1314 = vpop.permute.xlu0 %1313
        %1315 = vrot.lane.b32.xlu0 %v1294, 71
        %v1316 = vpop.permute.xlu0 %1315
        %1317 = vrot.lane.b32.xlu0 %v1295, 71
        %v1318 = vpop.permute.xlu0 %1317
        %1319 = vrot.lane.b32.xlu0 %v1296, 71
        %v1320 = vpop.permute.xlu0 %1319
        %v1321 = vrot.slane %v1306, 1
        %v1322 = vrot.slane %v1308, 1
        %v1323 = vrot.slane %v1310, 1
        %v1324 = vrot.slane %v1312, 1
        %v1325 = vrot.slane %v1314, 1
        %v1326 = vrot.slane %v1316, 1
        %v1327 = vrot.slane %v1318, 1
        %v1328 = vrot.slane %v1320, 1
        %vm1329 = vcmask 580608
        %v1330 = vsel %vm1329, %v1306, %v1321
        %v1331 = vsel %vm1329, %v1308, %v1322
        %v1332 = vsel %vm1329, %v1310, %v1323
        %v1333 = vsel %vm1329, %v1312, %v1324
        %v1334 = vsel %vm1329, %v1314, %v1325
        %v1335 = vsel %vm1329, %v1316, %v1326
        %v1336 = vsel %vm1329, %v1318, %v1327
        %v1337 = vsel %vm1329, %v1320, %v1328
        %s1346 = scalar_lea.vmem [#allocation3], 51
        %1347 = vst.msk [vmem:[%s1346] ss:$8 sm:$0xf] %vm455, %v1330
        %1348 = vst.msk [vmem:[%s1346] ss:$8 sm:$0x30] %vm455, %v1330
        %s1349 = scalar_lea.vmem [#allocation3], 243
        %1350 = vst.msk [vmem:[%s1349] ss:$8 sm:$0xf] %vm455, %v1331
        %1351 = vst.msk [vmem:[%s1349] ss:$8 sm:$0x30] %vm455, %v1331
        %s1352 = scalar_lea.vmem [#allocation3], 435
        %1353 = vst.msk [vmem:[%s1352] ss:$8 sm:$0xf] %vm455, %v1332
        %1354 = vst.msk [vmem:[%s1352] ss:$8 sm:$0x30] %vm455, %v1332
        %s1355 = scalar_lea.vmem [#allocation3], 627
        %1356 = vst.msk [vmem:[%s1355] ss:$8 sm:$0xf] %vm455, %v1333
        %1357 = vst.msk [vmem:[%s1355] ss:$8 sm:$0x30] %vm455, %v1333
        %s1358 = scalar_lea.vmem [#allocation3], 819
        %1359 = vst.msk [vmem:[%s1358] ss:$8 sm:$0xf] %vm455, %v1334
        %1360 = vst.msk [vmem:[%s1358] ss:$8 sm:$0x30] %vm455, %v1334
        %s1361 = scalar_lea.vmem [#allocation3], 1011
        %1362 = vst.msk [vmem:[%s1361] ss:$8 sm:$0xf] %vm455, %v1335
        %1363 = vst.msk [vmem:[%s1361] ss:$8 sm:$0x30] %vm455, %v1335
        %s1364 = scalar_lea.vmem [#allocation3], 1203
        %1365 = vst.msk [vmem:[%s1364] ss:$8 sm:$0xf] %vm455, %v1336
        %1366 = vst.msk [vmem:[%s1364] ss:$8 sm:$0x30] %vm455, %v1336
        %s1367 = scalar_lea.vmem [#allocation3], 1395
        %1368 = vst.msk [vmem:[%s1367] ss:$8 sm:$0xf] %vm455, %v1337
        %1369 = vst.msk [vmem:[%s1367] ss:$8 sm:$0x30] %vm455, %v1337
        %v1370 = vld [vmem:[#allocation2] sm:$0x3f]
        %v1371 = vld [vmem:[#allocation2 + $0x7] sm:$0x3f]
        %v1372 = vld [vmem:[#allocation2 + $0xe] sm:$0x3f]
        %v1373 = vld [vmem:[#allocation2 + $0x15] sm:$0x3f]
        %v1374 = vld [vmem:[#allocation2 + $0x1c] sm:$0x3f]
        %v1375 = vld [vmem:[#allocation2 + $0x23] sm:$0x3f]
        %v1376 = vld [vmem:[#allocation2 + $0x2a] sm:$0x3f]
        %v1377 = vld [vmem:[#allocation2 + $0x31] sm:$0x3f]
        %1386 = vrot.lane.b32.xlu0 %v1370, 70
        %v1387 = vpop.permute.xlu0 %1386
        %1388 = vrot.lane.b32.xlu0 %v1371, 70
        %v1389 = vpop.permute.xlu0 %1388
        %1390 = vrot.lane.b32.xlu0 %v1372, 70
        %v1391 = vpop.permute.xlu0 %1390
        %1392 = vrot.lane.b32.xlu0 %v1373, 70
        %v1393 = vpop.permute.xlu0 %1392
        %1394 = vrot.lane.b32.xlu0 %v1374, 70
        %v1395 = vpop.permute.xlu0 %1394
        %1396 = vrot.lane.b32.xlu0 %v1375, 70
        %v1397 = vpop.permute.xlu0 %1396
        %1398 = vrot.lane.b32.xlu0 %v1376, 70
        %v1399 = vpop.permute.xlu0 %1398
        %1400 = vrot.lane.b32.xlu0 %v1377, 70
        %v1401 = vpop.permute.xlu0 %1400
        %v1402 = vrot.slane %v1387, 1
        %v1403 = vrot.slane %v1389, 1
        %v1404 = vrot.slane %v1391, 1
        %v1405 = vrot.slane %v1393, 1
        %v1406 = vrot.slane %v1395, 1
        %v1407 = vrot.slane %v1397, 1
        %v1408 = vrot.slane %v1399, 1
        %v1409 = vrot.slane %v1401, 1
        %vm1410 = vcmask 572416
        %v1411 = vsel %vm1410, %v1387, %v1402
        %v1412 = vsel %vm1410, %v1389, %v1403
        %v1413 = vsel %vm1410, %v1391, %v1404
        %v1414 = vsel %vm1410, %v1393, %v1405
        %v1415 = vsel %vm1410, %v1395, %v1406
        %v1416 = vsel %vm1410, %v1397, %v1407
        %v1417 = vsel %vm1410, %v1399, %v1408
        %v1418 = vsel %vm1410, %v1401, %v1409
        %s1427 = scalar_lea.vmem [#allocation3], 52
        %1428 = vst.msk [vmem:[%s1427] ss:$8 sm:$0xf] %vm455, %v1411
        %1429 = vst.msk [vmem:[%s1427] ss:$8 sm:$0x30] %vm455, %v1411
        %s1430 = scalar_lea.vmem [#allocation3], 244
        %1431 = vst.msk [vmem:[%s1430] ss:$8 sm:$0xf] %vm455, %v1412
        %1432 = vst.msk [vmem:[%s1430] ss:$8 sm:$0x30] %vm455, %v1412
        %s1433 = scalar_lea.vmem [#allocation3], 436
        %1434 = vst.msk [vmem:[%s1433] ss:$8 sm:$0xf] %vm455, %v1413
        %1435 = vst.msk [vmem:[%s1433] ss:$8 sm:$0x30] %vm455, %v1413
        %s1436 = scalar_lea.vmem [#allocation3], 628
        %1437 = vst.msk [vmem:[%s1436] ss:$8 sm:$0xf] %vm455, %v1414
        %1438 = vst.msk [vmem:[%s1436] ss:$8 sm:$0x30] %vm455, %v1414
        %s1439 = scalar_lea.vmem [#allocation3], 820
        %1440 = vst.msk [vmem:[%s1439] ss:$8 sm:$0xf] %vm455, %v1415
        %1441 = vst.msk [vmem:[%s1439] ss:$8 sm:$0x30] %vm455, %v1415
        %s1442 = scalar_lea.vmem [#allocation3], 1012
        %1443 = vst.msk [vmem:[%s1442] ss:$8 sm:$0xf] %vm455, %v1416
        %1444 = vst.msk [vmem:[%s1442] ss:$8 sm:$0x30] %vm455, %v1416
        %s1445 = scalar_lea.vmem [#allocation3], 1204
        %1446 = vst.msk [vmem:[%s1445] ss:$8 sm:$0xf] %vm455, %v1417
        %1447 = vst.msk [vmem:[%s1445] ss:$8 sm:$0x30] %vm455, %v1417
        %s1448 = scalar_lea.vmem [#allocation3], 1396
        %1449 = vst.msk [vmem:[%s1448] ss:$8 sm:$0xf] %vm455, %v1418
        %1450 = vst.msk [vmem:[%s1448] ss:$8 sm:$0x30] %vm455, %v1418
        %v1451 = vld [vmem:[#allocation2] sm:$0x3f]
        %v1452 = vld [vmem:[#allocation2 + $0x7] sm:$0x3f]
        %v1453 = vld [vmem:[#allocation2 + $0xe] sm:$0x3f]
        %v1454 = vld [vmem:[#allocation2 + $0x15] sm:$0x3f]
        %v1455 = vld [vmem:[#allocation2 + $0x1c] sm:$0x3f]
        %v1456 = vld [vmem:[#allocation2 + $0x23] sm:$0x3f]
        %v1457 = vld [vmem:[#allocation2 + $0x2a] sm:$0x3f]
        %v1458 = vld [vmem:[#allocation2 + $0x31] sm:$0x3f]
        %1467 = vrot.lane.b32.xlu0 %v1451, 69
        %v1468 = vpop.permute.xlu0 %1467
        %1469 = vrot.lane.b32.xlu0 %v1452, 69
        %v1470 = vpop.permute.xlu0 %1469
        %1471 = vrot.lane.b32.xlu0 %v1453, 69
        %v1472 = vpop.permute.xlu0 %1471
        %1473 = vrot.lane.b32.xlu0 %v1454, 69
        %v1474 = vpop.permute.xlu0 %1473
        %1475 = vrot.lane.b32.xlu0 %v1455, 69
        %v1476 = vpop.permute.xlu0 %1475
        %1477 = vrot.lane.b32.xlu0 %v1456, 69
        %v1478 = vpop.permute.xlu0 %1477
        %1479 = vrot.lane.b32.xlu0 %v1457, 69
        %v1480 = vpop.permute.xlu0 %1479
        %1481 = vrot.lane.b32.xlu0 %v1458, 69
        %v1482 = vpop.permute.xlu0 %1481
        %v1483 = vrot.slane %v1468, 1
        %v1484 = vrot.slane %v1470, 1
        %v1485 = vrot.slane %v1472, 1
        %v1486 = vrot.slane %v1474, 1
        %v1487 = vrot.slane %v1476, 1
        %v1488 = vrot.slane %v1478, 1
        %v1489 = vrot.slane %v1480, 1
        %v1490 = vrot.slane %v1482, 1
        %vm1491 = vcmask 564224
        %v1492 = vsel %vm1491, %v1468, %v1483
        %v1493 = vsel %vm1491, %v1470, %v1484
        %v1494 = vsel %vm1491, %v1472, %v1485
        %v1495 = vsel %vm1491, %v1474, %v1486
        %v1496 = vsel %vm1491, %v1476, %v1487
        %v1497 = vsel %vm1491, %v1478, %v1488
        %v1498 = vsel %vm1491, %v1480, %v1489
        %v1499 = vsel %vm1491, %v1482, %v1490
        %s1508 = scalar_lea.vmem [#allocation3], 53
        %1509 = vst.msk [vmem:[%s1508] ss:$8 sm:$0xf] %vm455, %v1492
        %1510 = vst.msk [vmem:[%s1508] ss:$8 sm:$0x30] %vm455, %v1492
        %s1511 = scalar_lea.vmem [#allocation3], 245
        %1512 = vst.msk [vmem:[%s1511] ss:$8 sm:$0xf] %vm455, %v1493
        %1513 = vst.msk [vmem:[%s1511] ss:$8 sm:$0x30] %vm455, %v1493
        %s1514 = scalar_lea.vmem [#allocation3], 437
        %1515 = vst.msk [vmem:[%s1514] ss:$8 sm:$0xf] %vm455, %v1494
        %1516 = vst.msk [vmem:[%s1514] ss:$8 sm:$0x30] %vm455, %v1494
        %s1517 = scalar_lea.vmem [#allocation3], 629
        %1518 = vst.msk [vmem:[%s1517] ss:$8 sm:$0xf] %vm455, %v1495
        %1519 = vst.msk [vmem:[%s1517] ss:$8 sm:$0x30] %vm455, %v1495
        %s1520 = scalar_lea.vmem [#allocation3], 821
        %1521 = vst.msk [vmem:[%s1520] ss:$8 sm:$0xf] %vm455, %v1496
        %1522 = vst.msk [vmem:[%s1520] ss:$8 sm:$0x30] %vm455, %v1496
        %s1523 = scalar_lea.vmem [#allocation3], 1013
        %1524 = vst.msk [vmem:[%s1523] ss:$8 sm:$0xf] %vm455, %v1497
        %1525 = vst.msk [vmem:[%s1523] ss:$8 sm:$0x30] %vm455, %v1497
        %s1526 = scalar_lea.vmem [#allocation3], 1205
        %1527 = vst.msk [vmem:[%s1526] ss:$8 sm:$0xf] %vm455, %v1498
        %1528 = vst.msk [vmem:[%s1526] ss:$8 sm:$0x30] %vm455, %v1498
        %s1529 = scalar_lea.vmem [#allocation3], 1397
        %1530 = vst.msk [vmem:[%s1529] ss:$8 sm:$0xf] %vm455, %v1499
        %1531 = vst.msk [vmem:[%s1529] ss:$8 sm:$0x30] %vm455, %v1499
        %v1532 = vld [vmem:[#allocation2] sm:$0x3f]
        %v1533 = vld [vmem:[#allocation2 + $0x7] sm:$0x3f]
        %v1534 = vld [vmem:[#allocation2 + $0xe] sm:$0x3f]
        %v1535 = vld [vmem:[#allocation2 + $0x15] sm:$0x3f]
        %v1536 = vld [vmem:[#allocation2 + $0x1c] sm:$0x3f]
        %v1537 = vld [vmem:[#allocation2 + $0x23] sm:$0x3f]
        %v1538 = vld [vmem:[#allocation2 + $0x2a] sm:$0x3f]
        %v1539 = vld [vmem:[#allocation2 + $0x31] sm:$0x3f]
        %1548 = vrot.lane.b32.xlu0 %v1532, 68
        %v1549 = vpop.permute.xlu0 %1548
        %1550 = vrot.lane.b32.xlu0 %v1533, 68
        %v1551 = vpop.permute.xlu0 %1550
        %1552 = vrot.lane.b32.xlu0 %v1534, 68
        %v1553 = vpop.permute.xlu0 %1552
        %1554 = vrot.lane.b32.xlu0 %v1535, 68
        %v1555 = vpop.permute.xlu0 %1554
        %1556 = vrot.lane.b32.xlu0 %v1536, 68
        %v1557 = vpop.permute.xlu0 %1556
        %1558 = vrot.lane.b32.xlu0 %v1537, 68
        %v1559 = vpop.permute.xlu0 %1558
        %1560 = vrot.lane.b32.xlu0 %v1538, 68
        %v1561 = vpop.permute.xlu0 %1560
        %1562 = vrot.lane.b32.xlu0 %v1539, 68
        %v1563 = vpop.permute.xlu0 %1562
        %v1564 = vrot.slane %v1549, 1
        %v1565 = vrot.slane %v1551, 1
        %v1566 = vrot.slane %v1553, 1
        %v1567 = vrot.slane %v1555, 1
        %v1568 = vrot.slane %v1557, 1
        %v1569 = vrot.slane %v1559, 1
        %v1570 = vrot.slane %v1561, 1
        %v1571 = vrot.slane %v1563, 1
        %vm1572 = vcmask 556032
        %v1573 = vsel %vm1572, %v1549, %v1564
        %v1574 = vsel %vm1572, %v1551, %v1565
        %v1575 = vsel %vm1572, %v1553, %v1566
        %v1576 = vsel %vm1572, %v1555, %v1567
        %v1577 = vsel %vm1572, %v1557, %v1568
        %v1578 = vsel %vm1572, %v1559, %v1569
        %v1579 = vsel %vm1572, %v1561, %v1570
        %v1580 = vsel %vm1572, %v1563, %v1571
        %s1589 = scalar_lea.vmem [#allocation3], 54
        %1590 = vst.msk [vmem:[%s1589] ss:$8 sm:$0xf] %vm455, %v1573
        %1591 = vst.msk [vmem:[%s1589] ss:$8 sm:$0x30] %vm455, %v1573
        %s1592 = scalar_lea.vmem [#allocation3], 246
        %1593 = vst.msk [vmem:[%s1592] ss:$8 sm:$0xf] %vm455, %v1574
        %1594 = vst.msk [vmem:[%s1592] ss:$8 sm:$0x30] %vm455, %v1574
        %s1595 = scalar_lea.vmem [#allocation3], 438
        %1596 = vst.msk [vmem:[%s1595] ss:$8 sm:$0xf] %vm455, %v1575
        %1597 = vst.msk [vmem:[%s1595] ss:$8 sm:$0x30] %vm455, %v1575
        %s1598 = scalar_lea.vmem [#allocation3], 630
        %1599 = vst.msk [vmem:[%s1598] ss:$8 sm:$0xf] %vm455, %v1576
        %1600 = vst.msk [vmem:[%s1598] ss:$8 sm:$0x30] %vm455, %v1576
        %s1601 = scalar_lea.vmem [#allocation3], 822
        %1602 = vst.msk [vmem:[%s1601] ss:$8 sm:$0xf] %vm455, %v1577
        %1603 = vst.msk [vmem:[%s1601] ss:$8 sm:$0x30] %vm455, %v1577
        %s1604 = scalar_lea.vmem [#allocation3], 1014
        %1605 = vst.msk [vmem:[%s1604] ss:$8 sm:$0xf] %vm455, %v1578
        %1606 = vst.msk [vmem:[%s1604] ss:$8 sm:$0x30] %vm455, %v1578
        %s1607 = scalar_lea.vmem [#allocation3], 1206
        %1608 = vst.msk [vmem:[%s1607] ss:$8 sm:$0xf] %vm455, %v1579
        %1609 = vst.msk [vmem:[%s1607] ss:$8 sm:$0x30] %vm455, %v1579
        %s1610 = scalar_lea.vmem [#allocation3], 1398
        %1611 = vst.msk [vmem:[%s1610] ss:$8 sm:$0xf] %vm455, %v1580
        %1612 = vst.msk [vmem:[%s1610] ss:$8 sm:$0x30] %vm455, %v1580
        %v1613 = vld [vmem:[#allocation2] sm:$0x3f]
        %v1614 = vld [vmem:[#allocation2 + $0x7] sm:$0x3f]
        %v1615 = vld [vmem:[#allocation2 + $0xe] sm:$0x3f]
        %v1616 = vld [vmem:[#allocation2 + $0x15] sm:$0x3f]
        %v1617 = vld [vmem:[#allocation2 + $0x1c] sm:$0x3f]
        %v1618 = vld [vmem:[#allocation2 + $0x23] sm:$0x3f]
        %v1619 = vld [vmem:[#allocation2 + $0x2a] sm:$0x3f]
        %v1620 = vld [vmem:[#allocation2 + $0x31] sm:$0x3f]
        %1629 = vrot.lane.b32.xlu0 %v1613, 44
        %v1630 = vpop.permute.xlu0 %1629
        %1631 = vrot.lane.b32.xlu0 %v1614, 44
        %v1632 = vpop.permute.xlu0 %1631
        %1633 = vrot.lane.b32.xlu0 %v1615, 44
        %v1634 = vpop.permute.xlu0 %1633
        %1635 = vrot.lane.b32.xlu0 %v1616, 44
        %v1636 = vpop.permute.xlu0 %1635
        %1637 = vrot.lane.b32.xlu0 %v1617, 44
        %v1638 = vpop.permute.xlu0 %1637
        %1639 = vrot.lane.b32.xlu0 %v1618, 44
        %v1640 = vpop.permute.xlu0 %1639
        %1641 = vrot.lane.b32.xlu0 %v1619, 44
        %v1642 = vpop.permute.xlu0 %1641
        %1643 = vrot.lane.b32.xlu0 %v1620, 44
        %v1644 = vpop.permute.xlu0 %1643
        %v1645 = vrot.slane %v1630, 1
        %v1646 = vrot.slane %v1632, 1
        %v1647 = vrot.slane %v1634, 1
        %v1648 = vrot.slane %v1636, 1
        %v1649 = vrot.slane %v1638, 1
        %v1650 = vrot.slane %v1640, 1
        %v1651 = vrot.slane %v1642, 1
        %v1652 = vrot.slane %v1644, 1
        %vm1653 = vcmask 359424
        %v1654 = vsel %vm1653, %v1630, %v1645
        %v1655 = vsel %vm1653, %v1632, %v1646
        %v1656 = vsel %vm1653, %v1634, %v1647
        %v1657 = vsel %vm1653, %v1636, %v1648
        %v1658 = vsel %vm1653, %v1638, %v1649
        %v1659 = vsel %vm1653, %v1640, %v1650
        %v1660 = vsel %vm1653, %v1642, %v1651
        %v1661 = vsel %vm1653, %v1644, %v1652
        %s1670 = scalar_lea.vmem [#allocation3], 55
        %1671 = vst.msk [vmem:[%s1670] ss:$8 sm:$0xf] %vm455, %v1654
        %1672 = vst.msk [vmem:[%s1670] ss:$8 sm:$0x30] %vm455, %v1654
        %s1673 = scalar_lea.vmem [#allocation3], 247
        %1674 = vst.msk [vmem:[%s1673] ss:$8 sm:$0xf] %vm455, %v1655
        %1675 = vst.msk [vmem:[%s1673] ss:$8 sm:$0x30] %vm455, %v1655
        %s1676 = scalar_lea.vmem [#allocation3], 439
        %1677 = vst.msk [vmem:[%s1676] ss:$8 sm:$0xf] %vm455, %v1656
        %1678 = vst.msk [vmem:[%s1676] ss:$8 sm:$0x30] %vm455, %v1656
        %s1679 = scalar_lea.vmem [#allocation3], 631
        %1680 = vst.msk [vmem:[%s1679] ss:$8 sm:$0xf] %vm455, %v1657
        %1681 = vst.msk [vmem:[%s1679] ss:$8 sm:$0x30] %vm455, %v1657
        %s1682 = scalar_lea.vmem [#allocation3], 823
        %1683 = vst.msk [vmem:[%s1682] ss:$8 sm:$0xf] %vm455, %v1658
        %1684 = vst.msk [vmem:[%s1682] ss:$8 sm:$0x30] %vm455, %v1658
        %s1685 = scalar_lea.vmem [#allocation3], 1015
        %1686 = vst.msk [vmem:[%s1685] ss:$8 sm:$0xf] %vm455, %v1659
        %1687 = vst.msk [vmem:[%s1685] ss:$8 sm:$0x30] %vm455, %v1659
        %s1688 = scalar_lea.vmem [#allocation3], 1207
        %1689 = vst.msk [vmem:[%s1688] ss:$8 sm:$0xf] %vm455, %v1660
        %1690 = vst.msk [vmem:[%s1688] ss:$8 sm:$0x30] %vm455, %v1660
        %s1691 = scalar_lea.vmem [#allocation3], 1399
        %1692 = vst.msk [vmem:[%s1691] ss:$8 sm:$0xf] %vm455, %v1661
        %1693 = vst.msk [vmem:[%s1691] ss:$8 sm:$0x30] %vm455, %v1661
        %v1694 = vld [vmem:[#allocation2] sm:$0x3f]
        %v1695 = vld [vmem:[#allocation2 + $0x7] sm:$0x3f]
        %v1696 = vld [vmem:[#allocation2 + $0xe] sm:$0x3f]
        %v1697 = vld [vmem:[#allocation2 + $0x15] sm:$0x3f]
        %v1698 = vld [vmem:[#allocation2 + $0x1c] sm:$0x3f]
        %v1699 = vld [vmem:[#allocation2 + $0x23] sm:$0x3f]
        %v1700 = vld [vmem:[#allocation2 + $0x2a] sm:$0x3f]
        %v1701 = vld [vmem:[#allocation2 + $0x31] sm:$0x3f]
        %1710 = vrot.lane.b32.xlu0 %v1694, 43
        %v1711 = vpop.permute.xlu0 %1710
        %1712 = vrot.lane.b32.xlu0 %v1695, 43
        %v1713 = vpop.permute.xlu0 %1712
        %1714 = vrot.lane.b32.xlu0 %v1696, 43
        %v1715 = vpop.permute.xlu0 %1714
        %1716 = vrot.lane.b32.xlu0 %v1697, 43
        %v1717 = vpop.permute.xlu0 %1716
        %1718 = vrot.lane.b32.xlu0 %v1698, 43
        %v1719 = vpop.permute.xlu0 %1718
        %1720 = vrot.lane.b32.xlu0 %v1699, 43
        %v1721 = vpop.permute.xlu0 %1720
        %1722 = vrot.lane.b32.xlu0 %v1700, 43
        %v1723 = vpop.permute.xlu0 %1722
        %1724 = vrot.lane.b32.xlu0 %v1701, 43
        %v1725 = vpop.permute.xlu0 %1724
        %v1726 = vrot.slane %v1711, 1
        %v1727 = vrot.slane %v1713, 1
        %v1728 = vrot.slane %v1715, 1
        %v1729 = vrot.slane %v1717, 1
        %v1730 = vrot.slane %v1719, 1
        %v1731 = vrot.slane %v1721, 1
        %v1732 = vrot.slane %v1723, 1
        %v1733 = vrot.slane %v1725, 1
        %vm1734 = vcmask 351232
        %v1735 = vsel %vm1734, %v1711, %v1726
        %v1736 = vsel %vm1734, %v1713, %v1727
        %v1737 = vsel %vm1734, %v1715, %v1728
        %v1738 = vsel %vm1734, %v1717, %v1729
        %v1739 = vsel %vm1734, %v1719, %v1730
        %v1740 = vsel %vm1734, %v1721, %v1731
        %v1741 = vsel %vm1734, %v1723, %v1732
        %v1742 = vsel %vm1734, %v1725, %v1733
        %s1751 = scalar_lea.vmem [#allocation3], 96
        %1752 = vst.msk [vmem:[%s1751] ss:$8 sm:$0xf] %vm455, %v1735
        %1753 = vst.msk [vmem:[%s1751] ss:$8 sm:$0x30] %vm455, %v1735
        %s1754 = scalar_lea.vmem [#allocation3], 288
        %1755 = vst.msk [vmem:[%s1754] ss:$8 sm:$0xf] %vm455, %v1736
        %1756 = vst.msk [vmem:[%s1754] ss:$8 sm:$0x30] %vm455, %v1736
        %s1757 = scalar_lea.vmem [#allocation3], 480
        %1758 = vst.msk [vmem:[%s1757] ss:$8 sm:$0xf] %vm455, %v1737
        %1759 = vst.msk [vmem:[%s1757] ss:$8 sm:$0x30] %vm455, %v1737
        %s1760 = scalar_lea.vmem [#allocation3], 672
        %1761 = vst.msk [vmem:[%s1760] ss:$8 sm:$0xf] %vm455, %v1738
        %1762 = vst.msk [vmem:[%s1760] ss:$8 sm:$0x30] %vm455, %v1738
        %s1763 = scalar_lea.vmem [#allocation3], 864
        %1764 = vst.msk [vmem:[%s1763] ss:$8 sm:$0xf] %vm455, %v1739
        %1765 = vst.msk [vmem:[%s1763] ss:$8 sm:$0x30] %vm455, %v1739
        %s1766 = scalar_lea.vmem [#allocation3], 1056
        %1767 = vst.msk [vmem:[%s1766] ss:$8 sm:$0xf] %vm455, %v1740
        %1768 = vst.msk [vmem:[%s1766] ss:$8 sm:$0x30] %vm455, %v1740
        %s1769 = scalar_lea.vmem [#allocation3], 1248
        %1770 = vst.msk [vmem:[%s1769] ss:$8 sm:$0xf] %vm455, %v1741
        %1771 = vst.msk [vmem:[%s1769] ss:$8 sm:$0x30] %vm455, %v1741
        %s1772 = scalar_lea.vmem [#allocation3], 1440
        %1773 = vst.msk [vmem:[%s1772] ss:$8 sm:$0xf] %vm455, %v1742
        %1774 = vst.msk [vmem:[%s1772] ss:$8 sm:$0x30] %vm455, %v1742
        %v1775 = vld [vmem:[#allocation2] sm:$0x3f]
        %v1776 = vld [vmem:[#allocation2 + $0x7] sm:$0x3f]
        %v1777 = vld [vmem:[#allocation2 + $0xe] sm:$0x3f]
        %v1778 = vld [vmem:[#allocation2 + $0x15] sm:$0x3f]
        %v1779 = vld [vmem:[#allocation2 + $0x1c] sm:$0x3f]
        %v1780 = vld [vmem:[#allocation2 + $0x23] sm:$0x3f]
        %v1781 = vld [vmem:[#allocation2 + $0x2a] sm:$0x3f]
        %v1782 = vld [vmem:[#allocation2 + $0x31] sm:$0x3f]
        %1791 = vrot.lane.b32.xlu0 %v1775, 42
        %v1792 = vpop.permute.xlu0 %1791
        %1793 = vrot.lane.b32.xlu0 %v1776, 42
        %v1794 = vpop.permute.xlu0 %1793
        %1795 = vrot.lane.b32.xlu0 %v1777, 42
        %v1796 = vpop.permute.xlu0 %1795
        %1797 = vrot.lane.b32.xlu0 %v1778, 42
        %v1798 = vpop.permute.xlu0 %1797
        %1799 = vrot.lane.b32.xlu0 %v1779, 42
        %v1800 = vpop.permute.xlu0 %1799
        %1801 = vrot.lane.b32.xlu0 %v1780, 42
        %v1802 = vpop.permute.xlu0 %1801
        %1803 = vrot.lane.b32.xlu0 %v1781, 42
        %v1804 = vpop.permute.xlu0 %1803
        %1805 = vrot.lane.b32.xlu0 %v1782, 42
        %v1806 = vpop.permute.xlu0 %1805
        %v1807 = vrot.slane %v1792, 1
        %v1808 = vrot.slane %v1794, 1
        %v1809 = vrot.slane %v1796, 1
        %v1810 = vrot.slane %v1798, 1
        %v1811 = vrot.slane %v1800, 1
        %v1812 = vrot.slane %v1802, 1
        %v1813 = vrot.slane %v1804, 1
        %v1814 = vrot.slane %v1806, 1
        %vm1815 = vcmask 343040
        %v1816 = vsel %vm1815, %v1792, %v1807
        %v1817 = vsel %vm1815, %v1794, %v1808
        %v1818 = vsel %vm1815, %v1796, %v1809
        %v1819 = vsel %vm1815, %v1798, %v1810
        %v1820 = vsel %vm1815, %v1800, %v1811
        %v1821 = vsel %vm1815, %v1802, %v1812
        %v1822 = vsel %vm1815, %v1804, %v1813
        %v1823 = vsel %vm1815, %v1806, %v1814
        %s1832 = scalar_lea.vmem [#allocation3], 97
        %1833 = vst.msk [vmem:[%s1832] ss:$8 sm:$0xf] %vm455, %v1816
        %1834 = vst.msk [vmem:[%s1832] ss:$8 sm:$0x30] %vm455, %v1816
        %s1835 = scalar_lea.vmem [#allocation3], 289
        %1836 = vst.msk [vmem:[%s1835] ss:$8 sm:$0xf] %vm455, %v1817
        %1837 = vst.msk [vmem:[%s1835] ss:$8 sm:$0x30] %vm455, %v1817
        %s1838 = scalar_lea.vmem [#allocation3], 481
        %1839 = vst.msk [vmem:[%s1838] ss:$8 sm:$0xf] %vm455, %v1818
        %1840 = vst.msk [vmem:[%s1838] ss:$8 sm:$0x30] %vm455, %v1818
        %s1841 = scalar_lea.vmem [#allocation3], 673
        %1842 = vst.msk [vmem:[%s1841] ss:$8 sm:$0xf] %vm455, %v1819
        %1843 = vst.msk [vmem:[%s1841] ss:$8 sm:$0x30] %vm455, %v1819
        %s1844 = scalar_lea.vmem [#allocation3], 865
        %1845 = vst.msk [vmem:[%s1844] ss:$8 sm:$0xf] %vm455, %v1820
        %1846 = vst.msk [vmem:[%s1844] ss:$8 sm:$0x30] %vm455, %v1820
        %s1847 = scalar_lea.vmem [#allocation3], 1057
        %1848 = vst.msk [vmem:[%s1847] ss:$8 sm:$0xf] %vm455, %v1821
        %1849 = vst.msk [vmem:[%s1847] ss:$8 sm:$0x30] %vm455, %v1821
        %s1850 = scalar_lea.vmem [#allocation3], 1249
        %1851 = vst.msk [vmem:[%s1850] ss:$8 sm:$0xf] %vm455, %v1822
        %1852 = vst.msk [vmem:[%s1850] ss:$8 sm:$0x30] %vm455, %v1822
        %s1853 = scalar_lea.vmem [#allocation3], 1441
        %1854 = vst.msk [vmem:[%s1853] ss:$8 sm:$0xf] %vm455, %v1823
        %1855 = vst.msk [vmem:[%s1853] ss:$8 sm:$0x30] %vm455, %v1823
        %v1856 = vld [vmem:[#allocation2] sm:$0x3f]
        %v1857 = vld [vmem:[#allocation2 + $0x7] sm:$0x3f]
        %v1858 = vld [vmem:[#allocation2 + $0xe] sm:$0x3f]
        %v1859 = vld [vmem:[#allocation2 + $0x15] sm:$0x3f]
        %v1860 = vld [vmem:[#allocation2 + $0x1c] sm:$0x3f]
        %v1861 = vld [vmem:[#allocation2 + $0x23] sm:$0x3f]
        %v1862 = vld [vmem:[#allocation2 + $0x2a] sm:$0x3f]
        %v1863 = vld [vmem:[#allocation2 + $0x31] sm:$0x3f]
        %1872 = vrot.lane.b32.xlu0 %v1856, 41
        %v1873 = vpop.permute.xlu0 %1872
        %1874 = vrot.lane.b32.xlu0 %v1857, 41
        %v1875 = vpop.permute.xlu0 %1874
        %1876 = vrot.lane.b32.xlu0 %v1858, 41
        %v1877 = vpop.permute.xlu0 %1876
        %1878 = vrot.lane.b32.xlu0 %v1859, 41
        %v1879 = vpop.permute.xlu0 %1878
        %1880 = vrot.lane.b32.xlu0 %v1860, 41
        %v1881 = vpop.permute.xlu0 %1880
        %1882 = vrot.lane.b32.xlu0 %v1861, 41
        %v1883 = vpop.permute.xlu0 %1882
        %1884 = vrot.lane.b32.xlu0 %v1862, 41
        %v1885 = vpop.permute.xlu0 %1884
        %1886 = vrot.lane.b32.xlu0 %v1863, 41
        %v1887 = vpop.permute.xlu0 %1886
        %v1888 = vrot.slane %v1873, 1
        %v1889 = vrot.slane %v1875, 1
        %v1890 = vrot.slane %v1877, 1
        %v1891 = vrot.slane %v1879, 1
        %v1892 = vrot.slane %v1881, 1
        %v1893 = vrot.slane %v1883, 1
        %v1894 = vrot.slane %v1885, 1
        %v1895 = vrot.slane %v1887, 1
        %vm1896 = vcmask 334848
        %v1897 = vsel %vm1896, %v1873, %v1888
        %v1898 = vsel %vm1896, %v1875, %v1889
        %v1899 = vsel %vm1896, %v1877, %v1890
        %v1900 = vsel %vm1896, %v1879, %v1891
        %v1901 = vsel %vm1896, %v1881, %v1892
        %v1902 = vsel %vm1896, %v1883, %v1893
        %v1903 = vsel %vm1896, %v1885, %v1894
        %v1904 = vsel %vm1896, %v1887, %v1895
        %s1913 = scalar_lea.vmem [#allocation3], 98
        %1914 = vst.msk [vmem:[%s1913] ss:$8 sm:$0xf] %vm455, %v1897
        %1915 = vst.msk [vmem:[%s1913] ss:$8 sm:$0x30] %vm455, %v1897
        %s1916 = scalar_lea.vmem [#allocation3], 290
        %1917 = vst.msk [vmem:[%s1916] ss:$8 sm:$0xf] %vm455, %v1898
        %1918 = vst.msk [vmem:[%s1916] ss:$8 sm:$0x30] %vm455, %v1898
        %s1919 = scalar_lea.vmem [#allocation3], 482
        %1920 = vst.msk [vmem:[%s1919] ss:$8 sm:$0xf] %vm455, %v1899
        %1921 = vst.msk [vmem:[%s1919] ss:$8 sm:$0x30] %vm455, %v1899
        %s1922 = scalar_lea.vmem [#allocation3], 674
        %1923 = vst.msk [vmem:[%s1922] ss:$8 sm:$0xf] %vm455, %v1900
        %1924 = vst.msk [vmem:[%s1922] ss:$8 sm:$0x30] %vm455, %v1900
        %s1925 = scalar_lea.vmem [#allocation3], 866
        %1926 = vst.msk [vmem:[%s1925] ss:$8 sm:$0xf] %vm455, %v1901
        %1927 = vst.msk [vmem:[%s1925] ss:$8 sm:$0x30] %vm455, %v1901
        %s1928 = scalar_lea.vmem [#allocation3], 1058
        %1929 = vst.msk [vmem:[%s1928] ss:$8 sm:$0xf] %vm455, %v1902
        %1930 = vst.msk [vmem:[%s1928] ss:$8 sm:$0x30] %vm455, %v1902
        %s1931 = scalar_lea.vmem [#allocation3], 1250
        %1932 = vst.msk [vmem:[%s1931] ss:$8 sm:$0xf] %vm455, %v1903
        %1933 = vst.msk [vmem:[%s1931] ss:$8 sm:$0x30] %vm455, %v1903
        %s1934 = scalar_lea.vmem [#allocation3], 1442
        %1935 = vst.msk [vmem:[%s1934] ss:$8 sm:$0xf] %vm455, %v1904
        %1936 = vst.msk [vmem:[%s1934] ss:$8 sm:$0x30] %vm455, %v1904
        %v1937 = vld [vmem:[#allocation2] sm:$0x3f]
        %v1938 = vld [vmem:[#allocation2 + $0x7] sm:$0x3f]
        %v1939 = vld [vmem:[#allocation2 + $0xe] sm:$0x3f]
        %v1940 = vld [vmem:[#allocation2 + $0x15] sm:$0x3f]
        %v1941 = vld [vmem:[#allocation2 + $0x1c] sm:$0x3f]
        %v1942 = vld [vmem:[#allocation2 + $0x23] sm:$0x3f]
        %v1943 = vld [vmem:[#allocation2 + $0x2a] sm:$0x3f]
        %v1944 = vld [vmem:[#allocation2 + $0x31] sm:$0x3f]
        %1953 = vrot.lane.b32.xlu0 %v1937, 40
        %v1954 = vpop.permute.xlu0 %1953
        %1955 = vrot.lane.b32.xlu0 %v1938, 40
        %v1956 = vpop.permute.xlu0 %1955
        %1957 = vrot.lane.b32.xlu0 %v1939, 40
        %v1958 = vpop.permute.xlu0 %1957
        %1959 = vrot.lane.b32.xlu0 %v1940, 40
        %v1960 = vpop.permute.xlu0 %1959
        %1961 = vrot.lane.b32.xlu0 %v1941, 40
        %v1962 = vpop.permute.xlu0 %1961
        %1963 = vrot.lane.b32.xlu0 %v1942, 40
        %v1964 = vpop.permute.xlu0 %1963
        %1965 = vrot.lane.b32.xlu0 %v1943, 40
        %v1966 = vpop.permute.xlu0 %1965
        %1967 = vrot.lane.b32.xlu0 %v1944, 40
        %v1968 = vpop.permute.xlu0 %1967
        %v1969 = vrot.slane %v1954, 1
        %v1970 = vrot.slane %v1956, 1
        %v1971 = vrot.slane %v1958, 1
        %v1972 = vrot.slane %v1960, 1
        %v1973 = vrot.slane %v1962, 1
        %v1974 = vrot.slane %v1964, 1
        %v1975 = vrot.slane %v1966, 1
        %v1976 = vrot.slane %v1968, 1
        %vm1977 = vcmask 326656
        %v1978 = vsel %vm1977, %v1954, %v1969
        %v1979 = vsel %vm1977, %v1956, %v1970
        %v1980 = vsel %vm1977, %v1958, %v1971
        %v1981 = vsel %vm1977, %v1960, %v1972
        %v1982 = vsel %vm1977, %v1962, %v1973
        %v1983 = vsel %vm1977, %v1964, %v1974
        %v1984 = vsel %vm1977, %v1966, %v1975
        %v1985 = vsel %vm1977, %v1968, %v1976
        %s1994 = scalar_lea.vmem [#allocation3], 99
        %1995 = vst.msk [vmem:[%s1994] ss:$8 sm:$0xf] %vm455, %v1978
        %1996 = vst.msk [vmem:[%s1994] ss:$8 sm:$0x30] %vm455, %v1978
        %s1997 = scalar_lea.vmem [#allocation3], 291
        %1998 = vst.msk [vmem:[%s1997] ss:$8 sm:$0xf] %vm455, %v1979
        %1999 = vst.msk [vmem:[%s1997] ss:$8 sm:$0x30] %vm455, %v1979
        %s2000 = scalar_lea.vmem [#allocation3], 483
        %2001 = vst.msk [vmem:[%s2000] ss:$8 sm:$0xf] %vm455, %v1980
        %2002 = vst.msk [vmem:[%s2000] ss:$8 sm:$0x30] %vm455, %v1980
        %s2003 = scalar_lea.vmem [#allocation3], 675
        %2004 = vst.msk [vmem:[%s2003] ss:$8 sm:$0xf] %vm455, %v1981
        %2005 = vst.msk [vmem:[%s2003] ss:$8 sm:$0x30] %vm455, %v1981
        %s2006 = scalar_lea.vmem [#allocation3], 867
        %2007 = vst.msk [vmem:[%s2006] ss:$8 sm:$0xf] %vm455, %v1982
        %2008 = vst.msk [vmem:[%s2006] ss:$8 sm:$0x30] %vm455, %v1982
        %s2009 = scalar_lea.vmem [#allocation3], 1059
        %2010 = vst.msk [vmem:[%s2009] ss:$8 sm:$0xf] %vm455, %v1983
        %2011 = vst.msk [vmem:[%s2009] ss:$8 sm:$0x30] %vm455, %v1983
        %s2012 = scalar_lea.vmem [#allocation3], 1251
        %2013 = vst.msk [vmem:[%s2012] ss:$8 sm:$0xf] %vm455, %v1984
        %2014 = vst.msk [vmem:[%s2012] ss:$8 sm:$0x30] %vm455, %v1984
        %s2015 = scalar_lea.vmem [#allocation3], 1443
        %2016 = vst.msk [vmem:[%s2015] ss:$8 sm:$0xf] %vm455, %v1985
        %2017 = vst.msk [vmem:[%s2015] ss:$8 sm:$0x30] %vm455, %v1985
        %v2018 = vld [vmem:[#allocation2] sm:$0x7f]
        %v2019 = vld [vmem:[#allocation2 + $0x7] sm:$0x7f]
        %v2020 = vld [vmem:[#allocation2 + $0xe] sm:$0x7f]
        %v2021 = vld [vmem:[#allocation2 + $0x15] sm:$0x7f]
        %v2022 = vld [vmem:[#allocation2 + $0x1c] sm:$0x7f]
        %v2023 = vld [vmem:[#allocation2 + $0x23] sm:$0x7f]
        %v2024 = vld [vmem:[#allocation2 + $0x2a] sm:$0x7f]
        %v2025 = vld [vmem:[#allocation2 + $0x31] sm:$0x7f]
        %2034 = vrot.lane.b32.xlu0 %v2018, 16
        %v2035 = vpop.permute.xlu0 %2034
        %2036 = vrot.lane.b32.xlu0 %v2019, 16
        %v2037 = vpop.permute.xlu0 %2036
        %2038 = vrot.lane.b32.xlu0 %v2020, 16
        %v2039 = vpop.permute.xlu0 %2038
        %2040 = vrot.lane.b32.xlu0 %v2021, 16
        %v2041 = vpop.permute.xlu0 %2040
        %2042 = vrot.lane.b32.xlu0 %v2022, 16
        %v2043 = vpop.permute.xlu0 %2042
        %2044 = vrot.lane.b32.xlu0 %v2023, 16
        %v2045 = vpop.permute.xlu0 %2044
        %2046 = vrot.lane.b32.xlu0 %v2024, 16
        %v2047 = vpop.permute.xlu0 %2046
        %2048 = vrot.lane.b32.xlu0 %v2025, 16
        %v2049 = vpop.permute.xlu0 %2048
        %v2050 = vrot.slane %v2035, 1
        %v2051 = vrot.slane %v2037, 1
        %v2052 = vrot.slane %v2039, 1
        %v2053 = vrot.slane %v2041, 1
        %v2054 = vrot.slane %v2043, 1
        %v2055 = vrot.slane %v2045, 1
        %v2056 = vrot.slane %v2047, 1
        %v2057 = vrot.slane %v2049, 1
        %vm2058 = vcmask 130048
        %v2059 = vsel %vm2058, %v2035, %v2050
        %v2060 = vsel %vm2058, %v2037, %v2051
        %v2061 = vsel %vm2058, %v2039, %v2052
        %v2062 = vsel %vm2058, %v2041, %v2053
        %v2063 = vsel %vm2058, %v2043, %v2054
        %v2064 = vsel %vm2058, %v2045, %v2055
        %v2065 = vsel %vm2058, %v2047, %v2056
        %v2066 = vsel %vm2058, %v2049, %v2057
        %s2075 = scalar_lea.vmem [#allocation3], 100
        %2076 = vst.msk [vmem:[%s2075] ss:$8 sm:$0xf] %vm455, %v2059
        %2077 = vst.msk [vmem:[%s2075] ss:$8 sm:$0x30] %vm455, %v2059
        %s2078 = scalar_lea.vmem [#allocation3], 292
        %2079 = vst.msk [vmem:[%s2078] ss:$8 sm:$0xf] %vm455, %v2060
        %2080 = vst.msk [vmem:[%s2078] ss:$8 sm:$0x30] %vm455, %v2060
        %s2081 = scalar_lea.vmem [#allocation3], 484
        %2082 = vst.msk [vmem:[%s2081] ss:$8 sm:$0xf] %vm455, %v2061
        %2083 = vst.msk [vmem:[%s2081] ss:$8 sm:$0x30] %vm455, %v2061
        %s2084 = scalar_lea.vmem [#allocation3], 676
        %2085 = vst.msk [vmem:[%s2084] ss:$8 sm:$0xf] %vm455, %v2062
        %2086 = vst.msk [vmem:[%s2084] ss:$8 sm:$0x30] %vm455, %v2062
        %s2087 = scalar_lea.vmem [#allocation3], 868
        %2088 = vst.msk [vmem:[%s2087] ss:$8 sm:$0xf] %vm455, %v2063
        %2089 = vst.msk [vmem:[%s2087] ss:$8 sm:$0x30] %vm455, %v2063
        %s2090 = scalar_lea.vmem [#allocation3], 1060
        %2091 = vst.msk [vmem:[%s2090] ss:$8 sm:$0xf] %vm455, %v2064
        %2092 = vst.msk [vmem:[%s2090] ss:$8 sm:$0x30] %vm455, %v2064
        %s2093 = scalar_lea.vmem [#allocation3], 1252
        %2094 = vst.msk [vmem:[%s2093] ss:$8 sm:$0xf] %vm455, %v2065
        %2095 = vst.msk [vmem:[%s2093] ss:$8 sm:$0x30] %vm455, %v2065
        %s2096 = scalar_lea.vmem [#allocation3], 1444
        %2097 = vst.msk [vmem:[%s2096] ss:$8 sm:$0xf] %vm455, %v2066
        %2098 = vst.msk [vmem:[%s2096] ss:$8 sm:$0x30] %vm455, %v2066
        %v2099 = vld [vmem:[#allocation2] sm:$0x7f]
        %v2100 = vld [vmem:[#allocation2 + $0x7] sm:$0x7f]
        %v2101 = vld [vmem:[#allocation2 + $0xe] sm:$0x7f]
        %v2102 = vld [vmem:[#allocation2 + $0x15] sm:$0x7f]
        %v2103 = vld [vmem:[#allocation2 + $0x1c] sm:$0x7f]
        %v2104 = vld [vmem:[#allocation2 + $0x23] sm:$0x7f]
        %v2105 = vld [vmem:[#allocation2 + $0x2a] sm:$0x7f]
        %v2106 = vld [vmem:[#allocation2 + $0x31] sm:$0x7f]
        %2115 = vrot.lane.b32.xlu0 %v2099, 15
        %v2116 = vpop.permute.xlu0 %2115
        %2117 = vrot.lane.b32.xlu0 %v2100, 15
        %v2118 = vpop.permute.xlu0 %2117
        %2119 = vrot.lane.b32.xlu0 %v2101, 15
        %v2120 = vpop.permute.xlu0 %2119
        %2121 = vrot.lane.b32.xlu0 %v2102, 15
        %v2122 = vpop.permute.xlu0 %2121
        %2123 = vrot.lane.b32.xlu0 %v2103, 15
        %v2124 = vpop.permute.xlu0 %2123
        %2125 = vrot.lane.b32.xlu0 %v2104, 15
        %v2126 = vpop.permute.xlu0 %2125
        %2127 = vrot.lane.b32.xlu0 %v2105, 15
        %v2128 = vpop.permute.xlu0 %2127
        %2129 = vrot.lane.b32.xlu0 %v2106, 15
        %v2130 = vpop.permute.xlu0 %2129
        %v2131 = vrot.slane %v2116, 1
        %v2132 = vrot.slane %v2118, 1
        %v2133 = vrot.slane %v2120, 1
        %v2134 = vrot.slane %v2122, 1
        %v2135 = vrot.slane %v2124, 1
        %v2136 = vrot.slane %v2126, 1
        %v2137 = vrot.slane %v2128, 1
        %v2138 = vrot.slane %v2130, 1
        %vm2139 = vcmask 121856
        %v2140 = vsel %vm2139, %v2116, %v2131
        %v2141 = vsel %vm2139, %v2118, %v2132
        %v2142 = vsel %vm2139, %v2120, %v2133
        %v2143 = vsel %vm2139, %v2122, %v2134
        %v2144 = vsel %vm2139, %v2124, %v2135
        %v2145 = vsel %vm2139, %v2126, %v2136
        %v2146 = vsel %vm2139, %v2128, %v2137
        %v2147 = vsel %vm2139, %v2130, %v2138
        %s2156 = scalar_lea.vmem [#allocation3], 101
        %2157 = vst.msk [vmem:[%s2156] ss:$8 sm:$0xf] %vm455, %v2140
        %2158 = vst.msk [vmem:[%s2156] ss:$8 sm:$0x30] %vm455, %v2140
        %s2159 = scalar_lea.vmem [#allocation3], 293
        %2160 = vst.msk [vmem:[%s2159] ss:$8 sm:$0xf] %vm455, %v2141
        %2161 = vst.msk [vmem:[%s2159] ss:$8 sm:$0x30] %vm455, %v2141
        %s2162 = scalar_lea.vmem [#allocation3], 485
        %2163 = vst.msk [vmem:[%s2162] ss:$8 sm:$0xf] %vm455, %v2142
        %2164 = vst.msk [vmem:[%s2162] ss:$8 sm:$0x30] %vm455, %v2142
        %s2165 = scalar_lea.vmem [#allocation3], 677
        %2166 = vst.msk [vmem:[%s2165] ss:$8 sm:$0xf] %vm455, %v2143
        %2167 = vst.msk [vmem:[%s2165] ss:$8 sm:$0x30] %vm455, %v2143
        %s2168 = scalar_lea.vmem [#allocation3], 869
        %2169 = vst.msk [vmem:[%s2168] ss:$8 sm:$0xf] %vm455, %v2144
        %2170 = vst.msk [vmem:[%s2168] ss:$8 sm:$0x30] %vm455, %v2144
        %s2171 = scalar_lea.vmem [#allocation3], 1061
        %2172 = vst.msk [vmem:[%s2171] ss:$8 sm:$0xf] %vm455, %v2145
        %2173 = vst.msk [vmem:[%s2171] ss:$8 sm:$0x30] %vm455, %v2145
        %s2174 = scalar_lea.vmem [#allocation3], 1253
        %2175 = vst.msk [vmem:[%s2174] ss:$8 sm:$0xf] %vm455, %v2146
        %2176 = vst.msk [vmem:[%s2174] ss:$8 sm:$0x30] %vm455, %v2146
        %s2177 = scalar_lea.vmem [#allocation3], 1445
        %2178 = vst.msk [vmem:[%s2177] ss:$8 sm:$0xf] %vm455, %v2147
        %2179 = vst.msk [vmem:[%s2177] ss:$8 sm:$0x30] %vm455, %v2147
        %v2180 = vld [vmem:[#allocation2] sm:$0x7f]
        %v2181 = vld [vmem:[#allocation2 + $0x7] sm:$0x7f]
        %v2182 = vld [vmem:[#allocation2 + $0xe] sm:$0x7f]
        %v2183 = vld [vmem:[#allocation2 + $0x15] sm:$0x7f]
        %v2184 = vld [vmem:[#allocation2 + $0x1c] sm:$0x7f]
        %v2185 = vld [vmem:[#allocation2 + $0x23] sm:$0x7f]
        %v2186 = vld [vmem:[#allocation2 + $0x2a] sm:$0x7f]
        %v2187 = vld [vmem:[#allocation2 + $0x31] sm:$0x7f]
        %2196 = vrot.lane.b32.xlu0 %v2180, 14
        %v2197 = vpop.permute.xlu0 %2196
        %2198 = vrot.lane.b32.xlu0 %v2181, 14
        %v2199 = vpop.permute.xlu0 %2198
        %2200 = vrot.lane.b32.xlu0 %v2182, 14
        %v2201 = vpop.permute.xlu0 %2200
        %2202 = vrot.lane.b32.xlu0 %v2183, 14
        %v2203 = vpop.permute.xlu0 %2202
        %2204 = vrot.lane.b32.xlu0 %v2184, 14
        %v2205 = vpop.permute.xlu0 %2204
        %2206 = vrot.lane.b32.xlu0 %v2185, 14
        %v2207 = vpop.permute.xlu0 %2206
        %2208 = vrot.lane.b32.xlu0 %v2186, 14
        %v2209 = vpop.permute.xlu0 %2208
        %2210 = vrot.lane.b32.xlu0 %v2187, 14
        %v2211 = vpop.permute.xlu0 %2210
        %v2212 = vrot.slane %v2197, 1
        %v2213 = vrot.slane %v2199, 1
        %v2214 = vrot.slane %v2201, 1
        %v2215 = vrot.slane %v2203, 1
        %v2216 = vrot.slane %v2205, 1
        %v2217 = vrot.slane %v2207, 1
        %v2218 = vrot.slane %v2209, 1
        %v2219 = vrot.slane %v2211, 1
        %vm2220 = vcmask 113664
        %v2221 = vsel %vm2220, %v2197, %v2212
        %v2222 = vsel %vm2220, %v2199, %v2213
        %v2223 = vsel %vm2220, %v2201, %v2214
        %v2224 = vsel %vm2220, %v2203, %v2215
        %v2225 = vsel %vm2220, %v2205, %v2216
        %v2226 = vsel %vm2220, %v2207, %v2217
        %v2227 = vsel %vm2220, %v2209, %v2218
        %v2228 = vsel %vm2220, %v2211, %v2219
        %s2237 = scalar_lea.vmem [#allocation3], 102
        %2238 = vst.msk [vmem:[%s2237] ss:$8 sm:$0xf] %vm455, %v2221
        %2239 = vst.msk [vmem:[%s2237] ss:$8 sm:$0x30] %vm455, %v2221
        %s2240 = scalar_lea.vmem [#allocation3], 294
        %2241 = vst.msk [vmem:[%s2240] ss:$8 sm:$0xf] %vm455, %v2222
        %2242 = vst.msk [vmem:[%s2240] ss:$8 sm:$0x30] %vm455, %v2222
        %s2243 = scalar_lea.vmem [#allocation3], 486
        %2244 = vst.msk [vmem:[%s2243] ss:$8 sm:$0xf] %vm455, %v2223
        %2245 = vst.msk [vmem:[%s2243] ss:$8 sm:$0x30] %vm455, %v2223
        %s2246 = scalar_lea.vmem [#allocation3], 678
        %2247 = vst.msk [vmem:[%s2246] ss:$8 sm:$0xf] %vm455, %v2224
        %2248 = vst.msk [vmem:[%s2246] ss:$8 sm:$0x30] %vm455, %v2224
        %s2249 = scalar_lea.vmem [#allocation3], 870
        %2250 = vst.msk [vmem:[%s2249] ss:$8 sm:$0xf] %vm455, %v2225
        %2251 = vst.msk [vmem:[%s2249] ss:$8 sm:$0x30] %vm455, %v2225
        %s2252 = scalar_lea.vmem [#allocation3], 1062
        %2253 = vst.msk [vmem:[%s2252] ss:$8 sm:$0xf] %vm455, %v2226
        %2254 = vst.msk [vmem:[%s2252] ss:$8 sm:$0x30] %vm455, %v2226
        %s2255 = scalar_lea.vmem [#allocation3], 1254
        %2256 = vst.msk [vmem:[%s2255] ss:$8 sm:$0xf] %vm455, %v2227
        %2257 = vst.msk [vmem:[%s2255] ss:$8 sm:$0x30] %vm455, %v2227
        %s2258 = scalar_lea.vmem [#allocation3], 1446
        %2259 = vst.msk [vmem:[%s2258] ss:$8 sm:$0xf] %vm455, %v2228
        %2260 = vst.msk [vmem:[%s2258] ss:$8 sm:$0x30] %vm455, %v2228
        %v2261 = vld [vmem:[#allocation2] sm:$0x7f]
        %v2262 = vld [vmem:[#allocation2 + $0x7] sm:$0x7f]
        %v2263 = vld [vmem:[#allocation2 + $0xe] sm:$0x7f]
        %v2264 = vld [vmem:[#allocation2 + $0x15] sm:$0x7f]
        %v2265 = vld [vmem:[#allocation2 + $0x1c] sm:$0x7f]
        %v2266 = vld [vmem:[#allocation2 + $0x23] sm:$0x7f]
        %v2267 = vld [vmem:[#allocation2 + $0x2a] sm:$0x7f]
        %v2268 = vld [vmem:[#allocation2 + $0x31] sm:$0x7f]
        %2277 = vrot.lane.b32.xlu0 %v2261, 13
        %v2278 = vpop.permute.xlu0 %2277
        %2279 = vrot.lane.b32.xlu0 %v2262, 13
        %v2280 = vpop.permute.xlu0 %2279
        %2281 = vrot.lane.b32.xlu0 %v2263, 13
        %v2282 = vpop.permute.xlu0 %2281
        %2283 = vrot.lane.b32.xlu0 %v2264, 13
        %v2284 = vpop.permute.xlu0 %2283
        %2285 = vrot.lane.b32.xlu0 %v2265, 13
        %v2286 = vpop.permute.xlu0 %2285
        %2287 = vrot.lane.b32.xlu0 %v2266, 13
        %v2288 = vpop.permute.xlu0 %2287
        %2289 = vrot.lane.b32.xlu0 %v2267, 13
        %v2290 = vpop.permute.xlu0 %2289
        %2291 = vrot.lane.b32.xlu0 %v2268, 13
        %v2292 = vpop.permute.xlu0 %2291
        %v2293 = vrot.slane %v2278, 1
        %v2294 = vrot.slane %v2280, 1
        %v2295 = vrot.slane %v2282, 1
        %v2296 = vrot.slane %v2284, 1
        %v2297 = vrot.slane %v2286, 1
        %v2298 = vrot.slane %v2288, 1
        %v2299 = vrot.slane %v2290, 1
        %v2300 = vrot.slane %v2292, 1
        %vm2301 = vcmask 105472
        %v2302 = vsel %vm2301, %v2278, %v2293
        %v2303 = vsel %vm2301, %v2280, %v2294
        %v2304 = vsel %vm2301, %v2282, %v2295
        %v2305 = vsel %vm2301, %v2284, %v2296
        %v2306 = vsel %vm2301, %v2286, %v2297
        %v2307 = vsel %vm2301, %v2288, %v2298
        %v2308 = vsel %vm2301, %v2290, %v2299
        %v2309 = vsel %vm2301, %v2292, %v2300
        %s2318 = scalar_lea.vmem [#allocation3], 103
        %2319 = vst.msk [vmem:[%s2318] ss:$8 sm:$0xf] %vm455, %v2302
        %2320 = vst.msk [vmem:[%s2318] ss:$8 sm:$0x30] %vm455, %v2302
        %s2321 = scalar_lea.vmem [#allocation3], 295
        %2322 = vst.msk [vmem:[%s2321] ss:$8 sm:$0xf] %vm455, %v2303
        %2323 = vst.msk [vmem:[%s2321] ss:$8 sm:$0x30] %vm455, %v2303
        %s2324 = scalar_lea.vmem [#allocation3], 487
        %2325 = vst.msk [vmem:[%s2324] ss:$8 sm:$0xf] %vm455, %v2304
        %2326 = vst.msk [vmem:[%s2324] ss:$8 sm:$0x30] %vm455, %v2304
        %s2327 = scalar_lea.vmem [#allocation3], 679
        %2328 = vst.msk [vmem:[%s2327] ss:$8 sm:$0xf] %vm455, %v2305
        %2329 = vst.msk [vmem:[%s2327] ss:$8 sm:$0x30] %vm455, %v2305
        %s2330 = scalar_lea.vmem [#allocation3], 871
        %2331 = vst.msk [vmem:[%s2330] ss:$8 sm:$0xf] %vm455, %v2306
        %2332 = vst.msk [vmem:[%s2330] ss:$8 sm:$0x30] %vm455, %v2306
        %s2333 = scalar_lea.vmem [#allocation3], 1063
        %2334 = vst.msk [vmem:[%s2333] ss:$8 sm:$0xf] %vm455, %v2307
        %2335 = vst.msk [vmem:[%s2333] ss:$8 sm:$0x30] %vm455, %v2307
        %s2336 = scalar_lea.vmem [#allocation3], 1255
        %2337 = vst.msk [vmem:[%s2336] ss:$8 sm:$0xf] %vm455, %v2308
        %2338 = vst.msk [vmem:[%s2336] ss:$8 sm:$0x30] %vm455, %v2308
        %s2339 = scalar_lea.vmem [#allocation3], 1447
        %2340 = vst.msk [vmem:[%s2339] ss:$8 sm:$0xf] %vm455, %v2309
        %2341 = vst.msk [vmem:[%s2339] ss:$8 sm:$0x30] %vm455, %v2309
        %v2342 = vld [vmem:[#allocation2] sm:$0x7f]
        %v2343 = vld [vmem:[#allocation2 + $0x7] sm:$0x7f]
        %v2344 = vld [vmem:[#allocation2 + $0xe] sm:$0x7f]
        %v2345 = vld [vmem:[#allocation2 + $0x15] sm:$0x7f]
        %v2346 = vld [vmem:[#allocation2 + $0x1c] sm:$0x7f]
        %v2347 = vld [vmem:[#allocation2 + $0x23] sm:$0x7f]
        %v2348 = vld [vmem:[#allocation2 + $0x2a] sm:$0x7f]
        %v2349 = vld [vmem:[#allocation2 + $0x31] sm:$0x7f]
        %2358 = vrot.lane.b32.xlu0 %v2342, 12
        %v2359 = vpop.permute.xlu0 %2358
        %2360 = vrot.lane.b32.xlu0 %v2343, 12
        %v2361 = vpop.permute.xlu0 %2360
        %2362 = vrot.lane.b32.xlu0 %v2344, 12
        %v2363 = vpop.permute.xlu0 %2362
        %2364 = vrot.lane.b32.xlu0 %v2345, 12
        %v2365 = vpop.permute.xlu0 %2364
        %2366 = vrot.lane.b32.xlu0 %v2346, 12
        %v2367 = vpop.permute.xlu0 %2366
        %2368 = vrot.lane.b32.xlu0 %v2347, 12
        %v2369 = vpop.permute.xlu0 %2368
        %2370 = vrot.lane.b32.xlu0 %v2348, 12
        %v2371 = vpop.permute.xlu0 %2370
        %2372 = vrot.lane.b32.xlu0 %v2349, 12
        %v2373 = vpop.permute.xlu0 %2372
        %v2374 = vrot.slane %v2359, 1
        %v2375 = vrot.slane %v2361, 1
        %v2376 = vrot.slane %v2363, 1
        %v2377 = vrot.slane %v2365, 1
        %v2378 = vrot.slane %v2367, 1
        %v2379 = vrot.slane %v2369, 1
        %v2380 = vrot.slane %v2371, 1
        %v2381 = vrot.slane %v2373, 1
        %vm2382 = vcmask 97280
        %v2383 = vsel %vm2382, %v2359, %v2374
        %v2384 = vsel %vm2382, %v2361, %v2375
        %v2385 = vsel %vm2382, %v2363, %v2376
        %v2386 = vsel %vm2382, %v2365, %v2377
        %v2387 = vsel %vm2382, %v2367, %v2378
        %v2388 = vsel %vm2382, %v2369, %v2379
        %v2389 = vsel %vm2382, %v2371, %v2380
        %v2390 = vsel %vm2382, %v2373, %v2381
        %s2399 = scalar_lea.vmem [#allocation3], 144
        %2400 = vst.msk [vmem:[%s2399] ss:$8 sm:$0xf] %vm455, %v2383
        %2401 = vst.msk [vmem:[%s2399] ss:$8 sm:$0x30] %vm455, %v2383
        %s2402 = scalar_lea.vmem [#allocation3], 336
        %2403 = vst.msk [vmem:[%s2402] ss:$8 sm:$0xf] %vm455, %v2384
        %2404 = vst.msk [vmem:[%s2402] ss:$8 sm:$0x30] %vm455, %v2384
        %s2405 = scalar_lea.vmem [#allocation3], 528
        %2406 = vst.msk [vmem:[%s2405] ss:$8 sm:$0xf] %vm455, %v2385
        %2407 = vst.msk [vmem:[%s2405] ss:$8 sm:$0x30] %vm455, %v2385
        %s2408 = scalar_lea.vmem [#allocation3], 720
        %2409 = vst.msk [vmem:[%s2408] ss:$8 sm:$0xf] %vm455, %v2386
        %2410 = vst.msk [vmem:[%s2408] ss:$8 sm:$0x30] %vm455, %v2386
        %s2411 = scalar_lea.vmem [#allocation3], 912
        %2412 = vst.msk [vmem:[%s2411] ss:$8 sm:$0xf] %vm455, %v2387
        %2413 = vst.msk [vmem:[%s2411] ss:$8 sm:$0x30] %vm455, %v2387
        %s2414 = scalar_lea.vmem [#allocation3], 1104
        %2415 = vst.msk [vmem:[%s2414] ss:$8 sm:$0xf] %vm455, %v2388
        %2416 = vst.msk [vmem:[%s2414] ss:$8 sm:$0x30] %vm455, %v2388
        %s2417 = scalar_lea.vmem [#allocation3], 1296
        %2418 = vst.msk [vmem:[%s2417] ss:$8 sm:$0xf] %vm455, %v2389
        %2419 = vst.msk [vmem:[%s2417] ss:$8 sm:$0x30] %vm455, %v2389
        %s2420 = scalar_lea.vmem [#allocation3], 1488
        %2421 = vst.msk [vmem:[%s2420] ss:$8 sm:$0xf] %vm455, %v2390
        %2422 = vst.msk [vmem:[%s2420] ss:$8 sm:$0x30] %vm455, %v2390
        %v2423 = vld [vmem:[%s1] sm:$0xff]
        %v2424 = vld [vmem:[#allocation3] sm:$0xff]
        %v2425 = vld [vmem:[#allocation3 + $0x8] sm:$0xff]
        %v2426 = vld [vmem:[#allocation3 + $0x10] sm:$0xff]
        %v2427 = vld [vmem:[#allocation3 + $0x18] sm:$0xff]
        %v2428 = vld [vmem:[#allocation3 + $0x20] sm:$0xff]
        %v2429 = vld [vmem:[#allocation3 + $0x28] sm:$0xff]
        %v2430 = vld [vmem:[#allocation3 + $0x30] sm:$0xff]
        %v2431 = vld [vmem:[#allocation3 + $0x38] sm:$0xff]
        %v2432 = vld [vmem:[#allocation3 + $0x40] sm:$0xff]
        %v2433 = vld [vmem:[#allocation3 + $0x48] sm:$0xff]
        %v2434 = vld [vmem:[#allocation3 + $0x50] sm:$0xff]
        %v2435 = vld [vmem:[#allocation3 + $0x58] sm:$0xff]
        %v2436 = vld [vmem:[#allocation3 + $0x60] sm:$0xff]
        %v2437 = vld [vmem:[#allocation3 + $0x68] sm:$0xff]
        %v2438 = vld [vmem:[#allocation3 + $0x70] sm:$0xff]
        %v2439 = vld [vmem:[#allocation3 + $0x78] sm:$0xff]
        %v2440 = vld [vmem:[#allocation3 + $0x80] sm:$0xff]
        %v2441 = vld [vmem:[#allocation3 + $0x88] sm:$0xff]
        %v2442 = vld [vmem:[#allocation3 + $0x90] sm:$0x1]
        %v2443 = vld [vmem:[#allocation3 + $0x98] sm:$0x1]
        %v2444 = vld [vmem:[#allocation3 + $0xa0] sm:$0x1]
        %v2445 = vld [vmem:[#allocation3 + $0xa8] sm:$0x1]
        %v2446 = vld [vmem:[#allocation3 + $0xb0] sm:$0x1]
        %v2447 = vld [vmem:[#allocation3 + $0xb8] sm:$0x1]
        %v2448 = vld [vmem:[%s2] sm:$0xff]
        %2450 = vset.pattern.permute.xlu0 0
        %2451 = vperm.xlu0 %2450, %v2448
        %v2452 = vpop.permute.xlu0 %2451
        %vm2454 = vcmask 203776
        %v2456 = vsel %vm2454, %v2423, 0
        %vm2458 = vcmask 1040384
        %v2460 = vsel %vm2458, %v2442, 0
        %v2463 = vsel %vm2458, %v2443, 0
        %v2466 = vsel %vm2458, %v2444, 0
        %v2469 = vsel %vm2458, %v2445, 0
        %v2472 = vsel %vm2458, %v2446, 0
        %v2475 = vsel %vm2458, %v2447, 0
        %2477 = vmatpush.msra.mxu0 0.0
        %2478 = vmatpush.msra.mxu0 0.0
        %2479 = vmatpush.msra.mxu0 0.0
        %2480 = vmatpush.msra.mxu0 0.0
        %2481 = vmatpush.msra.mxu0 0.0
        %2482 = vmatpush.msra.mxu0 0.0
        %2483 = vmatpush.msra.mxu0 0.0
        %2484 = vmatpush.msra.mxu0 0.0
        %2485 = vmatpush.msra.mxu0 0.0
        %2486 = vmatpush.msra.mxu0 0.0
        %2487 = vmatpush.msra.mxu0 0.0
        %2488 = vmatpush.msra.mxu0 0.0
        %2489 = vmatpush.msra.mxu0 %v2460
        %2490 = vmatpush.msra.mxu0 %v2436
        %2491 = vmatpush.msra.mxu0 %v2430
        %2492 = vmatpush.msra.mxu0 %v2424
        %2493 = vmatmul.f32.gmra.mxu0 %v2456
        %v2494 = vpop.f32.mrf.mxu0
        %v2495 = vadd.f32 %v2452, %v2494
        %2496 = vdwg.mxu0
        %2497 = vmatpush.msra.mxu0 0.0
        %2498 = vmatpush.msra.mxu0 0.0
        %2499 = vmatpush.msra.mxu0 0.0
        %2500 = vmatpush.msra.mxu0 0.0
        %2501 = vmatpush.msra.mxu0 0.0
        %2502 = vmatpush.msra.mxu0 0.0
        %2503 = vmatpush.msra.mxu0 0.0
        %2504 = vmatpush.msra.mxu0 0.0
        %2505 = vmatpush.msra.mxu0 0.0
        %2506 = vmatpush.msra.mxu0 0.0
        %2507 = vmatpush.msra.mxu0 0.0
        %2508 = vmatpush.msra.mxu0 0.0
        %2509 = vmatpush.msra.mxu0 %v2463
        %2510 = vmatpush.msra.mxu0 %v2437
        %2511 = vmatpush.msra.mxu0 %v2431
        %2512 = vmatpush.msra.mxu0 %v2425
        %2513 = vmatmul.f32.gmra.mxu0 %v2456
        %v2514 = vpop.f32.mrf.mxu0
        %v2515 = vadd.f32 %v2452, %v2514
        %2516 = vdwg.mxu0
        %2517 = vmatpush.msra.mxu0 0.0
        %2518 = vmatpush.msra.mxu0 0.0
        %2519 = vmatpush.msra.mxu0 0.0
        %2520 = vmatpush.msra.mxu0 0.0
        %2521 = vmatpush.msra.mxu0 0.0
        %2522 = vmatpush.msra.mxu0 0.0
        %2523 = vmatpush.msra.mxu0 0.0
        %2524 = vmatpush.msra.mxu0 0.0
        %2525 = vmatpush.msra.mxu0 0.0
        %2526 = vmatpush.msra.mxu0 0.0
        %2527 = vmatpush.msra.mxu0 0.0
        %2528 = vmatpush.msra.mxu0 0.0
        %2529 = vmatpush.msra.mxu0 %v2466
        %2530 = vmatpush.msra.mxu0 %v2438
        %2531 = vmatpush.msra.mxu0 %v2432
        %2532 = vmatpush.msra.mxu0 %v2426
        %2533 = vmatmul.f32.gmra.mxu0 %v2456
        %v2534 = vpop.f32.mrf.mxu0
        %v2535 = vadd.f32 %v2452, %v2534
        %2536 = vdwg.mxu0
        %2537 = vmatpush.msra.mxu0 0.0
        %2538 = vmatpush.msra.mxu0 0.0
        %2539 = vmatpush.msra.mxu0 0.0
        %2540 = vmatpush.msra.mxu0 0.0
        %2541 = vmatpush.msra.mxu0 0.0
        %2542 = vmatpush.msra.mxu0 0.0
        %2543 = vmatpush.msra.mxu0 0.0
        %2544 = vmatpush.msra.mxu0 0.0
        %2545 = vmatpush.msra.mxu0 0.0
        %2546 = vmatpush.msra.mxu0 0.0
        %2547 = vmatpush.msra.mxu0 0.0
        %2548 = vmatpush.msra.mxu0 0.0
        %2549 = vmatpush.msra.mxu0 %v2469
        %2550 = vmatpush.msra.mxu0 %v2439
        %2551 = vmatpush.msra.mxu0 %v2433
        %2552 = vmatpush.msra.mxu0 %v2427
        %2553 = vmatmul.f32.gmra.mxu0 %v2456
        %v2554 = vpop.f32.mrf.mxu0
        %v2555 = vadd.f32 %v2452, %v2554
        %2556 = vdwg.mxu0
        %2557 = vmatpush.msra.mxu0 0.0
        %2558 = vmatpush.msra.mxu0 0.0
        %2559 = vmatpush.msra.mxu0 0.0
        %2560 = vmatpush.msra.mxu0 0.0
        %2561 = vmatpush.msra.mxu0 0.0
        %2562 = vmatpush.msra.mxu0 0.0
        %2563 = vmatpush.msra.mxu0 0.0
        %2564 = vmatpush.msra.mxu0 0.0
        %2565 = vmatpush.msra.mxu0 0.0
        %2566 = vmatpush.msra.mxu0 0.0
        %2567 = vmatpush.msra.mxu0 0.0
        %2568 = vmatpush.msra.mxu0 0.0
        %2569 = vmatpush.msra.mxu0 %v2472
        %2570 = vmatpush.msra.mxu0 %v2440
        %2571 = vmatpush.msra.mxu0 %v2434
        %2572 = vmatpush.msra.mxu0 %v2428
        %2573 = vmatmul.f32.gmra.mxu0 %v2456
        %v2574 = vpop.f32.mrf.mxu0
        %v2575 = vadd.f32 %v2452, %v2574
        %2576 = vdwg.mxu0
        %2577 = vmatpush.msra.mxu0 0.0
        %2578 = vmatpush.msra.mxu0 0.0
        %2579 = vmatpush.msra.mxu0 0.0
        %2580 = vmatpush.msra.mxu0 0.0
        %2581 = vmatpush.msra.mxu0 0.0
        %2582 = vmatpush.msra.mxu0 0.0
        %2583 = vmatpush.msra.mxu0 0.0
        %2584 = vmatpush.msra.mxu0 0.0
        %2585 = vmatpush.msra.mxu0 0.0
        %2586 = vmatpush.msra.mxu0 0.0
        %2587 = vmatpush.msra.mxu0 0.0
        %2588 = vmatpush.msra.mxu0 0.0
        %2589 = vmatpush.msra.mxu0 %v2475
        %2590 = vmatpush.msra.mxu0 %v2441
        %2591 = vmatpush.msra.mxu0 %v2435
        %2592 = vmatpush.msra.mxu0 %v2429
        %2593 = vmatmul.f32.gmra.mxu0 %v2456
        %v2594 = vpop.f32.mrf.mxu0
        %v2595 = vadd.f32 %v2452, %v2594
        %2596 = vdwg.mxu0
        %v2597 = vmax.f32 %v2495, 0.0
        %v2598 = vmax.f32 %v2515, 0.0
        %v2599 = vmax.f32 %v2535, 0.0
        %v2600 = vmax.f32 %v2555, 0.0
        %v2601 = vmax.f32 %v2575, 0.0
        %v2602 = vmax.f32 %v2595, 0.0
        %v2603 = vpack.c.bf16 %v2598, %v2597
        %v2604 = vpack.c.bf16 %v2600, %v2599
        %v2605 = vpack.c.bf16 %v2602, %v2601
        %2606 = vst [vmem:[#allocation4] sm:$0xff] %v2603
        %2607 = vst [vmem:[#allocation4 + $0x8] sm:$0xff] %v2604
        %vm2608 = vcmask 1043456
        %vm2609 = vcmask 261124
        %vm2610 = vmor %vm2609, %vm2608
        %2611 = vst.msk [vmem:[#allocation4 + $0x10] sm:$0xff] %vm2610, %v2605
        %v2612 = vld [vmem:[%s1] sm:$0xff]
        %s2613 = scalar_lea.vmem [#allocation3], 192
        %v2614 = vld [vmem:[%s2613] sm:$0xff]
        %v2615 = vld [vmem:[%s2613 + $0x8] sm:$0xff]
        %v2616 = vld [vmem:[%s2613 + $0x10] sm:$0xff]
        %v2617 = vld [vmem:[%s2613 + $0x18] sm:$0xff]
        %v2618 = vld [vmem:[%s2613 + $0x20] sm:$0xff]
        %v2619 = vld [vmem:[%s2613 + $0x28] sm:$0xff]
        %v2620 = vld [vmem:[%s2613 + $0x30] sm:$0xff]
        %v2621 = vld [vmem:[%s2613 + $0x38] sm:$0xff]
        %v2622 = vld [vmem:[%s2613 + $0x40] sm:$0xff]
        %v2623 = vld [vmem:[%s2613 + $0x48] sm:$0xff]
        %v2624 = vld [vmem:[%s2613 + $0x50] sm:$0xff]
        %v2625 = vld [vmem:[%s2613 + $0x58] sm:$0xff]
        %v2626 = vld [vmem:[%s2613 + $0x60] sm:$0xff]
        %v2627 = vld [vmem:[%s2613 + $0x68] sm:$0xff]
        %v2628 = vld [vmem:[%s2613 + $0x70] sm:$0xff]
        %v2629 = vld [vmem:[%s2613 + $0x78] sm:$0xff]
        %v2630 = vld [vmem:[%s2613 + $0x80] sm:$0xff]
        %v2631 = vld [vmem:[%s2613 + $0x88] sm:$0xff]
        %v2632 = vld [vmem:[%s2613 + $0x90] sm:$0x1]
        %v2633 = vld [vmem:[%s2613 + $0x98] sm:$0x1]
        %v2634 = vld [vmem:[%s2613 + $0xa0] sm:$0x1]
        %v2635 = vld [vmem:[%s2613 + $0xa8] sm:$0x1]
        %v2636 = vld [vmem:[%s2613 + $0xb0] sm:$0x1]
        %v2637 = vld [vmem:[%s2613 + $0xb8] sm:$0x1]
        %v2638 = vld [vmem:[%s2] sm:$0xff]
        %2640 = vset.pattern.permute.xlu0 0
        %2641 = vperm.xlu0 %2640, %v2638
        %v2642 = vpop.permute.xlu0 %2641
        %v2645 = vsel %vm2454, %v2612, 0
        %v2648 = vsel %vm2458, %v2632, 0
        %v2651 = vsel %vm2458, %v2633, 0
        %v2654 = vsel %vm2458, %v2634, 0
        %v2657 = vsel %vm2458, %v2635, 0
        %v2660 = vsel %vm2458, %v2636, 0
        %v2663 = vsel %vm2458, %v2637, 0
        %2665 = vmatpush.msra.mxu0 0.0
        %2666 = vmatpush.msra.mxu0 0.0
        %2667 = vmatpush.msra.mxu0 0.0
        %2668 = vmatpush.msra.mxu0 0.0
        %2669 = vmatpush.msra.mxu0 0.0
        %2670 = vmatpush.msra.mxu0 0.0
        %2671 = vmatpush.msra.mxu0 0.0
        %2672 = vmatpush.msra.mxu0 0.0
        %2673 = vmatpush.msra.mxu0 0.0
        %2674 = vmatpush.msra.mxu0 0.0
        %2675 = vmatpush.msra.mxu0 0.0
        %2676 = vmatpush.msra.mxu0 0.0
        %2677 = vmatpush.msra.mxu0 %v2648
        %2678 = vmatpush.msra.mxu0 %v2626
        %2679 = vmatpush.msra.mxu0 %v2620
        %2680 = vmatpush.msra.mxu0 %v2614
        %2681 = vmatmul.f32.gmra.mxu0 %v2645
        %v2682 = vpop.f32.mrf.mxu0
        %v2683 = vadd.f32 %v2642, %v2682
        %2684 = vdwg.mxu0
        %2685 = vmatpush.msra.mxu0 0.0
        %2686 = vmatpush.msra.mxu0 0.0
        %2687 = vmatpush.msra.mxu0 0.0
        %2688 = vmatpush.msra.mxu0 0.0
        %2689 = vmatpush.msra.mxu0 0.0
        %2690 = vmatpush.msra.mxu0 0.0
        %2691 = vmatpush.msra.mxu0 0.0
        %2692 = vmatpush.msra.mxu0 0.0
        %2693 = vmatpush.msra.mxu0 0.0
        %2694 = vmatpush.msra.mxu0 0.0
        %2695 = vmatpush.msra.mxu0 0.0
        %2696 = vmatpush.msra.mxu0 0.0
        %2697 = vmatpush.msra.mxu0 %v2651
        %2698 = vmatpush.msra.mxu0 %v2627
        %2699 = vmatpush.msra.mxu0 %v2621
        %2700 = vmatpush.msra.mxu0 %v2615
        %2701 = vmatmul.f32.gmra.mxu0 %v2645
        %v2702 = vpop.f32.mrf.mxu0
        %v2703 = vadd.f32 %v2642, %v2702
        %2704 = vdwg.mxu0
        %2705 = vmatpush.msra.mxu0 0.0
        %2706 = vmatpush.msra.mxu0 0.0
        %2707 = vmatpush.msra.mxu0 0.0
        %2708 = vmatpush.msra.mxu0 0.0
        %2709 = vmatpush.msra.mxu0 0.0
        %2710 = vmatpush.msra.mxu0 0.0
        %2711 = vmatpush.msra.mxu0 0.0
        %2712 = vmatpush.msra.mxu0 0.0
        %2713 = vmatpush.msra.mxu0 0.0
        %2714 = vmatpush.msra.mxu0 0.0
        %2715 = vmatpush.msra.mxu0 0.0
        %2716 = vmatpush.msra.mxu0 0.0
        %2717 = vmatpush.msra.mxu0 %v2654
        %2718 = vmatpush.msra.mxu0 %v2628
        %2719 = vmatpush.msra.mxu0 %v2622
        %2720 = vmatpush.msra.mxu0 %v2616
        %2721 = vmatmul.f32.gmra.mxu0 %v2645
        %v2722 = vpop.f32.mrf.mxu0
        %v2723 = vadd.f32 %v2642, %v2722
        %2724 = vdwg.mxu0
        %2725 = vmatpush.msra.mxu0 0.0
        %2726 = vmatpush.msra.mxu0 0.0
        %2727 = vmatpush.msra.mxu0 0.0
        %2728 = vmatpush.msra.mxu0 0.0
        %2729 = vmatpush.msra.mxu0 0.0
        %2730 = vmatpush.msra.mxu0 0.0
        %2731 = vmatpush.msra.mxu0 0.0
        %2732 = vmatpush.msra.mxu0 0.0
        %2733 = vmatpush.msra.mxu0 0.0
        %2734 = vmatpush.msra.mxu0 0.0
        %2735 = vmatpush.msra.mxu0 0.0
        %2736 = vmatpush.msra.mxu0 0.0
        %2737 = vmatpush.msra.mxu0 %v2657
        %2738 = vmatpush.msra.mxu0 %v2629
        %2739 = vmatpush.msra.mxu0 %v2623
        %2740 = vmatpush.msra.mxu0 %v2617
        %2741 = vmatmul.f32.gmra.mxu0 %v2645
        %v2742 = vpop.f32.mrf.mxu0
        %v2743 = vadd.f32 %v2642, %v2742
        %2744 = vdwg.mxu0
        %2745 = vmatpush.msra.mxu0 0.0
        %2746 = vmatpush.msra.mxu0 0.0
        %2747 = vmatpush.msra.mxu0 0.0
        %2748 = vmatpush.msra.mxu0 0.0
        %2749 = vmatpush.msra.mxu0 0.0
        %2750 = vmatpush.msra.mxu0 0.0
        %2751 = vmatpush.msra.mxu0 0.0
        %2752 = vmatpush.msra.mxu0 0.0
        %2753 = vmatpush.msra.mxu0 0.0
        %2754 = vmatpush.msra.mxu0 0.0
        %2755 = vmatpush.msra.mxu0 0.0
        %2756 = vmatpush.msra.mxu0 0.0
        %2757 = vmatpush.msra.mxu0 %v2660
        %2758 = vmatpush.msra.mxu0 %v2630
        %2759 = vmatpush.msra.mxu0 %v2624
        %2760 = vmatpush.msra.mxu0 %v2618
        %2761 = vmatmul.f32.gmra.mxu0 %v2645
        %v2762 = vpop.f32.mrf.mxu0
        %v2763 = vadd.f32 %v2642, %v2762
        %2764 = vdwg.mxu0
        %2765 = vmatpush.msra.mxu0 0.0
        %2766 = vmatpush.msra.mxu0 0.0
        %2767 = vmatpush.msra.mxu0 0.0
        %2768 = vmatpush.msra.mxu0 0.0
        %2769 = vmatpush.msra.mxu0 0.0
        %2770 = vmatpush.msra.mxu0 0.0
        %2771 = vmatpush.msra.mxu0 0.0
        %2772 = vmatpush.msra.mxu0 0.0
        %2773 = vmatpush.msra.mxu0 0.0
        %2774 = vmatpush.msra.mxu0 0.0
        %2775 = vmatpush.msra.mxu0 0.0
        %2776 = vmatpush.msra.mxu0 0.0
        %2777 = vmatpush.msra.mxu0 %v2663
        %2778 = vmatpush.msra.mxu0 %v2631
        %2779 = vmatpush.msra.mxu0 %v2625
        %2780 = vmatpush.msra.mxu0 %v2619
        %2781 = vmatmul.f32.gmra.mxu0 %v2645
        %v2782 = vpop.f32.mrf.mxu0
        %v2783 = vadd.f32 %v2642, %v2782
        %2784 = vdwg.mxu0
        %v2785 = vmax.f32 %v2683, 0.0
        %v2786 = vmax.f32 %v2703, 0.0
        %v2787 = vmax.f32 %v2723, 0.0
        %v2788 = vmax.f32 %v2743, 0.0
        %v2789 = vmax.f32 %v2763, 0.0
        %v2790 = vmax.f32 %v2783, 0.0
        %v2791 = vpack.c.bf16 %v2786, %v2785
        %v2792 = vpack.c.bf16 %v2788, %v2787
        %v2793 = vpack.c.bf16 %v2790, %v2789
        %s2794 = scalar_lea.vmem [#allocation4], 24
        %2795 = vst [vmem:[%s2794] sm:$0xff] %v2791
        %2796 = vst [vmem:[%s2794 + $0x8] sm:$0xff] %v2792
        %2797 = vst.msk [vmem:[%s2794 + $0x10] sm:$0xff] %vm2610, %v2793
        %v2798 = vld [vmem:[%s1] sm:$0xff]
        %s2799 = scalar_lea.vmem [#allocation3], 384
        %v2800 = vld [vmem:[%s2799] sm:$0xff]
        %v2801 = vld [vmem:[%s2799 + $0x8] sm:$0xff]
        %v2802 = vld [vmem:[%s2799 + $0x10] sm:$0xff]
        %v2803 = vld [vmem:[%s2799 + $0x18] sm:$0xff]
        %v2804 = vld [vmem:[%s2799 + $0x20] sm:$0xff]
        %v2805 = vld [vmem:[%s2799 + $0x28] sm:$0xff]
        %v2806 = vld [vmem:[%s2799 + $0x30] sm:$0xff]
        %v2807 = vld [vmem:[%s2799 + $0x38] sm:$0xff]
        %v2808 = vld [vmem:[%s2799 + $0x40] sm:$0xff]
        %v2809 = vld [vmem:[%s2799 + $0x48] sm:$0xff]
        %v2810 = vld [vmem:[%s2799 + $0x50] sm:$0xff]
        %v2811 = vld [vmem:[%s2799 + $0x58] sm:$0xff]
        %v2812 = vld [vmem:[%s2799 + $0x60] sm:$0xff]
        %v2813 = vld [vmem:[%s2799 + $0x68] sm:$0xff]
        %v2814 = vld [vmem:[%s2799 + $0x70] sm:$0xff]
        %v2815 = vld [vmem:[%s2799 + $0x78] sm:$0xff]
        %v2816 = vld [vmem:[%s2799 + $0x80] sm:$0xff]
        %v2817 = vld [vmem:[%s2799 + $0x88] sm:$0xff]
        %v2818 = vld [vmem:[%s2799 + $0x90] sm:$0x1]
        %v2819 = vld [vmem:[%s2799 + $0x98] sm:$0x1]
        %v2820 = vld [vmem:[%s2799 + $0xa0] sm:$0x1]
        %v2821 = vld [vmem:[%s2799 + $0xa8] sm:$0x1]
        %v2822 = vld [vmem:[%s2799 + $0xb0] sm:$0x1]
        %v2823 = vld [vmem:[%s2799 + $0xb8] sm:$0x1]
        %v2824 = vld [vmem:[%s2] sm:$0xff]
        %2826 = vset.pattern.permute.xlu0 0
        %2827 = vperm.xlu0 %2826, %v2824
        %v2828 = vpop.permute.xlu0 %2827
        %v2831 = vsel %vm2454, %v2798, 0
        %v2834 = vsel %vm2458, %v2818, 0
        %v2837 = vsel %vm2458, %v2819, 0
        %v2840 = vsel %vm2458, %v2820, 0
        %v2843 = vsel %vm2458, %v2821, 0
        %v2846 = vsel %vm2458, %v2822, 0
        %v2849 = vsel %vm2458, %v2823, 0
        %2851 = vmatpush.msra.mxu0 0.0
        %2852 = vmatpush.msra.mxu0 0.0
        %2853 = vmatpush.msra.mxu0 0.0
        %2854 = vmatpush.msra.mxu0 0.0
        %2855 = vmatpush.msra.mxu0 0.0
        %2856 = vmatpush.msra.mxu0 0.0
        %2857 = vmatpush.msra.mxu0 0.0
        %2858 = vmatpush.msra.mxu0 0.0
        %2859 = vmatpush.msra.mxu0 0.0
        %2860 = vmatpush.msra.mxu0 0.0
        %2861 = vmatpush.msra.mxu0 0.0
        %2862 = vmatpush.msra.mxu0 0.0
        %2863 = vmatpush.msra.mxu0 %v2834
        %2864 = vmatpush.msra.mxu0 %v2812
        %2865 = vmatpush.msra.mxu0 %v2806
        %2866 = vmatpush.msra.mxu0 %v2800
        %2867 = vmatmul.f32.gmra.mxu0 %v2831
        %v2868 = vpop.f32.mrf.mxu0
        %v2869 = vadd.f32 %v2828, %v2868
        %2870 = vdwg.mxu0
        %2871 = vmatpush.msra.mxu0 0.0
        %2872 = vmatpush.msra.mxu0 0.0
        %2873 = vmatpush.msra.mxu0 0.0
        %2874 = vmatpush.msra.mxu0 0.0
        %2875 = vmatpush.msra.mxu0 0.0
        %2876 = vmatpush.msra.mxu0 0.0
        %2877 = vmatpush.msra.mxu0 0.0
        %2878 = vmatpush.msra.mxu0 0.0
        %2879 = vmatpush.msra.mxu0 0.0
        %2880 = vmatpush.msra.mxu0 0.0
        %2881 = vmatpush.msra.mxu0 0.0
        %2882 = vmatpush.msra.mxu0 0.0
        %2883 = vmatpush.msra.mxu0 %v2837
        %2884 = vmatpush.msra.mxu0 %v2813
        %2885 = vmatpush.msra.mxu0 %v2807
        %2886 = vmatpush.msra.mxu0 %v2801
        %2887 = vmatmul.f32.gmra.mxu0 %v2831
        %v2888 = vpop.f32.mrf.mxu0
        %v2889 = vadd.f32 %v2828, %v2888
        %2890 = vdwg.mxu0
        %2891 = vmatpush.msra.mxu0 0.0
        %2892 = vmatpush.msra.mxu0 0.0
        %2893 = vmatpush.msra.mxu0 0.0
        %2894 = vmatpush.msra.mxu0 0.0
        %2895 = vmatpush.msra.mxu0 0.0
        %2896 = vmatpush.msra.mxu0 0.0
        %2897 = vmatpush.msra.mxu0 0.0
        %2898 = vmatpush.msra.mxu0 0.0
        %2899 = vmatpush.msra.mxu0 0.0
        %2900 = vmatpush.msra.mxu0 0.0
        %2901 = vmatpush.msra.mxu0 0.0
        %2902 = vmatpush.msra.mxu0 0.0
        %2903 = vmatpush.msra.mxu0 %v2840
        %2904 = vmatpush.msra.mxu0 %v2814
        %2905 = vmatpush.msra.mxu0 %v2808
        %2906 = vmatpush.msra.mxu0 %v2802
        %2907 = vmatmul.f32.gmra.mxu0 %v2831
        %v2908 = vpop.f32.mrf.mxu0
        %v2909 = vadd.f32 %v2828, %v2908
        %2910 = vdwg.mxu0
        %2911 = vmatpush.msra.mxu0 0.0
        %2912 = vmatpush.msra.mxu0 0.0
        %2913 = vmatpush.msra.mxu0 0.0
        %2914 = vmatpush.msra.mxu0 0.0
        %2915 = vmatpush.msra.mxu0 0.0
        %2916 = vmatpush.msra.mxu0 0.0
        %2917 = vmatpush.msra.mxu0 0.0
        %2918 = vmatpush.msra.mxu0 0.0
        %2919 = vmatpush.msra.mxu0 0.0
        %2920 = vmatpush.msra.mxu0 0.0
        %2921 = vmatpush.msra.mxu0 0.0
        %2922 = vmatpush.msra.mxu0 0.0
        %2923 = vmatpush.msra.mxu0 %v2843
        %2924 = vmatpush.msra.mxu0 %v2815
        %2925 = vmatpush.msra.mxu0 %v2809
        %2926 = vmatpush.msra.mxu0 %v2803
        %2927 = vmatmul.f32.gmra.mxu0 %v2831
        %v2928 = vpop.f32.mrf.mxu0
        %v2929 = vadd.f32 %v2828, %v2928
        %2930 = vdwg.mxu0
        %2931 = vmatpush.msra.mxu0 0.0
        %2932 = vmatpush.msra.mxu0 0.0
        %2933 = vmatpush.msra.mxu0 0.0
        %2934 = vmatpush.msra.mxu0 0.0
        %2935 = vmatpush.msra.mxu0 0.0
        %2936 = vmatpush.msra.mxu0 0.0
        %2937 = vmatpush.msra.mxu0 0.0
        %2938 = vmatpush.msra.mxu0 0.0
        %2939 = vmatpush.msra.mxu0 0.0
        %2940 = vmatpush.msra.mxu0 0.0
        %2941 = vmatpush.msra.mxu0 0.0
        %2942 = vmatpush.msra.mxu0 0.0
        %2943 = vmatpush.msra.mxu0 %v2846
        %2944 = vmatpush.msra.mxu0 %v2816
        %2945 = vmatpush.msra.mxu0 %v2810
        %2946 = vmatpush.msra.mxu0 %v2804
        %2947 = vmatmul.f32.gmra.mxu0 %v2831
        %v2948 = vpop.f32.mrf.mxu0
        %v2949 = vadd.f32 %v2828, %v2948
        %2950 = vdwg.mxu0
        %2951 = vmatpush.msra.mxu0 0.0
        %2952 = vmatpush.msra.mxu0 0.0
        %2953 = vmatpush.msra.mxu0 0.0
        %2954 = vmatpush.msra.mxu0 0.0
        %2955 = vmatpush.msra.mxu0 0.0
        %2956 = vmatpush.msra.mxu0 0.0
        %2957 = vmatpush.msra.mxu0 0.0
        %2958 = vmatpush.msra.mxu0 0.0
        %2959 = vmatpush.msra.mxu0 0.0
        %2960 = vmatpush.msra.mxu0 0.0
        %2961 = vmatpush.msra.mxu0 0.0
        %2962 = vmatpush.msra.mxu0 0.0
        %2963 = vmatpush.msra.mxu0 %v2849
        %2964 = vmatpush.msra.mxu0 %v2817
        %2965 = vmatpush.msra.mxu0 %v2811
        %2966 = vmatpush.msra.mxu0 %v2805
        %2967 = vmatmul.f32.gmra.mxu0 %v2831
        %v2968 = vpop.f32.mrf.mxu0
        %v2969 = vadd.f32 %v2828, %v2968
        %2970 = vdwg.mxu0
        %v2971 = vmax.f32 %v2869, 0.0
        %v2972 = vmax.f32 %v2889, 0.0
        %v2973 = vmax.f32 %v2909, 0.0
        %v2974 = vmax.f32 %v2929, 0.0
        %v2975 = vmax.f32 %v2949, 0.0
        %v2976 = vmax.f32 %v2969, 0.0
        %v2977 = vpack.c.bf16 %v2972, %v2971
        %v2978 = vpack.c.bf16 %v2974, %v2973
        %v2979 = vpack.c.bf16 %v2976, %v2975
        %s2980 = scalar_lea.vmem [#allocation4], 48
        %2981 = vst [vmem:[%s2980] sm:$0xff] %v2977
        %2982 = vst [vmem:[%s2980 + $0x8] sm:$0xff] %v2978
        %2983 = vst.msk [vmem:[%s2980 + $0x10] sm:$0xff] %vm2610, %v2979
        %v2984 = vld [vmem:[%s1] sm:$0xff]
        %s2985 = scalar_lea.vmem [#allocation3], 576
        %v2986 = vld [vmem:[%s2985] sm:$0xff]
        %v2987 = vld [vmem:[%s2985 + $0x8] sm:$0xff]
        %v2988 = vld [vmem:[%s2985 + $0x10] sm:$0xff]
        %v2989 = vld [vmem:[%s2985 + $0x18] sm:$0xff]
        %v2990 = vld [vmem:[%s2985 + $0x20] sm:$0xff]
        %v2991 = vld [vmem:[%s2985 + $0x28] sm:$0xff]
        %v2992 = vld [vmem:[%s2985 + $0x30] sm:$0xff]
        %v2993 = vld [vmem:[%s2985 + $0x38] sm:$0xff]
        %v2994 = vld [vmem:[%s2985 + $0x40] sm:$0xff]
        %v2995 = vld [vmem:[%s2985 + $0x48] sm:$0xff]
        %v2996 = vld [vmem:[%s2985 + $0x50] sm:$0xff]
        %v2997 = vld [vmem:[%s2985 + $0x58] sm:$0xff]
        %v2998 = vld [vmem:[%s2985 + $0x60] sm:$0xff]
        %v2999 = vld [vmem:[%s2985 + $0x68] sm:$0xff]
        %v3000 = vld [vmem:[%s2985 + $0x70] sm:$0xff]
        %v3001 = vld [vmem:[%s2985 + $0x78] sm:$0xff]
        %v3002 = vld [vmem:[%s2985 + $0x80] sm:$0xff]
        %v3003 = vld [vmem:[%s2985 + $0x88] sm:$0xff]
        %v3004 = vld [vmem:[%s2985 + $0x90] sm:$0x1]
        %v3005 = vld [vmem:[%s2985 + $0x98] sm:$0x1]
        %v3006 = vld [vmem:[%s2985 + $0xa0] sm:$0x1]
        %v3007 = vld [vmem:[%s2985 + $0xa8] sm:$0x1]
        %v3008 = vld [vmem:[%s2985 + $0xb0] sm:$0x1]
        %v3009 = vld [vmem:[%s2985 + $0xb8] sm:$0x1]
        %v3010 = vld [vmem:[%s2] sm:$0xff]
        %3012 = vset.pattern.permute.xlu0 0
        %3013 = vperm.xlu0 %3012, %v3010
        %v3014 = vpop.permute.xlu0 %3013
        %v3017 = vsel %vm2454, %v2984, 0
        %v3020 = vsel %vm2458, %v3004, 0
        %v3023 = vsel %vm2458, %v3005, 0
        %v3026 = vsel %vm2458, %v3006, 0
        %v3029 = vsel %vm2458, %v3007, 0
        %v3032 = vsel %vm2458, %v3008, 0
        %v3035 = vsel %vm2458, %v3009, 0
        %3037 = vmatpush.msra.mxu0 0.0
        %3038 = vmatpush.msra.mxu0 0.0
        %3039 = vmatpush.msra.mxu0 0.0
        %3040 = vmatpush.msra.mxu0 0.0
        %3041 = vmatpush.msra.mxu0 0.0
        %3042 = vmatpush.msra.mxu0 0.0
        %3043 = vmatpush.msra.mxu0 0.0
        %3044 = vmatpush.msra.mxu0 0.0
        %3045 = vmatpush.msra.mxu0 0.0
        %3046 = vmatpush.msra.mxu0 0.0
        %3047 = vmatpush.msra.mxu0 0.0
        %3048 = vmatpush.msra.mxu0 0.0
        %3049 = vmatpush.msra.mxu0 %v3020
        %3050 = vmatpush.msra.mxu0 %v2998
        %3051 = vmatpush.msra.mxu0 %v2992
        %3052 = vmatpush.msra.mxu0 %v2986
        %3053 = vmatmul.f32.gmra.mxu0 %v3017
        %v3054 = vpop.f32.mrf.mxu0
        %v3055 = vadd.f32 %v3014, %v3054
        %3056 = vdwg.mxu0
        %3057 = vmatpush.msra.mxu0 0.0
        %3058 = vmatpush.msra.mxu0 0.0
        %3059 = vmatpush.msra.mxu0 0.0
        %3060 = vmatpush.msra.mxu0 0.0
        %3061 = vmatpush.msra.mxu0 0.0
        %3062 = vmatpush.msra.mxu0 0.0
        %3063 = vmatpush.msra.mxu0 0.0
        %3064 = vmatpush.msra.mxu0 0.0
        %3065 = vmatpush.msra.mxu0 0.0
        %3066 = vmatpush.msra.mxu0 0.0
        %3067 = vmatpush.msra.mxu0 0.0
        %3068 = vmatpush.msra.mxu0 0.0
        %3069 = vmatpush.msra.mxu0 %v3023
        %3070 = vmatpush.msra.mxu0 %v2999
        %3071 = vmatpush.msra.mxu0 %v2993
        %3072 = vmatpush.msra.mxu0 %v2987
        %3073 = vmatmul.f32.gmra.mxu0 %v3017
        %v3074 = vpop.f32.mrf.mxu0
        %v3075 = vadd.f32 %v3014, %v3074
        %3076 = vdwg.mxu0
        %3077 = vmatpush.msra.mxu0 0.0
        %3078 = vmatpush.msra.mxu0 0.0
        %3079 = vmatpush.msra.mxu0 0.0
        %3080 = vmatpush.msra.mxu0 0.0
        %3081 = vmatpush.msra.mxu0 0.0
        %3082 = vmatpush.msra.mxu0 0.0
        %3083 = vmatpush.msra.mxu0 0.0
        %3084 = vmatpush.msra.mxu0 0.0
        %3085 = vmatpush.msra.mxu0 0.0
        %3086 = vmatpush.msra.mxu0 0.0
        %3087 = vmatpush.msra.mxu0 0.0
        %3088 = vmatpush.msra.mxu0 0.0
        %3089 = vmatpush.msra.mxu0 %v3026
        %3090 = vmatpush.msra.mxu0 %v3000
        %3091 = vmatpush.msra.mxu0 %v2994
        %3092 = vmatpush.msra.mxu0 %v2988
        %3093 = vmatmul.f32.gmra.mxu0 %v3017
        %v3094 = vpop.f32.mrf.mxu0
        %v3095 = vadd.f32 %v3014, %v3094
        %3096 = vdwg.mxu0
        %3097 = vmatpush.msra.mxu0 0.0
        %3098 = vmatpush.msra.mxu0 0.0
        %3099 = vmatpush.msra.mxu0 0.0
        %3100 = vmatpush.msra.mxu0 0.0
        %3101 = vmatpush.msra.mxu0 0.0
        %3102 = vmatpush.msra.mxu0 0.0
        %3103 = vmatpush.msra.mxu0 0.0
        %3104 = vmatpush.msra.mxu0 0.0
        %3105 = vmatpush.msra.mxu0 0.0
        %3106 = vmatpush.msra.mxu0 0.0
        %3107 = vmatpush.msra.mxu0 0.0
        %3108 = vmatpush.msra.mxu0 0.0
        %3109 = vmatpush.msra.mxu0 %v3029
        %3110 = vmatpush.msra.mxu0 %v3001
        %3111 = vmatpush.msra.mxu0 %v2995
        %3112 = vmatpush.msra.mxu0 %v2989
        %3113 = vmatmul.f32.gmra.mxu0 %v3017
        %v3114 = vpop.f32.mrf.mxu0
        %v3115 = vadd.f32 %v3014, %v3114
        %3116 = vdwg.mxu0
        %3117 = vmatpush.msra.mxu0 0.0
        %3118 = vmatpush.msra.mxu0 0.0
        %3119 = vmatpush.msra.mxu0 0.0
        %3120 = vmatpush.msra.mxu0 0.0
        %3121 = vmatpush.msra.mxu0 0.0
        %3122 = vmatpush.msra.mxu0 0.0
        %3123 = vmatpush.msra.mxu0 0.0
        %3124 = vmatpush.msra.mxu0 0.0
        %3125 = vmatpush.msra.mxu0 0.0
        %3126 = vmatpush.msra.mxu0 0.0
        %3127 = vmatpush.msra.mxu0 0.0
        %3128 = vmatpush.msra.mxu0 0.0
        %3129 = vmatpush.msra.mxu0 %v3032
        %3130 = vmatpush.msra.mxu0 %v3002
        %3131 = vmatpush.msra.mxu0 %v2996
        %3132 = vmatpush.msra.mxu0 %v2990
        %3133 = vmatmul.f32.gmra.mxu0 %v3017
        %v3134 = vpop.f32.mrf.mxu0
        %v3135 = vadd.f32 %v3014, %v3134
        %3136 = vdwg.mxu0
        %3137 = vmatpush.msra.mxu0 0.0
        %3138 = vmatpush.msra.mxu0 0.0
        %3139 = vmatpush.msra.mxu0 0.0
        %3140 = vmatpush.msra.mxu0 0.0
        %3141 = vmatpush.msra.mxu0 0.0
        %3142 = vmatpush.msra.mxu0 0.0
        %3143 = vmatpush.msra.mxu0 0.0
        %3144 = vmatpush.msra.mxu0 0.0
        %3145 = vmatpush.msra.mxu0 0.0
        %3146 = vmatpush.msra.mxu0 0.0
        %3147 = vmatpush.msra.mxu0 0.0
        %3148 = vmatpush.msra.mxu0 0.0
        %3149 = vmatpush.msra.mxu0 %v3035
        %3150 = vmatpush.msra.mxu0 %v3003
        %3151 = vmatpush.msra.mxu0 %v2997
        %3152 = vmatpush.msra.mxu0 %v2991
        %3153 = vmatmul.f32.gmra.mxu0 %v3017
        %v3154 = vpop.f32.mrf.mxu0
        %v3155 = vadd.f32 %v3014, %v3154
        %3156 = vdwg.mxu0
        %v3157 = vmax.f32 %v3055, 0.0
        %v3158 = vmax.f32 %v3075, 0.0
        %v3159 = vmax.f32 %v3095, 0.0
        %v3160 = vmax.f32 %v3115, 0.0
        %v3161 = vmax.f32 %v3135, 0.0
        %v3162 = vmax.f32 %v3155, 0.0
        %v3163 = vpack.c.bf16 %v3158, %v3157
        %v3164 = vpack.c.bf16 %v3160, %v3159
        %v3165 = vpack.c.bf16 %v3162, %v3161
        %s3166 = scalar_lea.vmem [#allocation4], 72
        %3167 = vst [vmem:[%s3166] sm:$0xff] %v3163
        %3168 = vst [vmem:[%s3166 + $0x8] sm:$0xff] %v3164
        %3169 = vst.msk [vmem:[%s3166 + $0x10] sm:$0xff] %vm2610, %v3165
        %v3170 = vld [vmem:[%s1] sm:$0xff]
        %s3171 = scalar_lea.vmem [#allocation3], 768
        %v3172 = vld [vmem:[%s3171] sm:$0xff]
        %v3173 = vld [vmem:[%s3171 + $0x8] sm:$0xff]
        %v3174 = vld [vmem:[%s3171 + $0x10] sm:$0xff]
        %v3175 = vld [vmem:[%s3171 + $0x18] sm:$0xff]
        %v3176 = vld [vmem:[%s3171 + $0x20] sm:$0xff]
        %v3177 = vld [vmem:[%s3171 + $0x28] sm:$0xff]
        %v3178 = vld [vmem:[%s3171 + $0x30] sm:$0xff]
        %v3179 = vld [vmem:[%s3171 + $0x38] sm:$0xff]
        %v3180 = vld [vmem:[%s3171 + $0x40] sm:$0xff]
        %v3181 = vld [vmem:[%s3171 + $0x48] sm:$0xff]
        %v3182 = vld [vmem:[%s3171 + $0x50] sm:$0xff]
        %v3183 = vld [vmem:[%s3171 + $0x58] sm:$0xff]
        %v3184 = vld [vmem:[%s3171 + $0x60] sm:$0xff]
        %v3185 = vld [vmem:[%s3171 + $0x68] sm:$0xff]
        %v3186 = vld [vmem:[%s3171 + $0x70] sm:$0xff]
        %v3187 = vld [vmem:[%s3171 + $0x78] sm:$0xff]
        %v3188 = vld [vmem:[%s3171 + $0x80] sm:$0xff]
        %v3189 = vld [vmem:[%s3171 + $0x88] sm:$0xff]
        %v3190 = vld [vmem:[%s3171 + $0x90] sm:$0x1]
        %v3191 = vld [vmem:[%s3171 + $0x98] sm:$0x1]
        %v3192 = vld [vmem:[%s3171 + $0xa0] sm:$0x1]
        %v3193 = vld [vmem:[%s3171 + $0xa8] sm:$0x1]
        %v3194 = vld [vmem:[%s3171 + $0xb0] sm:$0x1]
        %v3195 = vld [vmem:[%s3171 + $0xb8] sm:$0x1]
        %v3196 = vld [vmem:[%s2] sm:$0xff]
        %3198 = vset.pattern.permute.xlu0 0
        %3199 = vperm.xlu0 %3198, %v3196
        %v3200 = vpop.permute.xlu0 %3199
        %v3203 = vsel %vm2454, %v3170, 0
        %v3206 = vsel %vm2458, %v3190, 0
        %v3209 = vsel %vm2458, %v3191, 0
        %v3212 = vsel %vm2458, %v3192, 0
        %v3215 = vsel %vm2458, %v3193, 0
        %v3218 = vsel %vm2458, %v3194, 0
        %v3221 = vsel %vm2458, %v3195, 0
        %3223 = vmatpush.msra.mxu0 0.0
        %3224 = vmatpush.msra.mxu0 0.0
        %3225 = vmatpush.msra.mxu0 0.0
        %3226 = vmatpush.msra.mxu0 0.0
        %3227 = vmatpush.msra.mxu0 0.0
        %3228 = vmatpush.msra.mxu0 0.0
        %3229 = vmatpush.msra.mxu0 0.0
        %3230 = vmatpush.msra.mxu0 0.0
        %3231 = vmatpush.msra.mxu0 0.0
        %3232 = vmatpush.msra.mxu0 0.0
        %3233 = vmatpush.msra.mxu0 0.0
        %3234 = vmatpush.msra.mxu0 0.0
        %3235 = vmatpush.msra.mxu0 %v3206
        %3236 = vmatpush.msra.mxu0 %v3184
        %3237 = vmatpush.msra.mxu0 %v3178
        %3238 = vmatpush.msra.mxu0 %v3172
        %3239 = vmatmul.f32.gmra.mxu0 %v3203
        %v3240 = vpop.f32.mrf.mxu0
        %v3241 = vadd.f32 %v3200, %v3240
        %3242 = vdwg.mxu0
        %3243 = vmatpush.msra.mxu0 0.0
        %3244 = vmatpush.msra.mxu0 0.0
        %3245 = vmatpush.msra.mxu0 0.0
        %3246 = vmatpush.msra.mxu0 0.0
        %3247 = vmatpush.msra.mxu0 0.0
        %3248 = vmatpush.msra.mxu0 0.0
        %3249 = vmatpush.msra.mxu0 0.0
        %3250 = vmatpush.msra.mxu0 0.0
        %3251 = vmatpush.msra.mxu0 0.0
        %3252 = vmatpush.msra.mxu0 0.0
        %3253 = vmatpush.msra.mxu0 0.0
        %3254 = vmatpush.msra.mxu0 0.0
        %3255 = vmatpush.msra.mxu0 %v3209
        %3256 = vmatpush.msra.mxu0 %v3185
        %3257 = vmatpush.msra.mxu0 %v3179
        %3258 = vmatpush.msra.mxu0 %v3173
        %3259 = vmatmul.f32.gmra.mxu0 %v3203
        %v3260 = vpop.f32.mrf.mxu0
        %v3261 = vadd.f32 %v3200, %v3260
        %3262 = vdwg.mxu0
        %3263 = vmatpush.msra.mxu0 0.0
        %3264 = vmatpush.msra.mxu0 0.0
        %3265 = vmatpush.msra.mxu0 0.0
        %3266 = vmatpush.msra.mxu0 0.0
        %3267 = vmatpush.msra.mxu0 0.0
        %3268 = vmatpush.msra.mxu0 0.0
        %3269 = vmatpush.msra.mxu0 0.0
        %3270 = vmatpush.msra.mxu0 0.0
        %3271 = vmatpush.msra.mxu0 0.0
        %3272 = vmatpush.msra.mxu0 0.0
        %3273 = vmatpush.msra.mxu0 0.0
        %3274 = vmatpush.msra.mxu0 0.0
        %3275 = vmatpush.msra.mxu0 %v3212
        %3276 = vmatpush.msra.mxu0 %v3186
        %3277 = vmatpush.msra.mxu0 %v3180
        %3278 = vmatpush.msra.mxu0 %v3174
        %3279 = vmatmul.f32.gmra.mxu0 %v3203
        %v3280 = vpop.f32.mrf.mxu0
        %v3281 = vadd.f32 %v3200, %v3280
        %3282 = vdwg.mxu0
        %3283 = vmatpush.msra.mxu0 0.0
        %3284 = vmatpush.msra.mxu0 0.0
        %3285 = vmatpush.msra.mxu0 0.0
        %3286 = vmatpush.msra.mxu0 0.0
        %3287 = vmatpush.msra.mxu0 0.0
        %3288 = vmatpush.msra.mxu0 0.0
        %3289 = vmatpush.msra.mxu0 0.0
        %3290 = vmatpush.msra.mxu0 0.0
        %3291 = vmatpush.msra.mxu0 0.0
        %3292 = vmatpush.msra.mxu0 0.0
        %3293 = vmatpush.msra.mxu0 0.0
        %3294 = vmatpush.msra.mxu0 0.0
        %3295 = vmatpush.msra.mxu0 %v3215
        %3296 = vmatpush.msra.mxu0 %v3187
        %3297 = vmatpush.msra.mxu0 %v3181
        %3298 = vmatpush.msra.mxu0 %v3175
        %3299 = vmatmul.f32.gmra.mxu0 %v3203
        %v3300 = vpop.f32.mrf.mxu0
        %v3301 = vadd.f32 %v3200, %v3300
        %3302 = vdwg.mxu0
        %3303 = vmatpush.msra.mxu0 0.0
        %3304 = vmatpush.msra.mxu0 0.0
        %3305 = vmatpush.msra.mxu0 0.0
        %3306 = vmatpush.msra.mxu0 0.0
        %3307 = vmatpush.msra.mxu0 0.0
        %3308 = vmatpush.msra.mxu0 0.0
        %3309 = vmatpush.msra.mxu0 0.0
        %3310 = vmatpush.msra.mxu0 0.0
        %3311 = vmatpush.msra.mxu0 0.0
        %3312 = vmatpush.msra.mxu0 0.0
        %3313 = vmatpush.msra.mxu0 0.0
        %3314 = vmatpush.msra.mxu0 0.0
        %3315 = vmatpush.msra.mxu0 %v3218
        %3316 = vmatpush.msra.mxu0 %v3188
        %3317 = vmatpush.msra.mxu0 %v3182
        %3318 = vmatpush.msra.mxu0 %v3176
        %3319 = vmatmul.f32.gmra.mxu0 %v3203
        %v3320 = vpop.f32.mrf.mxu0
        %v3321 = vadd.f32 %v3200, %v3320
        %3322 = vdwg.mxu0
        %3323 = vmatpush.msra.mxu0 0.0
        %3324 = vmatpush.msra.mxu0 0.0
        %3325 = vmatpush.msra.mxu0 0.0
        %3326 = vmatpush.msra.mxu0 0.0
        %3327 = vmatpush.msra.mxu0 0.0
        %3328 = vmatpush.msra.mxu0 0.0
        %3329 = vmatpush.msra.mxu0 0.0
        %3330 = vmatpush.msra.mxu0 0.0
        %3331 = vmatpush.msra.mxu0 0.0
        %3332 = vmatpush.msra.mxu0 0.0
        %3333 = vmatpush.msra.mxu0 0.0
        %3334 = vmatpush.msra.mxu0 0.0
        %3335 = vmatpush.msra.mxu0 %v3221
        %3336 = vmatpush.msra.mxu0 %v3189
        %3337 = vmatpush.msra.mxu0 %v3183
        %3338 = vmatpush.msra.mxu0 %v3177
        %3339 = vmatmul.f32.gmra.mxu0 %v3203
        %v3340 = vpop.f32.mrf.mxu0
        %v3341 = vadd.f32 %v3200, %v3340
        %3342 = vdwg.mxu0
        %v3343 = vmax.f32 %v3241, 0.0
        %v3344 = vmax.f32 %v3261, 0.0
        %v3345 = vmax.f32 %v3281, 0.0
        %v3346 = vmax.f32 %v3301, 0.0
        %v3347 = vmax.f32 %v3321, 0.0
        %v3348 = vmax.f32 %v3341, 0.0
        %v3349 = vpack.c.bf16 %v3344, %v3343
        %v3350 = vpack.c.bf16 %v3346, %v3345
        %v3351 = vpack.c.bf16 %v3348, %v3347
        %s3352 = scalar_lea.vmem [#allocation4], 96
        %3353 = vst [vmem:[%s3352] sm:$0xff] %v3349
        %3354 = vst [vmem:[%s3352 + $0x8] sm:$0xff] %v3350
        %3355 = vst.msk [vmem:[%s3352 + $0x10] sm:$0xff] %vm2610, %v3351
        %v3356 = vld [vmem:[%s1] sm:$0xff]
        %s3357 = scalar_lea.vmem [#allocation3], 960
        %v3358 = vld [vmem:[%s3357] sm:$0xff]
        %v3359 = vld [vmem:[%s3357 + $0x8] sm:$0xff]
        %v3360 = vld [vmem:[%s3357 + $0x10] sm:$0xff]
        %v3361 = vld [vmem:[%s3357 + $0x18] sm:$0xff]
        %v3362 = vld [vmem:[%s3357 + $0x20] sm:$0xff]
        %v3363 = vld [vmem:[%s3357 + $0x28] sm:$0xff]
        %v3364 = vld [vmem:[%s3357 + $0x30] sm:$0xff]
        %v3365 = vld [vmem:[%s3357 + $0x38] sm:$0xff]
        %v3366 = vld [vmem:[%s3357 + $0x40] sm:$0xff]
        %v3367 = vld [vmem:[%s3357 + $0x48] sm:$0xff]
        %v3368 = vld [vmem:[%s3357 + $0x50] sm:$0xff]
        %v3369 = vld [vmem:[%s3357 + $0x58] sm:$0xff]
        %v3370 = vld [vmem:[%s3357 + $0x60] sm:$0xff]
        %v3371 = vld [vmem:[%s3357 + $0x68] sm:$0xff]
        %v3372 = vld [vmem:[%s3357 + $0x70] sm:$0xff]
        %v3373 = vld [vmem:[%s3357 + $0x78] sm:$0xff]
        %v3374 = vld [vmem:[%s3357 + $0x80] sm:$0xff]
        %v3375 = vld [vmem:[%s3357 + $0x88] sm:$0xff]
        %v3376 = vld [vmem:[%s3357 + $0x90] sm:$0x1]
        %v3377 = vld [vmem:[%s3357 + $0x98] sm:$0x1]
        %v3378 = vld [vmem:[%s3357 + $0xa0] sm:$0x1]
        %v3379 = vld [vmem:[%s3357 + $0xa8] sm:$0x1]
        %v3380 = vld [vmem:[%s3357 + $0xb0] sm:$0x1]
        %v3381 = vld [vmem:[%s3357 + $0xb8] sm:$0x1]
        %v3382 = vld [vmem:[%s2] sm:$0xff]
        %3384 = vset.pattern.permute.xlu0 0
        %3385 = vperm.xlu0 %3384, %v3382
        %v3386 = vpop.permute.xlu0 %3385
        %v3389 = vsel %vm2454, %v3356, 0
        %v3392 = vsel %vm2458, %v3376, 0
        %v3395 = vsel %vm2458, %v3377, 0
        %v3398 = vsel %vm2458, %v3378, 0
        %v3401 = vsel %vm2458, %v3379, 0
        %v3404 = vsel %vm2458, %v3380, 0
        %v3407 = vsel %vm2458, %v3381, 0
        %3409 = vmatpush.msra.mxu0 0.0
        %3410 = vmatpush.msra.mxu0 0.0
        %3411 = vmatpush.msra.mxu0 0.0
        %3412 = vmatpush.msra.mxu0 0.0
        %3413 = vmatpush.msra.mxu0 0.0
        %3414 = vmatpush.msra.mxu0 0.0
        %3415 = vmatpush.msra.mxu0 0.0
        %3416 = vmatpush.msra.mxu0 0.0
        %3417 = vmatpush.msra.mxu0 0.0
        %3418 = vmatpush.msra.mxu0 0.0
        %3419 = vmatpush.msra.mxu0 0.0
        %3420 = vmatpush.msra.mxu0 0.0
        %3421 = vmatpush.msra.mxu0 %v3392
        %3422 = vmatpush.msra.mxu0 %v3370
        %3423 = vmatpush.msra.mxu0 %v3364
        %3424 = vmatpush.msra.mxu0 %v3358
        %3425 = vmatmul.f32.gmra.mxu0 %v3389
        %v3426 = vpop.f32.mrf.mxu0
        %v3427 = vadd.f32 %v3386, %v3426
        %3428 = vdwg.mxu0
        %3429 = vmatpush.msra.mxu0 0.0
        %3430 = vmatpush.msra.mxu0 0.0
        %3431 = vmatpush.msra.mxu0 0.0
        %3432 = vmatpush.msra.mxu0 0.0
        %3433 = vmatpush.msra.mxu0 0.0
        %3434 = vmatpush.msra.mxu0 0.0
        %3435 = vmatpush.msra.mxu0 0.0
        %3436 = vmatpush.msra.mxu0 0.0
        %3437 = vmatpush.msra.mxu0 0.0
        %3438 = vmatpush.msra.mxu0 0.0
        %3439 = vmatpush.msra.mxu0 0.0
        %3440 = vmatpush.msra.mxu0 0.0
        %3441 = vmatpush.msra.mxu0 %v3395
        %3442 = vmatpush.msra.mxu0 %v3371
        %3443 = vmatpush.msra.mxu0 %v3365
        %3444 = vmatpush.msra.mxu0 %v3359
        %3445 = vmatmul.f32.gmra.mxu0 %v3389
        %v3446 = vpop.f32.mrf.mxu0
        %v3447 = vadd.f32 %v3386, %v3446
        %3448 = vdwg.mxu0
        %3449 = vmatpush.msra.mxu0 0.0
        %3450 = vmatpush.msra.mxu0 0.0
        %3451 = vmatpush.msra.mxu0 0.0
        %3452 = vmatpush.msra.mxu0 0.0
        %3453 = vmatpush.msra.mxu0 0.0
        %3454 = vmatpush.msra.mxu0 0.0
        %3455 = vmatpush.msra.mxu0 0.0
        %3456 = vmatpush.msra.mxu0 0.0
        %3457 = vmatpush.msra.mxu0 0.0
        %3458 = vmatpush.msra.mxu0 0.0
        %3459 = vmatpush.msra.mxu0 0.0
        %3460 = vmatpush.msra.mxu0 0.0
        %3461 = vmatpush.msra.mxu0 %v3398
        %3462 = vmatpush.msra.mxu0 %v3372
        %3463 = vmatpush.msra.mxu0 %v3366
        %3464 = vmatpush.msra.mxu0 %v3360
        %3465 = vmatmul.f32.gmra.mxu0 %v3389
        %v3466 = vpop.f32.mrf.mxu0
        %v3467 = vadd.f32 %v3386, %v3466
        %3468 = vdwg.mxu0
        %3469 = vmatpush.msra.mxu0 0.0
        %3470 = vmatpush.msra.mxu0 0.0
        %3471 = vmatpush.msra.mxu0 0.0
        %3472 = vmatpush.msra.mxu0 0.0
        %3473 = vmatpush.msra.mxu0 0.0
        %3474 = vmatpush.msra.mxu0 0.0
        %3475 = vmatpush.msra.mxu0 0.0
        %3476 = vmatpush.msra.mxu0 0.0
        %3477 = vmatpush.msra.mxu0 0.0
        %3478 = vmatpush.msra.mxu0 0.0
        %3479 = vmatpush.msra.mxu0 0.0
        %3480 = vmatpush.msra.mxu0 0.0
        %3481 = vmatpush.msra.mxu0 %v3401
        %3482 = vmatpush.msra.mxu0 %v3373
        %3483 = vmatpush.msra.mxu0 %v3367
        %3484 = vmatpush.msra.mxu0 %v3361
        %3485 = vmatmul.f32.gmra.mxu0 %v3389
        %v3486 = vpop.f32.mrf.mxu0
        %v3487 = vadd.f32 %v3386, %v3486
        %3488 = vdwg.mxu0
        %3489 = vmatpush.msra.mxu0 0.0
        %3490 = vmatpush.msra.mxu0 0.0
        %3491 = vmatpush.msra.mxu0 0.0
        %3492 = vmatpush.msra.mxu0 0.0
        %3493 = vmatpush.msra.mxu0 0.0
        %3494 = vmatpush.msra.mxu0 0.0
        %3495 = vmatpush.msra.mxu0 0.0
        %3496 = vmatpush.msra.mxu0 0.0
        %3497 = vmatpush.msra.mxu0 0.0
        %3498 = vmatpush.msra.mxu0 0.0
        %3499 = vmatpush.msra.mxu0 0.0
        %3500 = vmatpush.msra.mxu0 0.0
        %3501 = vmatpush.msra.mxu0 %v3404
        %3502 = vmatpush.msra.mxu0 %v3374
        %3503 = vmatpush.msra.mxu0 %v3368
        %3504 = vmatpush.msra.mxu0 %v3362
        %3505 = vmatmul.f32.gmra.mxu0 %v3389
        %v3506 = vpop.f32.mrf.mxu0
        %v3507 = vadd.f32 %v3386, %v3506
        %3508 = vdwg.mxu0
        %3509 = vmatpush.msra.mxu0 0.0
        %3510 = vmatpush.msra.mxu0 0.0
        %3511 = vmatpush.msra.mxu0 0.0
        %3512 = vmatpush.msra.mxu0 0.0
        %3513 = vmatpush.msra.mxu0 0.0
        %3514 = vmatpush.msra.mxu0 0.0
        %3515 = vmatpush.msra.mxu0 0.0
        %3516 = vmatpush.msra.mxu0 0.0
        %3517 = vmatpush.msra.mxu0 0.0
        %3518 = vmatpush.msra.mxu0 0.0
        %3519 = vmatpush.msra.mxu0 0.0
        %3520 = vmatpush.msra.mxu0 0.0
        %3521 = vmatpush.msra.mxu0 %v3407
        %3522 = vmatpush.msra.mxu0 %v3375
        %3523 = vmatpush.msra.mxu0 %v3369
        %3524 = vmatpush.msra.mxu0 %v3363
        %3525 = vmatmul.f32.gmra.mxu0 %v3389
        %v3526 = vpop.f32.mrf.mxu0
        %v3527 = vadd.f32 %v3386, %v3526
        %3528 = vdwg.mxu0
        %v3529 = vmax.f32 %v3427, 0.0
        %v3530 = vmax.f32 %v3447, 0.0
        %v3531 = vmax.f32 %v3467, 0.0
        %v3532 = vmax.f32 %v3487, 0.0
        %v3533 = vmax.f32 %v3507, 0.0
        %v3534 = vmax.f32 %v3527, 0.0
        %v3535 = vpack.c.bf16 %v3530, %v3529
        %v3536 = vpack.c.bf16 %v3532, %v3531
        %v3537 = vpack.c.bf16 %v3534, %v3533
        %s3538 = scalar_lea.vmem [#allocation4], 120
        %3539 = vst [vmem:[%s3538] sm:$0xff] %v3535
        %3540 = vst [vmem:[%s3538 + $0x8] sm:$0xff] %v3536
        %3541 = vst.msk [vmem:[%s3538 + $0x10] sm:$0xff] %vm2610, %v3537
        %v3542 = vld [vmem:[%s1] sm:$0xff]
        %s3543 = scalar_lea.vmem [#allocation3], 1152
        %v3544 = vld [vmem:[%s3543] sm:$0xff]
        %v3545 = vld [vmem:[%s3543 + $0x8] sm:$0xff]
        %v3546 = vld [vmem:[%s3543 + $0x10] sm:$0xff]
        %v3547 = vld [vmem:[%s3543 + $0x18] sm:$0xff]
        %v3548 = vld [vmem:[%s3543 + $0x20] sm:$0xff]
        %v3549 = vld [vmem:[%s3543 + $0x28] sm:$0xff]
        %v3550 = vld [vmem:[%s3543 + $0x30] sm:$0xff]
        %v3551 = vld [vmem:[%s3543 + $0x38] sm:$0xff]
        %v3552 = vld [vmem:[%s3543 + $0x40] sm:$0xff]
        %v3553 = vld [vmem:[%s3543 + $0x48] sm:$0xff]
        %v3554 = vld [vmem:[%s3543 + $0x50] sm:$0xff]
        %v3555 = vld [vmem:[%s3543 + $0x58] sm:$0xff]
        %v3556 = vld [vmem:[%s3543 + $0x60] sm:$0xff]
        %v3557 = vld [vmem:[%s3543 + $0x68] sm:$0xff]
        %v3558 = vld [vmem:[%s3543 + $0x70] sm:$0xff]
        %v3559 = vld [vmem:[%s3543 + $0x78] sm:$0xff]
        %v3560 = vld [vmem:[%s3543 + $0x80] sm:$0xff]
        %v3561 = vld [vmem:[%s3543 + $0x88] sm:$0xff]
        %v3562 = vld [vmem:[%s3543 + $0x90] sm:$0x1]
        %v3563 = vld [vmem:[%s3543 + $0x98] sm:$0x1]
        %v3564 = vld [vmem:[%s3543 + $0xa0] sm:$0x1]
        %v3565 = vld [vmem:[%s3543 + $0xa8] sm:$0x1]
        %v3566 = vld [vmem:[%s3543 + $0xb0] sm:$0x1]
        %v3567 = vld [vmem:[%s3543 + $0xb8] sm:$0x1]
        %v3568 = vld [vmem:[%s2] sm:$0xff]
        %3570 = vset.pattern.permute.xlu0 0
        %3571 = vperm.xlu0 %3570, %v3568
        %v3572 = vpop.permute.xlu0 %3571
        %v3575 = vsel %vm2454, %v3542, 0
        %v3578 = vsel %vm2458, %v3562, 0
        %v3581 = vsel %vm2458, %v3563, 0
        %v3584 = vsel %vm2458, %v3564, 0
        %v3587 = vsel %vm2458, %v3565, 0
        %v3590 = vsel %vm2458, %v3566, 0
        %v3593 = vsel %vm2458, %v3567, 0
        %3595 = vmatpush.msra.mxu0 0.0
        %3596 = vmatpush.msra.mxu0 0.0
        %3597 = vmatpush.msra.mxu0 0.0
        %3598 = vmatpush.msra.mxu0 0.0
        %3599 = vmatpush.msra.mxu0 0.0
        %3600 = vmatpush.msra.mxu0 0.0
        %3601 = vmatpush.msra.mxu0 0.0
        %3602 = vmatpush.msra.mxu0 0.0
        %3603 = vmatpush.msra.mxu0 0.0
        %3604 = vmatpush.msra.mxu0 0.0
        %3605 = vmatpush.msra.mxu0 0.0
        %3606 = vmatpush.msra.mxu0 0.0
        %3607 = vmatpush.msra.mxu0 %v3578
        %3608 = vmatpush.msra.mxu0 %v3556
        %3609 = vmatpush.msra.mxu0 %v3550
        %3610 = vmatpush.msra.mxu0 %v3544
        %3611 = vmatmul.f32.gmra.mxu0 %v3575
        %v3612 = vpop.f32.mrf.mxu0
        %v3613 = vadd.f32 %v3572, %v3612
        %3614 = vdwg.mxu0
        %3615 = vmatpush.msra.mxu0 0.0
        %3616 = vmatpush.msra.mxu0 0.0
        %3617 = vmatpush.msra.mxu0 0.0
        %3618 = vmatpush.msra.mxu0 0.0
        %3619 = vmatpush.msra.mxu0 0.0
        %3620 = vmatpush.msra.mxu0 0.0
        %3621 = vmatpush.msra.mxu0 0.0
        %3622 = vmatpush.msra.mxu0 0.0
        %3623 = vmatpush.msra.mxu0 0.0
        %3624 = vmatpush.msra.mxu0 0.0
        %3625 = vmatpush.msra.mxu0 0.0
        %3626 = vmatpush.msra.mxu0 0.0
        %3627 = vmatpush.msra.mxu0 %v3581
        %3628 = vmatpush.msra.mxu0 %v3557
        %3629 = vmatpush.msra.mxu0 %v3551
        %3630 = vmatpush.msra.mxu0 %v3545
        %3631 = vmatmul.f32.gmra.mxu0 %v3575
        %v3632 = vpop.f32.mrf.mxu0
        %v3633 = vadd.f32 %v3572, %v3632
        %3634 = vdwg.mxu0
        %3635 = vmatpush.msra.mxu0 0.0
        %3636 = vmatpush.msra.mxu0 0.0
        %3637 = vmatpush.msra.mxu0 0.0
        %3638 = vmatpush.msra.mxu0 0.0
        %3639 = vmatpush.msra.mxu0 0.0
        %3640 = vmatpush.msra.mxu0 0.0
        %3641 = vmatpush.msra.mxu0 0.0
        %3642 = vmatpush.msra.mxu0 0.0
        %3643 = vmatpush.msra.mxu0 0.0
        %3644 = vmatpush.msra.mxu0 0.0
        %3645 = vmatpush.msra.mxu0 0.0
        %3646 = vmatpush.msra.mxu0 0.0
        %3647 = vmatpush.msra.mxu0 %v3584
        %3648 = vmatpush.msra.mxu0 %v3558
        %3649 = vmatpush.msra.mxu0 %v3552
        %3650 = vmatpush.msra.mxu0 %v3546
        %3651 = vmatmul.f32.gmra.mxu0 %v3575
        %v3652 = vpop.f32.mrf.mxu0
        %v3653 = vadd.f32 %v3572, %v3652
        %3654 = vdwg.mxu0
        %3655 = vmatpush.msra.mxu0 0.0
        %3656 = vmatpush.msra.mxu0 0.0
        %3657 = vmatpush.msra.mxu0 0.0
        %3658 = vmatpush.msra.mxu0 0.0
        %3659 = vmatpush.msra.mxu0 0.0
        %3660 = vmatpush.msra.mxu0 0.0
        %3661 = vmatpush.msra.mxu0 0.0
        %3662 = vmatpush.msra.mxu0 0.0
        %3663 = vmatpush.msra.mxu0 0.0
        %3664 = vmatpush.msra.mxu0 0.0
        %3665 = vmatpush.msra.mxu0 0.0
        %3666 = vmatpush.msra.mxu0 0.0
        %3667 = vmatpush.msra.mxu0 %v3587
        %3668 = vmatpush.msra.mxu0 %v3559
        %3669 = vmatpush.msra.mxu0 %v3553
        %3670 = vmatpush.msra.mxu0 %v3547
        %3671 = vmatmul.f32.gmra.mxu0 %v3575
        %v3672 = vpop.f32.mrf.mxu0
        %v3673 = vadd.f32 %v3572, %v3672
        %3674 = vdwg.mxu0
        %3675 = vmatpush.msra.mxu0 0.0
        %3676 = vmatpush.msra.mxu0 0.0
        %3677 = vmatpush.msra.mxu0 0.0
        %3678 = vmatpush.msra.mxu0 0.0
        %3679 = vmatpush.msra.mxu0 0.0
        %3680 = vmatpush.msra.mxu0 0.0
        %3681 = vmatpush.msra.mxu0 0.0
        %3682 = vmatpush.msra.mxu0 0.0
        %3683 = vmatpush.msra.mxu0 0.0
        %3684 = vmatpush.msra.mxu0 0.0
        %3685 = vmatpush.msra.mxu0 0.0
        %3686 = vmatpush.msra.mxu0 0.0
        %3687 = vmatpush.msra.mxu0 %v3590
        %3688 = vmatpush.msra.mxu0 %v3560
        %3689 = vmatpush.msra.mxu0 %v3554
        %3690 = vmatpush.msra.mxu0 %v3548
        %3691 = vmatmul.f32.gmra.mxu0 %v3575
        %v3692 = vpop.f32.mrf.mxu0
        %v3693 = vadd.f32 %v3572, %v3692
        %3694 = vdwg.mxu0
        %3695 = vmatpush.msra.mxu0 0.0
        %3696 = vmatpush.msra.mxu0 0.0
        %3697 = vmatpush.msra.mxu0 0.0
        %3698 = vmatpush.msra.mxu0 0.0
        %3699 = vmatpush.msra.mxu0 0.0
        %3700 = vmatpush.msra.mxu0 0.0
        %3701 = vmatpush.msra.mxu0 0.0
        %3702 = vmatpush.msra.mxu0 0.0
        %3703 = vmatpush.msra.mxu0 0.0
        %3704 = vmatpush.msra.mxu0 0.0
        %3705 = vmatpush.msra.mxu0 0.0
        %3706 = vmatpush.msra.mxu0 0.0
        %3707 = vmatpush.msra.mxu0 %v3593
        %3708 = vmatpush.msra.mxu0 %v3561
        %3709 = vmatpush.msra.mxu0 %v3555
        %3710 = vmatpush.msra.mxu0 %v3549
        %3711 = vmatmul.f32.gmra.mxu0 %v3575
        %v3712 = vpop.f32.mrf.mxu0
        %v3713 = vadd.f32 %v3572, %v3712
        %3714 = vdwg.mxu0
        %v3715 = vmax.f32 %v3613, 0.0
        %v3716 = vmax.f32 %v3633, 0.0
        %v3717 = vmax.f32 %v3653, 0.0
        %v3718 = vmax.f32 %v3673, 0.0
        %v3719 = vmax.f32 %v3693, 0.0
        %v3720 = vmax.f32 %v3713, 0.0
        %v3721 = vpack.c.bf16 %v3716, %v3715
        %v3722 = vpack.c.bf16 %v3718, %v3717
        %v3723 = vpack.c.bf16 %v3720, %v3719
        %s3724 = scalar_lea.vmem [#allocation4], 144
        %3725 = vst [vmem:[%s3724] sm:$0xff] %v3721
        %3726 = vst [vmem:[%s3724 + $0x8] sm:$0xff] %v3722
        %3727 = vst.msk [vmem:[%s3724 + $0x10] sm:$0xff] %vm2610, %v3723
        %v3728 = vld [vmem:[%s1] sm:$0xff]
        %s3729 = scalar_lea.vmem [#allocation3], 1344
        %v3730 = vld [vmem:[%s3729] sm:$0xff]
        %v3731 = vld [vmem:[%s3729 + $0x8] sm:$0xff]
        %v3732 = vld [vmem:[%s3729 + $0x10] sm:$0xff]
        %v3733 = vld [vmem:[%s3729 + $0x18] sm:$0xff]
        %v3734 = vld [vmem:[%s3729 + $0x20] sm:$0xff]
        %v3735 = vld [vmem:[%s3729 + $0x28] sm:$0xff]
        %v3736 = vld [vmem:[%s3729 + $0x30] sm:$0xff]
        %v3737 = vld [vmem:[%s3729 + $0x38] sm:$0xff]
        %v3738 = vld [vmem:[%s3729 + $0x40] sm:$0xff]
        %v3739 = vld [vmem:[%s3729 + $0x48] sm:$0xff]
        %v3740 = vld [vmem:[%s3729 + $0x50] sm:$0xff]
        %v3741 = vld [vmem:[%s3729 + $0x58] sm:$0xff]
        %v3742 = vld [vmem:[%s3729 + $0x60] sm:$0xff]
        %v3743 = vld [vmem:[%s3729 + $0x68] sm:$0xff]
        %v3744 = vld [vmem:[%s3729 + $0x70] sm:$0xff]
        %v3745 = vld [vmem:[%s3729 + $0x78] sm:$0xff]
        %v3746 = vld [vmem:[%s3729 + $0x80] sm:$0xff]
        %v3747 = vld [vmem:[%s3729 + $0x88] sm:$0xff]
        %v3748 = vld [vmem:[%s3729 + $0x90] sm:$0x1]
        %v3749 = vld [vmem:[%s3729 + $0x98] sm:$0x1]
        %v3750 = vld [vmem:[%s3729 + $0xa0] sm:$0x1]
        %v3751 = vld [vmem:[%s3729 + $0xa8] sm:$0x1]
        %v3752 = vld [vmem:[%s3729 + $0xb0] sm:$0x1]
        %v3753 = vld [vmem:[%s3729 + $0xb8] sm:$0x1]
        %v3754 = vld [vmem:[%s2] sm:$0xff]
        %3756 = vset.pattern.permute.xlu0 0
        %3757 = vperm.xlu0 %3756, %v3754
        %v3758 = vpop.permute.xlu0 %3757
        %v3761 = vsel %vm2454, %v3728, 0
        %v3764 = vsel %vm2458, %v3748, 0
        %v3767 = vsel %vm2458, %v3749, 0
        %v3770 = vsel %vm2458, %v3750, 0
        %v3773 = vsel %vm2458, %v3751, 0
        %v3776 = vsel %vm2458, %v3752, 0
        %v3779 = vsel %vm2458, %v3753, 0
        %3781 = vmatpush.msra.mxu0 0.0
        %3782 = vmatpush.msra.mxu0 0.0
        %3783 = vmatpush.msra.mxu0 0.0
        %3784 = vmatpush.msra.mxu0 0.0
        %3785 = vmatpush.msra.mxu0 0.0
        %3786 = vmatpush.msra.mxu0 0.0
        %3787 = vmatpush.msra.mxu0 0.0
        %3788 = vmatpush.msra.mxu0 0.0
        %3789 = vmatpush.msra.mxu0 0.0
        %3790 = vmatpush.msra.mxu0 0.0
        %3791 = vmatpush.msra.mxu0 0.0
        %3792 = vmatpush.msra.mxu0 0.0
        %3793 = vmatpush.msra.mxu0 %v3764
        %3794 = vmatpush.msra.mxu0 %v3742
        %3795 = vmatpush.msra.mxu0 %v3736
        %3796 = vmatpush.msra.mxu0 %v3730
        %3797 = vmatmul.f32.gmra.mxu0 %v3761
        %v3798 = vpop.f32.mrf.mxu0
        %v3799 = vadd.f32 %v3758, %v3798
        %3800 = vdwg.mxu0
        %3801 = vmatpush.msra.mxu0 0.0
        %3802 = vmatpush.msra.mxu0 0.0
        %3803 = vmatpush.msra.mxu0 0.0
        %3804 = vmatpush.msra.mxu0 0.0
        %3805 = vmatpush.msra.mxu0 0.0
        %3806 = vmatpush.msra.mxu0 0.0
        %3807 = vmatpush.msra.mxu0 0.0
        %3808 = vmatpush.msra.mxu0 0.0
        %3809 = vmatpush.msra.mxu0 0.0
        %3810 = vmatpush.msra.mxu0 0.0
        %3811 = vmatpush.msra.mxu0 0.0
        %3812 = vmatpush.msra.mxu0 0.0
        %3813 = vmatpush.msra.mxu0 %v3767
        %3814 = vmatpush.msra.mxu0 %v3743
        %3815 = vmatpush.msra.mxu0 %v3737
        %3816 = vmatpush.msra.mxu0 %v3731
        %3817 = vmatmul.f32.gmra.mxu0 %v3761
        %v3818 = vpop.f32.mrf.mxu0
        %v3819 = vadd.f32 %v3758, %v3818
        %3820 = vdwg.mxu0
        %3821 = vmatpush.msra.mxu0 0.0
        %3822 = vmatpush.msra.mxu0 0.0
        %3823 = vmatpush.msra.mxu0 0.0
        %3824 = vmatpush.msra.mxu0 0.0
        %3825 = vmatpush.msra.mxu0 0.0
        %3826 = vmatpush.msra.mxu0 0.0
        %3827 = vmatpush.msra.mxu0 0.0
        %3828 = vmatpush.msra.mxu0 0.0
        %3829 = vmatpush.msra.mxu0 0.0
        %3830 = vmatpush.msra.mxu0 0.0
        %3831 = vmatpush.msra.mxu0 0.0
        %3832 = vmatpush.msra.mxu0 0.0
        %3833 = vmatpush.msra.mxu0 %v3770
        %3834 = vmatpush.msra.mxu0 %v3744
        %3835 = vmatpush.msra.mxu0 %v3738
        %3836 = vmatpush.msra.mxu0 %v3732
        %3837 = vmatmul.f32.gmra.mxu0 %v3761
        %v3838 = vpop.f32.mrf.mxu0
        %v3839 = vadd.f32 %v3758, %v3838
        %3840 = vdwg.mxu0
        %3841 = vmatpush.msra.mxu0 0.0
        %3842 = vmatpush.msra.mxu0 0.0
        %3843 = vmatpush.msra.mxu0 0.0
        %3844 = vmatpush.msra.mxu0 0.0
        %3845 = vmatpush.msra.mxu0 0.0
        %3846 = vmatpush.msra.mxu0 0.0
        %3847 = vmatpush.msra.mxu0 0.0
        %3848 = vmatpush.msra.mxu0 0.0
        %3849 = vmatpush.msra.mxu0 0.0
        %3850 = vmatpush.msra.mxu0 0.0
        %3851 = vmatpush.msra.mxu0 0.0
        %3852 = vmatpush.msra.mxu0 0.0
        %3853 = vmatpush.msra.mxu0 %v3773
        %3854 = vmatpush.msra.mxu0 %v3745
        %3855 = vmatpush.msra.mxu0 %v3739
        %3856 = vmatpush.msra.mxu0 %v3733
        %3857 = vmatmul.f32.gmra.mxu0 %v3761
        %v3858 = vpop.f32.mrf.mxu0
        %v3859 = vadd.f32 %v3758, %v3858
        %3860 = vdwg.mxu0
        %3861 = vmatpush.msra.mxu0 0.0
        %3862 = vmatpush.msra.mxu0 0.0
        %3863 = vmatpush.msra.mxu0 0.0
        %3864 = vmatpush.msra.mxu0 0.0
        %3865 = vmatpush.msra.mxu0 0.0
        %3866 = vmatpush.msra.mxu0 0.0
        %3867 = vmatpush.msra.mxu0 0.0
        %3868 = vmatpush.msra.mxu0 0.0
        %3869 = vmatpush.msra.mxu0 0.0
        %3870 = vmatpush.msra.mxu0 0.0
        %3871 = vmatpush.msra.mxu0 0.0
        %3872 = vmatpush.msra.mxu0 0.0
        %3873 = vmatpush.msra.mxu0 %v3776
        %3874 = vmatpush.msra.mxu0 %v3746
        %3875 = vmatpush.msra.mxu0 %v3740
        %3876 = vmatpush.msra.mxu0 %v3734
        %3877 = vmatmul.f32.gmra.mxu0 %v3761
        %v3878 = vpop.f32.mrf.mxu0
        %v3879 = vadd.f32 %v3758, %v3878
        %3880 = vdwg.mxu0
        %3881 = vmatpush.msra.mxu0 0.0
        %3882 = vmatpush.msra.mxu0 0.0
        %3883 = vmatpush.msra.mxu0 0.0
        %3884 = vmatpush.msra.mxu0 0.0
        %3885 = vmatpush.msra.mxu0 0.0
        %3886 = vmatpush.msra.mxu0 0.0
        %3887 = vmatpush.msra.mxu0 0.0
        %3888 = vmatpush.msra.mxu0 0.0
        %3889 = vmatpush.msra.mxu0 0.0
        %3890 = vmatpush.msra.mxu0 0.0
        %3891 = vmatpush.msra.mxu0 0.0
        %3892 = vmatpush.msra.mxu0 0.0
        %3893 = vmatpush.msra.mxu0 %v3779
        %3894 = vmatpush.msra.mxu0 %v3747
        %3895 = vmatpush.msra.mxu0 %v3741
        %3896 = vmatpush.msra.mxu0 %v3735
        %3897 = vmatmul.f32.gmra.mxu0 %v3761
        %v3898 = vpop.f32.mrf.mxu0
        %v3899 = vadd.f32 %v3758, %v3898
        %3900 = vdwg.mxu0
        %v3901 = vmax.f32 %v3799, 0.0
        %v3902 = vmax.f32 %v3819, 0.0
        %v3903 = vmax.f32 %v3839, 0.0
        %v3904 = vmax.f32 %v3859, 0.0
        %v3905 = vmax.f32 %v3879, 0.0
        %v3906 = vmax.f32 %v3899, 0.0
        %v3907 = vpack.c.bf16 %v3902, %v3901
        %v3908 = vpack.c.bf16 %v3904, %v3903
        %v3909 = vpack.c.bf16 %v3906, %v3905
        %s3910 = scalar_lea.vmem [#allocation4], 168
        %3911 = vst [vmem:[%s3910] sm:$0xff] %v3907
        %3912 = vst [vmem:[%s3910 + $0x8] sm:$0xff] %v3908
        %3913 = vst.msk [vmem:[%s3910 + $0x10] sm:$0xff] %vm2610, %v3909
        %v3914 = vld [vmem:[#allocation4] sm:$0xff]
        %v3915 = vld [vmem:[#allocation4 + $0x8] sm:$0xff]
        %v3916 = vld [vmem:[#allocation4 + $0x10] sm:$0xff]
        %v3917 = vld [vmem:[#allocation4 + $0x18] sm:$0xff]
        %v3918 = vld [vmem:[#allocation4 + $0x20] sm:$0xff]
        %v3919 = vld [vmem:[#allocation4 + $0x28] sm:$0xff]
        %v3920 = vld [vmem:[#allocation4 + $0x30] sm:$0xff]
        %v3921 = vld [vmem:[#allocation4 + $0x38] sm:$0xff]
        %v3922 = vld [vmem:[#allocation4 + $0x40] sm:$0xff]
        %v3923 = vld [vmem:[#allocation4 + $0x48] sm:$0xff]
        %v3924 = vld [vmem:[#allocation4 + $0x50] sm:$0xff]
        %v3925 = vld [vmem:[#allocation4 + $0x58] sm:$0xff]
        %v3926 = vld [vmem:[#allocation4 + $0x60] sm:$0xff]
        %v3927 = vld [vmem:[#allocation4 + $0x68] sm:$0xff]
        %v3928 = vld [vmem:[#allocation4 + $0x70] sm:$0xff]
        %v3929 = vld [vmem:[#allocation4 + $0x78] sm:$0xff]
        %v3930 = vld [vmem:[#allocation4 + $0x80] sm:$0xff]
        %v3931 = vld [vmem:[#allocation4 + $0x88] sm:$0xff]
        %v3932 = vld [vmem:[#allocation4 + $0x90] sm:$0xff]
        %v3933 = vld [vmem:[#allocation4 + $0x98] sm:$0xff]
        %v3934 = vld [vmem:[#allocation4 + $0xa0] sm:$0xff]
        %v3935 = vld [vmem:[#allocation4 + $0xa8] sm:$0xff]
        %v3936 = vld [vmem:[#allocation4 + $0xb0] sm:$0xff]
        %v3937 = vld [vmem:[#allocation4 + $0xb8] sm:$0xff]
        %v3938 = vunpack.c.l.bf16 %v3914
        %v3939 = vunpack.c.h.bf16 %v3914
        %v3940 = vunpack.c.l.bf16 %v3915
        %v3941 = vunpack.c.h.bf16 %v3915
        %v3942 = vunpack.c.l.bf16 %v3916
        %v3943 = vunpack.c.h.bf16 %v3916
        %v3944 = vunpack.c.l.bf16 %v3917
        %v3945 = vunpack.c.h.bf16 %v3917
        %v3946 = vunpack.c.l.bf16 %v3918
        %v3947 = vunpack.c.h.bf16 %v3918
        %v3948 = vunpack.c.l.bf16 %v3919
        %v3949 = vunpack.c.h.bf16 %v3919
        %v3950 = vunpack.c.l.bf16 %v3920
        %v3951 = vunpack.c.h.bf16 %v3920
        %v3952 = vunpack.c.l.bf16 %v3921
        %v3953 = vunpack.c.h.bf16 %v3921
        %v3954 = vunpack.c.l.bf16 %v3922
        %v3955 = vunpack.c.h.bf16 %v3922
        %v3956 = vunpack.c.l.bf16 %v3923
        %v3957 = vunpack.c.h.bf16 %v3923
        %v3958 = vunpack.c.l.bf16 %v3924
        %v3959 = vunpack.c.h.bf16 %v3924
        %v3960 = vunpack.c.l.bf16 %v3925
        %v3961 = vunpack.c.h.bf16 %v3925
        %v3962 = vunpack.c.l.bf16 %v3926
        %v3963 = vunpack.c.h.bf16 %v3926
        %v3964 = vunpack.c.l.bf16 %v3927
        %v3965 = vunpack.c.h.bf16 %v3927
        %v3966 = vunpack.c.l.bf16 %v3928
        %v3967 = vunpack.c.h.bf16 %v3928
        %v3968 = vunpack.c.l.bf16 %v3929
        %v3969 = vunpack.c.h.bf16 %v3929
        %v3970 = vunpack.c.l.bf16 %v3930
        %v3971 = vunpack.c.h.bf16 %v3930
        %v3972 = vunpack.c.l.bf16 %v3931
        %v3973 = vunpack.c.h.bf16 %v3931
        %v3974 = vunpack.c.l.bf16 %v3932
        %v3975 = vunpack.c.h.bf16 %v3932
        %v3976 = vunpack.c.l.bf16 %v3933
        %v3977 = vunpack.c.h.bf16 %v3933
        %v3978 = vunpack.c.l.bf16 %v3934
        %v3979 = vunpack.c.h.bf16 %v3934
        %v3980 = vunpack.c.l.bf16 %v3935
        %v3981 = vunpack.c.h.bf16 %v3935
        %v3982 = vunpack.c.l.bf16 %v3936
        %v3983 = vunpack.c.h.bf16 %v3936
        %v3984 = vunpack.c.l.bf16 %v3937
        %v3985 = vunpack.c.h.bf16 %v3937
        %4034 = vrot.lane.b32.xlu0 %v3938, 127
        %v4035 = vpop.permute.xlu0 %4034
        %4036 = vrot.lane.b32.xlu0 %v3939, 127
        %v4037 = vpop.permute.xlu0 %4036
        %4038 = vrot.lane.b32.xlu0 %v3940, 127
        %v4039 = vpop.permute.xlu0 %4038
        %4040 = vrot.lane.b32.xlu0 %v3941, 127
        %v4041 = vpop.permute.xlu0 %4040
        %4042 = vrot.lane.b32.xlu0 %v3942, 127
        %v4043 = vpop.permute.xlu0 %4042
        %4044 = vrot.lane.b32.xlu0 %v3943, 127
        %v4045 = vpop.permute.xlu0 %4044
        %4046 = vrot.lane.b32.xlu0 %v3944, 127
        %v4047 = vpop.permute.xlu0 %4046
        %4048 = vrot.lane.b32.xlu0 %v3945, 127
        %v4049 = vpop.permute.xlu0 %4048
        %4050 = vrot.lane.b32.xlu0 %v3946, 127
        %v4051 = vpop.permute.xlu0 %4050
        %4052 = vrot.lane.b32.xlu0 %v3947, 127
        %v4053 = vpop.permute.xlu0 %4052
        %4054 = vrot.lane.b32.xlu0 %v3948, 127
        %v4055 = vpop.permute.xlu0 %4054
        %4056 = vrot.lane.b32.xlu0 %v3949, 127
        %v4057 = vpop.permute.xlu0 %4056
        %4058 = vrot.lane.b32.xlu0 %v3950, 127
        %v4059 = vpop.permute.xlu0 %4058
        %4060 = vrot.lane.b32.xlu0 %v3951, 127
        %v4061 = vpop.permute.xlu0 %4060
        %4062 = vrot.lane.b32.xlu0 %v3952, 127
        %v4063 = vpop.permute.xlu0 %4062
        %4064 = vrot.lane.b32.xlu0 %v3953, 127
        %v4065 = vpop.permute.xlu0 %4064
        %4066 = vrot.lane.b32.xlu0 %v3954, 127
        %v4067 = vpop.permute.xlu0 %4066
        %4068 = vrot.lane.b32.xlu0 %v3955, 127
        %v4069 = vpop.permute.xlu0 %4068
        %4070 = vrot.lane.b32.xlu0 %v3956, 127
        %v4071 = vpop.permute.xlu0 %4070
        %4072 = vrot.lane.b32.xlu0 %v3957, 127
        %v4073 = vpop.permute.xlu0 %4072
        %4074 = vrot.lane.b32.xlu0 %v3958, 127
        %v4075 = vpop.permute.xlu0 %4074
        %4076 = vrot.lane.b32.xlu0 %v3959, 127
        %v4077 = vpop.permute.xlu0 %4076
        %4078 = vrot.lane.b32.xlu0 %v3960, 127
        %v4079 = vpop.permute.xlu0 %4078
        %4080 = vrot.lane.b32.xlu0 %v3961, 127
        %v4081 = vpop.permute.xlu0 %4080
        %4082 = vrot.lane.b32.xlu0 %v3962, 127
        %v4083 = vpop.permute.xlu0 %4082
        %4084 = vrot.lane.b32.xlu0 %v3963, 127
        %v4085 = vpop.permute.xlu0 %4084
        %4086 = vrot.lane.b32.xlu0 %v3964, 127
        %v4087 = vpop.permute.xlu0 %4086
        %4088 = vrot.lane.b32.xlu0 %v3965, 127
        %v4089 = vpop.permute.xlu0 %4088
        %4090 = vrot.lane.b32.xlu0 %v3966, 127
        %v4091 = vpop.permute.xlu0 %4090
        %4092 = vrot.lane.b32.xlu0 %v3967, 127
        %v4093 = vpop.permute.xlu0 %4092
        %4094 = vrot.lane.b32.xlu0 %v3968, 127
        %v4095 = vpop.permute.xlu0 %4094
        %4096 = vrot.lane.b32.xlu0 %v3969, 127
        %v4097 = vpop.permute.xlu0 %4096
        %4098 = vrot.lane.b32.xlu0 %v3970, 127
        %v4099 = vpop.permute.xlu0 %4098
        %4100 = vrot.lane.b32.xlu0 %v3971, 127
        %v4101 = vpop.permute.xlu0 %4100
        %4102 = vrot.lane.b32.xlu0 %v3972, 127
        %v4103 = vpop.permute.xlu0 %4102
        %4104 = vrot.lane.b32.xlu0 %v3973, 127
        %v4105 = vpop.permute.xlu0 %4104
        %4106 = vrot.lane.b32.xlu0 %v3974, 127
        %v4107 = vpop.permute.xlu0 %4106
        %4108 = vrot.lane.b32.xlu0 %v3975, 127
        %v4109 = vpop.permute.xlu0 %4108
        %4110 = vrot.lane.b32.xlu0 %v3976, 127
        %v4111 = vpop.permute.xlu0 %4110
        %4112 = vrot.lane.b32.xlu0 %v3977, 127
        %v4113 = vpop.permute.xlu0 %4112
        %4114 = vrot.lane.b32.xlu0 %v3978, 127
        %v4115 = vpop.permute.xlu0 %4114
        %4116 = vrot.lane.b32.xlu0 %v3979, 127
        %v4117 = vpop.permute.xlu0 %4116
        %4118 = vrot.lane.b32.xlu0 %v3980, 127
        %v4119 = vpop.permute.xlu0 %4118
        %4120 = vrot.lane.b32.xlu0 %v3981, 127
        %v4121 = vpop.permute.xlu0 %4120
        %4122 = vrot.lane.b32.xlu0 %v3982, 127
        %v4123 = vpop.permute.xlu0 %4122
        %4124 = vrot.lane.b32.xlu0 %v3983, 127
        %v4125 = vpop.permute.xlu0 %4124
        %4126 = vrot.lane.b32.xlu0 %v3984, 127
        %v4127 = vpop.permute.xlu0 %4126
        %4128 = vrot.lane.b32.xlu0 %v3985, 127
        %v4129 = vpop.permute.xlu0 %4128
        %v4130 = vsel %vm519, %v4035, %v4037
        %v4131 = vsel %vm519, %v4037, %v4039
        %v4132 = vsel %vm519, %v4039, %v4041
        %v4133 = vsel %vm519, %v4041, %v4043
        %v4134 = vsel %vm519, %v4043, %v4045
        %v4135 = vsel %vm519, %v4047, %v4049
        %v4136 = vsel %vm519, %v4049, %v4051
        %v4137 = vsel %vm519, %v4051, %v4053
        %v4138 = vsel %vm519, %v4053, %v4055
        %v4139 = vsel %vm519, %v4055, %v4057
        %v4140 = vsel %vm519, %v4059, %v4061
        %v4141 = vsel %vm519, %v4061, %v4063
        %v4142 = vsel %vm519, %v4063, %v4065
        %v4143 = vsel %vm519, %v4065, %v4067
        %v4144 = vsel %vm519, %v4067, %v4069
        %v4145 = vsel %vm519, %v4071, %v4073
        %v4146 = vsel %vm519, %v4073, %v4075
        %v4147 = vsel %vm519, %v4075, %v4077
        %v4148 = vsel %vm519, %v4077, %v4079
        %v4149 = vsel %vm519, %v4079, %v4081
        %v4150 = vsel %vm519, %v4083, %v4085
        %v4151 = vsel %vm519, %v4085, %v4087
        %v4152 = vsel %vm519, %v4087, %v4089
        %v4153 = vsel %vm519, %v4089, %v4091
        %v4154 = vsel %vm519, %v4091, %v4093
        %v4155 = vsel %vm519, %v4095, %v4097
        %v4156 = vsel %vm519, %v4097, %v4099
        %v4157 = vsel %vm519, %v4099, %v4101
        %v4158 = vsel %vm519, %v4101, %v4103
        %v4159 = vsel %vm519, %v4103, %v4105
        %v4160 = vsel %vm519, %v4107, %v4109
        %v4161 = vsel %vm519, %v4109, %v4111
        %v4162 = vsel %vm519, %v4111, %v4113
        %v4163 = vsel %vm519, %v4113, %v4115
        %v4164 = vsel %vm519, %v4115, %v4117
        %v4165 = vsel %vm519, %v4119, %v4121
        %v4166 = vsel %vm519, %v4121, %v4123
        %v4167 = vsel %vm519, %v4123, %v4125
        %v4168 = vsel %vm519, %v4125, %v4127
        %v4169 = vsel %vm519, %v4127, %v4129
        %v4218 = vmax.f32 %v3938, %v4130
        %v4219 = vmax.f32 %v3939, %v4131
        %v4220 = vmax.f32 %v3940, %v4132
        %v4221 = vmax.f32 %v3941, %v4133
        %v4222 = vmax.f32 %v3942, %v4134
        %v4223 = vmax.f32 %v3943, %v4045
        %v4224 = vmax.f32 %v3944, %v4135
        %v4225 = vmax.f32 %v3945, %v4136
        %v4226 = vmax.f32 %v3946, %v4137
        %v4227 = vmax.f32 %v3947, %v4138
        %v4228 = vmax.f32 %v3948, %v4139
        %v4229 = vmax.f32 %v3949, %v4057
        %v4230 = vmax.f32 %v3950, %v4140
        %v4231 = vmax.f32 %v3951, %v4141
        %v4232 = vmax.f32 %v3952, %v4142
        %v4233 = vmax.f32 %v3953, %v4143
        %v4234 = vmax.f32 %v3954, %v4144
        %v4235 = vmax.f32 %v3955, %v4069
        %v4236 = vmax.f32 %v3956, %v4145
        %v4237 = vmax.f32 %v3957, %v4146
        %v4238 = vmax.f32 %v3958, %v4147
        %v4239 = vmax.f32 %v3959, %v4148
        %v4240 = vmax.f32 %v3960, %v4149
        %v4241 = vmax.f32 %v3961, %v4081
        %v4242 = vmax.f32 %v3962, %v4150
        %v4243 = vmax.f32 %v3963, %v4151
        %v4244 = vmax.f32 %v3964, %v4152
        %v4245 = vmax.f32 %v3965, %v4153
        %v4246 = vmax.f32 %v3966, %v4154
        %v4247 = vmax.f32 %v3967, %v4093
        %v4248 = vmax.f32 %v3968, %v4155
        %v4249 = vmax.f32 %v3969, %v4156
        %v4250 = vmax.f32 %v3970, %v4157
        %v4251 = vmax.f32 %v3971, %v4158
        %v4252 = vmax.f32 %v3972, %v4159
        %v4253 = vmax.f32 %v3973, %v4105
        %v4254 = vmax.f32 %v3974, %v4160
        %v4255 = vmax.f32 %v3975, %v4161
        %v4256 = vmax.f32 %v3976, %v4162
        %v4257 = vmax.f32 %v3977, %v4163
        %v4258 = vmax.f32 %v3978, %v4164
        %v4259 = vmax.f32 %v3979, %v4117
        %v4260 = vmax.f32 %v3980, %v4165
        %v4261 = vmax.f32 %v3981, %v4166
        %v4262 = vmax.f32 %v3982, %v4167
        %v4263 = vmax.f32 %v3983, %v4168
        %v4264 = vmax.f32 %v3984, %v4169
        %v4265 = vmax.f32 %v3985, %v4129
        %v4266 = vpack.c.bf16 %v4219, %v4218
        %v4267 = vpack.c.bf16 %v4221, %v4220
        %v4268 = vpack.c.bf16 %v4223, %v4222
        %v4269 = vpack.c.bf16 %v4225, %v4224
        %v4270 = vpack.c.bf16 %v4227, %v4226
        %v4271 = vpack.c.bf16 %v4229, %v4228
        %v4272 = vpack.c.bf16 %v4231, %v4230
        %v4273 = vpack.c.bf16 %v4233, %v4232
        %v4274 = vpack.c.bf16 %v4235, %v4234
        %v4275 = vpack.c.bf16 %v4237, %v4236
        %v4276 = vpack.c.bf16 %v4239, %v4238
        %v4277 = vpack.c.bf16 %v4241, %v4240
        %v4278 = vpack.c.bf16 %v4243, %v4242
        %v4279 = vpack.c.bf16 %v4245, %v4244
        %v4280 = vpack.c.bf16 %v4247, %v4246
        %v4281 = vpack.c.bf16 %v4249, %v4248
        %v4282 = vpack.c.bf16 %v4251, %v4250
        %v4283 = vpack.c.bf16 %v4253, %v4252
        %v4284 = vpack.c.bf16 %v4255, %v4254
        %v4285 = vpack.c.bf16 %v4257, %v4256
        %v4286 = vpack.c.bf16 %v4259, %v4258
        %v4287 = vpack.c.bf16 %v4261, %v4260
        %v4288 = vpack.c.bf16 %v4263, %v4262
        %v4289 = vpack.c.bf16 %v4265, %v4264
        %v4290 = vunpack.c.l.bf16 %v4266
        %v4291 = vunpack.c.h.bf16 %v4266
        %v4292 = vunpack.c.l.bf16 %v4267
        %v4293 = vunpack.c.h.bf16 %v4267
        %v4294 = vunpack.c.l.bf16 %v4268
        %v4295 = vunpack.c.h.bf16 %v4268
        %v4296 = vunpack.c.l.bf16 %v4269
        %v4297 = vunpack.c.h.bf16 %v4269
        %v4298 = vunpack.c.l.bf16 %v4270
        %v4299 = vunpack.c.h.bf16 %v4270
        %v4300 = vunpack.c.l.bf16 %v4271
        %v4301 = vunpack.c.h.bf16 %v4271
        %v4302 = vunpack.c.l.bf16 %v4272
        %v4303 = vunpack.c.h.bf16 %v4272
        %v4304 = vunpack.c.l.bf16 %v4273
        %v4305 = vunpack.c.h.bf16 %v4273
        %v4306 = vunpack.c.l.bf16 %v4274
        %v4307 = vunpack.c.h.bf16 %v4274
        %v4308 = vunpack.c.l.bf16 %v4275
        %v4309 = vunpack.c.h.bf16 %v4275
        %v4310 = vunpack.c.l.bf16 %v4276
        %v4311 = vunpack.c.h.bf16 %v4276
        %v4312 = vunpack.c.l.bf16 %v4277
        %v4313 = vunpack.c.h.bf16 %v4277
        %v4314 = vunpack.c.l.bf16 %v4278
        %v4315 = vunpack.c.h.bf16 %v4278
        %v4316 = vunpack.c.l.bf16 %v4279
        %v4317 = vunpack.c.h.bf16 %v4279
        %v4318 = vunpack.c.l.bf16 %v4280
        %v4319 = vunpack.c.h.bf16 %v4280
        %v4320 = vunpack.c.l.bf16 %v4281
        %v4321 = vunpack.c.h.bf16 %v4281
        %v4322 = vunpack.c.l.bf16 %v4282
        %v4323 = vunpack.c.h.bf16 %v4282
        %v4324 = vunpack.c.l.bf16 %v4283
        %v4325 = vunpack.c.h.bf16 %v4283
        %v4326 = vunpack.c.l.bf16 %v4284
        %v4327 = vunpack.c.h.bf16 %v4284
        %v4328 = vunpack.c.l.bf16 %v4285
        %v4329 = vunpack.c.h.bf16 %v4285
        %v4330 = vunpack.c.l.bf16 %v4286
        %v4331 = vunpack.c.h.bf16 %v4286
        %v4332 = vunpack.c.l.bf16 %v4287
        %v4333 = vunpack.c.h.bf16 %v4287
        %v4334 = vunpack.c.l.bf16 %v4288
        %v4335 = vunpack.c.h.bf16 %v4288
        %v4336 = vunpack.c.l.bf16 %v4289
        %v4337 = vunpack.c.h.bf16 %v4289
        %4386 = vrot.lane.b32.xlu0 %v4290, 100
        %v4387 = vpop.permute.xlu0 %4386
        %4388 = vrot.lane.b32.xlu0 %v4291, 100
        %v4389 = vpop.permute.xlu0 %4388
        %4390 = vrot.lane.b32.xlu0 %v4292, 100
        %v4391 = vpop.permute.xlu0 %4390
        %4392 = vrot.lane.b32.xlu0 %v4293, 100
        %v4393 = vpop.permute.xlu0 %4392
        %4394 = vrot.lane.b32.xlu0 %v4294, 100
        %v4395 = vpop.permute.xlu0 %4394
        %4396 = vrot.lane.b32.xlu0 %v4295, 100
        %v4397 = vpop.permute.xlu0 %4396
        %4398 = vrot.lane.b32.xlu0 %v4296, 100
        %v4399 = vpop.permute.xlu0 %4398
        %4400 = vrot.lane.b32.xlu0 %v4297, 100
        %v4401 = vpop.permute.xlu0 %4400
        %4402 = vrot.lane.b32.xlu0 %v4298, 100
        %v4403 = vpop.permute.xlu0 %4402
        %4404 = vrot.lane.b32.xlu0 %v4299, 100
        %v4405 = vpop.permute.xlu0 %4404
        %4406 = vrot.lane.b32.xlu0 %v4300, 100
        %v4407 = vpop.permute.xlu0 %4406
        %4408 = vrot.lane.b32.xlu0 %v4301, 100
        %v4409 = vpop.permute.xlu0 %4408
        %4410 = vrot.lane.b32.xlu0 %v4302, 100
        %v4411 = vpop.permute.xlu0 %4410
        %4412 = vrot.lane.b32.xlu0 %v4303, 100
        %v4413 = vpop.permute.xlu0 %4412
        %4414 = vrot.lane.b32.xlu0 %v4304, 100
        %v4415 = vpop.permute.xlu0 %4414
        %4416 = vrot.lane.b32.xlu0 %v4305, 100
        %v4417 = vpop.permute.xlu0 %4416
        %4418 = vrot.lane.b32.xlu0 %v4306, 100
        %v4419 = vpop.permute.xlu0 %4418
        %4420 = vrot.lane.b32.xlu0 %v4307, 100
        %v4421 = vpop.permute.xlu0 %4420
        %4422 = vrot.lane.b32.xlu0 %v4308, 100
        %v4423 = vpop.permute.xlu0 %4422
        %4424 = vrot.lane.b32.xlu0 %v4309, 100
        %v4425 = vpop.permute.xlu0 %4424
        %4426 = vrot.lane.b32.xlu0 %v4310, 100
        %v4427 = vpop.permute.xlu0 %4426
        %4428 = vrot.lane.b32.xlu0 %v4311, 100
        %v4429 = vpop.permute.xlu0 %4428
        %4430 = vrot.lane.b32.xlu0 %v4312, 100
        %v4431 = vpop.permute.xlu0 %4430
        %4432 = vrot.lane.b32.xlu0 %v4313, 100
        %v4433 = vpop.permute.xlu0 %4432
        %4434 = vrot.lane.b32.xlu0 %v4314, 100
        %v4435 = vpop.permute.xlu0 %4434
        %4436 = vrot.lane.b32.xlu0 %v4315, 100
        %v4437 = vpop.permute.xlu0 %4436
        %4438 = vrot.lane.b32.xlu0 %v4316, 100
        %v4439 = vpop.permute.xlu0 %4438
        %4440 = vrot.lane.b32.xlu0 %v4317, 100
        %v4441 = vpop.permute.xlu0 %4440
        %4442 = vrot.lane.b32.xlu0 %v4318, 100
        %v4443 = vpop.permute.xlu0 %4442
        %4444 = vrot.lane.b32.xlu0 %v4319, 100
        %v4445 = vpop.permute.xlu0 %4444
        %4446 = vrot.lane.b32.xlu0 %v4320, 100
        %v4447 = vpop.permute.xlu0 %4446
        %4448 = vrot.lane.b32.xlu0 %v4321, 100
        %v4449 = vpop.permute.xlu0 %4448
        %4450 = vrot.lane.b32.xlu0 %v4322, 100
        %v4451 = vpop.permute.xlu0 %4450
        %4452 = vrot.lane.b32.xlu0 %v4323, 100
        %v4453 = vpop.permute.xlu0 %4452
        %4454 = vrot.lane.b32.xlu0 %v4324, 100
        %v4455 = vpop.permute.xlu0 %4454
        %4456 = vrot.lane.b32.xlu0 %v4325, 100
        %v4457 = vpop.permute.xlu0 %4456
        %4458 = vrot.lane.b32.xlu0 %v4326, 100
        %v4459 = vpop.permute.xlu0 %4458
        %4460 = vrot.lane.b32.xlu0 %v4327, 100
        %v4461 = vpop.permute.xlu0 %4460
        %4462 = vrot.lane.b32.xlu0 %v4328, 100
        %v4463 = vpop.permute.xlu0 %4462
        %4464 = vrot.lane.b32.xlu0 %v4329, 100
        %v4465 = vpop.permute.xlu0 %4464
        %4466 = vrot.lane.b32.xlu0 %v4330, 100
        %v4467 = vpop.permute.xlu0 %4466
        %4468 = vrot.lane.b32.xlu0 %v4331, 100
        %v4469 = vpop.permute.xlu0 %4468
        %4470 = vrot.lane.b32.xlu0 %v4332, 100
        %v4471 = vpop.permute.xlu0 %4470
        %4472 = vrot.lane.b32.xlu0 %v4333, 100
        %v4473 = vpop.permute.xlu0 %4472
        %4474 = vrot.lane.b32.xlu0 %v4334, 100
        %v4475 = vpop.permute.xlu0 %4474
        %4476 = vrot.lane.b32.xlu0 %v4335, 100
        %v4477 = vpop.permute.xlu0 %4476
        %4478 = vrot.lane.b32.xlu0 %v4336, 100
        %v4479 = vpop.permute.xlu0 %4478
        %4480 = vrot.lane.b32.xlu0 %v4337, 100
        %v4481 = vpop.permute.xlu0 %4480
        %v4482 = vsel %vm843, %v4387, %v4389
        %v4483 = vsel %vm843, %v4389, %v4391
        %v4484 = vsel %vm843, %v4391, %v4393
        %v4485 = vsel %vm843, %v4393, %v4395
        %v4486 = vsel %vm843, %v4395, %v4397
        %v4487 = vsel %vm843, %v4399, %v4401
        %v4488 = vsel %vm843, %v4401, %v4403
        %v4489 = vsel %vm843, %v4403, %v4405
        %v4490 = vsel %vm843, %v4405, %v4407
        %v4491 = vsel %vm843, %v4407, %v4409
        %v4492 = vsel %vm843, %v4411, %v4413
        %v4493 = vsel %vm843, %v4413, %v4415
        %v4494 = vsel %vm843, %v4415, %v4417
        %v4495 = vsel %vm843, %v4417, %v4419
        %v4496 = vsel %vm843, %v4419, %v4421
        %v4497 = vsel %vm843, %v4423, %v4425
        %v4498 = vsel %vm843, %v4425, %v4427
        %v4499 = vsel %vm843, %v4427, %v4429
        %v4500 = vsel %vm843, %v4429, %v4431
        %v4501 = vsel %vm843, %v4431, %v4433
        %v4502 = vsel %vm843, %v4435, %v4437
        %v4503 = vsel %vm843, %v4437, %v4439
        %v4504 = vsel %vm843, %v4439, %v4441
        %v4505 = vsel %vm843, %v4441, %v4443
        %v4506 = vsel %vm843, %v4443, %v4445
        %v4507 = vsel %vm843, %v4447, %v4449
        %v4508 = vsel %vm843, %v4449, %v4451
        %v4509 = vsel %vm843, %v4451, %v4453
        %v4510 = vsel %vm843, %v4453, %v4455
        %v4511 = vsel %vm843, %v4455, %v4457
        %v4512 = vsel %vm843, %v4459, %v4461
        %v4513 = vsel %vm843, %v4461, %v4463
        %v4514 = vsel %vm843, %v4463, %v4465
        %v4515 = vsel %vm843, %v4465, %v4467
        %v4516 = vsel %vm843, %v4467, %v4469
        %v4517 = vsel %vm843, %v4471, %v4473
        %v4518 = vsel %vm843, %v4473, %v4475
        %v4519 = vsel %vm843, %v4475, %v4477
        %v4520 = vsel %vm843, %v4477, %v4479
        %v4521 = vsel %vm843, %v4479, %v4481
        %v4570 = vmax.f32 %v4290, %v4482
        %v4571 = vmax.f32 %v4291, %v4483
        %v4572 = vmax.f32 %v4292, %v4484
        %v4573 = vmax.f32 %v4293, %v4485
        %v4574 = vmax.f32 %v4294, %v4486
        %v4575 = vmax.f32 %v4295, %v4397
        %v4576 = vmax.f32 %v4296, %v4487
        %v4577 = vmax.f32 %v4297, %v4488
        %v4578 = vmax.f32 %v4298, %v4489
        %v4579 = vmax.f32 %v4299, %v4490
        %v4580 = vmax.f32 %v4300, %v4491
        %v4581 = vmax.f32 %v4301, %v4409
        %v4582 = vmax.f32 %v4302, %v4492
        %v4583 = vmax.f32 %v4303, %v4493
        %v4584 = vmax.f32 %v4304, %v4494
        %v4585 = vmax.f32 %v4305, %v4495
        %v4586 = vmax.f32 %v4306, %v4496
        %v4587 = vmax.f32 %v4307, %v4421
        %v4588 = vmax.f32 %v4308, %v4497
        %v4589 = vmax.f32 %v4309, %v4498
        %v4590 = vmax.f32 %v4310, %v4499
        %v4591 = vmax.f32 %v4311, %v4500
        %v4592 = vmax.f32 %v4312, %v4501
        %v4593 = vmax.f32 %v4313, %v4433
        %v4594 = vmax.f32 %v4314, %v4502
        %v4595 = vmax.f32 %v4315, %v4503
        %v4596 = vmax.f32 %v4316, %v4504
        %v4597 = vmax.f32 %v4317, %v4505
        %v4598 = vmax.f32 %v4318, %v4506
        %v4599 = vmax.f32 %v4319, %v4445
        %v4600 = vmax.f32 %v4320, %v4507
        %v4601 = vmax.f32 %v4321, %v4508
        %v4602 = vmax.f32 %v4322, %v4509
        %v4603 = vmax.f32 %v4323, %v4510
        %v4604 = vmax.f32 %v4324, %v4511
        %v4605 = vmax.f32 %v4325, %v4457
        %v4606 = vmax.f32 %v4326, %v4512
        %v4607 = vmax.f32 %v4327, %v4513
        %v4608 = vmax.f32 %v4328, %v4514
        %v4609 = vmax.f32 %v4329, %v4515
        %v4610 = vmax.f32 %v4330, %v4516
        %v4611 = vmax.f32 %v4331, %v4469
        %v4612 = vmax.f32 %v4332, %v4517
        %v4613 = vmax.f32 %v4333, %v4518
        %v4614 = vmax.f32 %v4334, %v4519
        %v4615 = vmax.f32 %v4335, %v4520
        %v4616 = vmax.f32 %v4336, %v4521
        %v4617 = vmax.f32 %v4337, %v4481
        %v4618 = vpack.c.bf16 %v4576, %v4570
        %v4619 = vpack.c.bf16 %v4577, %v4571
        %v4620 = vpack.c.bf16 %v4578, %v4572
        %v4621 = vpack.c.bf16 %v4579, %v4573
        %v4622 = vpack.c.bf16 %v4580, %v4574
        %v4623 = vpack.c.bf16 %v4581, %v4575
        %v4624 = vpack.c.bf16 %v4588, %v4582
        %v4625 = vpack.c.bf16 %v4589, %v4583
        %v4626 = vpack.c.bf16 %v4590, %v4584
        %v4627 = vpack.c.bf16 %v4591, %v4585
        %v4628 = vpack.c.bf16 %v4592, %v4586
        %v4629 = vpack.c.bf16 %v4593, %v4587
        %v4630 = vpack.c.bf16 %v4600, %v4594
        %v4631 = vpack.c.bf16 %v4601, %v4595
        %v4632 = vpack.c.bf16 %v4602, %v4596
        %v4633 = vpack.c.bf16 %v4603, %v4597
        %v4634 = vpack.c.bf16 %v4604, %v4598
        %v4635 = vpack.c.bf16 %v4605, %v4599
        %v4636 = vpack.c.bf16 %v4612, %v4606
        %v4637 = vpack.c.bf16 %v4613, %v4607
        %v4638 = vpack.c.bf16 %v4614, %v4608
        %v4639 = vpack.c.bf16 %v4615, %v4609
        %v4640 = vpack.c.bf16 %v4616, %v4610
        %v4641 = vpack.c.bf16 %v4617, %v4611
        %v4642 = vld [vmem:[%s3] sm:$0xff]
        %v4643 = vld [vmem:[%s3 + $0x8] sm:$0xff]
        %v4644 = vld [vmem:[%s3 + $0x10] sm:$0xff]
        %v4645 = vld [vmem:[%s3 + $0x18] sm:$0xff]
        %v4646 = vld [vmem:[%s3 + $0x20] sm:$0xff]
        %v4647 = vld [vmem:[%s3 + $0x28] sm:$0xff]
        %v4648 = vld [vmem:[%s3 + $0x30] sm:$0xff]
        %v4649 = vld [vmem:[%s3 + $0x38] sm:$0xff]
        %v4650 = vld [vmem:[%s3 + $0x40] sm:$0xff]
        %v4651 = vld [vmem:[%s3 + $0x48] sm:$0xff]
        %v4652 = vld [vmem:[%s3 + $0x50] sm:$0xff]
        %v4653 = vld [vmem:[%s3 + $0x58] sm:$0xff]
        %v4654 = vld [vmem:[%s3 + $0x60] sm:$0xff]
        %v4655 = vld [vmem:[%s3 + $0x68] sm:$0xff]
        %v4656 = vld [vmem:[%s3 + $0x70] sm:$0xff]
        %v4657 = vld [vmem:[%s3 + $0x78] sm:$0xff]
        %v4658 = vld [vmem:[%s3 + $0x80] sm:$0xff]
        %v4659 = vld [vmem:[%s3 + $0x88] sm:$0xff]
        %v4660 = vld [vmem:[%s3 + $0x90] sm:$0xff]
        %v4661 = vld [vmem:[%s3 + $0x98] sm:$0xff]
        %v4662 = vld [vmem:[%s3 + $0xa0] sm:$0xff]
        %v4663 = vld [vmem:[%s3 + $0xa8] sm:$0xff]
        %v4664 = vld [vmem:[%s3 + $0xb0] sm:$0xff]
        %v4665 = vld [vmem:[%s3 + $0xb8] sm:$0xff]
        %v4666 = vld [vmem:[%s3 + $0xc0] sm:$0xff]
        %v4667 = vld [vmem:[%s3 + $0xc8] sm:$0xff]
        %v4668 = vld [vmem:[%s3 + $0xd0] sm:$0xff]
        %v4669 = vld [vmem:[%s3 + $0xd8] sm:$0xff]
        %v4670 = vld [vmem:[%s3 + $0xe0] sm:$0xff]
        %v4671 = vld [vmem:[%s3 + $0xe8] sm:$0xff]
        %v4672 = vld [vmem:[%s3 + $0xf0] sm:$0xff]
        %v4673 = vld [vmem:[%s3 + $0xf8] sm:$0xff]
        %v4674 = vld [vmem:[%s3 + $0x100] sm:$0xff]
        %v4675 = vld [vmem:[%s3 + $0x108] sm:$0xff]
        %v4676 = vld [vmem:[%s3 + $0x110] sm:$0xff]
        %v4677 = vld [vmem:[%s3 + $0x118] sm:$0xff]
        %v4678 = vld [vmem:[%s3 + $0x120] sm:$0xff]
        %v4679 = vld [vmem:[%s3 + $0x128] sm:$0xff]
        %v4680 = vld [vmem:[%s3 + $0x130] sm:$0xff]
        %v4681 = vld [vmem:[%s3 + $0x138] sm:$0xff]
        %v4682 = vld [vmem:[%s3 + $0x140] sm:$0xff]
        %v4683 = vld [vmem:[%s3 + $0x148] sm:$0xff]
        %v4684 = vld [vmem:[%s3 + $0x150] sm:$0xff]
        %v4685 = vld [vmem:[%s3 + $0x158] sm:$0xff]
        %v4686 = vld [vmem:[%s3 + $0x160] sm:$0xff]
        %v4687 = vld [vmem:[%s3 + $0x168] sm:$0xff]
        %v4688 = vld [vmem:[%s3 + $0x170] sm:$0xff]
        %v4689 = vld [vmem:[%s3 + $0x178] sm:$0xff]
        %v4690 = vld [vmem:[%s3 + $0x180] sm:$0xff]
        %v4691 = vld [vmem:[%s3 + $0x188] sm:$0xff]
        %v4692 = vld [vmem:[%s3 + $0x190] sm:$0xff]
        %v4693 = vld [vmem:[%s3 + $0x198] sm:$0xff]
        %v4694 = vld [vmem:[%s3 + $0x1a0] sm:$0xff]
        %v4695 = vld [vmem:[%s3 + $0x1a8] sm:$0xff]
        %v4696 = vld [vmem:[%s3 + $0x1b0] sm:$0xff]
        %v4697 = vld [vmem:[%s3 + $0x1b8] sm:$0xff]
        %v4698 = vld [vmem:[%s3 + $0x1c0] sm:$0xff]
        %v4699 = vld [vmem:[%s3 + $0x1c8] sm:$0xff]
        %v4700 = vld [vmem:[%s3 + $0x1d0] sm:$0xff]
        %v4701 = vld [vmem:[%s3 + $0x1d8] sm:$0xff]
        %v4702 = vld [vmem:[%s3 + $0x1e0] sm:$0xff]
        %v4703 = vld [vmem:[%s3 + $0x1e8] sm:$0xff]
        %v4704 = vld [vmem:[%s3 + $0x1f0] sm:$0xff]
        %v4705 = vld [vmem:[%s3 + $0x1f8] sm:$0xff]
        %v4706 = vld [vmem:[%s3 + $0x200] sm:$0xff]
        %v4707 = vld [vmem:[%s3 + $0x208] sm:$0xff]
        %v4708 = vld [vmem:[%s3 + $0x210] sm:$0xff]
        %v4709 = vld [vmem:[%s3 + $0x218] sm:$0xff]
        %v4710 = vld [vmem:[%s3 + $0x220] sm:$0xff]
        %v4711 = vld [vmem:[%s3 + $0x228] sm:$0xff]
        %v4712 = vld [vmem:[%s3 + $0x230] sm:$0xff]
        %v4713 = vld [vmem:[%s3 + $0x238] sm:$0xff]
        %v4714 = vld [vmem:[%s3 + $0x240] sm:$0xff]
        %v4715 = vld [vmem:[%s3 + $0x248] sm:$0xff]
        %v4716 = vld [vmem:[%s3 + $0x250] sm:$0xff]
        %v4717 = vld [vmem:[%s3 + $0x258] sm:$0xff]
        %v4718 = vld [vmem:[%s3 + $0x260] sm:$0xff]
        %v4719 = vld [vmem:[%s3 + $0x268] sm:$0xff]
        %v4720 = vld [vmem:[%s3 + $0x270] sm:$0xff]
        %v4721 = vld [vmem:[%s3 + $0x278] sm:$0xff]
        %v4722 = vld [vmem:[%s3 + $0x280] sm:$0x33]
        %v4804 = vunpack.c.l.b16 %v4642
        %v4805 = vunpack.c.h.b16 %v4642
        %v4806 = vunpack.c.l.b16 %v4643
        %v4807 = vunpack.c.h.b16 %v4643
        %v4808 = vunpack.c.l.b16 %v4644
        %v4809 = vunpack.c.h.b16 %v4644
        %v4810 = vunpack.c.l.b16 %v4645
        %v4811 = vunpack.c.h.b16 %v4645
        %v4812 = vunpack.c.l.b16 %v4646
        %v4813 = vunpack.c.h.b16 %v4646
        %v4814 = vunpack.c.l.b16 %v4647
        %v4815 = vunpack.c.h.b16 %v4647
        %v4816 = vunpack.c.l.b16 %v4648
        %v4817 = vunpack.c.h.b16 %v4648
        %v4818 = vunpack.c.l.b16 %v4649
        %v4819 = vunpack.c.h.b16 %v4649
        %v4820 = vunpack.c.l.b16 %v4650
        %v4821 = vunpack.c.h.b16 %v4650
        %v4822 = vunpack.c.l.b16 %v4651
        %v4823 = vunpack.c.h.b16 %v4651
        %v4824 = vunpack.c.l.b16 %v4652
        %v4825 = vunpack.c.h.b16 %v4652
        %v4826 = vunpack.c.l.b16 %v4653
        %v4827 = vunpack.c.h.b16 %v4653
        %v4828 = vunpack.c.l.b16 %v4654
        %v4829 = vunpack.c.h.b16 %v4654
        %v4830 = vunpack.c.l.b16 %v4655
        %v4831 = vunpack.c.h.b16 %v4655
        %v4832 = vunpack.c.l.b16 %v4656
        %v4833 = vunpack.c.h.b16 %v4656
        %v4834 = vunpack.c.l.b16 %v4657
        %v4835 = vunpack.c.h.b16 %v4657
        %v4836 = vunpack.c.l.b16 %v4658
        %v4837 = vunpack.c.h.b16 %v4658
        %v4838 = vunpack.c.l.b16 %v4659
        %v4839 = vunpack.c.h.b16 %v4659
        %v4840 = vunpack.c.l.b16 %v4660
        %v4841 = vunpack.c.h.b16 %v4660
        %v4842 = vunpack.c.l.b16 %v4661
        %v4843 = vunpack.c.h.b16 %v4661
        %v4844 = vunpack.c.l.b16 %v4662
        %v4845 = vunpack.c.h.b16 %v4662
        %v4846 = vunpack.c.l.b16 %v4663
        %v4847 = vunpack.c.h.b16 %v4663
        %v4848 = vunpack.c.l.b16 %v4664
        %v4849 = vunpack.c.h.b16 %v4664
        %v4850 = vunpack.c.l.b16 %v4665
        %v4851 = vunpack.c.h.b16 %v4665
        %v4852 = vunpack.c.l.b16 %v4666
        %v4853 = vunpack.c.h.b16 %v4666
        %v4854 = vunpack.c.l.b16 %v4667
        %v4855 = vunpack.c.h.b16 %v4667
        %v4856 = vunpack.c.l.b16 %v4668
        %v4857 = vunpack.c.h.b16 %v4668
        %v4858 = vunpack.c.l.b16 %v4669
        %v4859 = vunpack.c.h.b16 %v4669
        %v4860 = vunpack.c.l.b16 %v4670
        %v4861 = vunpack.c.h.b16 %v4670
        %v4862 = vunpack.c.l.b16 %v4671
        %v4863 = vunpack.c.h.b16 %v4671
        %v4864 = vunpack.c.l.b16 %v4672
        %v4865 = vunpack.c.h.b16 %v4672
        %v4866 = vunpack.c.l.b16 %v4673
        %v4867 = vunpack.c.h.b16 %v4673
        %v4868 = vunpack.c.l.b16 %v4674
        %v4869 = vunpack.c.h.b16 %v4674
        %v4870 = vunpack.c.l.b16 %v4675
        %v4871 = vunpack.c.h.b16 %v4675
        %v4872 = vunpack.c.l.b16 %v4676
        %v4873 = vunpack.c.h.b16 %v4676
        %v4874 = vunpack.c.l.b16 %v4677
        %v4875 = vunpack.c.h.b16 %v4677
        %v4876 = vunpack.c.l.b16 %v4678
        %v4877 = vunpack.c.h.b16 %v4678
        %v4878 = vunpack.c.l.b16 %v4679
        %v4879 = vunpack.c.h.b16 %v4679
        %v4880 = vunpack.c.l.b16 %v4680
        %v4881 = vunpack.c.h.b16 %v4680
        %v4882 = vunpack.c.l.b16 %v4681
        %v4883 = vunpack.c.h.b16 %v4681
        %v4884 = vunpack.c.l.b16 %v4682
        %v4885 = vunpack.c.h.b16 %v4682
        %v4886 = vunpack.c.l.b16 %v4683
        %v4887 = vunpack.c.h.b16 %v4683
        %v4888 = vunpack.c.l.b16 %v4684
        %v4889 = vunpack.c.h.b16 %v4684
        %v4890 = vunpack.c.l.b16 %v4685
        %v4891 = vunpack.c.h.b16 %v4685
        %v4892 = vunpack.c.l.b16 %v4686
        %v4893 = vunpack.c.h.b16 %v4686
        %v4894 = vunpack.c.l.b16 %v4687
        %v4895 = vunpack.c.h.b16 %v4687
        %v4896 = vunpack.c.l.b16 %v4688
        %v4897 = vunpack.c.h.b16 %v4688
        %v4898 = vunpack.c.l.b16 %v4689
        %v4899 = vunpack.c.h.b16 %v4689
        %v4900 = vunpack.c.l.b16 %v4690
        %v4901 = vunpack.c.h.b16 %v4690
        %v4902 = vunpack.c.l.b16 %v4691
        %v4903 = vunpack.c.h.b16 %v4691
        %v4904 = vunpack.c.l.b16 %v4692
        %v4905 = vunpack.c.h.b16 %v4692
        %v4906 = vunpack.c.l.b16 %v4693
        %v4907 = vunpack.c.h.b16 %v4693
        %v4908 = vunpack.c.l.b16 %v4694
        %v4909 = vunpack.c.h.b16 %v4694
        %v4910 = vunpack.c.l.b16 %v4695
        %v4911 = vunpack.c.h.b16 %v4695
        %v4912 = vunpack.c.l.b16 %v4696
        %v4913 = vunpack.c.h.b16 %v4696
        %v4914 = vunpack.c.l.b16 %v4697
        %v4915 = vunpack.c.h.b16 %v4697
        %v4916 = vunpack.c.l.b16 %v4698
        %v4917 = vunpack.c.h.b16 %v4698
        %v4918 = vunpack.c.l.b16 %v4699
        %v4919 = vunpack.c.h.b16 %v4699
        %v4920 = vunpack.c.l.b16 %v4700
        %v4921 = vunpack.c.h.b16 %v4700
        %v4922 = vunpack.c.l.b16 %v4701
        %v4923 = vunpack.c.h.b16 %v4701
        %v4924 = vunpack.c.l.b16 %v4702
        %v4925 = vunpack.c.h.b16 %v4702
        %v4926 = vunpack.c.l.b16 %v4703
        %v4927 = vunpack.c.h.b16 %v4703
        %v4928 = vunpack.c.l.b16 %v4704
        %v4929 = vunpack.c.h.b16 %v4704
        %v4930 = vunpack.c.l.b16 %v4705
        %v4931 = vunpack.c.h.b16 %v4705
        %v4932 = vunpack.c.l.b16 %v4706
        %v4933 = vunpack.c.h.b16 %v4706
        %v4934 = vunpack.c.l.b16 %v4707
        %v4935 = vunpack.c.h.b16 %v4707
        %v4936 = vunpack.c.l.b16 %v4708
        %v4937 = vunpack.c.h.b16 %v4708
        %v4938 = vunpack.c.l.b16 %v4709
        %v4939 = vunpack.c.h.b16 %v4709
        %v4940 = vunpack.c.l.b16 %v4710
        %v4941 = vunpack.c.h.b16 %v4710
        %v4942 = vunpack.c.l.b16 %v4711
        %v4943 = vunpack.c.h.b16 %v4711
        %v4944 = vunpack.c.l.b16 %v4712
        %v4945 = vunpack.c.h.b16 %v4712
        %v4946 = vunpack.c.l.b16 %v4713
        %v4947 = vunpack.c.h.b16 %v4713
        %v4948 = vunpack.c.l.b16 %v4714
        %v4949 = vunpack.c.h.b16 %v4714
        %v4950 = vunpack.c.l.b16 %v4715
        %v4951 = vunpack.c.h.b16 %v4715
        %v4952 = vunpack.c.l.b16 %v4716
        %v4953 = vunpack.c.h.b16 %v4716
        %v4954 = vunpack.c.l.b16 %v4717
        %v4955 = vunpack.c.h.b16 %v4717
        %v4956 = vunpack.c.l.b16 %v4718
        %v4957 = vunpack.c.h.b16 %v4718
        %v4958 = vunpack.c.l.b16 %v4719
        %v4959 = vunpack.c.h.b16 %v4719
        %v4960 = vunpack.c.l.b16 %v4720
        %v4961 = vunpack.c.h.b16 %v4720
        %v4962 = vunpack.c.l.b16 %v4721
        %v4963 = vunpack.c.h.b16 %v4721
        %v4964 = vunpack.c.l.b16 %v4722
        %v4965 = vunpack.c.h.b16 %v4722
        %v4966 = vpack.c.b16 %v4806, %v4804
        %v4967 = vpack.c.b16 %v4807, %v4805
        %v4968 = vpack.c.b16 %v4810, %v4808
        %v4969 = vpack.c.b16 %v4811, %v4809
        %v4970 = vpack.c.b16 %v4814, %v4812
        %v4971 = vpack.c.b16 %v4815, %v4813
        %v4972 = vpack.c.b16 %v4818, %v4816
        %v4973 = vpack.c.b16 %v4819, %v4817
        %v4974 = vpack.c.b16 %v4822, %v4820
        %v4975 = vpack.c.b16 %v4823, %v4821
        %v4976 = vpack.c.b16 %v4826, %v4824
        %v4977 = vpack.c.b16 %v4827, %v4825
        %v4978 = vpack.c.b16 %v4830, %v4828
        %v4979 = vpack.c.b16 %v4831, %v4829
        %v4980 = vpack.c.b16 %v4834, %v4832
        %v4981 = vpack.c.b16 %v4835, %v4833
        %v4982 = vpack.c.b16 %v4838, %v4836
        %v4983 = vpack.c.b16 %v4839, %v4837
        %v4984 = vpack.c.b16 %v4842, %v4840
        %v4985 = vpack.c.b16 %v4843, %v4841
        %v4986 = vpack.c.b16 %v4846, %v4844
        %v4987 = vpack.c.b16 %v4847, %v4845
        %v4988 = vpack.c.b16 %v4850, %v4848
        %v4989 = vpack.c.b16 %v4851, %v4849
        %v4990 = vpack.c.b16 %v4854, %v4852
        %v4991 = vpack.c.b16 %v4855, %v4853
        %v4992 = vpack.c.b16 %v4858, %v4856
        %v4993 = vpack.c.b16 %v4859, %v4857
        %v4994 = vpack.c.b16 %v4862, %v4860
        %v4995 = vpack.c.b16 %v4863, %v4861
        %v4996 = vpack.c.b16 %v4866, %v4864
        %v4997 = vpack.c.b16 %v4867, %v4865
        %v4998 = vpack.c.b16 %v4870, %v4868
        %v4999 = vpack.c.b16 %v4871, %v4869
        %v5000 = vpack.c.b16 %v4874, %v4872
        %v5001 = vpack.c.b16 %v4875, %v4873
        %v5002 = vpack.c.b16 %v4878, %v4876
        %v5003 = vpack.c.b16 %v4879, %v4877
        %v5004 = vpack.c.b16 %v4882, %v4880
        %v5005 = vpack.c.b16 %v4883, %v4881
        %v5006 = vpack.c.b16 %v4886, %v4884
        %v5007 = vpack.c.b16 %v4887, %v4885
        %v5008 = vpack.c.b16 %v4890, %v4888
        %v5009 = vpack.c.b16 %v4891, %v4889
        %v5010 = vpack.c.b16 %v4894, %v4892
        %v5011 = vpack.c.b16 %v4895, %v4893
        %v5012 = vpack.c.b16 %v4898, %v4896
        %v5013 = vpack.c.b16 %v4899, %v4897
        %v5014 = vpack.c.b16 %v4902, %v4900
        %v5015 = vpack.c.b16 %v4903, %v4901
        %v5016 = vpack.c.b16 %v4906, %v4904
        %v5017 = vpack.c.b16 %v4907, %v4905
        %v5018 = vpack.c.b16 %v4910, %v4908
        %v5019 = vpack.c.b16 %v4911, %v4909
        %v5020 = vpack.c.b16 %v4914, %v4912
        %v5021 = vpack.c.b16 %v4915, %v4913
        %v5022 = vpack.c.b16 %v4918, %v4916
        %v5023 = vpack.c.b16 %v4919, %v4917
        %v5024 = vpack.c.b16 %v4922, %v4920
        %v5025 = vpack.c.b16 %v4923, %v4921
        %v5026 = vpack.c.b16 %v4926, %v4924
        %v5027 = vpack.c.b16 %v4927, %v4925
        %v5028 = vpack.c.b16 %v4930, %v4928
        %v5029 = vpack.c.b16 %v4931, %v4929
        %v5030 = vpack.c.b16 %v4934, %v4932
        %v5031 = vpack.c.b16 %v4935, %v4933
        %v5032 = vpack.c.b16 %v4938, %v4936
        %v5033 = vpack.c.b16 %v4939, %v4937
        %v5034 = vpack.c.b16 %v4942, %v4940
        %v5035 = vpack.c.b16 %v4943, %v4941
        %v5036 = vpack.c.b16 %v4946, %v4944
        %v5037 = vpack.c.b16 %v4947, %v4945
        %v5038 = vpack.c.b16 %v4950, %v4948
        %v5039 = vpack.c.b16 %v4951, %v4949
        %v5040 = vpack.c.b16 %v4954, %v4952
        %v5041 = vpack.c.b16 %v4955, %v4953
        %v5042 = vpack.c.b16 %v4958, %v4956
        %v5043 = vpack.c.b16 %v4959, %v4957
        %v5044 = vpack.c.b16 %v4962, %v4960
        %v5045 = vpack.c.b16 %v4963, %v4961
        %v5046 = vpack.c.b16 %v4964, %v4964
        %v5047 = vpack.c.b16 %v4965, %v4965
        %vm5128 = vcmask 23552
        %v5130 = vsel %vm5128, %v4623, 0
        %v5133 = vsel %vm5128, %v4629, 0
        %v5136 = vsel %vm5128, %v4635, 0
        %v5139 = vsel %vm5128, %v4641, 0
        %vm5141 = vcmask 1041408
        %v5142 = vsel %vm2458, 4294967295, 65535
        %v5143 = vsel %vm5141, %v5142, 0
        %v5145 = vand.u32 %v5046, %v5143
        %v5148 = vand.u32 %v5047, %v5143
        %5150 = vmatpush.bf16.msra.mxu0 %v4980
        %5151 = vmatpush.bf16.msra.mxu0 %v4978
        %5152 = vmatpush.bf16.msra.mxu0 %v4976
        %5153 = vmatpush.bf16.msra.mxu0 %v4974
        %5154 = vmatpush.bf16.msra.mxu0 %v4972
        %5155 = vmatpush.bf16.msra.mxu0 %v4970
        %5156 = vmatpush.bf16.msra.mxu0 %v4968
        %5157 = vmatpush.bf16.msra.mxu0 %v4966
        %5158 = vmatmul.bf16.gmra.mxu0 %v4618
        %v5159 = vpop.f32.mrf.mxu0
        %v5160 = vadd.f32 0.0, %v5159
        %v5161 = vpop.f32.mrf.mxu0
        %v5162 = vadd.f32 0.0, %v5161
        %5163 = vmatmul.bf16.gmra.mxu0 %v4624
        %v5164 = vpop.f32.mrf.mxu0
        %v5165 = vadd.f32 0.0, %v5164
        %v5166 = vpop.f32.mrf.mxu0
        %v5167 = vadd.f32 0.0, %v5166
        %5168 = vmatmul.bf16.gmra.mxu0 %v4630
        %v5169 = vpop.f32.mrf.mxu0
        %v5170 = vadd.f32 0.0, %v5169
        %v5171 = vpop.f32.mrf.mxu0
        %v5172 = vadd.f32 0.0, %v5171
        %5173 = vmatmul.bf16.gmra.mxu0 %v4636
        %v5174 = vpop.f32.mrf.mxu0
        %v5175 = vadd.f32 0.0, %v5174
        %v5176 = vpop.f32.mrf.mxu0
        %v5177 = vadd.f32 0.0, %v5176
        %5178 = vdwg.mxu0
        %5179 = vmatpush.bf16.msra.mxu0 %v4996
        %5180 = vmatpush.bf16.msra.mxu0 %v4994
        %5181 = vmatpush.bf16.msra.mxu0 %v4992
        %5182 = vmatpush.bf16.msra.mxu0 %v4990
        %5183 = vmatpush.bf16.msra.mxu0 %v4988
        %5184 = vmatpush.bf16.msra.mxu0 %v4986
        %5185 = vmatpush.bf16.msra.mxu0 %v4984
        %5186 = vmatpush.bf16.msra.mxu0 %v4982
        %5187 = vmatmul.bf16.gmra.mxu0 %v4619
        %v5188 = vpop.f32.mrf.mxu0
        %v5189 = vadd.f32 %v5160, %v5188
        %v5190 = vpop.f32.mrf.mxu0
        %v5191 = vadd.f32 %v5162, %v5190
        %5192 = vmatmul.bf16.gmra.mxu0 %v4625
        %v5193 = vpop.f32.mrf.mxu0
        %v5194 = vadd.f32 %v5165, %v5193
        %v5195 = vpop.f32.mrf.mxu0
        %v5196 = vadd.f32 %v5167, %v5195
        %5197 = vmatmul.bf16.gmra.mxu0 %v4631
        %v5198 = vpop.f32.mrf.mxu0
        %v5199 = vadd.f32 %v5170, %v5198
        %v5200 = vpop.f32.mrf.mxu0
        %v5201 = vadd.f32 %v5172, %v5200
        %5202 = vmatmul.bf16.gmra.mxu0 %v4637
        %v5203 = vpop.f32.mrf.mxu0
        %v5204 = vadd.f32 %v5175, %v5203
        %v5205 = vpop.f32.mrf.mxu0
        %v5206 = vadd.f32 %v5177, %v5205
        %5207 = vdwg.mxu0
        %5208 = vmatpush.bf16.msra.mxu0 %v5012
        %5209 = vmatpush.bf16.msra.mxu0 %v5010
        %5210 = vmatpush.bf16.msra.mxu0 %v5008
        %5211 = vmatpush.bf16.msra.mxu0 %v5006
        %5212 = vmatpush.bf16.msra.mxu0 %v5004
        %5213 = vmatpush.bf16.msra.mxu0 %v5002
        %5214 = vmatpush.bf16.msra.mxu0 %v5000
        %5215 = vmatpush.bf16.msra.mxu0 %v4998
        %5216 = vmatmul.bf16.gmra.mxu0 %v4620
        %v5217 = vpop.f32.mrf.mxu0
        %v5218 = vadd.f32 %v5189, %v5217
        %v5219 = vpop.f32.mrf.mxu0
        %v5220 = vadd.f32 %v5191, %v5219
        %5221 = vmatmul.bf16.gmra.mxu0 %v4626
        %v5222 = vpop.f32.mrf.mxu0
        %v5223 = vadd.f32 %v5194, %v5222
        %v5224 = vpop.f32.mrf.mxu0
        %v5225 = vadd.f32 %v5196, %v5224
        %5226 = vmatmul.bf16.gmra.mxu0 %v4632
        %v5227 = vpop.f32.mrf.mxu0
        %v5228 = vadd.f32 %v5199, %v5227
        %v5229 = vpop.f32.mrf.mxu0
        %v5230 = vadd.f32 %v5201, %v5229
        %5231 = vmatmul.bf16.gmra.mxu0 %v4638
        %v5232 = vpop.f32.mrf.mxu0
        %v5233 = vadd.f32 %v5204, %v5232
        %v5234 = vpop.f32.mrf.mxu0
        %v5235 = vadd.f32 %v5206, %v5234
        %5236 = vdwg.mxu0
        %5237 = vmatpush.bf16.msra.mxu0 %v5028
        %5238 = vmatpush.bf16.msra.mxu0 %v5026
        %5239 = vmatpush.bf16.msra.mxu0 %v5024
        %5240 = vmatpush.bf16.msra.mxu0 %v5022
        %5241 = vmatpush.bf16.msra.mxu0 %v5020
        %5242 = vmatpush.bf16.msra.mxu0 %v5018
        %5243 = vmatpush.bf16.msra.mxu0 %v5016
        %5244 = vmatpush.bf16.msra.mxu0 %v5014
        %5245 = vmatmul.bf16.gmra.mxu0 %v4621
        %v5246 = vpop.f32.mrf.mxu0
        %v5247 = vadd.f32 %v5218, %v5246
        %v5248 = vpop.f32.mrf.mxu0
        %v5249 = vadd.f32 %v5220, %v5248
        %5250 = vmatmul.bf16.gmra.mxu0 %v4627
        %v5251 = vpop.f32.mrf.mxu0
        %v5252 = vadd.f32 %v5223, %v5251
        %v5253 = vpop.f32.mrf.mxu0
        %v5254 = vadd.f32 %v5225, %v5253
        %5255 = vmatmul.bf16.gmra.mxu0 %v4633
        %v5256 = vpop.f32.mrf.mxu0
        %v5257 = vadd.f32 %v5228, %v5256
        %v5258 = vpop.f32.mrf.mxu0
        %v5259 = vadd.f32 %v5230, %v5258
        %5260 = vmatmul.bf16.gmra.mxu0 %v4639
        %v5261 = vpop.f32.mrf.mxu0
        %v5262 = vadd.f32 %v5233, %v5261
        %v5263 = vpop.f32.mrf.mxu0
        %v5264 = vadd.f32 %v5235, %v5263
        %5265 = vdwg.mxu0
        %5266 = vmatpush.bf16.msra.mxu0 %v5044
        %5267 = vmatpush.bf16.msra.mxu0 %v5042
        %5268 = vmatpush.bf16.msra.mxu0 %v5040
        %5269 = vmatpush.bf16.msra.mxu0 %v5038
        %5270 = vmatpush.bf16.msra.mxu0 %v5036
        %5271 = vmatpush.bf16.msra.mxu0 %v5034
        %5272 = vmatpush.bf16.msra.mxu0 %v5032
        %5273 = vmatpush.bf16.msra.mxu0 %v5030
        %5274 = vmatmul.bf16.gmra.mxu0 %v4622
        %v5275 = vpop.f32.mrf.mxu0
        %v5276 = vadd.f32 %v5247, %v5275
        %v5277 = vpop.f32.mrf.mxu0
        %v5278 = vadd.f32 %v5249, %v5277
        %5279 = vmatmul.bf16.gmra.mxu0 %v4628
        %v5280 = vpop.f32.mrf.mxu0
        %v5281 = vadd.f32 %v5252, %v5280
        %v5282 = vpop.f32.mrf.mxu0
        %v5283 = vadd.f32 %v5254, %v5282
        %5284 = vmatmul.bf16.gmra.mxu0 %v4634
        %v5285 = vpop.f32.mrf.mxu0
        %v5286 = vadd.f32 %v5257, %v5285
        %v5287 = vpop.f32.mrf.mxu0
        %v5288 = vadd.f32 %v5259, %v5287
        %5289 = vmatmul.bf16.gmra.mxu0 %v4640
        %v5290 = vpop.f32.mrf.mxu0
        %v5291 = vadd.f32 %v5262, %v5290
        %v5292 = vpop.f32.mrf.mxu0
        %v5293 = vadd.f32 %v5264, %v5292
        %5294 = vdwg.mxu0
        %5295 = vmatpush.bf16.msra.mxu0 0
        %5296 = vmatpush.bf16.msra.mxu0 0
        %5297 = vmatpush.bf16.msra.mxu0 0
        %5298 = vmatpush.bf16.msra.mxu0 0
        %5299 = vmatpush.bf16.msra.mxu0 0
        %5300 = vmatpush.bf16.msra.mxu0 0
        %5301 = vmatpush.bf16.msra.mxu0 0
        %5302 = vmatpush.bf16.msra.mxu0 %v5145
        %5303 = vmatmul.bf16.gmra.mxu0 %v5130
        %v5304 = vpop.f32.mrf.mxu0
        %v5305 = vadd.f32 %v5276, %v5304
        %v5306 = vpop.f32.mrf.mxu0
        %v5307 = vadd.f32 %v5278, %v5306
        %5308 = vmatmul.bf16.gmra.mxu0 %v5133
        %v5309 = vpop.f32.mrf.mxu0
        %v5310 = vadd.f32 %v5281, %v5309
        %v5311 = vpop.f32.mrf.mxu0
        %v5312 = vadd.f32 %v5283, %v5311
        %5313 = vmatmul.bf16.gmra.mxu0 %v5136
        %v5314 = vpop.f32.mrf.mxu0
        %v5315 = vadd.f32 %v5286, %v5314
        %v5316 = vpop.f32.mrf.mxu0
        %v5317 = vadd.f32 %v5288, %v5316
        %5318 = vmatmul.bf16.gmra.mxu0 %v5139
        %v5319 = vpop.f32.mrf.mxu0
        %v5320 = vadd.f32 %v5291, %v5319
        %v5321 = vpop.f32.mrf.mxu0
        %v5322 = vadd.f32 %v5293, %v5321
        %5323 = vdwg.mxu0
        %5324 = vmatpush.bf16.msra.mxu0 %v4981
        %5325 = vmatpush.bf16.msra.mxu0 %v4979
        %5326 = vmatpush.bf16.msra.mxu0 %v4977
        %5327 = vmatpush.bf16.msra.mxu0 %v4975
        %5328 = vmatpush.bf16.msra.mxu0 %v4973
        %5329 = vmatpush.bf16.msra.mxu0 %v4971
        %5330 = vmatpush.bf16.msra.mxu0 %v4969
        %5331 = vmatpush.bf16.msra.mxu0 %v4967
        %5332 = vmatmul.bf16.gmra.mxu0 %v4618
        %v5333 = vpop.f32.mrf.mxu0
        %v5334 = vadd.f32 0.0, %v5333
        %v5335 = vpop.f32.mrf.mxu0
        %v5336 = vadd.f32 0.0, %v5335
        %5337 = vmatmul.bf16.gmra.mxu0 %v4624
        %v5338 = vpop.f32.mrf.mxu0
        %v5339 = vadd.f32 0.0, %v5338
        %v5340 = vpop.f32.mrf.mxu0
        %v5341 = vadd.f32 0.0, %v5340
        %5342 = vmatmul.bf16.gmra.mxu0 %v4630
        %v5343 = vpop.f32.mrf.mxu0
        %v5344 = vadd.f32 0.0, %v5343
        %v5345 = vpop.f32.mrf.mxu0
        %v5346 = vadd.f32 0.0, %v5345
        %5347 = vmatmul.bf16.gmra.mxu0 %v4636
        %v5348 = vpop.f32.mrf.mxu0
        %v5349 = vadd.f32 0.0, %v5348
        %v5350 = vpop.f32.mrf.mxu0
        %v5351 = vadd.f32 0.0, %v5350
        %5352 = vdwg.mxu0
        %5353 = vmatpush.bf16.msra.mxu0 %v4997
        %5354 = vmatpush.bf16.msra.mxu0 %v4995
        %5355 = vmatpush.bf16.msra.mxu0 %v4993
        %5356 = vmatpush.bf16.msra.mxu0 %v4991
        %5357 = vmatpush.bf16.msra.mxu0 %v4989
        %5358 = vmatpush.bf16.msra.mxu0 %v4987
        %5359 = vmatpush.bf16.msra.mxu0 %v4985
        %5360 = vmatpush.bf16.msra.mxu0 %v4983
        %5361 = vmatmul.bf16.gmra.mxu0 %v4619
        %v5362 = vpop.f32.mrf.mxu0
        %v5363 = vadd.f32 %v5334, %v5362
        %v5364 = vpop.f32.mrf.mxu0
        %v5365 = vadd.f32 %v5336, %v5364
        %5366 = vmatmul.bf16.gmra.mxu0 %v4625
        %v5367 = vpop.f32.mrf.mxu0
        %v5368 = vadd.f32 %v5339, %v5367
        %v5369 = vpop.f32.mrf.mxu0
        %v5370 = vadd.f32 %v5341, %v5369
        %5371 = vmatmul.bf16.gmra.mxu0 %v4631
        %v5372 = vpop.f32.mrf.mxu0
        %v5373 = vadd.f32 %v5344, %v5372
        %v5374 = vpop.f32.mrf.mxu0
        %v5375 = vadd.f32 %v5346, %v5374
        %5376 = vmatmul.bf16.gmra.mxu0 %v4637
        %v5377 = vpop.f32.mrf.mxu0
        %v5378 = vadd.f32 %v5349, %v5377
        %v5379 = vpop.f32.mrf.mxu0
        %v5380 = vadd.f32 %v5351, %v5379
        %5381 = vdwg.mxu0
        %5382 = vmatpush.bf16.msra.mxu0 %v5013
        %5383 = vmatpush.bf16.msra.mxu0 %v5011
        %5384 = vmatpush.bf16.msra.mxu0 %v5009
        %5385 = vmatpush.bf16.msra.mxu0 %v5007
        %5386 = vmatpush.bf16.msra.mxu0 %v5005
        %5387 = vmatpush.bf16.msra.mxu0 %v5003
        %5388 = vmatpush.bf16.msra.mxu0 %v5001
        %5389 = vmatpush.bf16.msra.mxu0 %v4999
        %5390 = vmatmul.bf16.gmra.mxu0 %v4620
        %v5391 = vpop.f32.mrf.mxu0
        %v5392 = vadd.f32 %v5363, %v5391
        %v5393 = vpop.f32.mrf.mxu0
        %v5394 = vadd.f32 %v5365, %v5393
        %5395 = vmatmul.bf16.gmra.mxu0 %v4626
        %v5396 = vpop.f32.mrf.mxu0
        %v5397 = vadd.f32 %v5368, %v5396
        %v5398 = vpop.f32.mrf.mxu0
        %v5399 = vadd.f32 %v5370, %v5398
        %5400 = vmatmul.bf16.gmra.mxu0 %v4632
        %v5401 = vpop.f32.mrf.mxu0
        %v5402 = vadd.f32 %v5373, %v5401
        %v5403 = vpop.f32.mrf.mxu0
        %v5404 = vadd.f32 %v5375, %v5403
        %5405 = vmatmul.bf16.gmra.mxu0 %v4638
        %v5406 = vpop.f32.mrf.mxu0
        %v5407 = vadd.f32 %v5378, %v5406
        %v5408 = vpop.f32.mrf.mxu0
        %v5409 = vadd.f32 %v5380, %v5408
        %5410 = vdwg.mxu0
        %5411 = vmatpush.bf16.msra.mxu0 %v5029
        %5412 = vmatpush.bf16.msra.mxu0 %v5027
        %5413 = vmatpush.bf16.msra.mxu0 %v5025
        %5414 = vmatpush.bf16.msra.mxu0 %v5023
        %5415 = vmatpush.bf16.msra.mxu0 %v5021
        %5416 = vmatpush.bf16.msra.mxu0 %v5019
        %5417 = vmatpush.bf16.msra.mxu0 %v5017
        %5418 = vmatpush.bf16.msra.mxu0 %v5015
        %5419 = vmatmul.bf16.gmra.mxu0 %v4621
        %v5420 = vpop.f32.mrf.mxu0
        %v5421 = vadd.f32 %v5392, %v5420
        %v5422 = vpop.f32.mrf.mxu0
        %v5423 = vadd.f32 %v5394, %v5422
        %5424 = vmatmul.bf16.gmra.mxu0 %v4627
        %v5425 = vpop.f32.mrf.mxu0
        %v5426 = vadd.f32 %v5397, %v5425
        %v5427 = vpop.f32.mrf.mxu0
        %v5428 = vadd.f32 %v5399, %v5427
        %5429 = vmatmul.bf16.gmra.mxu0 %v4633
        %v5430 = vpop.f32.mrf.mxu0
        %v5431 = vadd.f32 %v5402, %v5430
        %v5432 = vpop.f32.mrf.mxu0
        %v5433 = vadd.f32 %v5404, %v5432
        %5434 = vmatmul.bf16.gmra.mxu0 %v4639
        %v5435 = vpop.f32.mrf.mxu0
        %v5436 = vadd.f32 %v5407, %v5435
        %v5437 = vpop.f32.mrf.mxu0
        %v5438 = vadd.f32 %v5409, %v5437
        %5439 = vdwg.mxu0
        %5440 = vmatpush.bf16.msra.mxu0 %v5045
        %5441 = vmatpush.bf16.msra.mxu0 %v5043
        %5442 = vmatpush.bf16.msra.mxu0 %v5041
        %5443 = vmatpush.bf16.msra.mxu0 %v5039
        %5444 = vmatpush.bf16.msra.mxu0 %v5037
        %5445 = vmatpush.bf16.msra.mxu0 %v5035
        %5446 = vmatpush.bf16.msra.mxu0 %v5033
        %5447 = vmatpush.bf16.msra.mxu0 %v5031
        %5448 = vmatmul.bf16.gmra.mxu0 %v4622
        %v5449 = vpop.f32.mrf.mxu0
        %v5450 = vadd.f32 %v5421, %v5449
        %v5451 = vpop.f32.mrf.mxu0
        %v5452 = vadd.f32 %v5423, %v5451
        %5453 = vmatmul.bf16.gmra.mxu0 %v4628
        %v5454 = vpop.f32.mrf.mxu0
        %v5455 = vadd.f32 %v5426, %v5454
        %v5456 = vpop.f32.mrf.mxu0
        %v5457 = vadd.f32 %v5428, %v5456
        %5458 = vmatmul.bf16.gmra.mxu0 %v4634
        %v5459 = vpop.f32.mrf.mxu0
        %v5460 = vadd.f32 %v5431, %v5459
        %v5461 = vpop.f32.mrf.mxu0
        %v5462 = vadd.f32 %v5433, %v5461
        %5463 = vmatmul.bf16.gmra.mxu0 %v4640
        %v5464 = vpop.f32.mrf.mxu0
        %v5465 = vadd.f32 %v5436, %v5464
        %v5466 = vpop.f32.mrf.mxu0
        %v5467 = vadd.f32 %v5438, %v5466
        %5468 = vdwg.mxu0
        %5469 = vmatpush.bf16.msra.mxu0 0
        %5470 = vmatpush.bf16.msra.mxu0 0
        %5471 = vmatpush.bf16.msra.mxu0 0
        %5472 = vmatpush.bf16.msra.mxu0 0
        %5473 = vmatpush.bf16.msra.mxu0 0
        %5474 = vmatpush.bf16.msra.mxu0 0
        %5475 = vmatpush.bf16.msra.mxu0 0
        %5476 = vmatpush.bf16.msra.mxu0 %v5148
        %5477 = vmatmul.bf16.gmra.mxu0 %v5130
        %v5478 = vpop.f32.mrf.mxu0
        %v5479 = vadd.f32 %v5450, %v5478
        %v5480 = vpop.f32.mrf.mxu0
        %v5481 = vadd.f32 %v5452, %v5480
        %5482 = vmatmul.bf16.gmra.mxu0 %v5133
        %v5483 = vpop.f32.mrf.mxu0
        %v5484 = vadd.f32 %v5455, %v5483
        %v5485 = vpop.f32.mrf.mxu0
        %v5486 = vadd.f32 %v5457, %v5485
        %5487 = vmatmul.bf16.gmra.mxu0 %v5136
        %v5488 = vpop.f32.mrf.mxu0
        %v5489 = vadd.f32 %v5460, %v5488
        %v5490 = vpop.f32.mrf.mxu0
        %v5491 = vadd.f32 %v5462, %v5490
        %5492 = vmatmul.bf16.gmra.mxu0 %v5139
        %v5493 = vpop.f32.mrf.mxu0
        %v5494 = vadd.f32 %v5465, %v5493
        %v5495 = vpop.f32.mrf.mxu0
        %v5496 = vadd.f32 %v5467, %v5495
        %5497 = vdwg.mxu0
        %v5498 = vpack.c.bf16 %v5479, %v5305
        %v5499 = vpack.c.bf16 %v5481, %v5307
        %v5500 = vpack.c.bf16 %v5484, %v5310
        %v5501 = vpack.c.bf16 %v5486, %v5312
        %v5502 = vpack.c.bf16 %v5489, %v5315
        %v5503 = vpack.c.bf16 %v5491, %v5317
        %v5504 = vpack.c.bf16 %v5494, %v5320
        %v5505 = vpack.c.bf16 %v5496, %v5322
        %vm5506 = vcmask 162820
        %vm5507 = vmor %vm5506, %vm2608
        %5508 = vst.msk [vmem:[#allocation5] sm:$0xff] %vm5507, %v5498
        %5509 = vst.msk [vmem:[#allocation5 + $0x8] sm:$0xff] %vm5507, %v5499
        %5510 = vst.msk [vmem:[#allocation5 + $0x10] sm:$0xff] %vm5507, %v5500
        %5511 = vst.msk [vmem:[#allocation5 + $0x18] sm:$0xff] %vm5507, %v5501
        %5512 = vst.msk [vmem:[#allocation5 + $0x20] sm:$0xff] %vm5507, %v5502
        %5513 = vst.msk [vmem:[#allocation5 + $0x28] sm:$0xff] %vm5507, %v5503
        %5514 = vst.msk [vmem:[#allocation5 + $0x30] sm:$0xff] %vm5507, %v5504
        %5515 = vst.msk [vmem:[#allocation5 + $0x38] sm:$0xff] %vm5507, %v5505
        %v5516 = vld [vmem:[#allocation5] sm:$0xf]
        %v5517 = vld [vmem:[#allocation5 + $0x8] sm:$0xf]
        %v5518 = vld [vmem:[#allocation5 + $0x10] sm:$0xf]
        %v5519 = vld [vmem:[#allocation5 + $0x18] sm:$0xf]
        %v5520 = vld [vmem:[#allocation5 + $0x20] sm:$0xf]
        %v5521 = vld [vmem:[#allocation5 + $0x28] sm:$0xf]
        %v5522 = vld [vmem:[#allocation5 + $0x30] sm:$0xf]
        %v5523 = vld [vmem:[#allocation5 + $0x38] sm:$0xf]
        %vm5524 = vcmask 781312
        %5525 = vst.msk [vmem:[#allocation6] sm:$0xf] %vm5524, %v5516
        %5526 = vst.msk [vmem:[#allocation6 + $0x64] sm:$0xf] %vm5524, %v5517
        %5527 = vst.msk [vmem:[#allocation6 + $0xc8] sm:$0xf] %vm5524, %v5518
        %5528 = vst.msk [vmem:[#allocation6 + $0x12c] sm:$0xf] %vm5524, %v5519
        %5529 = vst.msk [vmem:[#allocation6 + $0x190] sm:$0xf] %vm5524, %v5520
        %5530 = vst.msk [vmem:[#allocation6 + $0x1f4] sm:$0xf] %vm5524, %v5521
        %5531 = vst.msk [vmem:[#allocation6 + $0x258] sm:$0xf] %vm5524, %v5522
        %5532 = vst.msk [vmem:[#allocation6 + $0x2bc] sm:$0xf] %vm5524, %v5523
        %v5533 = vld [vmem:[#allocation5] sm:$0xf]
        %v5534 = vld [vmem:[#allocation5 + $0x8] sm:$0xf]
        %v5535 = vld [vmem:[#allocation5 + $0x10] sm:$0xf]
        %v5536 = vld [vmem:[#allocation5 + $0x18] sm:$0xf]
        %v5537 = vld [vmem:[#allocation5 + $0x20] sm:$0xf]
        %v5538 = vld [vmem:[#allocation5 + $0x28] sm:$0xf]
        %v5539 = vld [vmem:[#allocation5 + $0x30] sm:$0xf]
        %v5540 = vld [vmem:[#allocation5 + $0x38] sm:$0xf]
        %5549 = vrot.lane.b32.xlu0 %v5533, 127
        %v5550 = vpop.permute.xlu0 %5549
        %5551 = vrot.lane.b32.xlu0 %v5534, 127
        %v5552 = vpop.permute.xlu0 %5551
        %5553 = vrot.lane.b32.xlu0 %v5535, 127
        %v5554 = vpop.permute.xlu0 %5553
        %5555 = vrot.lane.b32.xlu0 %v5536, 127
        %v5556 = vpop.permute.xlu0 %5555
        %5557 = vrot.lane.b32.xlu0 %v5537, 127
        %v5558 = vpop.permute.xlu0 %5557
        %5559 = vrot.lane.b32.xlu0 %v5538, 127
        %v5560 = vpop.permute.xlu0 %5559
        %5561 = vrot.lane.b32.xlu0 %v5539, 127
        %v5562 = vpop.permute.xlu0 %5561
        %5563 = vrot.lane.b32.xlu0 %v5540, 127
        %v5564 = vpop.permute.xlu0 %5563
        %5573 = vst.msk [vmem:[#allocation6 + $0x4] sm:$0xf] %vm5524, %v5550
        %5574 = vst.msk [vmem:[#allocation6 + $0x68] sm:$0xf] %vm5524, %v5552
        %5575 = vst.msk [vmem:[#allocation6 + $0xcc] sm:$0xf] %vm5524, %v5554
        %5576 = vst.msk [vmem:[#allocation6 + $0x130] sm:$0xf] %vm5524, %v5556
        %5577 = vst.msk [vmem:[#allocation6 + $0x194] sm:$0xf] %vm5524, %v5558
        %5578 = vst.msk [vmem:[#allocation6 + $0x1f8] sm:$0xf] %vm5524, %v5560
        %5579 = vst.msk [vmem:[#allocation6 + $0x25c] sm:$0xf] %vm5524, %v5562
        %5580 = vst.msk [vmem:[#allocation6 + $0x2c0] sm:$0xf] %vm5524, %v5564
        %v5581 = vld [vmem:[#allocation5] sm:$0xf]
        %v5582 = vld [vmem:[#allocation5 + $0x8] sm:$0xf]
        %v5583 = vld [vmem:[#allocation5 + $0x10] sm:$0xf]
        %v5584 = vld [vmem:[#allocation5 + $0x18] sm:$0xf]
        %v5585 = vld [vmem:[#allocation5 + $0x20] sm:$0xf]
        %v5586 = vld [vmem:[#allocation5 + $0x28] sm:$0xf]
        %v5587 = vld [vmem:[#allocation5 + $0x30] sm:$0xf]
        %v5588 = vld [vmem:[#allocation5 + $0x38] sm:$0xf]
        %5597 = vrot.lane.b32.xlu0 %v5581, 126
        %v5598 = vpop.permute.xlu0 %5597
        %5599 = vrot.lane.b32.xlu0 %v5582, 126
        %v5600 = vpop.permute.xlu0 %5599
        %5601 = vrot.lane.b32.xlu0 %v5583, 126
        %v5602 = vpop.permute.xlu0 %5601
        %5603 = vrot.lane.b32.xlu0 %v5584, 126
        %v5604 = vpop.permute.xlu0 %5603
        %5605 = vrot.lane.b32.xlu0 %v5585, 126
        %v5606 = vpop.permute.xlu0 %5605
        %5607 = vrot.lane.b32.xlu0 %v5586, 126
        %v5608 = vpop.permute.xlu0 %5607
        %5609 = vrot.lane.b32.xlu0 %v5587, 126
        %v5610 = vpop.permute.xlu0 %5609
        %5611 = vrot.lane.b32.xlu0 %v5588, 126
        %v5612 = vpop.permute.xlu0 %5611
        %5621 = vst.msk [vmem:[#allocation6 + $0x8] sm:$0xf] %vm5524, %v5598
        %5622 = vst.msk [vmem:[#allocation6 + $0x6c] sm:$0xf] %vm5524, %v5600
        %5623 = vst.msk [vmem:[#allocation6 + $0xd0] sm:$0xf] %vm5524, %v5602
        %5624 = vst.msk [vmem:[#allocation6 + $0x134] sm:$0xf] %vm5524, %v5604
        %5625 = vst.msk [vmem:[#allocation6 + $0x198] sm:$0xf] %vm5524, %v5606
        %5626 = vst.msk [vmem:[#allocation6 + $0x1fc] sm:$0xf] %vm5524, %v5608
        %5627 = vst.msk [vmem:[#allocation6 + $0x260] sm:$0xf] %vm5524, %v5610
        %5628 = vst.msk [vmem:[#allocation6 + $0x2c4] sm:$0xf] %vm5524, %v5612
        %v5629 = vld [vmem:[#allocation5] sm:$0xf]
        %v5630 = vld [vmem:[#allocation5 + $0x8] sm:$0xf]
        %v5631 = vld [vmem:[#allocation5 + $0x10] sm:$0xf]
        %v5632 = vld [vmem:[#allocation5 + $0x18] sm:$0xf]
        %v5633 = vld [vmem:[#allocation5 + $0x20] sm:$0xf]
        %v5634 = vld [vmem:[#allocation5 + $0x28] sm:$0xf]
        %v5635 = vld [vmem:[#allocation5 + $0x30] sm:$0xf]
        %v5636 = vld [vmem:[#allocation5 + $0x38] sm:$0xf]
        %5645 = vrot.lane.b32.xlu0 %v5629, 125
        %v5646 = vpop.permute.xlu0 %5645
        %5647 = vrot.lane.b32.xlu0 %v5630, 125
        %v5648 = vpop.permute.xlu0 %5647
        %5649 = vrot.lane.b32.xlu0 %v5631, 125
        %v5650 = vpop.permute.xlu0 %5649
        %5651 = vrot.lane.b32.xlu0 %v5632, 125
        %v5652 = vpop.permute.xlu0 %5651
        %5653 = vrot.lane.b32.xlu0 %v5633, 125
        %v5654 = vpop.permute.xlu0 %5653
        %5655 = vrot.lane.b32.xlu0 %v5634, 125
        %v5656 = vpop.permute.xlu0 %5655
        %5657 = vrot.lane.b32.xlu0 %v5635, 125
        %v5658 = vpop.permute.xlu0 %5657
        %5659 = vrot.lane.b32.xlu0 %v5636, 125
        %v5660 = vpop.permute.xlu0 %5659
        %5669 = vst.msk [vmem:[#allocation6 + $0xc] sm:$0xf] %vm5524, %v5646
        %5670 = vst.msk [vmem:[#allocation6 + $0x70] sm:$0xf] %vm5524, %v5648
        %5671 = vst.msk [vmem:[#allocation6 + $0xd4] sm:$0xf] %vm5524, %v5650
        %5672 = vst.msk [vmem:[#allocation6 + $0x138] sm:$0xf] %vm5524, %v5652
        %5673 = vst.msk [vmem:[#allocation6 + $0x19c] sm:$0xf] %vm5524, %v5654
        %5674 = vst.msk [vmem:[#allocation6 + $0x200] sm:$0xf] %vm5524, %v5656
        %5675 = vst.msk [vmem:[#allocation6 + $0x264] sm:$0xf] %vm5524, %v5658
        %5676 = vst.msk [vmem:[#allocation6 + $0x2c8] sm:$0xf] %vm5524, %v5660
        %v5677 = vld [vmem:[#allocation5] sm:$0xf]
        %v5678 = vld [vmem:[#allocation5 + $0x8] sm:$0xf]
        %v5679 = vld [vmem:[#allocation5 + $0x10] sm:$0xf]
        %v5680 = vld [vmem:[#allocation5 + $0x18] sm:$0xf]
        %v5681 = vld [vmem:[#allocation5 + $0x20] sm:$0xf]
        %v5682 = vld [vmem:[#allocation5 + $0x28] sm:$0xf]
        %v5683 = vld [vmem:[#allocation5 + $0x30] sm:$0xf]
        %v5684 = vld [vmem:[#allocation5 + $0x38] sm:$0xf]
        %5693 = vrot.lane.b32.xlu0 %v5677, 124
        %v5694 = vpop.permute.xlu0 %5693
        %5695 = vrot.lane.b32.xlu0 %v5678, 124
        %v5696 = vpop.permute.xlu0 %5695
        %5697 = vrot.lane.b32.xlu0 %v5679, 124
        %v5698 = vpop.permute.xlu0 %5697
        %5699 = vrot.lane.b32.xlu0 %v5680, 124
        %v5700 = vpop.permute.xlu0 %5699
        %5701 = vrot.lane.b32.xlu0 %v5681, 124
        %v5702 = vpop.permute.xlu0 %5701
        %5703 = vrot.lane.b32.xlu0 %v5682, 124
        %v5704 = vpop.permute.xlu0 %5703
        %5705 = vrot.lane.b32.xlu0 %v5683, 124
        %v5706 = vpop.permute.xlu0 %5705
        %5707 = vrot.lane.b32.xlu0 %v5684, 124
        %v5708 = vpop.permute.xlu0 %5707
        %5717 = vst.msk [vmem:[#allocation6 + $0x10] sm:$0xf] %vm5524, %v5694
        %5718 = vst.msk [vmem:[#allocation6 + $0x74] sm:$0xf] %vm5524, %v5696
        %5719 = vst.msk [vmem:[#allocation6 + $0xd8] sm:$0xf] %vm5524, %v5698
        %5720 = vst.msk [vmem:[#allocation6 + $0x13c] sm:$0xf] %vm5524, %v5700
        %5721 = vst.msk [vmem:[#allocation6 + $0x1a0] sm:$0xf] %vm5524, %v5702
        %5722 = vst.msk [vmem:[#allocation6 + $0x204] sm:$0xf] %vm5524, %v5704
        %5723 = vst.msk [vmem:[#allocation6 + $0x268] sm:$0xf] %vm5524, %v5706
        %5724 = vst.msk [vmem:[#allocation6 + $0x2cc] sm:$0xf] %vm5524, %v5708
        %v5725 = vld [vmem:[#allocation5] sm:$0xf]
        %v5726 = vld [vmem:[#allocation5 + $0x8] sm:$0xf]
        %v5727 = vld [vmem:[#allocation5 + $0x10] sm:$0xf]
        %v5728 = vld [vmem:[#allocation5 + $0x18] sm:$0xf]
        %v5729 = vld [vmem:[#allocation5 + $0x20] sm:$0xf]
        %v5730 = vld [vmem:[#allocation5 + $0x28] sm:$0xf]
        %v5731 = vld [vmem:[#allocation5 + $0x30] sm:$0xf]
        %v5732 = vld [vmem:[#allocation5 + $0x38] sm:$0xf]
        %5741 = vrot.lane.b32.xlu0 %v5725, 116
        %v5742 = vpop.permute.xlu0 %5741
        %5743 = vrot.lane.b32.xlu0 %v5726, 116
        %v5744 = vpop.permute.xlu0 %5743
        %5745 = vrot.lane.b32.xlu0 %v5727, 116
        %v5746 = vpop.permute.xlu0 %5745
        %5747 = vrot.lane.b32.xlu0 %v5728, 116
        %v5748 = vpop.permute.xlu0 %5747
        %5749 = vrot.lane.b32.xlu0 %v5729, 116
        %v5750 = vpop.permute.xlu0 %5749
        %5751 = vrot.lane.b32.xlu0 %v5730, 116
        %v5752 = vpop.permute.xlu0 %5751
        %5753 = vrot.lane.b32.xlu0 %v5731, 116
        %v5754 = vpop.permute.xlu0 %5753
        %5755 = vrot.lane.b32.xlu0 %v5732, 116
        %v5756 = vpop.permute.xlu0 %5755
        %5765 = vst.msk [vmem:[#allocation6 + $0x14] sm:$0xf] %vm5524, %v5742
        %5766 = vst.msk [vmem:[#allocation6 + $0x78] sm:$0xf] %vm5524, %v5744
        %5767 = vst.msk [vmem:[#allocation6 + $0xdc] sm:$0xf] %vm5524, %v5746
        %5768 = vst.msk [vmem:[#allocation6 + $0x140] sm:$0xf] %vm5524, %v5748
        %5769 = vst.msk [vmem:[#allocation6 + $0x1a4] sm:$0xf] %vm5524, %v5750
        %5770 = vst.msk [vmem:[#allocation6 + $0x208] sm:$0xf] %vm5524, %v5752
        %5771 = vst.msk [vmem:[#allocation6 + $0x26c] sm:$0xf] %vm5524, %v5754
        %5772 = vst.msk [vmem:[#allocation6 + $0x2d0] sm:$0xf] %vm5524, %v5756
        %v5773 = vld [vmem:[#allocation5] sm:$0xf]
        %v5774 = vld [vmem:[#allocation5 + $0x8] sm:$0xf]
        %v5775 = vld [vmem:[#allocation5 + $0x10] sm:$0xf]
        %v5776 = vld [vmem:[#allocation5 + $0x18] sm:$0xf]
        %v5777 = vld [vmem:[#allocation5 + $0x20] sm:$0xf]
        %v5778 = vld [vmem:[#allocation5 + $0x28] sm:$0xf]
        %v5779 = vld [vmem:[#allocation5 + $0x30] sm:$0xf]
        %v5780 = vld [vmem:[#allocation5 + $0x38] sm:$0xf]
        %5789 = vrot.lane.b32.xlu0 %v5773, 115
        %v5790 = vpop.permute.xlu0 %5789
        %5791 = vrot.lane.b32.xlu0 %v5774, 115
        %v5792 = vpop.permute.xlu0 %5791
        %5793 = vrot.lane.b32.xlu0 %v5775, 115
        %v5794 = vpop.permute.xlu0 %5793
        %5795 = vrot.lane.b32.xlu0 %v5776, 115
        %v5796 = vpop.permute.xlu0 %5795
        %5797 = vrot.lane.b32.xlu0 %v5777, 115
        %v5798 = vpop.permute.xlu0 %5797
        %5799 = vrot.lane.b32.xlu0 %v5778, 115
        %v5800 = vpop.permute.xlu0 %5799
        %5801 = vrot.lane.b32.xlu0 %v5779, 115
        %v5802 = vpop.permute.xlu0 %5801
        %5803 = vrot.lane.b32.xlu0 %v5780, 115
        %v5804 = vpop.permute.xlu0 %5803
        %5813 = vst.msk [vmem:[#allocation6 + $0x18] sm:$0xf] %vm5524, %v5790
        %5814 = vst.msk [vmem:[#allocation6 + $0x7c] sm:$0xf] %vm5524, %v5792
        %5815 = vst.msk [vmem:[#allocation6 + $0xe0] sm:$0xf] %vm5524, %v5794
        %5816 = vst.msk [vmem:[#allocation6 + $0x144] sm:$0xf] %vm5524, %v5796
        %5817 = vst.msk [vmem:[#allocation6 + $0x1a8] sm:$0xf] %vm5524, %v5798
        %5818 = vst.msk [vmem:[#allocation6 + $0x20c] sm:$0xf] %vm5524, %v5800
        %5819 = vst.msk [vmem:[#allocation6 + $0x270] sm:$0xf] %vm5524, %v5802
        %5820 = vst.msk [vmem:[#allocation6 + $0x2d4] sm:$0xf] %vm5524, %v5804
        %v5821 = vld [vmem:[#allocation5] sm:$0xf]
        %v5822 = vld [vmem:[#allocation5 + $0x8] sm:$0xf]
        %v5823 = vld [vmem:[#allocation5 + $0x10] sm:$0xf]
        %v5824 = vld [vmem:[#allocation5 + $0x18] sm:$0xf]
        %v5825 = vld [vmem:[#allocation5 + $0x20] sm:$0xf]
        %v5826 = vld [vmem:[#allocation5 + $0x28] sm:$0xf]
        %v5827 = vld [vmem:[#allocation5 + $0x30] sm:$0xf]
        %v5828 = vld [vmem:[#allocation5 + $0x38] sm:$0xf]
        %5837 = vrot.lane.b32.xlu0 %v5821, 114
        %v5838 = vpop.permute.xlu0 %5837
        %5839 = vrot.lane.b32.xlu0 %v5822, 114
        %v5840 = vpop.permute.xlu0 %5839
        %5841 = vrot.lane.b32.xlu0 %v5823, 114
        %v5842 = vpop.permute.xlu0 %5841
        %5843 = vrot.lane.b32.xlu0 %v5824, 114
        %v5844 = vpop.permute.xlu0 %5843
        %5845 = vrot.lane.b32.xlu0 %v5825, 114
        %v5846 = vpop.permute.xlu0 %5845
        %5847 = vrot.lane.b32.xlu0 %v5826, 114
        %v5848 = vpop.permute.xlu0 %5847
        %5849 = vrot.lane.b32.xlu0 %v5827, 114
        %v5850 = vpop.permute.xlu0 %5849
        %5851 = vrot.lane.b32.xlu0 %v5828, 114
        %v5852 = vpop.permute.xlu0 %5851
        %5861 = vst.msk [vmem:[#allocation6 + $0x1c] sm:$0xf] %vm5524, %v5838
        %5862 = vst.msk [vmem:[#allocation6 + $0x80] sm:$0xf] %vm5524, %v5840
        %5863 = vst.msk [vmem:[#allocation6 + $0xe4] sm:$0xf] %vm5524, %v5842
        %5864 = vst.msk [vmem:[#allocation6 + $0x148] sm:$0xf] %vm5524, %v5844
        %5865 = vst.msk [vmem:[#allocation6 + $0x1ac] sm:$0xf] %vm5524, %v5846
        %5866 = vst.msk [vmem:[#allocation6 + $0x210] sm:$0xf] %vm5524, %v5848
        %5867 = vst.msk [vmem:[#allocation6 + $0x274] sm:$0xf] %vm5524, %v5850
        %5868 = vst.msk [vmem:[#allocation6 + $0x2d8] sm:$0xf] %vm5524, %v5852
        %v5869 = vld [vmem:[#allocation5] sm:$0xf]
        %v5870 = vld [vmem:[#allocation5 + $0x8] sm:$0xf]
        %v5871 = vld [vmem:[#allocation5 + $0x10] sm:$0xf]
        %v5872 = vld [vmem:[#allocation5 + $0x18] sm:$0xf]
        %v5873 = vld [vmem:[#allocation5 + $0x20] sm:$0xf]
        %v5874 = vld [vmem:[#allocation5 + $0x28] sm:$0xf]
        %v5875 = vld [vmem:[#allocation5 + $0x30] sm:$0xf]
        %v5876 = vld [vmem:[#allocation5 + $0x38] sm:$0xf]
        %5885 = vrot.lane.b32.xlu0 %v5869, 113
        %v5886 = vpop.permute.xlu0 %5885
        %5887 = vrot.lane.b32.xlu0 %v5870, 113
        %v5888 = vpop.permute.xlu0 %5887
        %5889 = vrot.lane.b32.xlu0 %v5871, 113
        %v5890 = vpop.permute.xlu0 %5889
        %5891 = vrot.lane.b32.xlu0 %v5872, 113
        %v5892 = vpop.permute.xlu0 %5891
        %5893 = vrot.lane.b32.xlu0 %v5873, 113
        %v5894 = vpop.permute.xlu0 %5893
        %5895 = vrot.lane.b32.xlu0 %v5874, 113
        %v5896 = vpop.permute.xlu0 %5895
        %5897 = vrot.lane.b32.xlu0 %v5875, 113
        %v5898 = vpop.permute.xlu0 %5897
        %5899 = vrot.lane.b32.xlu0 %v5876, 113
        %v5900 = vpop.permute.xlu0 %5899
        %5909 = vst.msk [vmem:[#allocation6 + $0x20] sm:$0xf] %vm5524, %v5886
        %5910 = vst.msk [vmem:[#allocation6 + $0x84] sm:$0xf] %vm5524, %v5888
        %5911 = vst.msk [vmem:[#allocation6 + $0xe8] sm:$0xf] %vm5524, %v5890
        %5912 = vst.msk [vmem:[#allocation6 + $0x14c] sm:$0xf] %vm5524, %v5892
        %5913 = vst.msk [vmem:[#allocation6 + $0x1b0] sm:$0xf] %vm5524, %v5894
        %5914 = vst.msk [vmem:[#allocation6 + $0x214] sm:$0xf] %vm5524, %v5896
        %5915 = vst.msk [vmem:[#allocation6 + $0x278] sm:$0xf] %vm5524, %v5898
        %5916 = vst.msk [vmem:[#allocation6 + $0x2dc] sm:$0xf] %vm5524, %v5900
        %v5917 = vld [vmem:[#allocation5] sm:$0xf]
        %v5918 = vld [vmem:[#allocation5 + $0x8] sm:$0xf]
        %v5919 = vld [vmem:[#allocation5 + $0x10] sm:$0xf]
        %v5920 = vld [vmem:[#allocation5 + $0x18] sm:$0xf]
        %v5921 = vld [vmem:[#allocation5 + $0x20] sm:$0xf]
        %v5922 = vld [vmem:[#allocation5 + $0x28] sm:$0xf]
        %v5923 = vld [vmem:[#allocation5 + $0x30] sm:$0xf]
        %v5924 = vld [vmem:[#allocation5 + $0x38] sm:$0xf]
        %5933 = vrot.lane.b32.xlu0 %v5917, 112
        %v5934 = vpop.permute.xlu0 %5933
        %5935 = vrot.lane.b32.xlu0 %v5918, 112
        %v5936 = vpop.permute.xlu0 %5935
        %5937 = vrot.lane.b32.xlu0 %v5919, 112
        %v5938 = vpop.permute.xlu0 %5937
        %5939 = vrot.lane.b32.xlu0 %v5920, 112
        %v5940 = vpop.permute.xlu0 %5939
        %5941 = vrot.lane.b32.xlu0 %v5921, 112
        %v5942 = vpop.permute.xlu0 %5941
        %5943 = vrot.lane.b32.xlu0 %v5922, 112
        %v5944 = vpop.permute.xlu0 %5943
        %5945 = vrot.lane.b32.xlu0 %v5923, 112
        %v5946 = vpop.permute.xlu0 %5945
        %5947 = vrot.lane.b32.xlu0 %v5924, 112
        %v5948 = vpop.permute.xlu0 %5947
        %5957 = vst.msk [vmem:[#allocation6 + $0x24] sm:$0xf] %vm5524, %v5934
        %5958 = vst.msk [vmem:[#allocation6 + $0x88] sm:$0xf] %vm5524, %v5936
        %5959 = vst.msk [vmem:[#allocation6 + $0xec] sm:$0xf] %vm5524, %v5938
        %5960 = vst.msk [vmem:[#allocation6 + $0x150] sm:$0xf] %vm5524, %v5940
        %5961 = vst.msk [vmem:[#allocation6 + $0x1b4] sm:$0xf] %vm5524, %v5942
        %5962 = vst.msk [vmem:[#allocation6 + $0x218] sm:$0xf] %vm5524, %v5944
        %5963 = vst.msk [vmem:[#allocation6 + $0x27c] sm:$0xf] %vm5524, %v5946
        %5964 = vst.msk [vmem:[#allocation6 + $0x2e0] sm:$0xf] %vm5524, %v5948
        %v5965 = vld [vmem:[#allocation5] sm:$0xf]
        %v5966 = vld [vmem:[#allocation5 + $0x8] sm:$0xf]
        %v5967 = vld [vmem:[#allocation5 + $0x10] sm:$0xf]
        %v5968 = vld [vmem:[#allocation5 + $0x18] sm:$0xf]
        %v5969 = vld [vmem:[#allocation5 + $0x20] sm:$0xf]
        %v5970 = vld [vmem:[#allocation5 + $0x28] sm:$0xf]
        %v5971 = vld [vmem:[#allocation5 + $0x30] sm:$0xf]
        %v5972 = vld [vmem:[#allocation5 + $0x38] sm:$0xf]
        %5981 = vrot.lane.b32.xlu0 %v5965, 104
        %v5982 = vpop.permute.xlu0 %5981
        %5983 = vrot.lane.b32.xlu0 %v5966, 104
        %v5984 = vpop.permute.xlu0 %5983
        %5985 = vrot.lane.b32.xlu0 %v5967, 104
        %v5986 = vpop.permute.xlu0 %5985
        %5987 = vrot.lane.b32.xlu0 %v5968, 104
        %v5988 = vpop.permute.xlu0 %5987
        %5989 = vrot.lane.b32.xlu0 %v5969, 104
        %v5990 = vpop.permute.xlu0 %5989
        %5991 = vrot.lane.b32.xlu0 %v5970, 104
        %v5992 = vpop.permute.xlu0 %5991
        %5993 = vrot.lane.b32.xlu0 %v5971, 104
        %v5994 = vpop.permute.xlu0 %5993
        %5995 = vrot.lane.b32.xlu0 %v5972, 104
        %v5996 = vpop.permute.xlu0 %5995
        %6005 = vst.msk [vmem:[#allocation6 + $0x28] sm:$0xf] %vm5524, %v5982
        %6006 = vst.msk [vmem:[#allocation6 + $0x8c] sm:$0xf] %vm5524, %v5984
        %6007 = vst.msk [vmem:[#allocation6 + $0xf0] sm:$0xf] %vm5524, %v5986
        %6008 = vst.msk [vmem:[#allocation6 + $0x154] sm:$0xf] %vm5524, %v5988
        %6009 = vst.msk [vmem:[#allocation6 + $0x1b8] sm:$0xf] %vm5524, %v5990
        %6010 = vst.msk [vmem:[#allocation6 + $0x21c] sm:$0xf] %vm5524, %v5992
        %6011 = vst.msk [vmem:[#allocation6 + $0x280] sm:$0xf] %vm5524, %v5994
        %6012 = vst.msk [vmem:[#allocation6 + $0x2e4] sm:$0xf] %vm5524, %v5996
        %v6013 = vld [vmem:[#allocation5] sm:$0xf]
        %v6014 = vld [vmem:[#allocation5 + $0x8] sm:$0xf]
        %v6015 = vld [vmem:[#allocation5 + $0x10] sm:$0xf]
        %v6016 = vld [vmem:[#allocation5 + $0x18] sm:$0xf]
        %v6017 = vld [vmem:[#allocation5 + $0x20] sm:$0xf]
        %v6018 = vld [vmem:[#allocation5 + $0x28] sm:$0xf]
        %v6019 = vld [vmem:[#allocation5 + $0x30] sm:$0xf]
        %v6020 = vld [vmem:[#allocation5 + $0x38] sm:$0xf]
        %6029 = vrot.lane.b32.xlu0 %v6013, 103
        %v6030 = vpop.permute.xlu0 %6029
        %6031 = vrot.lane.b32.xlu0 %v6014, 103
        %v6032 = vpop.permute.xlu0 %6031
        %6033 = vrot.lane.b32.xlu0 %v6015, 103
        %v6034 = vpop.permute.xlu0 %6033
        %6035 = vrot.lane.b32.xlu0 %v6016, 103
        %v6036 = vpop.permute.xlu0 %6035
        %6037 = vrot.lane.b32.xlu0 %v6017, 103
        %v6038 = vpop.permute.xlu0 %6037
        %6039 = vrot.lane.b32.xlu0 %v6018, 103
        %v6040 = vpop.permute.xlu0 %6039
        %6041 = vrot.lane.b32.xlu0 %v6019, 103
        %v6042 = vpop.permute.xlu0 %6041
        %6043 = vrot.lane.b32.xlu0 %v6020, 103
        %v6044 = vpop.permute.xlu0 %6043
        %6053 = vst.msk [vmem:[#allocation6 + $0x2c] sm:$0xf] %vm5524, %v6030
        %6054 = vst.msk [vmem:[#allocation6 + $0x90] sm:$0xf] %vm5524, %v6032
        %6055 = vst.msk [vmem:[#allocation6 + $0xf4] sm:$0xf] %vm5524, %v6034
        %6056 = vst.msk [vmem:[#allocation6 + $0x158] sm:$0xf] %vm5524, %v6036
        %6057 = vst.msk [vmem:[#allocation6 + $0x1bc] sm:$0xf] %vm5524, %v6038
        %6058 = vst.msk [vmem:[#allocation6 + $0x220] sm:$0xf] %vm5524, %v6040
        %6059 = vst.msk [vmem:[#allocation6 + $0x284] sm:$0xf] %vm5524, %v6042
        %6060 = vst.msk [vmem:[#allocation6 + $0x2e8] sm:$0xf] %vm5524, %v6044
        %v6061 = vld [vmem:[#allocation5] sm:$0xf]
        %v6062 = vld [vmem:[#allocation5 + $0x8] sm:$0xf]
        %v6063 = vld [vmem:[#allocation5 + $0x10] sm:$0xf]
        %v6064 = vld [vmem:[#allocation5 + $0x18] sm:$0xf]
        %v6065 = vld [vmem:[#allocation5 + $0x20] sm:$0xf]
        %v6066 = vld [vmem:[#allocation5 + $0x28] sm:$0xf]
        %v6067 = vld [vmem:[#allocation5 + $0x30] sm:$0xf]
        %v6068 = vld [vmem:[#allocation5 + $0x38] sm:$0xf]
        %6077 = vrot.lane.b32.xlu0 %v6061, 102
        %v6078 = vpop.permute.xlu0 %6077
        %6079 = vrot.lane.b32.xlu0 %v6062, 102
        %v6080 = vpop.permute.xlu0 %6079
        %6081 = vrot.lane.b32.xlu0 %v6063, 102
        %v6082 = vpop.permute.xlu0 %6081
        %6083 = vrot.lane.b32.xlu0 %v6064, 102
        %v6084 = vpop.permute.xlu0 %6083
        %6085 = vrot.lane.b32.xlu0 %v6065, 102
        %v6086 = vpop.permute.xlu0 %6085
        %6087 = vrot.lane.b32.xlu0 %v6066, 102
        %v6088 = vpop.permute.xlu0 %6087
        %6089 = vrot.lane.b32.xlu0 %v6067, 102
        %v6090 = vpop.permute.xlu0 %6089
        %6091 = vrot.lane.b32.xlu0 %v6068, 102
        %v6092 = vpop.permute.xlu0 %6091
        %6101 = vst.msk [vmem:[#allocation6 + $0x30] sm:$0xf] %vm5524, %v6078
        %6102 = vst.msk [vmem:[#allocation6 + $0x94] sm:$0xf] %vm5524, %v6080
        %6103 = vst.msk [vmem:[#allocation6 + $0xf8] sm:$0xf] %vm5524, %v6082
        %6104 = vst.msk [vmem:[#allocation6 + $0x15c] sm:$0xf] %vm5524, %v6084
        %6105 = vst.msk [vmem:[#allocation6 + $0x1c0] sm:$0xf] %vm5524, %v6086
        %6106 = vst.msk [vmem:[#allocation6 + $0x224] sm:$0xf] %vm5524, %v6088
        %6107 = vst.msk [vmem:[#allocation6 + $0x288] sm:$0xf] %vm5524, %v6090
        %6108 = vst.msk [vmem:[#allocation6 + $0x2ec] sm:$0xf] %vm5524, %v6092
        %v6109 = vld [vmem:[#allocation5] sm:$0xf]
        %v6110 = vld [vmem:[#allocation5 + $0x8] sm:$0xf]
        %v6111 = vld [vmem:[#allocation5 + $0x10] sm:$0xf]
        %v6112 = vld [vmem:[#allocation5 + $0x18] sm:$0xf]
        %v6113 = vld [vmem:[#allocation5 + $0x20] sm:$0xf]
        %v6114 = vld [vmem:[#allocation5 + $0x28] sm:$0xf]
        %v6115 = vld [vmem:[#allocation5 + $0x30] sm:$0xf]
        %v6116 = vld [vmem:[#allocation5 + $0x38] sm:$0xf]
        %6125 = vrot.lane.b32.xlu0 %v6109, 101
        %v6126 = vpop.permute.xlu0 %6125
        %6127 = vrot.lane.b32.xlu0 %v6110, 101
        %v6128 = vpop.permute.xlu0 %6127
        %6129 = vrot.lane.b32.xlu0 %v6111, 101
        %v6130 = vpop.permute.xlu0 %6129
        %6131 = vrot.lane.b32.xlu0 %v6112, 101
        %v6132 = vpop.permute.xlu0 %6131
        %6133 = vrot.lane.b32.xlu0 %v6113, 101
        %v6134 = vpop.permute.xlu0 %6133
        %6135 = vrot.lane.b32.xlu0 %v6114, 101
        %v6136 = vpop.permute.xlu0 %6135
        %6137 = vrot.lane.b32.xlu0 %v6115, 101
        %v6138 = vpop.permute.xlu0 %6137
        %6139 = vrot.lane.b32.xlu0 %v6116, 101
        %v6140 = vpop.permute.xlu0 %6139
        %6149 = vst.msk [vmem:[#allocation6 + $0x34] sm:$0xf] %vm5524, %v6126
        %6150 = vst.msk [vmem:[#allocation6 + $0x98] sm:$0xf] %vm5524, %v6128
        %6151 = vst.msk [vmem:[#allocation6 + $0xfc] sm:$0xf] %vm5524, %v6130
        %6152 = vst.msk [vmem:[#allocation6 + $0x160] sm:$0xf] %vm5524, %v6132
        %6153 = vst.msk [vmem:[#allocation6 + $0x1c4] sm:$0xf] %vm5524, %v6134
        %6154 = vst.msk [vmem:[#allocation6 + $0x228] sm:$0xf] %vm5524, %v6136
        %6155 = vst.msk [vmem:[#allocation6 + $0x28c] sm:$0xf] %vm5524, %v6138
        %6156 = vst.msk [vmem:[#allocation6 + $0x2f0] sm:$0xf] %vm5524, %v6140
        %v6157 = vld [vmem:[#allocation5] sm:$0xf]
        %v6158 = vld [vmem:[#allocation5 + $0x8] sm:$0xf]
        %v6159 = vld [vmem:[#allocation5 + $0x10] sm:$0xf]
        %v6160 = vld [vmem:[#allocation5 + $0x18] sm:$0xf]
        %v6161 = vld [vmem:[#allocation5 + $0x20] sm:$0xf]
        %v6162 = vld [vmem:[#allocation5 + $0x28] sm:$0xf]
        %v6163 = vld [vmem:[#allocation5 + $0x30] sm:$0xf]
        %v6164 = vld [vmem:[#allocation5 + $0x38] sm:$0xf]
        %6173 = vrot.lane.b32.xlu0 %v6157, 100
        %v6174 = vpop.permute.xlu0 %6173
        %6175 = vrot.lane.b32.xlu0 %v6158, 100
        %v6176 = vpop.permute.xlu0 %6175
        %6177 = vrot.lane.b32.xlu0 %v6159, 100
        %v6178 = vpop.permute.xlu0 %6177
        %6179 = vrot.lane.b32.xlu0 %v6160, 100
        %v6180 = vpop.permute.xlu0 %6179
        %6181 = vrot.lane.b32.xlu0 %v6161, 100
        %v6182 = vpop.permute.xlu0 %6181
        %6183 = vrot.lane.b32.xlu0 %v6162, 100
        %v6184 = vpop.permute.xlu0 %6183
        %6185 = vrot.lane.b32.xlu0 %v6163, 100
        %v6186 = vpop.permute.xlu0 %6185
        %6187 = vrot.lane.b32.xlu0 %v6164, 100
        %v6188 = vpop.permute.xlu0 %6187
        %6197 = vst.msk [vmem:[#allocation6 + $0x38] sm:$0xf] %vm5524, %v6174
        %6198 = vst.msk [vmem:[#allocation6 + $0x9c] sm:$0xf] %vm5524, %v6176
        %6199 = vst.msk [vmem:[#allocation6 + $0x100] sm:$0xf] %vm5524, %v6178
        %6200 = vst.msk [vmem:[#allocation6 + $0x164] sm:$0xf] %vm5524, %v6180
        %6201 = vst.msk [vmem:[#allocation6 + $0x1c8] sm:$0xf] %vm5524, %v6182
        %6202 = vst.msk [vmem:[#allocation6 + $0x22c] sm:$0xf] %vm5524, %v6184
        %6203 = vst.msk [vmem:[#allocation6 + $0x290] sm:$0xf] %vm5524, %v6186
        %6204 = vst.msk [vmem:[#allocation6 + $0x2f4] sm:$0xf] %vm5524, %v6188
        %v6205 = vld [vmem:[#allocation5] sm:$0xff]
        %v6206 = vld [vmem:[#allocation5 + $0x8] sm:$0xff]
        %v6207 = vld [vmem:[#allocation5 + $0x10] sm:$0xff]
        %v6208 = vld [vmem:[#allocation5 + $0x18] sm:$0xff]
        %v6209 = vld [vmem:[#allocation5 + $0x20] sm:$0xff]
        %v6210 = vld [vmem:[#allocation5 + $0x28] sm:$0xff]
        %v6211 = vld [vmem:[#allocation5 + $0x30] sm:$0xff]
        %v6212 = vld [vmem:[#allocation5 + $0x38] sm:$0xff]
        %6221 = vrot.lane.b32.xlu0 %v6205, 92
        %v6222 = vpop.permute.xlu0 %6221
        %6223 = vrot.lane.b32.xlu0 %v6206, 92
        %v6224 = vpop.permute.xlu0 %6223
        %6225 = vrot.lane.b32.xlu0 %v6207, 92
        %v6226 = vpop.permute.xlu0 %6225
        %6227 = vrot.lane.b32.xlu0 %v6208, 92
        %v6228 = vpop.permute.xlu0 %6227
        %6229 = vrot.lane.b32.xlu0 %v6209, 92
        %v6230 = vpop.permute.xlu0 %6229
        %6231 = vrot.lane.b32.xlu0 %v6210, 92
        %v6232 = vpop.permute.xlu0 %6231
        %6233 = vrot.lane.b32.xlu0 %v6211, 92
        %v6234 = vpop.permute.xlu0 %6233
        %6235 = vrot.lane.b32.xlu0 %v6212, 92
        %v6236 = vpop.permute.xlu0 %6235
        %v6237 = vrot.slane %v6222, 4
        %v6238 = vrot.slane %v6224, 4
        %v6239 = vrot.slane %v6226, 4
        %v6240 = vrot.slane %v6228, 4
        %v6241 = vrot.slane %v6230, 4
        %v6242 = vrot.slane %v6232, 4
        %v6243 = vrot.slane %v6234, 4
        %v6244 = vrot.slane %v6236, 4
        %vm6245 = vcmask 752640
        %v6246 = vsel %vm6245, %v6222, %v6237
        %v6247 = vsel %vm6245, %v6224, %v6238
        %v6248 = vsel %vm6245, %v6226, %v6239
        %v6249 = vsel %vm6245, %v6228, %v6240
        %v6250 = vsel %vm6245, %v6230, %v6241
        %v6251 = vsel %vm6245, %v6232, %v6242
        %v6252 = vsel %vm6245, %v6234, %v6243
        %v6253 = vsel %vm6245, %v6236, %v6244
        %6262 = vst.msk [vmem:[#allocation6 + $0x3c] sm:$0xf] %vm5524, %v6246
        %6263 = vst.msk [vmem:[#allocation6 + $0xa0] sm:$0xf] %vm5524, %v6247
        %6264 = vst.msk [vmem:[#allocation6 + $0x104] sm:$0xf] %vm5524, %v6248
        %6265 = vst.msk [vmem:[#allocation6 + $0x168] sm:$0xf] %vm5524, %v6249
        %6266 = vst.msk [vmem:[#allocation6 + $0x1cc] sm:$0xf] %vm5524, %v6250
        %6267 = vst.msk [vmem:[#allocation6 + $0x230] sm:$0xf] %vm5524, %v6251
        %6268 = vst.msk [vmem:[#allocation6 + $0x294] sm:$0xf] %vm5524, %v6252
        %6269 = vst.msk [vmem:[#allocation6 + $0x2f8] sm:$0xf] %vm5524, %v6253
        %v6270 = vld [vmem:[#allocation5] sm:$0xff]
        %v6271 = vld [vmem:[#allocation5 + $0x8] sm:$0xff]
        %v6272 = vld [vmem:[#allocation5 + $0x10] sm:$0xff]
        %v6273 = vld [vmem:[#allocation5 + $0x18] sm:$0xff]
        %v6274 = vld [vmem:[#allocation5 + $0x20] sm:$0xff]
        %v6275 = vld [vmem:[#allocation5 + $0x28] sm:$0xff]
        %v6276 = vld [vmem:[#allocation5 + $0x30] sm:$0xff]
        %v6277 = vld [vmem:[#allocation5 + $0x38] sm:$0xff]
        %6286 = vrot.lane.b32.xlu0 %v6270, 91
        %v6287 = vpop.permute.xlu0 %6286
        %6288 = vrot.lane.b32.xlu0 %v6271, 91
        %v6289 = vpop.permute.xlu0 %6288
        %6290 = vrot.lane.b32.xlu0 %v6272, 91
        %v6291 = vpop.permute.xlu0 %6290
        %6292 = vrot.lane.b32.xlu0 %v6273, 91
        %v6293 = vpop.permute.xlu0 %6292
        %6294 = vrot.lane.b32.xlu0 %v6274, 91
        %v6295 = vpop.permute.xlu0 %6294
        %6296 = vrot.lane.b32.xlu0 %v6275, 91
        %v6297 = vpop.permute.xlu0 %6296
        %6298 = vrot.lane.b32.xlu0 %v6276, 91
        %v6299 = vpop.permute.xlu0 %6298
        %6300 = vrot.lane.b32.xlu0 %v6277, 91
        %v6301 = vpop.permute.xlu0 %6300
        %v6302 = vrot.slane %v6287, 4
        %v6303 = vrot.slane %v6289, 4
        %v6304 = vrot.slane %v6291, 4
        %v6305 = vrot.slane %v6293, 4
        %v6306 = vrot.slane %v6295, 4
        %v6307 = vrot.slane %v6297, 4
        %v6308 = vrot.slane %v6299, 4
        %v6309 = vrot.slane %v6301, 4
        %vm6310 = vcmask 744448
        %v6311 = vsel %vm6310, %v6287, %v6302
        %v6312 = vsel %vm6310, %v6289, %v6303
        %v6313 = vsel %vm6310, %v6291, %v6304
        %v6314 = vsel %vm6310, %v6293, %v6305
        %v6315 = vsel %vm6310, %v6295, %v6306
        %v6316 = vsel %vm6310, %v6297, %v6307
        %v6317 = vsel %vm6310, %v6299, %v6308
        %v6318 = vsel %vm6310, %v6301, %v6309
        %6327 = vst.msk [vmem:[#allocation6 + $0x40] sm:$0xf] %vm5524, %v6311
        %6328 = vst.msk [vmem:[#allocation6 + $0xa4] sm:$0xf] %vm5524, %v6312
        %6329 = vst.msk [vmem:[#allocation6 + $0x108] sm:$0xf] %vm5524, %v6313
        %6330 = vst.msk [vmem:[#allocation6 + $0x16c] sm:$0xf] %vm5524, %v6314
        %6331 = vst.msk [vmem:[#allocation6 + $0x1d0] sm:$0xf] %vm5524, %v6315
        %6332 = vst.msk [vmem:[#allocation6 + $0x234] sm:$0xf] %vm5524, %v6316
        %6333 = vst.msk [vmem:[#allocation6 + $0x298] sm:$0xf] %vm5524, %v6317
        %6334 = vst.msk [vmem:[#allocation6 + $0x2fc] sm:$0xf] %vm5524, %v6318
        %v6335 = vld [vmem:[#allocation5] sm:$0xff]
        %v6336 = vld [vmem:[#allocation5 + $0x8] sm:$0xff]
        %v6337 = vld [vmem:[#allocation5 + $0x10] sm:$0xff]
        %v6338 = vld [vmem:[#allocation5 + $0x18] sm:$0xff]
        %v6339 = vld [vmem:[#allocation5 + $0x20] sm:$0xff]
        %v6340 = vld [vmem:[#allocation5 + $0x28] sm:$0xff]
        %v6341 = vld [vmem:[#allocation5 + $0x30] sm:$0xff]
        %v6342 = vld [vmem:[#allocation5 + $0x38] sm:$0xff]
        %6351 = vrot.lane.b32.xlu0 %v6335, 90
        %v6352 = vpop.permute.xlu0 %6351
        %6353 = vrot.lane.b32.xlu0 %v6336, 90
        %v6354 = vpop.permute.xlu0 %6353
        %6355 = vrot.lane.b32.xlu0 %v6337, 90
        %v6356 = vpop.permute.xlu0 %6355
        %6357 = vrot.lane.b32.xlu0 %v6338, 90
        %v6358 = vpop.permute.xlu0 %6357
        %6359 = vrot.lane.b32.xlu0 %v6339, 90
        %v6360 = vpop.permute.xlu0 %6359
        %6361 = vrot.lane.b32.xlu0 %v6340, 90
        %v6362 = vpop.permute.xlu0 %6361
        %6363 = vrot.lane.b32.xlu0 %v6341, 90
        %v6364 = vpop.permute.xlu0 %6363
        %6365 = vrot.lane.b32.xlu0 %v6342, 90
        %v6366 = vpop.permute.xlu0 %6365
        %v6367 = vrot.slane %v6352, 4
        %v6368 = vrot.slane %v6354, 4
        %v6369 = vrot.slane %v6356, 4
        %v6370 = vrot.slane %v6358, 4
        %v6371 = vrot.slane %v6360, 4
        %v6372 = vrot.slane %v6362, 4
        %v6373 = vrot.slane %v6364, 4
        %v6374 = vrot.slane %v6366, 4
        %vm6375 = vcmask 736256
        %v6376 = vsel %vm6375, %v6352, %v6367
        %v6377 = vsel %vm6375, %v6354, %v6368
        %v6378 = vsel %vm6375, %v6356, %v6369
        %v6379 = vsel %vm6375, %v6358, %v6370
        %v6380 = vsel %vm6375, %v6360, %v6371
        %v6381 = vsel %vm6375, %v6362, %v6372
        %v6382 = vsel %vm6375, %v6364, %v6373
        %v6383 = vsel %vm6375, %v6366, %v6374
        %6392 = vst.msk [vmem:[#allocation6 + $0x44] sm:$0xf] %vm5524, %v6376
        %6393 = vst.msk [vmem:[#allocation6 + $0xa8] sm:$0xf] %vm5524, %v6377
        %6394 = vst.msk [vmem:[#allocation6 + $0x10c] sm:$0xf] %vm5524, %v6378
        %6395 = vst.msk [vmem:[#allocation6 + $0x170] sm:$0xf] %vm5524, %v6379
        %6396 = vst.msk [vmem:[#allocation6 + $0x1d4] sm:$0xf] %vm5524, %v6380
        %6397 = vst.msk [vmem:[#allocation6 + $0x238] sm:$0xf] %vm5524, %v6381
        %6398 = vst.msk [vmem:[#allocation6 + $0x29c] sm:$0xf] %vm5524, %v6382
        %6399 = vst.msk [vmem:[#allocation6 + $0x300] sm:$0xf] %vm5524, %v6383
        %v6400 = vld [vmem:[#allocation5] sm:$0xff]
        %v6401 = vld [vmem:[#allocation5 + $0x8] sm:$0xff]
        %v6402 = vld [vmem:[#allocation5 + $0x10] sm:$0xff]
        %v6403 = vld [vmem:[#allocation5 + $0x18] sm:$0xff]
        %v6404 = vld [vmem:[#allocation5 + $0x20] sm:$0xff]
        %v6405 = vld [vmem:[#allocation5 + $0x28] sm:$0xff]
        %v6406 = vld [vmem:[#allocation5 + $0x30] sm:$0xff]
        %v6407 = vld [vmem:[#allocation5 + $0x38] sm:$0xff]
        %6416 = vrot.lane.b32.xlu0 %v6400, 89
        %v6417 = vpop.permute.xlu0 %6416
        %6418 = vrot.lane.b32.xlu0 %v6401, 89
        %v6419 = vpop.permute.xlu0 %6418
        %6420 = vrot.lane.b32.xlu0 %v6402, 89
        %v6421 = vpop.permute.xlu0 %6420
        %6422 = vrot.lane.b32.xlu0 %v6403, 89
        %v6423 = vpop.permute.xlu0 %6422
        %6424 = vrot.lane.b32.xlu0 %v6404, 89
        %v6425 = vpop.permute.xlu0 %6424
        %6426 = vrot.lane.b32.xlu0 %v6405, 89
        %v6427 = vpop.permute.xlu0 %6426
        %6428 = vrot.lane.b32.xlu0 %v6406, 89
        %v6429 = vpop.permute.xlu0 %6428
        %6430 = vrot.lane.b32.xlu0 %v6407, 89
        %v6431 = vpop.permute.xlu0 %6430
        %v6432 = vrot.slane %v6417, 4
        %v6433 = vrot.slane %v6419, 4
        %v6434 = vrot.slane %v6421, 4
        %v6435 = vrot.slane %v6423, 4
        %v6436 = vrot.slane %v6425, 4
        %v6437 = vrot.slane %v6427, 4
        %v6438 = vrot.slane %v6429, 4
        %v6439 = vrot.slane %v6431, 4
        %vm6440 = vcmask 728064
        %v6441 = vsel %vm6440, %v6417, %v6432
        %v6442 = vsel %vm6440, %v6419, %v6433
        %v6443 = vsel %vm6440, %v6421, %v6434
        %v6444 = vsel %vm6440, %v6423, %v6435
        %v6445 = vsel %vm6440, %v6425, %v6436
        %v6446 = vsel %vm6440, %v6427, %v6437
        %v6447 = vsel %vm6440, %v6429, %v6438
        %v6448 = vsel %vm6440, %v6431, %v6439
        %6457 = vst.msk [vmem:[#allocation6 + $0x48] sm:$0xf] %vm5524, %v6441
        %6458 = vst.msk [vmem:[#allocation6 + $0xac] sm:$0xf] %vm5524, %v6442
        %6459 = vst.msk [vmem:[#allocation6 + $0x110] sm:$0xf] %vm5524, %v6443
        %6460 = vst.msk [vmem:[#allocation6 + $0x174] sm:$0xf] %vm5524, %v6444
        %6461 = vst.msk [vmem:[#allocation6 + $0x1d8] sm:$0xf] %vm5524, %v6445
        %6462 = vst.msk [vmem:[#allocation6 + $0x23c] sm:$0xf] %vm5524, %v6446
        %6463 = vst.msk [vmem:[#allocation6 + $0x2a0] sm:$0xf] %vm5524, %v6447
        %6464 = vst.msk [vmem:[#allocation6 + $0x304] sm:$0xf] %vm5524, %v6448
        %v6465 = vld [vmem:[#allocation5] sm:$0xff]
        %v6466 = vld [vmem:[#allocation5 + $0x8] sm:$0xff]
        %v6467 = vld [vmem:[#allocation5 + $0x10] sm:$0xff]
        %v6468 = vld [vmem:[#allocation5 + $0x18] sm:$0xff]
        %v6469 = vld [vmem:[#allocation5 + $0x20] sm:$0xff]
        %v6470 = vld [vmem:[#allocation5 + $0x28] sm:$0xff]
        %v6471 = vld [vmem:[#allocation5 + $0x30] sm:$0xff]
        %v6472 = vld [vmem:[#allocation5 + $0x38] sm:$0xff]
        %6481 = vrot.lane.b32.xlu0 %v6465, 88
        %v6482 = vpop.permute.xlu0 %6481
        %6483 = vrot.lane.b32.xlu0 %v6466, 88
        %v6484 = vpop.permute.xlu0 %6483
        %6485 = vrot.lane.b32.xlu0 %v6467, 88
        %v6486 = vpop.permute.xlu0 %6485
        %6487 = vrot.lane.b32.xlu0 %v6468, 88
        %v6488 = vpop.permute.xlu0 %6487
        %6489 = vrot.lane.b32.xlu0 %v6469, 88
        %v6490 = vpop.permute.xlu0 %6489
        %6491 = vrot.lane.b32.xlu0 %v6470, 88
        %v6492 = vpop.permute.xlu0 %6491
        %6493 = vrot.lane.b32.xlu0 %v6471, 88
        %v6494 = vpop.permute.xlu0 %6493
        %6495 = vrot.lane.b32.xlu0 %v6472, 88
        %v6496 = vpop.permute.xlu0 %6495
        %v6497 = vrot.slane %v6482, 4
        %v6498 = vrot.slane %v6484, 4
        %v6499 = vrot.slane %v6486, 4
        %v6500 = vrot.slane %v6488, 4
        %v6501 = vrot.slane %v6490, 4
        %v6502 = vrot.slane %v6492, 4
        %v6503 = vrot.slane %v6494, 4
        %v6504 = vrot.slane %v6496, 4
        %vm6505 = vcmask 719872
        %v6506 = vsel %vm6505, %v6482, %v6497
        %v6507 = vsel %vm6505, %v6484, %v6498
        %v6508 = vsel %vm6505, %v6486, %v6499
        %v6509 = vsel %vm6505, %v6488, %v6500
        %v6510 = vsel %vm6505, %v6490, %v6501
        %v6511 = vsel %vm6505, %v6492, %v6502
        %v6512 = vsel %vm6505, %v6494, %v6503
        %v6513 = vsel %vm6505, %v6496, %v6504
        %6522 = vst.msk [vmem:[#allocation6 + $0x4c] sm:$0xf] %vm5524, %v6506
        %6523 = vst.msk [vmem:[#allocation6 + $0xb0] sm:$0xf] %vm5524, %v6507
        %6524 = vst.msk [vmem:[#allocation6 + $0x114] sm:$0xf] %vm5524, %v6508
        %6525 = vst.msk [vmem:[#allocation6 + $0x178] sm:$0xf] %vm5524, %v6509
        %6526 = vst.msk [vmem:[#allocation6 + $0x1dc] sm:$0xf] %vm5524, %v6510
        %6527 = vst.msk [vmem:[#allocation6 + $0x240] sm:$0xf] %vm5524, %v6511
        %6528 = vst.msk [vmem:[#allocation6 + $0x2a4] sm:$0xf] %vm5524, %v6512
        %6529 = vst.msk [vmem:[#allocation6 + $0x308] sm:$0xf] %vm5524, %v6513
        %v6530 = vld [vmem:[#allocation5] sm:$0xff]
        %v6531 = vld [vmem:[#allocation5 + $0x8] sm:$0xff]
        %v6532 = vld [vmem:[#allocation5 + $0x10] sm:$0xff]
        %v6533 = vld [vmem:[#allocation5 + $0x18] sm:$0xff]
        %v6534 = vld [vmem:[#allocation5 + $0x20] sm:$0xff]
        %v6535 = vld [vmem:[#allocation5 + $0x28] sm:$0xff]
        %v6536 = vld [vmem:[#allocation5 + $0x30] sm:$0xff]
        %v6537 = vld [vmem:[#allocation5 + $0x38] sm:$0xff]
        %6546 = vrot.lane.b32.xlu0 %v6530, 80
        %v6547 = vpop.permute.xlu0 %6546
        %6548 = vrot.lane.b32.xlu0 %v6531, 80
        %v6549 = vpop.permute.xlu0 %6548
        %6550 = vrot.lane.b32.xlu0 %v6532, 80
        %v6551 = vpop.permute.xlu0 %6550
        %6552 = vrot.lane.b32.xlu0 %v6533, 80
        %v6553 = vpop.permute.xlu0 %6552
        %6554 = vrot.lane.b32.xlu0 %v6534, 80
        %v6555 = vpop.permute.xlu0 %6554
        %6556 = vrot.lane.b32.xlu0 %v6535, 80
        %v6557 = vpop.permute.xlu0 %6556
        %6558 = vrot.lane.b32.xlu0 %v6536, 80
        %v6559 = vpop.permute.xlu0 %6558
        %6560 = vrot.lane.b32.xlu0 %v6537, 80
        %v6561 = vpop.permute.xlu0 %6560
        %v6562 = vrot.slane %v6547, 4
        %v6563 = vrot.slane %v6549, 4
        %v6564 = vrot.slane %v6551, 4
        %v6565 = vrot.slane %v6553, 4
        %v6566 = vrot.slane %v6555, 4
        %v6567 = vrot.slane %v6557, 4
        %v6568 = vrot.slane %v6559, 4
        %v6569 = vrot.slane %v6561, 4
        %vm6570 = vcmask 654336
        %v6571 = vsel %vm6570, %v6547, %v6562
        %v6572 = vsel %vm6570, %v6549, %v6563
        %v6573 = vsel %vm6570, %v6551, %v6564
        %v6574 = vsel %vm6570, %v6553, %v6565
        %v6575 = vsel %vm6570, %v6555, %v6566
        %v6576 = vsel %vm6570, %v6557, %v6567
        %v6577 = vsel %vm6570, %v6559, %v6568
        %v6578 = vsel %vm6570, %v6561, %v6569
        %6587 = vst.msk [vmem:[#allocation6 + $0x50] sm:$0xf] %vm5524, %v6571
        %6588 = vst.msk [vmem:[#allocation6 + $0xb4] sm:$0xf] %vm5524, %v6572
        %6589 = vst.msk [vmem:[#allocation6 + $0x118] sm:$0xf] %vm5524, %v6573
        %6590 = vst.msk [vmem:[#allocation6 + $0x17c] sm:$0xf] %vm5524, %v6574
        %6591 = vst.msk [vmem:[#allocation6 + $0x1e0] sm:$0xf] %vm5524, %v6575
        %6592 = vst.msk [vmem:[#allocation6 + $0x244] sm:$0xf] %vm5524, %v6576
        %6593 = vst.msk [vmem:[#allocation6 + $0x2a8] sm:$0xf] %vm5524, %v6577
        %6594 = vst.msk [vmem:[#allocation6 + $0x30c] sm:$0xf] %vm5524, %v6578
        %v6595 = vld [vmem:[#allocation5] sm:$0xff]
        %v6596 = vld [vmem:[#allocation5 + $0x8] sm:$0xff]
        %v6597 = vld [vmem:[#allocation5 + $0x10] sm:$0xff]
        %v6598 = vld [vmem:[#allocation5 + $0x18] sm:$0xff]
        %v6599 = vld [vmem:[#allocation5 + $0x20] sm:$0xff]
        %v6600 = vld [vmem:[#allocation5 + $0x28] sm:$0xff]
        %v6601 = vld [vmem:[#allocation5 + $0x30] sm:$0xff]
        %v6602 = vld [vmem:[#allocation5 + $0x38] sm:$0xff]
        %6611 = vrot.lane.b32.xlu0 %v6595, 79
        %v6612 = vpop.permute.xlu0 %6611
        %6613 = vrot.lane.b32.xlu0 %v6596, 79
        %v6614 = vpop.permute.xlu0 %6613
        %6615 = vrot.lane.b32.xlu0 %v6597, 79
        %v6616 = vpop.permute.xlu0 %6615
        %6617 = vrot.lane.b32.xlu0 %v6598, 79
        %v6618 = vpop.permute.xlu0 %6617
        %6619 = vrot.lane.b32.xlu0 %v6599, 79
        %v6620 = vpop.permute.xlu0 %6619
        %6621 = vrot.lane.b32.xlu0 %v6600, 79
        %v6622 = vpop.permute.xlu0 %6621
        %6623 = vrot.lane.b32.xlu0 %v6601, 79
        %v6624 = vpop.permute.xlu0 %6623
        %6625 = vrot.lane.b32.xlu0 %v6602, 79
        %v6626 = vpop.permute.xlu0 %6625
        %v6627 = vrot.slane %v6612, 4
        %v6628 = vrot.slane %v6614, 4
        %v6629 = vrot.slane %v6616, 4
        %v6630 = vrot.slane %v6618, 4
        %v6631 = vrot.slane %v6620, 4
        %v6632 = vrot.slane %v6622, 4
        %v6633 = vrot.slane %v6624, 4
        %v6634 = vrot.slane %v6626, 4
        %vm6635 = vcmask 646144
        %v6636 = vsel %vm6635, %v6612, %v6627
        %v6637 = vsel %vm6635, %v6614, %v6628
        %v6638 = vsel %vm6635, %v6616, %v6629
        %v6639 = vsel %vm6635, %v6618, %v6630
        %v6640 = vsel %vm6635, %v6620, %v6631
        %v6641 = vsel %vm6635, %v6622, %v6632
        %v6642 = vsel %vm6635, %v6624, %v6633
        %v6643 = vsel %vm6635, %v6626, %v6634
        %6652 = vst.msk [vmem:[#allocation6 + $0x54] sm:$0xf] %vm5524, %v6636
        %6653 = vst.msk [vmem:[#allocation6 + $0xb8] sm:$0xf] %vm5524, %v6637
        %6654 = vst.msk [vmem:[#allocation6 + $0x11c] sm:$0xf] %vm5524, %v6638
        %6655 = vst.msk [vmem:[#allocation6 + $0x180] sm:$0xf] %vm5524, %v6639
        %6656 = vst.msk [vmem:[#allocation6 + $0x1e4] sm:$0xf] %vm5524, %v6640
        %6657 = vst.msk [vmem:[#allocation6 + $0x248] sm:$0xf] %vm5524, %v6641
        %6658 = vst.msk [vmem:[#allocation6 + $0x2ac] sm:$0xf] %vm5524, %v6642
        %6659 = vst.msk [vmem:[#allocation6 + $0x310] sm:$0xf] %vm5524, %v6643
        %v6660 = vld [vmem:[#allocation5] sm:$0xff]
        %v6661 = vld [vmem:[#allocation5 + $0x8] sm:$0xff]
        %v6662 = vld [vmem:[#allocation5 + $0x10] sm:$0xff]
        %v6663 = vld [vmem:[#allocation5 + $0x18] sm:$0xff]
        %v6664 = vld [vmem:[#allocation5 + $0x20] sm:$0xff]
        %v6665 = vld [vmem:[#allocation5 + $0x28] sm:$0xff]
        %v6666 = vld [vmem:[#allocation5 + $0x30] sm:$0xff]
        %v6667 = vld [vmem:[#allocation5 + $0x38] sm:$0xff]
        %6676 = vrot.lane.b32.xlu0 %v6660, 78
        %v6677 = vpop.permute.xlu0 %6676
        %6678 = vrot.lane.b32.xlu0 %v6661, 78
        %v6679 = vpop.permute.xlu0 %6678
        %6680 = vrot.lane.b32.xlu0 %v6662, 78
        %v6681 = vpop.permute.xlu0 %6680
        %6682 = vrot.lane.b32.xlu0 %v6663, 78
        %v6683 = vpop.permute.xlu0 %6682
        %6684 = vrot.lane.b32.xlu0 %v6664, 78
        %v6685 = vpop.permute.xlu0 %6684
        %6686 = vrot.lane.b32.xlu0 %v6665, 78
        %v6687 = vpop.permute.xlu0 %6686
        %6688 = vrot.lane.b32.xlu0 %v6666, 78
        %v6689 = vpop.permute.xlu0 %6688
        %6690 = vrot.lane.b32.xlu0 %v6667, 78
        %v6691 = vpop.permute.xlu0 %6690
        %v6692 = vrot.slane %v6677, 4
        %v6693 = vrot.slane %v6679, 4
        %v6694 = vrot.slane %v6681, 4
        %v6695 = vrot.slane %v6683, 4
        %v6696 = vrot.slane %v6685, 4
        %v6697 = vrot.slane %v6687, 4
        %v6698 = vrot.slane %v6689, 4
        %v6699 = vrot.slane %v6691, 4
        %vm6700 = vcmask 637952
        %v6701 = vsel %vm6700, %v6677, %v6692
        %v6702 = vsel %vm6700, %v6679, %v6693
        %v6703 = vsel %vm6700, %v6681, %v6694
        %v6704 = vsel %vm6700, %v6683, %v6695
        %v6705 = vsel %vm6700, %v6685, %v6696
        %v6706 = vsel %vm6700, %v6687, %v6697
        %v6707 = vsel %vm6700, %v6689, %v6698
        %v6708 = vsel %vm6700, %v6691, %v6699
        %6717 = vst.msk [vmem:[#allocation6 + $0x58] sm:$0xf] %vm5524, %v6701
        %6718 = vst.msk [vmem:[#allocation6 + $0xbc] sm:$0xf] %vm5524, %v6702
        %6719 = vst.msk [vmem:[#allocation6 + $0x120] sm:$0xf] %vm5524, %v6703
        %6720 = vst.msk [vmem:[#allocation6 + $0x184] sm:$0xf] %vm5524, %v6704
        %6721 = vst.msk [vmem:[#allocation6 + $0x1e8] sm:$0xf] %vm5524, %v6705
        %6722 = vst.msk [vmem:[#allocation6 + $0x24c] sm:$0xf] %vm5524, %v6706
        %6723 = vst.msk [vmem:[#allocation6 + $0x2b0] sm:$0xf] %vm5524, %v6707
        %6724 = vst.msk [vmem:[#allocation6 + $0x314] sm:$0xf] %vm5524, %v6708
        %v6725 = vld [vmem:[#allocation5] sm:$0xff]
        %v6726 = vld [vmem:[#allocation5 + $0x8] sm:$0xff]
        %v6727 = vld [vmem:[#allocation5 + $0x10] sm:$0xff]
        %v6728 = vld [vmem:[#allocation5 + $0x18] sm:$0xff]
        %v6729 = vld [vmem:[#allocation5 + $0x20] sm:$0xff]
        %v6730 = vld [vmem:[#allocation5 + $0x28] sm:$0xff]
        %v6731 = vld [vmem:[#allocation5 + $0x30] sm:$0xff]
        %v6732 = vld [vmem:[#allocation5 + $0x38] sm:$0xff]
        %6741 = vrot.lane.b32.xlu0 %v6725, 77
        %v6742 = vpop.permute.xlu0 %6741
        %6743 = vrot.lane.b32.xlu0 %v6726, 77
        %v6744 = vpop.permute.xlu0 %6743
        %6745 = vrot.lane.b32.xlu0 %v6727, 77
        %v6746 = vpop.permute.xlu0 %6745
        %6747 = vrot.lane.b32.xlu0 %v6728, 77
        %v6748 = vpop.permute.xlu0 %6747
        %6749 = vrot.lane.b32.xlu0 %v6729, 77
        %v6750 = vpop.permute.xlu0 %6749
        %6751 = vrot.lane.b32.xlu0 %v6730, 77
        %v6752 = vpop.permute.xlu0 %6751
        %6753 = vrot.lane.b32.xlu0 %v6731, 77
        %v6754 = vpop.permute.xlu0 %6753
        %6755 = vrot.lane.b32.xlu0 %v6732, 77
        %v6756 = vpop.permute.xlu0 %6755
        %v6757 = vrot.slane %v6742, 4
        %v6758 = vrot.slane %v6744, 4
        %v6759 = vrot.slane %v6746, 4
        %v6760 = vrot.slane %v6748, 4
        %v6761 = vrot.slane %v6750, 4
        %v6762 = vrot.slane %v6752, 4
        %v6763 = vrot.slane %v6754, 4
        %v6764 = vrot.slane %v6756, 4
        %vm6765 = vcmask 629760
        %v6766 = vsel %vm6765, %v6742, %v6757
        %v6767 = vsel %vm6765, %v6744, %v6758
        %v6768 = vsel %vm6765, %v6746, %v6759
        %v6769 = vsel %vm6765, %v6748, %v6760
        %v6770 = vsel %vm6765, %v6750, %v6761
        %v6771 = vsel %vm6765, %v6752, %v6762
        %v6772 = vsel %vm6765, %v6754, %v6763
        %v6773 = vsel %vm6765, %v6756, %v6764
        %6782 = vst.msk [vmem:[#allocation6 + $0x5c] sm:$0xf] %vm5524, %v6766
        %6783 = vst.msk [vmem:[#allocation6 + $0xc0] sm:$0xf] %vm5524, %v6767
        %6784 = vst.msk [vmem:[#allocation6 + $0x124] sm:$0xf] %vm5524, %v6768
        %6785 = vst.msk [vmem:[#allocation6 + $0x188] sm:$0xf] %vm5524, %v6769
        %6786 = vst.msk [vmem:[#allocation6 + $0x1ec] sm:$0xf] %vm5524, %v6770
        %6787 = vst.msk [vmem:[#allocation6 + $0x250] sm:$0xf] %vm5524, %v6771
        %6788 = vst.msk [vmem:[#allocation6 + $0x2b4] sm:$0xf] %vm5524, %v6772
        %6789 = vst.msk [vmem:[#allocation6 + $0x318] sm:$0xf] %vm5524, %v6773
        %v6790 = vld [vmem:[#allocation5] sm:$0xff]
        %v6791 = vld [vmem:[#allocation5 + $0x8] sm:$0xff]
        %v6792 = vld [vmem:[#allocation5 + $0x10] sm:$0xff]
        %v6793 = vld [vmem:[#allocation5 + $0x18] sm:$0xff]
        %v6794 = vld [vmem:[#allocation5 + $0x20] sm:$0xff]
        %v6795 = vld [vmem:[#allocation5 + $0x28] sm:$0xff]
        %v6796 = vld [vmem:[#allocation5 + $0x30] sm:$0xff]
        %v6797 = vld [vmem:[#allocation5 + $0x38] sm:$0xff]
        %6806 = vrot.lane.b32.xlu0 %v6790, 76
        %v6807 = vpop.permute.xlu0 %6806
        %6808 = vrot.lane.b32.xlu0 %v6791, 76
        %v6809 = vpop.permute.xlu0 %6808
        %6810 = vrot.lane.b32.xlu0 %v6792, 76
        %v6811 = vpop.permute.xlu0 %6810
        %6812 = vrot.lane.b32.xlu0 %v6793, 76
        %v6813 = vpop.permute.xlu0 %6812
        %6814 = vrot.lane.b32.xlu0 %v6794, 76
        %v6815 = vpop.permute.xlu0 %6814
        %6816 = vrot.lane.b32.xlu0 %v6795, 76
        %v6817 = vpop.permute.xlu0 %6816
        %6818 = vrot.lane.b32.xlu0 %v6796, 76
        %v6819 = vpop.permute.xlu0 %6818
        %6820 = vrot.lane.b32.xlu0 %v6797, 76
        %v6821 = vpop.permute.xlu0 %6820
        %v6822 = vrot.slane %v6807, 4
        %v6823 = vrot.slane %v6809, 4
        %v6824 = vrot.slane %v6811, 4
        %v6825 = vrot.slane %v6813, 4
        %v6826 = vrot.slane %v6815, 4
        %v6827 = vrot.slane %v6817, 4
        %v6828 = vrot.slane %v6819, 4
        %v6829 = vrot.slane %v6821, 4
        %vm6830 = vcmask 621568
        %v6831 = vsel %vm6830, %v6807, %v6822
        %v6832 = vsel %vm6830, %v6809, %v6823
        %v6833 = vsel %vm6830, %v6811, %v6824
        %v6834 = vsel %vm6830, %v6813, %v6825
        %v6835 = vsel %vm6830, %v6815, %v6826
        %v6836 = vsel %vm6830, %v6817, %v6827
        %v6837 = vsel %vm6830, %v6819, %v6828
        %v6838 = vsel %vm6830, %v6821, %v6829
        %6847 = vst.msk [vmem:[#allocation6 + $0x60] sm:$0xf] %vm5524, %v6831
        %6848 = vst.msk [vmem:[#allocation6 + $0xc4] sm:$0xf] %vm5524, %v6832
        %6849 = vst.msk [vmem:[#allocation6 + $0x128] sm:$0xf] %vm5524, %v6833
        %6850 = vst.msk [vmem:[#allocation6 + $0x18c] sm:$0xf] %vm5524, %v6834
        %6851 = vst.msk [vmem:[#allocation6 + $0x1f0] sm:$0xf] %vm5524, %v6835
        %6852 = vst.msk [vmem:[#allocation6 + $0x254] sm:$0xf] %vm5524, %v6836
        %6853 = vst.msk [vmem:[#allocation6 + $0x2b8] sm:$0xf] %vm5524, %v6837
        %6854 = vst.msk [vmem:[#allocation6 + $0x31c] sm:$0xf] %vm5524, %v6838
        %v6855 = vld [vmem:[%s4] sm:$0xff]
        %v6856 = vld [vmem:[%s4 + $0x8] sm:$0xff]
        %v6857 = vld [vmem:[#allocation6] sm:$0xf]
        %v6858 = vld [vmem:[#allocation6 + $0x4] sm:$0xf]
        %v6859 = vld [vmem:[#allocation6 + $0x8] sm:$0xf]
        %v6860 = vld [vmem:[#allocation6 + $0xc] sm:$0xf]
        %v6861 = vld [vmem:[#allocation6 + $0x10] sm:$0xf]
        %v6862 = vld [vmem:[#allocation6 + $0x14] sm:$0xf]
        %v6863 = vld [vmem:[#allocation6 + $0x18] sm:$0xf]
        %v6864 = vld [vmem:[#allocation6 + $0x1c] sm:$0xf]
        %v6865 = vld [vmem:[#allocation6 + $0x20] sm:$0xf]
        %v6866 = vld [vmem:[#allocation6 + $0x24] sm:$0xf]
        %v6867 = vld [vmem:[#allocation6 + $0x28] sm:$0xf]
        %v6868 = vld [vmem:[#allocation6 + $0x2c] sm:$0xf]
        %v6869 = vld [vmem:[#allocation6 + $0x30] sm:$0xf]
        %v6870 = vld [vmem:[#allocation6 + $0x34] sm:$0xf]
        %v6871 = vld [vmem:[#allocation6 + $0x38] sm:$0xf]
        %v6872 = vld [vmem:[#allocation6 + $0x3c] sm:$0xf]
        %v6873 = vld [vmem:[#allocation6 + $0x40] sm:$0xf]
        %v6874 = vld [vmem:[#allocation6 + $0x44] sm:$0xf]
        %v6875 = vld [vmem:[#allocation6 + $0x48] sm:$0xf]
        %v6876 = vld [vmem:[#allocation6 + $0x4c] sm:$0xf]
        %v6877 = vld [vmem:[#allocation6 + $0x50] sm:$0xf]
        %v6878 = vld [vmem:[#allocation6 + $0x54] sm:$0xf]
        %v6879 = vld [vmem:[#allocation6 + $0x58] sm:$0xf]
        %v6880 = vld [vmem:[#allocation6 + $0x5c] sm:$0xf]
        %v6881 = vld [vmem:[#allocation6 + $0x60] sm:$0xf]
        %v6882 = vld [vmem:[%s5] sm:$0xff]
        %v6883 = vld [vmem:[%s5 + $0x8] sm:$0xff]
        %6885 = vset.pattern.permute.xlu0 0
        %6886 = vperm.xlu0 %6885, %v6882
        %v6887 = vpop.permute.xlu0 %6886
        %6890 = vset.pattern.permute.xlu0 0
        %6891 = vperm.xlu0 %6890, %v6883
        %v6892 = vpop.permute.xlu0 %6891
        %v6896 = vunpack.c.l.b16 %v6855
        %v6897 = vunpack.c.h.b16 %v6855
        %v6898 = vunpack.c.l.b16 %v6856
        %v6899 = vunpack.c.h.b16 %v6856
        %v6900 = vpack.c.b16 %v6898, %v6896
        %v6901 = vpack.c.b16 %v6899, %v6897
        %v6928 = vunpack.c.l.b16 %v6857
        %v6929 = vunpack.c.l.b16 %v6858
        %v6930 = vunpack.c.l.b16 %v6859
        %v6931 = vunpack.c.l.b16 %v6860
        %v6932 = vunpack.c.l.b16 %v6861
        %v6933 = vunpack.c.l.b16 %v6862
        %v6934 = vunpack.c.l.b16 %v6863
        %v6935 = vunpack.c.l.b16 %v6864
        %v6936 = vunpack.c.l.b16 %v6865
        %v6937 = vunpack.c.l.b16 %v6866
        %v6938 = vunpack.c.l.b16 %v6867
        %v6939 = vunpack.c.l.b16 %v6868
        %v6940 = vunpack.c.l.b16 %v6869
        %v6941 = vunpack.c.l.b16 %v6870
        %v6942 = vunpack.c.l.b16 %v6871
        %v6943 = vunpack.c.l.b16 %v6872
        %v6944 = vunpack.c.l.b16 %v6873
        %v6945 = vunpack.c.l.b16 %v6874
        %v6946 = vunpack.c.l.b16 %v6875
        %v6947 = vunpack.c.l.b16 %v6876
        %v6948 = vunpack.c.l.b16 %v6877
        %v6949 = vunpack.c.l.b16 %v6878
        %v6950 = vunpack.c.l.b16 %v6879
        %v6951 = vunpack.c.l.b16 %v6880
        %v6952 = vunpack.c.l.b16 %v6881
        %v6953 = vpack.c.b16 %v6929, %v6928
        %v6954 = vpack.c.b16 %v6931, %v6930
        %v6955 = vpack.c.b16 %v6933, %v6932
        %v6956 = vpack.c.b16 %v6935, %v6934
        %v6957 = vpack.c.b16 %v6937, %v6936
        %v6958 = vpack.c.b16 %v6939, %v6938
        %v6959 = vpack.c.b16 %v6941, %v6940
        %v6960 = vpack.c.b16 %v6943, %v6942
        %v6961 = vpack.c.b16 %v6945, %v6944
        %v6962 = vpack.c.b16 %v6947, %v6946
        %v6963 = vpack.c.b16 %v6949, %v6948
        %v6964 = vpack.c.b16 %v6951, %v6950
        %v6965 = vpack.c.b16 %v6952, %v6952
        %v6979 = vsel %vm1248, %v6901, 0
        %v6982 = vsel %vm2608, %v6965, 0
        %6984 = vmatpush.bf16.msra.mxu0 %v6960
        %6985 = vmatpush.bf16.msra.mxu0 %v6959
        %6986 = vmatpush.bf16.msra.mxu0 %v6958
        %6987 = vmatpush.bf16.msra.mxu0 %v6957
        %6988 = vmatpush.bf16.msra.mxu0 %v6956
        %6989 = vmatpush.bf16.msra.mxu0 %v6955
        %6990 = vmatpush.bf16.msra.mxu0 %v6954
        %6991 = vmatpush.bf16.msra.mxu0 %v6953
        %6992 = vmatmul.bf16.gmra.mxu0 %v6900
        %v6993 = vpop.f32.mrf.mxu0
        %v6994 = vadd.f32 %v6887, %v6993
        %v6995 = vpop.f32.mrf.mxu0
        %v6996 = vadd.f32 %v6892, %v6995
        %6997 = vdwg.mxu0
        %6998 = vmatpush.bf16.msra.mxu0 0
        %6999 = vmatpush.bf16.msra.mxu0 0
        %7000 = vmatpush.bf16.msra.mxu0 0
        %7001 = vmatpush.bf16.msra.mxu0 %v6982
        %7002 = vmatpush.bf16.msra.mxu0 %v6964
        %7003 = vmatpush.bf16.msra.mxu0 %v6963
        %7004 = vmatpush.bf16.msra.mxu0 %v6962
        %7005 = vmatpush.bf16.msra.mxu0 %v6961
        %7006 = vmatmul.bf16.gmra.mxu0 %v6979
        %v7007 = vpop.f32.mrf.mxu0
        %v7008 = vadd.f32 %v6994, %v7007
        %v7009 = vpop.f32.mrf.mxu0
        %v7010 = vadd.f32 %v6996, %v7009
        %7011 = vdwg.mxu0
        %v7012 = vmax.f32 %v7008, 0.0
        %v7013 = vmax.f32 %v7010, 0.0
        %v7014 = vpack.c.bf16 %v7012, %v7012
        %v7015 = vpack.c.bf16 %v7013, %v7013
        %7016 = vst.msk [vmem:[#allocation7] sm:$0xf] %vm5524, %v7014
        %7017 = vst.msk [vmem:[#allocation7 + $0x4] sm:$0xf] %vm5524, %v7015
        %v7018 = vld [vmem:[%s4] sm:$0xff]
        %v7019 = vld [vmem:[%s4 + $0x8] sm:$0xff]
        %s7020 = scalar_lea.vmem [#allocation6], 100
        %v7021 = vld [vmem:[%s7020] sm:$0xf]
        %v7022 = vld [vmem:[%s7020 + $0x4] sm:$0xf]
        %v7023 = vld [vmem:[%s7020 + $0x8] sm:$0xf]
        %v7024 = vld [vmem:[%s7020 + $0xc] sm:$0xf]
        %v7025 = vld [vmem:[%s7020 + $0x10] sm:$0xf]
        %v7026 = vld [vmem:[%s7020 + $0x14] sm:$0xf]
        %v7027 = vld [vmem:[%s7020 + $0x18] sm:$0xf]
        %v7028 = vld [vmem:[%s7020 + $0x1c] sm:$0xf]
        %v7029 = vld [vmem:[%s7020 + $0x20] sm:$0xf]
        %v7030 = vld [vmem:[%s7020 + $0x24] sm:$0xf]
        %v7031 = vld [vmem:[%s7020 + $0x28] sm:$0xf]
        %v7032 = vld [vmem:[%s7020 + $0x2c] sm:$0xf]
        %v7033 = vld [vmem:[%s7020 + $0x30] sm:$0xf]
        %v7034 = vld [vmem:[%s7020 + $0x34] sm:$0xf]
        %v7035 = vld [vmem:[%s7020 + $0x38] sm:$0xf]
        %v7036 = vld [vmem:[%s7020 + $0x3c] sm:$0xf]
        %v7037 = vld [vmem:[%s7020 + $0x40] sm:$0xf]
        %v7038 = vld [vmem:[%s7020 + $0x44] sm:$0xf]
        %v7039 = vld [vmem:[%s7020 + $0x48] sm:$0xf]
        %v7040 = vld [vmem:[%s7020 + $0x4c] sm:$0xf]
        %v7041 = vld [vmem:[%s7020 + $0x50] sm:$0xf]
        %v7042 = vld [vmem:[%s7020 + $0x54] sm:$0xf]
        %v7043 = vld [vmem:[%s7020 + $0x58] sm:$0xf]
        %v7044 = vld [vmem:[%s7020 + $0x5c] sm:$0xf]
        %v7045 = vld [vmem:[%s7020 + $0x60] sm:$0xf]
        %v7046 = vld [vmem:[%s5] sm:$0xff]
        %v7047 = vld [vmem:[%s5 + $0x8] sm:$0xff]
        %7049 = vset.pattern.permute.xlu0 0
        %7050 = vperm.xlu0 %7049, %v7046
        %v7051 = vpop.permute.xlu0 %7050
        %7054 = vset.pattern.permute.xlu0 0
        %7055 = vperm.xlu0 %7054, %v7047
        %v7056 = vpop.permute.xlu0 %7055
        %v7060 = vunpack.c.l.b16 %v7018
        %v7061 = vunpack.c.h.b16 %v7018
        %v7062 = vunpack.c.l.b16 %v7019
        %v7063 = vunpack.c.h.b16 %v7019
        %v7064 = vpack.c.b16 %v7062, %v7060
        %v7065 = vpack.c.b16 %v7063, %v7061
        %v7092 = vunpack.c.l.b16 %v7021
        %v7093 = vunpack.c.l.b16 %v7022
        %v7094 = vunpack.c.l.b16 %v7023
        %v7095 = vunpack.c.l.b16 %v7024
        %v7096 = vunpack.c.l.b16 %v7025
        %v7097 = vunpack.c.l.b16 %v7026
        %v7098 = vunpack.c.l.b16 %v7027
        %v7099 = vunpack.c.l.b16 %v7028
        %v7100 = vunpack.c.l.b16 %v7029
        %v7101 = vunpack.c.l.b16 %v7030
        %v7102 = vunpack.c.l.b16 %v7031
        %v7103 = vunpack.c.l.b16 %v7032
        %v7104 = vunpack.c.l.b16 %v7033
        %v7105 = vunpack.c.l.b16 %v7034
        %v7106 = vunpack.c.l.b16 %v7035
        %v7107 = vunpack.c.l.b16 %v7036
        %v7108 = vunpack.c.l.b16 %v7037
        %v7109 = vunpack.c.l.b16 %v7038
        %v7110 = vunpack.c.l.b16 %v7039
        %v7111 = vunpack.c.l.b16 %v7040
        %v7112 = vunpack.c.l.b16 %v7041
        %v7113 = vunpack.c.l.b16 %v7042
        %v7114 = vunpack.c.l.b16 %v7043
        %v7115 = vunpack.c.l.b16 %v7044
        %v7116 = vunpack.c.l.b16 %v7045
        %v7117 = vpack.c.b16 %v7093, %v7092
        %v7118 = vpack.c.b16 %v7095, %v7094
        %v7119 = vpack.c.b16 %v7097, %v7096
        %v7120 = vpack.c.b16 %v7099, %v7098
        %v7121 = vpack.c.b16 %v7101, %v7100
        %v7122 = vpack.c.b16 %v7103, %v7102
        %v7123 = vpack.c.b16 %v7105, %v7104
        %v7124 = vpack.c.b16 %v7107, %v7106
        %v7125 = vpack.c.b16 %v7109, %v7108
        %v7126 = vpack.c.b16 %v7111, %v7110
        %v7127 = vpack.c.b16 %v7113, %v7112
        %v7128 = vpack.c.b16 %v7115, %v7114
        %v7129 = vpack.c.b16 %v7116, %v7116
        %v7143 = vsel %vm1248, %v7065, 0
        %v7146 = vsel %vm2608, %v7129, 0
        %7148 = vmatpush.bf16.msra.mxu0 %v7124
        %7149 = vmatpush.bf16.msra.mxu0 %v7123
        %7150 = vmatpush.bf16.msra.mxu0 %v7122
        %7151 = vmatpush.bf16.msra.mxu0 %v7121
        %7152 = vmatpush.bf16.msra.mxu0 %v7120
        %7153 = vmatpush.bf16.msra.mxu0 %v7119
        %7154 = vmatpush.bf16.msra.mxu0 %v7118
        %7155 = vmatpush.bf16.msra.mxu0 %v7117
        %7156 = vmatmul.bf16.gmra.mxu0 %v7064
        %v7157 = vpop.f32.mrf.mxu0
        %v7158 = vadd.f32 %v7051, %v7157
        %v7159 = vpop.f32.mrf.mxu0
        %v7160 = vadd.f32 %v7056, %v7159
        %7161 = vdwg.mxu0
        %7162 = vmatpush.bf16.msra.mxu0 0
        %7163 = vmatpush.bf16.msra.mxu0 0
        %7164 = vmatpush.bf16.msra.mxu0 0
        %7165 = vmatpush.bf16.msra.mxu0 %v7146
        %7166 = vmatpush.bf16.msra.mxu0 %v7128
        %7167 = vmatpush.bf16.msra.mxu0 %v7127
        %7168 = vmatpush.bf16.msra.mxu0 %v7126
        %7169 = vmatpush.bf16.msra.mxu0 %v7125
        %7170 = vmatmul.bf16.gmra.mxu0 %v7143
        %v7171 = vpop.f32.mrf.mxu0
        %v7172 = vadd.f32 %v7158, %v7171
        %v7173 = vpop.f32.mrf.mxu0
        %v7174 = vadd.f32 %v7160, %v7173
        %7175 = vdwg.mxu0
        %v7176 = vmax.f32 %v7172, 0.0
        %v7177 = vmax.f32 %v7174, 0.0
        %v7178 = vpack.c.bf16 %v7176, %v7176
        %v7179 = vpack.c.bf16 %v7177, %v7177
        %s7180 = scalar_lea.vmem [#allocation7], 8
        %7181 = vst.msk [vmem:[%s7180] sm:$0xf] %vm5524, %v7178
        %7182 = vst.msk [vmem:[%s7180 + $0x4] sm:$0xf] %vm5524, %v7179
        %v7183 = vld [vmem:[%s4] sm:$0xff]
        %v7184 = vld [vmem:[%s4 + $0x8] sm:$0xff]
        %s7185 = scalar_lea.vmem [#allocation6], 200
        %v7186 = vld [vmem:[%s7185] sm:$0xf]
        %v7187 = vld [vmem:[%s7185 + $0x4] sm:$0xf]
        %v7188 = vld [vmem:[%s7185 + $0x8] sm:$0xf]
        %v7189 = vld [vmem:[%s7185 + $0xc] sm:$0xf]
        %v7190 = vld [vmem:[%s7185 + $0x10] sm:$0xf]
        %v7191 = vld [vmem:[%s7185 + $0x14] sm:$0xf]
        %v7192 = vld [vmem:[%s7185 + $0x18] sm:$0xf]
        %v7193 = vld [vmem:[%s7185 + $0x1c] sm:$0xf]
        %v7194 = vld [vmem:[%s7185 + $0x20] sm:$0xf]
        %v7195 = vld [vmem:[%s7185 + $0x24] sm:$0xf]
        %v7196 = vld [vmem:[%s7185 + $0x28] sm:$0xf]
        %v7197 = vld [vmem:[%s7185 + $0x2c] sm:$0xf]
        %v7198 = vld [vmem:[%s7185 + $0x30] sm:$0xf]
        %v7199 = vld [vmem:[%s7185 + $0x34] sm:$0xf]
        %v7200 = vld [vmem:[%s7185 + $0x38] sm:$0xf]
        %v7201 = vld [vmem:[%s7185 + $0x3c] sm:$0xf]
        %v7202 = vld [vmem:[%s7185 + $0x40] sm:$0xf]
        %v7203 = vld [vmem:[%s7185 + $0x44] sm:$0xf]
        %v7204 = vld [vmem:[%s7185 + $0x48] sm:$0xf]
        %v7205 = vld [vmem:[%s7185 + $0x4c] sm:$0xf]
        %v7206 = vld [vmem:[%s7185 + $0x50] sm:$0xf]
        %v7207 = vld [vmem:[%s7185 + $0x54] sm:$0xf]
        %v7208 = vld [vmem:[%s7185 + $0x58] sm:$0xf]
        %v7209 = vld [vmem:[%s7185 + $0x5c] sm:$0xf]
        %v7210 = vld [vmem:[%s7185 + $0x60] sm:$0xf]
        %v7211 = vld [vmem:[%s5] sm:$0xff]
        %v7212 = vld [vmem:[%s5 + $0x8] sm:$0xff]
        %7214 = vset.pattern.permute.xlu0 0
        %7215 = vperm.xlu0 %7214, %v7211
        %v7216 = vpop.permute.xlu0 %7215
        %7219 = vset.pattern.permute.xlu0 0
        %7220 = vperm.xlu0 %7219, %v7212
        %v7221 = vpop.permute.xlu0 %7220
        %v7225 = vunpack.c.l.b16 %v7183
        %v7226 = vunpack.c.h.b16 %v7183
        %v7227 = vunpack.c.l.b16 %v7184
        %v7228 = vunpack.c.h.b16 %v7184
        %v7229 = vpack.c.b16 %v7227, %v7225
        %v7230 = vpack.c.b16 %v7228, %v7226
        %v7257 = vunpack.c.l.b16 %v7186
        %v7258 = vunpack.c.l.b16 %v7187
        %v7259 = vunpack.c.l.b16 %v7188
        %v7260 = vunpack.c.l.b16 %v7189
        %v7261 = vunpack.c.l.b16 %v7190
        %v7262 = vunpack.c.l.b16 %v7191
        %v7263 = vunpack.c.l.b16 %v7192
        %v7264 = vunpack.c.l.b16 %v7193
        %v7265 = vunpack.c.l.b16 %v7194
        %v7266 = vunpack.c.l.b16 %v7195
        %v7267 = vunpack.c.l.b16 %v7196
        %v7268 = vunpack.c.l.b16 %v7197
        %v7269 = vunpack.c.l.b16 %v7198
        %v7270 = vunpack.c.l.b16 %v7199
        %v7271 = vunpack.c.l.b16 %v7200
        %v7272 = vunpack.c.l.b16 %v7201
        %v7273 = vunpack.c.l.b16 %v7202
        %v7274 = vunpack.c.l.b16 %v7203
        %v7275 = vunpack.c.l.b16 %v7204
        %v7276 = vunpack.c.l.b16 %v7205
        %v7277 = vunpack.c.l.b16 %v7206
        %v7278 = vunpack.c.l.b16 %v7207
        %v7279 = vunpack.c.l.b16 %v7208
        %v7280 = vunpack.c.l.b16 %v7209
        %v7281 = vunpack.c.l.b16 %v7210
        %v7282 = vpack.c.b16 %v7258, %v7257
        %v7283 = vpack.c.b16 %v7260, %v7259
        %v7284 = vpack.c.b16 %v7262, %v7261
        %v7285 = vpack.c.b16 %v7264, %v7263
        %v7286 = vpack.c.b16 %v7266, %v7265
        %v7287 = vpack.c.b16 %v7268, %v7267
        %v7288 = vpack.c.b16 %v7270, %v7269
        %v7289 = vpack.c.b16 %v7272, %v7271
        %v7290 = vpack.c.b16 %v7274, %v7273
        %v7291 = vpack.c.b16 %v7276, %v7275
        %v7292 = vpack.c.b16 %v7278, %v7277
        %v7293 = vpack.c.b16 %v7280, %v7279
        %v7294 = vpack.c.b16 %v7281, %v7281
        %v7308 = vsel %vm1248, %v7230, 0
        %v7311 = vsel %vm2608, %v7294, 0
        %7313 = vmatpush.bf16.msra.mxu0 %v7289
        %7314 = vmatpush.bf16.msra.mxu0 %v7288
        %7315 = vmatpush.bf16.msra.mxu0 %v7287
        %7316 = vmatpush.bf16.msra.mxu0 %v7286
        %7317 = vmatpush.bf16.msra.mxu0 %v7285
        %7318 = vmatpush.bf16.msra.mxu0 %v7284
        %7319 = vmatpush.bf16.msra.mxu0 %v7283
        %7320 = vmatpush.bf16.msra.mxu0 %v7282
        %7321 = vmatmul.bf16.gmra.mxu0 %v7229
        %v7322 = vpop.f32.mrf.mxu0
        %v7323 = vadd.f32 %v7216, %v7322
        %v7324 = vpop.f32.mrf.mxu0
        %v7325 = vadd.f32 %v7221, %v7324
        %7326 = vdwg.mxu0
        %7327 = vmatpush.bf16.msra.mxu0 0
        %7328 = vmatpush.bf16.msra.mxu0 0
        %7329 = vmatpush.bf16.msra.mxu0 0
        %7330 = vmatpush.bf16.msra.mxu0 %v7311
        %7331 = vmatpush.bf16.msra.mxu0 %v7293
        %7332 = vmatpush.bf16.msra.mxu0 %v7292
        %7333 = vmatpush.bf16.msra.mxu0 %v7291
        %7334 = vmatpush.bf16.msra.mxu0 %v7290
        %7335 = vmatmul.bf16.gmra.mxu0 %v7308
        %v7336 = vpop.f32.mrf.mxu0
        %v7337 = vadd.f32 %v7323, %v7336
        %v7338 = vpop.f32.mrf.mxu0
        %v7339 = vadd.f32 %v7325, %v7338
        %7340 = vdwg.mxu0
        %v7341 = vmax.f32 %v7337, 0.0
        %v7342 = vmax.f32 %v7339, 0.0
        %v7343 = vpack.c.bf16 %v7341, %v7341
        %v7344 = vpack.c.bf16 %v7342, %v7342
        %s7345 = scalar_lea.vmem [#allocation7], 16
        %7346 = vst.msk [vmem:[%s7345] sm:$0xf] %vm5524, %v7343
        %7347 = vst.msk [vmem:[%s7345 + $0x4] sm:$0xf] %vm5524, %v7344
        %v7348 = vld [vmem:[%s4] sm:$0xff]
        %v7349 = vld [vmem:[%s4 + $0x8] sm:$0xff]
        %s7350 = scalar_lea.vmem [#allocation6], 300
        %v7351 = vld [vmem:[%s7350] sm:$0xf]
        %v7352 = vld [vmem:[%s7350 + $0x4] sm:$0xf]
        %v7353 = vld [vmem:[%s7350 + $0x8] sm:$0xf]
        %v7354 = vld [vmem:[%s7350 + $0xc] sm:$0xf]
        %v7355 = vld [vmem:[%s7350 + $0x10] sm:$0xf]
        %v7356 = vld [vmem:[%s7350 + $0x14] sm:$0xf]
        %v7357 = vld [vmem:[%s7350 + $0x18] sm:$0xf]
        %v7358 = vld [vmem:[%s7350 + $0x1c] sm:$0xf]
        %v7359 = vld [vmem:[%s7350 + $0x20] sm:$0xf]
        %v7360 = vld [vmem:[%s7350 + $0x24] sm:$0xf]
        %v7361 = vld [vmem:[%s7350 + $0x28] sm:$0xf]
        %v7362 = vld [vmem:[%s7350 + $0x2c] sm:$0xf]
        %v7363 = vld [vmem:[%s7350 + $0x30] sm:$0xf]
        %v7364 = vld [vmem:[%s7350 + $0x34] sm:$0xf]
        %v7365 = vld [vmem:[%s7350 + $0x38] sm:$0xf]
        %v7366 = vld [vmem:[%s7350 + $0x3c] sm:$0xf]
        %v7367 = vld [vmem:[%s7350 + $0x40] sm:$0xf]
        %v7368 = vld [vmem:[%s7350 + $0x44] sm:$0xf]
        %v7369 = vld [vmem:[%s7350 + $0x48] sm:$0xf]
        %v7370 = vld [vmem:[%s7350 + $0x4c] sm:$0xf]
        %v7371 = vld [vmem:[%s7350 + $0x50] sm:$0xf]
        %v7372 = vld [vmem:[%s7350 + $0x54] sm:$0xf]
        %v7373 = vld [vmem:[%s7350 + $0x58] sm:$0xf]
        %v7374 = vld [vmem:[%s7350 + $0x5c] sm:$0xf]
        %v7375 = vld [vmem:[%s7350 + $0x60] sm:$0xf]
        %v7376 = vld [vmem:[%s5] sm:$0xff]
        %v7377 = vld [vmem:[%s5 + $0x8] sm:$0xff]
        %7379 = vset.pattern.permute.xlu0 0
        %7380 = vperm.xlu0 %7379, %v7376
        %v7381 = vpop.permute.xlu0 %7380
        %7384 = vset.pattern.permute.xlu0 0
        %7385 = vperm.xlu0 %7384, %v7377
        %v7386 = vpop.permute.xlu0 %7385
        %v7390 = vunpack.c.l.b16 %v7348
        %v7391 = vunpack.c.h.b16 %v7348
        %v7392 = vunpack.c.l.b16 %v7349
        %v7393 = vunpack.c.h.b16 %v7349
        %v7394 = vpack.c.b16 %v7392, %v7390
        %v7395 = vpack.c.b16 %v7393, %v7391
        %v7422 = vunpack.c.l.b16 %v7351
        %v7423 = vunpack.c.l.b16 %v7352
        %v7424 = vunpack.c.l.b16 %v7353
        %v7425 = vunpack.c.l.b16 %v7354
        %v7426 = vunpack.c.l.b16 %v7355
        %v7427 = vunpack.c.l.b16 %v7356
        %v7428 = vunpack.c.l.b16 %v7357
        %v7429 = vunpack.c.l.b16 %v7358
        %v7430 = vunpack.c.l.b16 %v7359
        %v7431 = vunpack.c.l.b16 %v7360
        %v7432 = vunpack.c.l.b16 %v7361
        %v7433 = vunpack.c.l.b16 %v7362
        %v7434 = vunpack.c.l.b16 %v7363
        %v7435 = vunpack.c.l.b16 %v7364
        %v7436 = vunpack.c.l.b16 %v7365
        %v7437 = vunpack.c.l.b16 %v7366
        %v7438 = vunpack.c.l.b16 %v7367
        %v7439 = vunpack.c.l.b16 %v7368
        %v7440 = vunpack.c.l.b16 %v7369
        %v7441 = vunpack.c.l.b16 %v7370
        %v7442 = vunpack.c.l.b16 %v7371
        %v7443 = vunpack.c.l.b16 %v7372
        %v7444 = vunpack.c.l.b16 %v7373
        %v7445 = vunpack.c.l.b16 %v7374
        %v7446 = vunpack.c.l.b16 %v7375
        %v7447 = vpack.c.b16 %v7423, %v7422
        %v7448 = vpack.c.b16 %v7425, %v7424
        %v7449 = vpack.c.b16 %v7427, %v7426
        %v7450 = vpack.c.b16 %v7429, %v7428
        %v7451 = vpack.c.b16 %v7431, %v7430
        %v7452 = vpack.c.b16 %v7433, %v7432
        %v7453 = vpack.c.b16 %v7435, %v7434
        %v7454 = vpack.c.b16 %v7437, %v7436
        %v7455 = vpack.c.b16 %v7439, %v7438
        %v7456 = vpack.c.b16 %v7441, %v7440
        %v7457 = vpack.c.b16 %v7443, %v7442
        %v7458 = vpack.c.b16 %v7445, %v7444
        %v7459 = vpack.c.b16 %v7446, %v7446
        %v7473 = vsel %vm1248, %v7395, 0
        %v7476 = vsel %vm2608, %v7459, 0
        %7478 = vmatpush.bf16.msra.mxu0 %v7454
        %7479 = vmatpush.bf16.msra.mxu0 %v7453
        %7480 = vmatpush.bf16.msra.mxu0 %v7452
        %7481 = vmatpush.bf16.msra.mxu0 %v7451
        %7482 = vmatpush.bf16.msra.mxu0 %v7450
        %7483 = vmatpush.bf16.msra.mxu0 %v7449
        %7484 = vmatpush.bf16.msra.mxu0 %v7448
        %7485 = vmatpush.bf16.msra.mxu0 %v7447
        %7486 = vmatmul.bf16.gmra.mxu0 %v7394
        %v7487 = vpop.f32.mrf.mxu0
        %v7488 = vadd.f32 %v7381, %v7487
        %v7489 = vpop.f32.mrf.mxu0
        %v7490 = vadd.f32 %v7386, %v7489
        %7491 = vdwg.mxu0
        %7492 = vmatpush.bf16.msra.mxu0 0
        %7493 = vmatpush.bf16.msra.mxu0 0
        %7494 = vmatpush.bf16.msra.mxu0 0
        %7495 = vmatpush.bf16.msra.mxu0 %v7476
        %7496 = vmatpush.bf16.msra.mxu0 %v7458
        %7497 = vmatpush.bf16.msra.mxu0 %v7457
        %7498 = vmatpush.bf16.msra.mxu0 %v7456
        %7499 = vmatpush.bf16.msra.mxu0 %v7455
        %7500 = vmatmul.bf16.gmra.mxu0 %v7473
        %v7501 = vpop.f32.mrf.mxu0
        %v7502 = vadd.f32 %v7488, %v7501
        %v7503 = vpop.f32.mrf.mxu0
        %v7504 = vadd.f32 %v7490, %v7503
        %7505 = vdwg.mxu0
        %v7506 = vmax.f32 %v7502, 0.0
        %v7507 = vmax.f32 %v7504, 0.0
        %v7508 = vpack.c.bf16 %v7506, %v7506
        %v7509 = vpack.c.bf16 %v7507, %v7507
        %s7510 = scalar_lea.vmem [#allocation7], 24
        %7511 = vst.msk [vmem:[%s7510] sm:$0xf] %vm5524, %v7508
        %7512 = vst.msk [vmem:[%s7510 + $0x4] sm:$0xf] %vm5524, %v7509
        %v7513 = vld [vmem:[%s4] sm:$0xff]
        %v7514 = vld [vmem:[%s4 + $0x8] sm:$0xff]
        %s7515 = scalar_lea.vmem [#allocation6], 400
        %v7516 = vld [vmem:[%s7515] sm:$0xf]
        %v7517 = vld [vmem:[%s7515 + $0x4] sm:$0xf]
        %v7518 = vld [vmem:[%s7515 + $0x8] sm:$0xf]
        %v7519 = vld [vmem:[%s7515 + $0xc] sm:$0xf]
        %v7520 = vld [vmem:[%s7515 + $0x10] sm:$0xf]
        %v7521 = vld [vmem:[%s7515 + $0x14] sm:$0xf]
        %v7522 = vld [vmem:[%s7515 + $0x18] sm:$0xf]
        %v7523 = vld [vmem:[%s7515 + $0x1c] sm:$0xf]
        %v7524 = vld [vmem:[%s7515 + $0x20] sm:$0xf]
        %v7525 = vld [vmem:[%s7515 + $0x24] sm:$0xf]
        %v7526 = vld [vmem:[%s7515 + $0x28] sm:$0xf]
        %v7527 = vld [vmem:[%s7515 + $0x2c] sm:$0xf]
        %v7528 = vld [vmem:[%s7515 + $0x30] sm:$0xf]
        %v7529 = vld [vmem:[%s7515 + $0x34] sm:$0xf]
        %v7530 = vld [vmem:[%s7515 + $0x38] sm:$0xf]
        %v7531 = vld [vmem:[%s7515 + $0x3c] sm:$0xf]
        %v7532 = vld [vmem:[%s7515 + $0x40] sm:$0xf]
        %v7533 = vld [vmem:[%s7515 + $0x44] sm:$0xf]
        %v7534 = vld [vmem:[%s7515 + $0x48] sm:$0xf]
        %v7535 = vld [vmem:[%s7515 + $0x4c] sm:$0xf]
        %v7536 = vld [vmem:[%s7515 + $0x50] sm:$0xf]
        %v7537 = vld [vmem:[%s7515 + $0x54] sm:$0xf]
        %v7538 = vld [vmem:[%s7515 + $0x58] sm:$0xf]
        %v7539 = vld [vmem:[%s7515 + $0x5c] sm:$0xf]
        %v7540 = vld [vmem:[%s7515 + $0x60] sm:$0xf]
        %v7541 = vld [vmem:[%s5] sm:$0xff]
        %v7542 = vld [vmem:[%s5 + $0x8] sm:$0xff]
        %7544 = vset.pattern.permute.xlu0 0
        %7545 = vperm.xlu0 %7544, %v7541
        %v7546 = vpop.permute.xlu0 %7545
        %7549 = vset.pattern.permute.xlu0 0
        %7550 = vperm.xlu0 %7549, %v7542
        %v7551 = vpop.permute.xlu0 %7550
        %v7555 = vunpack.c.l.b16 %v7513
        %v7556 = vunpack.c.h.b16 %v7513
        %v7557 = vunpack.c.l.b16 %v7514
        %v7558 = vunpack.c.h.b16 %v7514
        %v7559 = vpack.c.b16 %v7557, %v7555
        %v7560 = vpack.c.b16 %v7558, %v7556
        %v7587 = vunpack.c.l.b16 %v7516
        %v7588 = vunpack.c.l.b16 %v7517
        %v7589 = vunpack.c.l.b16 %v7518
        %v7590 = vunpack.c.l.b16 %v7519
        %v7591 = vunpack.c.l.b16 %v7520
        %v7592 = vunpack.c.l.b16 %v7521
        %v7593 = vunpack.c.l.b16 %v7522
        %v7594 = vunpack.c.l.b16 %v7523
        %v7595 = vunpack.c.l.b16 %v7524
        %v7596 = vunpack.c.l.b16 %v7525
        %v7597 = vunpack.c.l.b16 %v7526
        %v7598 = vunpack.c.l.b16 %v7527
        %v7599 = vunpack.c.l.b16 %v7528
        %v7600 = vunpack.c.l.b16 %v7529
        %v7601 = vunpack.c.l.b16 %v7530
        %v7602 = vunpack.c.l.b16 %v7531
        %v7603 = vunpack.c.l.b16 %v7532
        %v7604 = vunpack.c.l.b16 %v7533
        %v7605 = vunpack.c.l.b16 %v7534
        %v7606 = vunpack.c.l.b16 %v7535
        %v7607 = vunpack.c.l.b16 %v7536
        %v7608 = vunpack.c.l.b16 %v7537
        %v7609 = vunpack.c.l.b16 %v7538
        %v7610 = vunpack.c.l.b16 %v7539
        %v7611 = vunpack.c.l.b16 %v7540
        %v7612 = vpack.c.b16 %v7588, %v7587
        %v7613 = vpack.c.b16 %v7590, %v7589
        %v7614 = vpack.c.b16 %v7592, %v7591
        %v7615 = vpack.c.b16 %v7594, %v7593
        %v7616 = vpack.c.b16 %v7596, %v7595
        %v7617 = vpack.c.b16 %v7598, %v7597
        %v7618 = vpack.c.b16 %v7600, %v7599
        %v7619 = vpack.c.b16 %v7602, %v7601
        %v7620 = vpack.c.b16 %v7604, %v7603
        %v7621 = vpack.c.b16 %v7606, %v7605
        %v7622 = vpack.c.b16 %v7608, %v7607
        %v7623 = vpack.c.b16 %v7610, %v7609
        %v7624 = vpack.c.b16 %v7611, %v7611
        %v7638 = vsel %vm1248, %v7560, 0
        %v7641 = vsel %vm2608, %v7624, 0
        %7643 = vmatpush.bf16.msra.mxu0 %v7619
        %7644 = vmatpush.bf16.msra.mxu0 %v7618
        %7645 = vmatpush.bf16.msra.mxu0 %v7617
        %7646 = vmatpush.bf16.msra.mxu0 %v7616
        %7647 = vmatpush.bf16.msra.mxu0 %v7615
        %7648 = vmatpush.bf16.msra.mxu0 %v7614
        %7649 = vmatpush.bf16.msra.mxu0 %v7613
        %7650 = vmatpush.bf16.msra.mxu0 %v7612
        %7651 = vmatmul.bf16.gmra.mxu0 %v7559
        %v7652 = vpop.f32.mrf.mxu0
        %v7653 = vadd.f32 %v7546, %v7652
        %v7654 = vpop.f32.mrf.mxu0
        %v7655 = vadd.f32 %v7551, %v7654
        %7656 = vdwg.mxu0
        %7657 = vmatpush.bf16.msra.mxu0 0
        %7658 = vmatpush.bf16.msra.mxu0 0
        %7659 = vmatpush.bf16.msra.mxu0 0
        %7660 = vmatpush.bf16.msra.mxu0 %v7641
        %7661 = vmatpush.bf16.msra.mxu0 %v7623
        %7662 = vmatpush.bf16.msra.mxu0 %v7622
        %7663 = vmatpush.bf16.msra.mxu0 %v7621
        %7664 = vmatpush.bf16.msra.mxu0 %v7620
        %7665 = vmatmul.bf16.gmra.mxu0 %v7638
        %v7666 = vpop.f32.mrf.mxu0
        %v7667 = vadd.f32 %v7653, %v7666
        %v7668 = vpop.f32.mrf.mxu0
        %v7669 = vadd.f32 %v7655, %v7668
        %7670 = vdwg.mxu0
        %v7671 = vmax.f32 %v7667, 0.0
        %v7672 = vmax.f32 %v7669, 0.0
        %v7673 = vpack.c.bf16 %v7671, %v7671
        %v7674 = vpack.c.bf16 %v7672, %v7672
        %s7675 = scalar_lea.vmem [#allocation7], 32
        %7676 = vst.msk [vmem:[%s7675] sm:$0xf] %vm5524, %v7673
        %7677 = vst.msk [vmem:[%s7675 + $0x4] sm:$0xf] %vm5524, %v7674
        %v7678 = vld [vmem:[%s4] sm:$0xff]
        %v7679 = vld [vmem:[%s4 + $0x8] sm:$0xff]
        %s7680 = scalar_lea.vmem [#allocation6], 500
        %v7681 = vld [vmem:[%s7680] sm:$0xf]
        %v7682 = vld [vmem:[%s7680 + $0x4] sm:$0xf]
        %v7683 = vld [vmem:[%s7680 + $0x8] sm:$0xf]
        %v7684 = vld [vmem:[%s7680 + $0xc] sm:$0xf]
        %v7685 = vld [vmem:[%s7680 + $0x10] sm:$0xf]
        %v7686 = vld [vmem:[%s7680 + $0x14] sm:$0xf]
        %v7687 = vld [vmem:[%s7680 + $0x18] sm:$0xf]
        %v7688 = vld [vmem:[%s7680 + $0x1c] sm:$0xf]
        %v7689 = vld [vmem:[%s7680 + $0x20] sm:$0xf]
        %v7690 = vld [vmem:[%s7680 + $0x24] sm:$0xf]
        %v7691 = vld [vmem:[%s7680 + $0x28] sm:$0xf]
        %v7692 = vld [vmem:[%s7680 + $0x2c] sm:$0xf]
        %v7693 = vld [vmem:[%s7680 + $0x30] sm:$0xf]
        %v7694 = vld [vmem:[%s7680 + $0x34] sm:$0xf]
        %v7695 = vld [vmem:[%s7680 + $0x38] sm:$0xf]
        %v7696 = vld [vmem:[%s7680 + $0x3c] sm:$0xf]
        %v7697 = vld [vmem:[%s7680 + $0x40] sm:$0xf]
        %v7698 = vld [vmem:[%s7680 + $0x44] sm:$0xf]
        %v7699 = vld [vmem:[%s7680 + $0x48] sm:$0xf]
        %v7700 = vld [vmem:[%s7680 + $0x4c] sm:$0xf]
        %v7701 = vld [vmem:[%s7680 + $0x50] sm:$0xf]
        %v7702 = vld [vmem:[%s7680 + $0x54] sm:$0xf]
        %v7703 = vld [vmem:[%s7680 + $0x58] sm:$0xf]
        %v7704 = vld [vmem:[%s7680 + $0x5c] sm:$0xf]
        %v7705 = vld [vmem:[%s7680 + $0x60] sm:$0xf]
        %v7706 = vld [vmem:[%s5] sm:$0xff]
        %v7707 = vld [vmem:[%s5 + $0x8] sm:$0xff]
        %7709 = vset.pattern.permute.xlu0 0
        %7710 = vperm.xlu0 %7709, %v7706
        %v7711 = vpop.permute.xlu0 %7710
        %7714 = vset.pattern.permute.xlu0 0
        %7715 = vperm.xlu0 %7714, %v7707
        %v7716 = vpop.permute.xlu0 %7715
        %v7720 = vunpack.c.l.b16 %v7678
        %v7721 = vunpack.c.h.b16 %v7678
        %v7722 = vunpack.c.l.b16 %v7679
        %v7723 = vunpack.c.h.b16 %v7679
        %v7724 = vpack.c.b16 %v7722, %v7720
        %v7725 = vpack.c.b16 %v7723, %v7721
        %v7752 = vunpack.c.l.b16 %v7681
        %v7753 = vunpack.c.l.b16 %v7682
        %v7754 = vunpack.c.l.b16 %v7683
        %v7755 = vunpack.c.l.b16 %v7684
        %v7756 = vunpack.c.l.b16 %v7685
        %v7757 = vunpack.c.l.b16 %v7686
        %v7758 = vunpack.c.l.b16 %v7687
        %v7759 = vunpack.c.l.b16 %v7688
        %v7760 = vunpack.c.l.b16 %v7689
        %v7761 = vunpack.c.l.b16 %v7690
        %v7762 = vunpack.c.l.b16 %v7691
        %v7763 = vunpack.c.l.b16 %v7692
        %v7764 = vunpack.c.l.b16 %v7693
        %v7765 = vunpack.c.l.b16 %v7694
        %v7766 = vunpack.c.l.b16 %v7695
        %v7767 = vunpack.c.l.b16 %v7696
        %v7768 = vunpack.c.l.b16 %v7697
        %v7769 = vunpack.c.l.b16 %v7698
        %v7770 = vunpack.c.l.b16 %v7699
        %v7771 = vunpack.c.l.b16 %v7700
        %v7772 = vunpack.c.l.b16 %v7701
        %v7773 = vunpack.c.l.b16 %v7702
        %v7774 = vunpack.c.l.b16 %v7703
        %v7775 = vunpack.c.l.b16 %v7704
        %v7776 = vunpack.c.l.b16 %v7705
        %v7777 = vpack.c.b16 %v7753, %v7752
        %v7778 = vpack.c.b16 %v7755, %v7754
        %v7779 = vpack.c.b16 %v7757, %v7756
        %v7780 = vpack.c.b16 %v7759, %v7758
        %v7781 = vpack.c.b16 %v7761, %v7760
        %v7782 = vpack.c.b16 %v7763, %v7762
        %v7783 = vpack.c.b16 %v7765, %v7764
        %v7784 = vpack.c.b16 %v7767, %v7766
        %v7785 = vpack.c.b16 %v7769, %v7768
        %v7786 = vpack.c.b16 %v7771, %v7770
        %v7787 = vpack.c.b16 %v7773, %v7772
        %v7788 = vpack.c.b16 %v7775, %v7774
        %v7789 = vpack.c.b16 %v7776, %v7776
        %v7803 = vsel %vm1248, %v7725, 0
        %v7806 = vsel %vm2608, %v7789, 0
        %7808 = vmatpush.bf16.msra.mxu0 %v7784
        %7809 = vmatpush.bf16.msra.mxu0 %v7783
        %7810 = vmatpush.bf16.msra.mxu0 %v7782
        %7811 = vmatpush.bf16.msra.mxu0 %v7781
        %7812 = vmatpush.bf16.msra.mxu0 %v7780
        %7813 = vmatpush.bf16.msra.mxu0 %v7779
        %7814 = vmatpush.bf16.msra.mxu0 %v7778
        %7815 = vmatpush.bf16.msra.mxu0 %v7777
        %7816 = vmatmul.bf16.gmra.mxu0 %v7724
        %v7817 = vpop.f32.mrf.mxu0
        %v7818 = vadd.f32 %v7711, %v7817
        %v7819 = vpop.f32.mrf.mxu0
        %v7820 = vadd.f32 %v7716, %v7819
        %7821 = vdwg.mxu0
        %7822 = vmatpush.bf16.msra.mxu0 0
        %7823 = vmatpush.bf16.msra.mxu0 0
        %7824 = vmatpush.bf16.msra.mxu0 0
        %7825 = vmatpush.bf16.msra.mxu0 %v7806
        %7826 = vmatpush.bf16.msra.mxu0 %v7788
        %7827 = vmatpush.bf16.msra.mxu0 %v7787
        %7828 = vmatpush.bf16.msra.mxu0 %v7786
        %7829 = vmatpush.bf16.msra.mxu0 %v7785
        %7830 = vmatmul.bf16.gmra.mxu0 %v7803
        %v7831 = vpop.f32.mrf.mxu0
        %v7832 = vadd.f32 %v7818, %v7831
        %v7833 = vpop.f32.mrf.mxu0
        %v7834 = vadd.f32 %v7820, %v7833
        %7835 = vdwg.mxu0
        %v7836 = vmax.f32 %v7832, 0.0
        %v7837 = vmax.f32 %v7834, 0.0
        %v7838 = vpack.c.bf16 %v7836, %v7836
        %v7839 = vpack.c.bf16 %v7837, %v7837
        %s7840 = scalar_lea.vmem [#allocation7], 40
        %7841 = vst.msk [vmem:[%s7840] sm:$0xf] %vm5524, %v7838
        %7842 = vst.msk [vmem:[%s7840 + $0x4] sm:$0xf] %vm5524, %v7839
        %v7843 = vld [vmem:[%s4] sm:$0xff]
        %v7844 = vld [vmem:[%s4 + $0x8] sm:$0xff]
        %s7845 = scalar_lea.vmem [#allocation6], 600
        %v7846 = vld [vmem:[%s7845] sm:$0xf]
        %v7847 = vld [vmem:[%s7845 + $0x4] sm:$0xf]
        %v7848 = vld [vmem:[%s7845 + $0x8] sm:$0xf]
        %v7849 = vld [vmem:[%s7845 + $0xc] sm:$0xf]
        %v7850 = vld [vmem:[%s7845 + $0x10] sm:$0xf]
        %v7851 = vld [vmem:[%s7845 + $0x14] sm:$0xf]
        %v7852 = vld [vmem:[%s7845 + $0x18] sm:$0xf]
        %v7853 = vld [vmem:[%s7845 + $0x1c] sm:$0xf]
        %v7854 = vld [vmem:[%s7845 + $0x20] sm:$0xf]
        %v7855 = vld [vmem:[%s7845 + $0x24] sm:$0xf]
        %v7856 = vld [vmem:[%s7845 + $0x28] sm:$0xf]
        %v7857 = vld [vmem:[%s7845 + $0x2c] sm:$0xf]
        %v7858 = vld [vmem:[%s7845 + $0x30] sm:$0xf]
        %v7859 = vld [vmem:[%s7845 + $0x34] sm:$0xf]
        %v7860 = vld [vmem:[%s7845 + $0x38] sm:$0xf]
        %v7861 = vld [vmem:[%s7845 + $0x3c] sm:$0xf]
        %v7862 = vld [vmem:[%s7845 + $0x40] sm:$0xf]
        %v7863 = vld [vmem:[%s7845 + $0x44] sm:$0xf]
        %v7864 = vld [vmem:[%s7845 + $0x48] sm:$0xf]
        %v7865 = vld [vmem:[%s7845 + $0x4c] sm:$0xf]
        %v7866 = vld [vmem:[%s7845 + $0x50] sm:$0xf]
        %v7867 = vld [vmem:[%s7845 + $0x54] sm:$0xf]
        %v7868 = vld [vmem:[%s7845 + $0x58] sm:$0xf]
        %v7869 = vld [vmem:[%s7845 + $0x5c] sm:$0xf]
        %v7870 = vld [vmem:[%s7845 + $0x60] sm:$0xf]
        %v7871 = vld [vmem:[%s5] sm:$0xff]
        %v7872 = vld [vmem:[%s5 + $0x8] sm:$0xff]
        %7874 = vset.pattern.permute.xlu0 0
        %7875 = vperm.xlu0 %7874, %v7871
        %v7876 = vpop.permute.xlu0 %7875
        %7879 = vset.pattern.permute.xlu0 0
        %7880 = vperm.xlu0 %7879, %v7872
        %v7881 = vpop.permute.xlu0 %7880
        %v7885 = vunpack.c.l.b16 %v7843
        %v7886 = vunpack.c.h.b16 %v7843
        %v7887 = vunpack.c.l.b16 %v7844
        %v7888 = vunpack.c.h.b16 %v7844
        %v7889 = vpack.c.b16 %v7887, %v7885
        %v7890 = vpack.c.b16 %v7888, %v7886
        %v7917 = vunpack.c.l.b16 %v7846
        %v7918 = vunpack.c.l.b16 %v7847
        %v7919 = vunpack.c.l.b16 %v7848
        %v7920 = vunpack.c.l.b16 %v7849
        %v7921 = vunpack.c.l.b16 %v7850
        %v7922 = vunpack.c.l.b16 %v7851
        %v7923 = vunpack.c.l.b16 %v7852
        %v7924 = vunpack.c.l.b16 %v7853
        %v7925 = vunpack.c.l.b16 %v7854
        %v7926 = vunpack.c.l.b16 %v7855
        %v7927 = vunpack.c.l.b16 %v7856
        %v7928 = vunpack.c.l.b16 %v7857
        %v7929 = vunpack.c.l.b16 %v7858
        %v7930 = vunpack.c.l.b16 %v7859
        %v7931 = vunpack.c.l.b16 %v7860
        %v7932 = vunpack.c.l.b16 %v7861
        %v7933 = vunpack.c.l.b16 %v7862
        %v7934 = vunpack.c.l.b16 %v7863
        %v7935 = vunpack.c.l.b16 %v7864
        %v7936 = vunpack.c.l.b16 %v7865
        %v7937 = vunpack.c.l.b16 %v7866
        %v7938 = vunpack.c.l.b16 %v7867
        %v7939 = vunpack.c.l.b16 %v7868
        %v7940 = vunpack.c.l.b16 %v7869
        %v7941 = vunpack.c.l.b16 %v7870
        %v7942 = vpack.c.b16 %v7918, %v7917
        %v7943 = vpack.c.b16 %v7920, %v7919
        %v7944 = vpack.c.b16 %v7922, %v7921
        %v7945 = vpack.c.b16 %v7924, %v7923
        %v7946 = vpack.c.b16 %v7926, %v7925
        %v7947 = vpack.c.b16 %v7928, %v7927
        %v7948 = vpack.c.b16 %v7930, %v7929
        %v7949 = vpack.c.b16 %v7932, %v7931
        %v7950 = vpack.c.b16 %v7934, %v7933
        %v7951 = vpack.c.b16 %v7936, %v7935
        %v7952 = vpack.c.b16 %v7938, %v7937
        %v7953 = vpack.c.b16 %v7940, %v7939
        %v7954 = vpack.c.b16 %v7941, %v7941
        %v7968 = vsel %vm1248, %v7890, 0
        %v7971 = vsel %vm2608, %v7954, 0
        %7973 = vmatpush.bf16.msra.mxu0 %v7949
        %7974 = vmatpush.bf16.msra.mxu0 %v7948
        %7975 = vmatpush.bf16.msra.mxu0 %v7947
        %7976 = vmatpush.bf16.msra.mxu0 %v7946
        %7977 = vmatpush.bf16.msra.mxu0 %v7945
        %7978 = vmatpush.bf16.msra.mxu0 %v7944
        %7979 = vmatpush.bf16.msra.mxu0 %v7943
        %7980 = vmatpush.bf16.msra.mxu0 %v7942
        %7981 = vmatmul.bf16.gmra.mxu0 %v7889
        %v7982 = vpop.f32.mrf.mxu0
        %v7983 = vadd.f32 %v7876, %v7982
        %v7984 = vpop.f32.mrf.mxu0
        %v7985 = vadd.f32 %v7881, %v7984
        %7986 = vdwg.mxu0
        %7987 = vmatpush.bf16.msra.mxu0 0
        %7988 = vmatpush.bf16.msra.mxu0 0
        %7989 = vmatpush.bf16.msra.mxu0 0
        %7990 = vmatpush.bf16.msra.mxu0 %v7971
        %7991 = vmatpush.bf16.msra.mxu0 %v7953
        %7992 = vmatpush.bf16.msra.mxu0 %v7952
        %7993 = vmatpush.bf16.msra.mxu0 %v7951
        %7994 = vmatpush.bf16.msra.mxu0 %v7950
        %7995 = vmatmul.bf16.gmra.mxu0 %v7968
        %v7996 = vpop.f32.mrf.mxu0
        %v7997 = vadd.f32 %v7983, %v7996
        %v7998 = vpop.f32.mrf.mxu0
        %v7999 = vadd.f32 %v7985, %v7998
        %8000 = vdwg.mxu0
        %v8001 = vmax.f32 %v7997, 0.0
        %v8002 = vmax.f32 %v7999, 0.0
        %v8003 = vpack.c.bf16 %v8001, %v8001
        %v8004 = vpack.c.bf16 %v8002, %v8002
        %s8005 = scalar_lea.vmem [#allocation7], 48
        %8006 = vst.msk [vmem:[%s8005] sm:$0xf] %vm5524, %v8003
        %8007 = vst.msk [vmem:[%s8005 + $0x4] sm:$0xf] %vm5524, %v8004
        %v8008 = vld [vmem:[%s4] sm:$0xff]
        %v8009 = vld [vmem:[%s4 + $0x8] sm:$0xff]
        %s8010 = scalar_lea.vmem [#allocation6], 700
        %v8011 = vld [vmem:[%s8010] sm:$0xf]
        %v8012 = vld [vmem:[%s8010 + $0x4] sm:$0xf]
        %v8013 = vld [vmem:[%s8010 + $0x8] sm:$0xf]
        %v8014 = vld [vmem:[%s8010 + $0xc] sm:$0xf]
        %v8015 = vld [vmem:[%s8010 + $0x10] sm:$0xf]
        %v8016 = vld [vmem:[%s8010 + $0x14] sm:$0xf]
        %v8017 = vld [vmem:[%s8010 + $0x18] sm:$0xf]
        %v8018 = vld [vmem:[%s8010 + $0x1c] sm:$0xf]
        %v8019 = vld [vmem:[%s8010 + $0x20] sm:$0xf]
        %v8020 = vld [vmem:[%s8010 + $0x24] sm:$0xf]
        %v8021 = vld [vmem:[%s8010 + $0x28] sm:$0xf]
        %v8022 = vld [vmem:[%s8010 + $0x2c] sm:$0xf]
        %v8023 = vld [vmem:[%s8010 + $0x30] sm:$0xf]
        %v8024 = vld [vmem:[%s8010 + $0x34] sm:$0xf]
        %v8025 = vld [vmem:[%s8010 + $0x38] sm:$0xf]
        %v8026 = vld [vmem:[%s8010 + $0x3c] sm:$0xf]
        %v8027 = vld [vmem:[%s8010 + $0x40] sm:$0xf]
        %v8028 = vld [vmem:[%s8010 + $0x44] sm:$0xf]
        %v8029 = vld [vmem:[%s8010 + $0x48] sm:$0xf]
        %v8030 = vld [vmem:[%s8010 + $0x4c] sm:$0xf]
        %v8031 = vld [vmem:[%s8010 + $0x50] sm:$0xf]
        %v8032 = vld [vmem:[%s8010 + $0x54] sm:$0xf]
        %v8033 = vld [vmem:[%s8010 + $0x58] sm:$0xf]
        %v8034 = vld [vmem:[%s8010 + $0x5c] sm:$0xf]
        %v8035 = vld [vmem:[%s8010 + $0x60] sm:$0xf]
        %v8036 = vld [vmem:[%s5] sm:$0xff]
        %v8037 = vld [vmem:[%s5 + $0x8] sm:$0xff]
        %8039 = vset.pattern.permute.xlu0 0
        %8040 = vperm.xlu0 %8039, %v8036
        %v8041 = vpop.permute.xlu0 %8040
        %8044 = vset.pattern.permute.xlu0 0
        %8045 = vperm.xlu0 %8044, %v8037
        %v8046 = vpop.permute.xlu0 %8045
        %v8050 = vunpack.c.l.b16 %v8008
        %v8051 = vunpack.c.h.b16 %v8008
        %v8052 = vunpack.c.l.b16 %v8009
        %v8053 = vunpack.c.h.b16 %v8009
        %v8054 = vpack.c.b16 %v8052, %v8050
        %v8055 = vpack.c.b16 %v8053, %v8051
        %v8082 = vunpack.c.l.b16 %v8011
        %v8083 = vunpack.c.l.b16 %v8012
        %v8084 = vunpack.c.l.b16 %v8013
        %v8085 = vunpack.c.l.b16 %v8014
        %v8086 = vunpack.c.l.b16 %v8015
        %v8087 = vunpack.c.l.b16 %v8016
        %v8088 = vunpack.c.l.b16 %v8017
        %v8089 = vunpack.c.l.b16 %v8018
        %v8090 = vunpack.c.l.b16 %v8019
        %v8091 = vunpack.c.l.b16 %v8020
        %v8092 = vunpack.c.l.b16 %v8021
        %v8093 = vunpack.c.l.b16 %v8022
        %v8094 = vunpack.c.l.b16 %v8023
        %v8095 = vunpack.c.l.b16 %v8024
        %v8096 = vunpack.c.l.b16 %v8025
        %v8097 = vunpack.c.l.b16 %v8026
        %v8098 = vunpack.c.l.b16 %v8027
        %v8099 = vunpack.c.l.b16 %v8028
        %v8100 = vunpack.c.l.b16 %v8029
        %v8101 = vunpack.c.l.b16 %v8030
        %v8102 = vunpack.c.l.b16 %v8031
        %v8103 = vunpack.c.l.b16 %v8032
        %v8104 = vunpack.c.l.b16 %v8033
        %v8105 = vunpack.c.l.b16 %v8034
        %v8106 = vunpack.c.l.b16 %v8035
        %v8107 = vpack.c.b16 %v8083, %v8082
        %v8108 = vpack.c.b16 %v8085, %v8084
        %v8109 = vpack.c.b16 %v8087, %v8086
        %v8110 = vpack.c.b16 %v8089, %v8088
        %v8111 = vpack.c.b16 %v8091, %v8090
        %v8112 = vpack.c.b16 %v8093, %v8092
        %v8113 = vpack.c.b16 %v8095, %v8094
        %v8114 = vpack.c.b16 %v8097, %v8096
        %v8115 = vpack.c.b16 %v8099, %v8098
        %v8116 = vpack.c.b16 %v8101, %v8100
        %v8117 = vpack.c.b16 %v8103, %v8102
        %v8118 = vpack.c.b16 %v8105, %v8104
        %v8119 = vpack.c.b16 %v8106, %v8106
        %v8133 = vsel %vm1248, %v8055, 0
        %v8136 = vsel %vm2608, %v8119, 0
        %8138 = vmatpush.bf16.msra.mxu0 %v8114
        %8139 = vmatpush.bf16.msra.mxu0 %v8113
        %8140 = vmatpush.bf16.msra.mxu0 %v8112
        %8141 = vmatpush.bf16.msra.mxu0 %v8111
        %8142 = vmatpush.bf16.msra.mxu0 %v8110
        %8143 = vmatpush.bf16.msra.mxu0 %v8109
        %8144 = vmatpush.bf16.msra.mxu0 %v8108
        %8145 = vmatpush.bf16.msra.mxu0 %v8107
        %8146 = vmatmul.bf16.gmra.mxu0 %v8054
        %v8147 = vpop.f32.mrf.mxu0
        %v8148 = vadd.f32 %v8041, %v8147
        %v8149 = vpop.f32.mrf.mxu0
        %v8150 = vadd.f32 %v8046, %v8149
        %8151 = vdwg.mxu0
        %8152 = vmatpush.bf16.msra.mxu0 0
        %8153 = vmatpush.bf16.msra.mxu0 0
        %8154 = vmatpush.bf16.msra.mxu0 0
        %8155 = vmatpush.bf16.msra.mxu0 %v8136
        %8156 = vmatpush.bf16.msra.mxu0 %v8118
        %8157 = vmatpush.bf16.msra.mxu0 %v8117
        %8158 = vmatpush.bf16.msra.mxu0 %v8116
        %8159 = vmatpush.bf16.msra.mxu0 %v8115
        %8160 = vmatmul.bf16.gmra.mxu0 %v8133
        %v8161 = vpop.f32.mrf.mxu0
        %v8162 = vadd.f32 %v8148, %v8161
        %v8163 = vpop.f32.mrf.mxu0
        %v8164 = vadd.f32 %v8150, %v8163
        %8165 = vdwg.mxu0
        %v8166 = vmax.f32 %v8162, 0.0
        %v8167 = vmax.f32 %v8164, 0.0
        %v8168 = vpack.c.bf16 %v8166, %v8166
        %v8169 = vpack.c.bf16 %v8167, %v8167
        %s8170 = scalar_lea.vmem [#allocation7], 56
        %8171 = vst.msk [vmem:[%s8170] sm:$0xf] %vm5524, %v8168
        %8172 = vst.msk [vmem:[%s8170 + $0x4] sm:$0xf] %vm5524, %v8169
        %v8173 = vld [vmem:[#allocation7] sm:$0xf]
        %v8174 = vld [vmem:[#allocation7 + $0x4] sm:$0xf]
        %v8175 = vld [vmem:[#allocation7 + $0x8] sm:$0xf]
        %v8176 = vld [vmem:[#allocation7 + $0xc] sm:$0xf]
        %v8177 = vld [vmem:[#allocation7 + $0x10] sm:$0xf]
        %v8178 = vld [vmem:[#allocation7 + $0x14] sm:$0xf]
        %v8179 = vld [vmem:[#allocation7 + $0x18] sm:$0xf]
        %v8180 = vld [vmem:[#allocation7 + $0x1c] sm:$0xf]
        %v8181 = vld [vmem:[#allocation7 + $0x20] sm:$0xf]
        %v8182 = vld [vmem:[#allocation7 + $0x24] sm:$0xf]
        %v8183 = vld [vmem:[#allocation7 + $0x28] sm:$0xf]
        %v8184 = vld [vmem:[#allocation7 + $0x2c] sm:$0xf]
        %v8185 = vld [vmem:[#allocation7 + $0x30] sm:$0xf]
        %v8186 = vld [vmem:[#allocation7 + $0x34] sm:$0xf]
        %v8187 = vld [vmem:[#allocation7 + $0x38] sm:$0xf]
        %v8188 = vld [vmem:[#allocation7 + $0x3c] sm:$0xf]
        %v8189 = vunpack.c.l.bf16 %v8173
        %v8190 = vunpack.c.l.bf16 %v8174
        %v8191 = vunpack.c.l.bf16 %v8175
        %v8192 = vunpack.c.l.bf16 %v8176
        %v8193 = vunpack.c.l.bf16 %v8177
        %v8194 = vunpack.c.l.bf16 %v8178
        %v8195 = vunpack.c.l.bf16 %v8179
        %v8196 = vunpack.c.l.bf16 %v8180
        %v8197 = vunpack.c.l.bf16 %v8181
        %v8198 = vunpack.c.l.bf16 %v8182
        %v8199 = vunpack.c.l.bf16 %v8183
        %v8200 = vunpack.c.l.bf16 %v8184
        %v8201 = vunpack.c.l.bf16 %v8185
        %v8202 = vunpack.c.l.bf16 %v8186
        %v8203 = vunpack.c.l.bf16 %v8187
        %v8204 = vunpack.c.l.bf16 %v8188
        %8221 = vrot.lane.b32.xlu0 %v8189, 127
        %v8222 = vpop.permute.xlu0 %8221
        %8223 = vrot.lane.b32.xlu0 %v8190, 127
        %v8224 = vpop.permute.xlu0 %8223
        %8225 = vrot.lane.b32.xlu0 %v8191, 127
        %v8226 = vpop.permute.xlu0 %8225
        %8227 = vrot.lane.b32.xlu0 %v8192, 127
        %v8228 = vpop.permute.xlu0 %8227
        %8229 = vrot.lane.b32.xlu0 %v8193, 127
        %v8230 = vpop.permute.xlu0 %8229
        %8231 = vrot.lane.b32.xlu0 %v8194, 127
        %v8232 = vpop.permute.xlu0 %8231
        %8233 = vrot.lane.b32.xlu0 %v8195, 127
        %v8234 = vpop.permute.xlu0 %8233
        %8235 = vrot.lane.b32.xlu0 %v8196, 127
        %v8236 = vpop.permute.xlu0 %8235
        %8237 = vrot.lane.b32.xlu0 %v8197, 127
        %v8238 = vpop.permute.xlu0 %8237
        %8239 = vrot.lane.b32.xlu0 %v8198, 127
        %v8240 = vpop.permute.xlu0 %8239
        %8241 = vrot.lane.b32.xlu0 %v8199, 127
        %v8242 = vpop.permute.xlu0 %8241
        %8243 = vrot.lane.b32.xlu0 %v8200, 127
        %v8244 = vpop.permute.xlu0 %8243
        %8245 = vrot.lane.b32.xlu0 %v8201, 127
        %v8246 = vpop.permute.xlu0 %8245
        %8247 = vrot.lane.b32.xlu0 %v8202, 127
        %v8248 = vpop.permute.xlu0 %8247
        %8249 = vrot.lane.b32.xlu0 %v8203, 127
        %v8250 = vpop.permute.xlu0 %8249
        %8251 = vrot.lane.b32.xlu0 %v8204, 127
        %v8252 = vpop.permute.xlu0 %8251
        %v8269 = vmax.f32 %v8189, %v8222
        %v8270 = vmax.f32 %v8190, %v8224
        %v8271 = vmax.f32 %v8191, %v8226
        %v8272 = vmax.f32 %v8192, %v8228
        %v8273 = vmax.f32 %v8193, %v8230
        %v8274 = vmax.f32 %v8194, %v8232
        %v8275 = vmax.f32 %v8195, %v8234
        %v8276 = vmax.f32 %v8196, %v8236
        %v8277 = vmax.f32 %v8197, %v8238
        %v8278 = vmax.f32 %v8198, %v8240
        %v8279 = vmax.f32 %v8199, %v8242
        %v8280 = vmax.f32 %v8200, %v8244
        %v8281 = vmax.f32 %v8201, %v8246
        %v8282 = vmax.f32 %v8202, %v8248
        %v8283 = vmax.f32 %v8203, %v8250
        %v8284 = vmax.f32 %v8204, %v8252
        %v8285 = vpack.c.bf16 %v8269, %v8269
        %v8286 = vpack.c.bf16 %v8270, %v8270
        %v8287 = vpack.c.bf16 %v8271, %v8271
        %v8288 = vpack.c.bf16 %v8272, %v8272
        %v8289 = vpack.c.bf16 %v8273, %v8273
        %v8290 = vpack.c.bf16 %v8274, %v8274
        %v8291 = vpack.c.bf16 %v8275, %v8275
        %v8292 = vpack.c.bf16 %v8276, %v8276
        %v8293 = vpack.c.bf16 %v8277, %v8277
        %v8294 = vpack.c.bf16 %v8278, %v8278
        %v8295 = vpack.c.bf16 %v8279, %v8279
        %v8296 = vpack.c.bf16 %v8280, %v8280
        %v8297 = vpack.c.bf16 %v8281, %v8281
        %v8298 = vpack.c.bf16 %v8282, %v8282
        %v8299 = vpack.c.bf16 %v8283, %v8283
        %v8300 = vpack.c.bf16 %v8284, %v8284
        %v8301 = vunpack.c.l.bf16 %v8285
        %v8302 = vunpack.c.l.bf16 %v8286
        %v8303 = vunpack.c.l.bf16 %v8287
        %v8304 = vunpack.c.l.bf16 %v8288
        %v8305 = vunpack.c.l.bf16 %v8289
        %v8306 = vunpack.c.l.bf16 %v8290
        %v8307 = vunpack.c.l.bf16 %v8291
        %v8308 = vunpack.c.l.bf16 %v8292
        %v8309 = vunpack.c.l.bf16 %v8293
        %v8310 = vunpack.c.l.bf16 %v8294
        %v8311 = vunpack.c.l.bf16 %v8295
        %v8312 = vunpack.c.l.bf16 %v8296
        %v8313 = vunpack.c.l.bf16 %v8297
        %v8314 = vunpack.c.l.bf16 %v8298
        %v8315 = vunpack.c.l.bf16 %v8299
        %v8316 = vunpack.c.l.bf16 %v8300
        %8333 = vrot.lane.b32.xlu0 %v8301, 116
        %v8334 = vpop.permute.xlu0 %8333
        %8335 = vrot.lane.b32.xlu0 %v8302, 116
        %v8336 = vpop.permute.xlu0 %8335
        %8337 = vrot.lane.b32.xlu0 %v8303, 116
        %v8338 = vpop.permute.xlu0 %8337
        %8339 = vrot.lane.b32.xlu0 %v8304, 116
        %v8340 = vpop.permute.xlu0 %8339
        %8341 = vrot.lane.b32.xlu0 %v8305, 116
        %v8342 = vpop.permute.xlu0 %8341
        %8343 = vrot.lane.b32.xlu0 %v8306, 116
        %v8344 = vpop.permute.xlu0 %8343
        %8345 = vrot.lane.b32.xlu0 %v8307, 116
        %v8346 = vpop.permute.xlu0 %8345
        %8347 = vrot.lane.b32.xlu0 %v8308, 116
        %v8348 = vpop.permute.xlu0 %8347
        %8349 = vrot.lane.b32.xlu0 %v8309, 116
        %v8350 = vpop.permute.xlu0 %8349
        %8351 = vrot.lane.b32.xlu0 %v8310, 116
        %v8352 = vpop.permute.xlu0 %8351
        %8353 = vrot.lane.b32.xlu0 %v8311, 116
        %v8354 = vpop.permute.xlu0 %8353
        %8355 = vrot.lane.b32.xlu0 %v8312, 116
        %v8356 = vpop.permute.xlu0 %8355
        %8357 = vrot.lane.b32.xlu0 %v8313, 116
        %v8358 = vpop.permute.xlu0 %8357
        %8359 = vrot.lane.b32.xlu0 %v8314, 116
        %v8360 = vpop.permute.xlu0 %8359
        %8361 = vrot.lane.b32.xlu0 %v8315, 116
        %v8362 = vpop.permute.xlu0 %8361
        %8363 = vrot.lane.b32.xlu0 %v8316, 116
        %v8364 = vpop.permute.xlu0 %8363
        %v8381 = vmax.f32 %v8301, %v8334
        %v8382 = vmax.f32 %v8302, %v8336
        %v8383 = vmax.f32 %v8303, %v8338
        %v8384 = vmax.f32 %v8304, %v8340
        %v8385 = vmax.f32 %v8305, %v8342
        %v8386 = vmax.f32 %v8306, %v8344
        %v8387 = vmax.f32 %v8307, %v8346
        %v8388 = vmax.f32 %v8308, %v8348
        %v8389 = vmax.f32 %v8309, %v8350
        %v8390 = vmax.f32 %v8310, %v8352
        %v8391 = vmax.f32 %v8311, %v8354
        %v8392 = vmax.f32 %v8312, %v8356
        %v8393 = vmax.f32 %v8313, %v8358
        %v8394 = vmax.f32 %v8314, %v8360
        %v8395 = vmax.f32 %v8315, %v8362
        %v8396 = vmax.f32 %v8316, %v8364
        %v8397 = vpack.c.bf16 %v8381, %v8381
        %v8398 = vpack.c.bf16 %v8382, %v8382
        %v8399 = vpack.c.bf16 %v8383, %v8383
        %v8400 = vpack.c.bf16 %v8384, %v8384
        %v8401 = vpack.c.bf16 %v8385, %v8385
        %v8402 = vpack.c.bf16 %v8386, %v8386
        %v8403 = vpack.c.bf16 %v8387, %v8387
        %v8404 = vpack.c.bf16 %v8388, %v8388
        %v8405 = vpack.c.bf16 %v8389, %v8389
        %v8406 = vpack.c.bf16 %v8390, %v8390
        %v8407 = vpack.c.bf16 %v8391, %v8391
        %v8408 = vpack.c.bf16 %v8392, %v8392
        %v8409 = vpack.c.bf16 %v8393, %v8393
        %v8410 = vpack.c.bf16 %v8394, %v8394
        %v8411 = vpack.c.bf16 %v8395, %v8395
        %v8412 = vpack.c.bf16 %v8396, %v8396
        %v8413 = vld [vmem:[%s6] sm:$0xf]
        %v8414 = vld [vmem:[%s6 + $0x4] sm:$0xf]
        %v8415 = vld [vmem:[%s6 + $0x8] sm:$0xf]
        %v8416 = vld [vmem:[%s6 + $0xc] sm:$0xf]
        %v8417 = vld [vmem:[%s6 + $0x10] sm:$0xf]
        %v8418 = vld [vmem:[%s6 + $0x14] sm:$0xf]
        %v8419 = vld [vmem:[%s6 + $0x18] sm:$0xf]
        %v8420 = vld [vmem:[%s6 + $0x1c] sm:$0xf]
        %v8421 = vld [vmem:[%s6 + $0x20] sm:$0xf]
        %v8422 = vld [vmem:[%s6 + $0x24] sm:$0xf]
        %v8423 = vld [vmem:[%s6 + $0x28] sm:$0x3]
        %s8424 = scalar_lea.vmem %s6, 44
        %v8425 = vld [vmem:[%s8424] sm:$0xf]
        %v8426 = vld [vmem:[%s8424 + $0x4] sm:$0xf]
        %v8427 = vld [vmem:[%s8424 + $0x8] sm:$0xf]
        %v8428 = vld [vmem:[%s8424 + $0xc] sm:$0xf]
        %v8429 = vld [vmem:[%s8424 + $0x10] sm:$0xf]
        %v8430 = vld [vmem:[%s8424 + $0x14] sm:$0xf]
        %v8431 = vld [vmem:[%s8424 + $0x18] sm:$0xf]
        %v8432 = vld [vmem:[%s8424 + $0x1c] sm:$0xf]
        %v8433 = vld [vmem:[%s8424 + $0x20] sm:$0xf]
        %v8434 = vld [vmem:[%s8424 + $0x24] sm:$0xf]
        %v8435 = vld [vmem:[%s8424 + $0x28] sm:$0x3]
        %v8444 = vunpack.c.l.b16 %v8397
        %v8445 = vunpack.c.l.b16 %v8399
        %v8446 = vunpack.c.l.b16 %v8401
        %v8447 = vunpack.c.l.b16 %v8403
        %v8448 = vunpack.c.l.b16 %v8405
        %v8449 = vunpack.c.l.b16 %v8407
        %v8450 = vunpack.c.l.b16 %v8409
        %v8451 = vunpack.c.l.b16 %v8411
        %v8452 = vpack.c.b16 %v8444, %v8444
        %v8453 = vpack.c.b16 %v8445, %v8445
        %v8454 = vpack.c.b16 %v8446, %v8446
        %v8455 = vpack.c.b16 %v8447, %v8447
        %v8456 = vpack.c.b16 %v8448, %v8448
        %v8457 = vpack.c.b16 %v8449, %v8449
        %v8458 = vpack.c.b16 %v8450, %v8450
        %v8459 = vpack.c.b16 %v8451, %v8451
        %v8460 = vunpack.c.l.b16 %v8452
        %v8461 = vunpack.c.l.b16 %v8453
        %v8462 = vunpack.c.l.b16 %v8454
        %v8463 = vunpack.c.l.b16 %v8455
        %v8464 = vunpack.c.l.b16 %v8456
        %v8465 = vunpack.c.l.b16 %v8457
        %v8466 = vunpack.c.l.b16 %v8458
        %v8467 = vunpack.c.l.b16 %v8459
        %v8468 = vrot.slane %v8460, 1
        %vm8469 = vcmask 1041409
        %v8470 = vsel %vm8469, %v8461, %v8468
        %v8471 = vrot.slane %v8462, 7
        %vm8472 = vcmask 1042434
        %v8473 = vsel %vm8472, %v8471, %v8470
        %v8474 = vrot.slane %v8463, 6
        %vm8475 = vcmask 1043459
        %v8476 = vsel %vm8475, %v8474, %v8473
        %v8477 = vrot.slane %v8464, 5
        %vm8478 = vcmask 1044484
        %v8479 = vsel %vm8478, %v8477, %v8476
        %v8480 = vrot.slane %v8465, 4
        %vm8481 = vcmask 1045509
        %v8482 = vsel %vm8481, %v8480, %v8479
        %v8483 = vrot.slane %v8466, 3
        %vm8484 = vcmask 1046534
        %v8485 = vsel %vm8484, %v8483, %v8482
        %v8486 = vrot.slane %v8467, 2
        %vm8487 = vcmask 1047559
        %v8488 = vsel %vm8487, %v8486, %v8485
        %v8489 = vpack.c.b16 %v8488, %v8488
        %v8501 = vunpack.c.l.b16 %v8425
        %v8502 = vunpack.c.l.b16 %v8426
        %v8503 = vunpack.c.l.b16 %v8427
        %v8504 = vunpack.c.l.b16 %v8428
        %v8505 = vunpack.c.l.b16 %v8429
        %v8506 = vunpack.c.l.b16 %v8430
        %v8507 = vunpack.c.l.b16 %v8431
        %v8508 = vunpack.c.l.b16 %v8432
        %v8509 = vunpack.c.l.b16 %v8433
        %v8510 = vunpack.c.l.b16 %v8434
        %v8511 = vunpack.c.l.b16 %v8435
        %v8512 = vpack.c.b16 %v8502, %v8501
        %v8513 = vpack.c.b16 %v8504, %v8503
        %v8514 = vpack.c.b16 %v8506, %v8505
        %v8515 = vpack.c.b16 %v8508, %v8507
        %v8516 = vpack.c.b16 %v8510, %v8509
        %v8517 = vpack.c.b16 %v8511, %v8511
        %vm8523 = vcmask 678912
        %v8525 = vsel %vm8523, %v8489, 0
        %v8528 = vand.u32 %v8517, %v5143
        %8530 = vmatpush.bf16.msra.mxu0 0
        %8531 = vmatpush.bf16.msra.mxu0 0
        %8532 = vmatpush.bf16.msra.mxu0 %v8528
        %8533 = vmatpush.bf16.msra.mxu0 %v8516
        %8534 = vmatpush.bf16.msra.mxu0 %v8515
        %8535 = vmatpush.bf16.msra.mxu0 %v8514
        %8536 = vmatpush.bf16.msra.mxu0 %v8513
        %8537 = vmatpush.bf16.msra.mxu0 %v8512
        %8538 = vmatmul.bf16.gmra.mxu0 %v8525
        %v8539 = vpop.f32.mrf.mxu0
        %v8540 = vadd.f32 0.0, %v8539
        %v8541 = vpop.f32.mrf.mxu0
        %8542 = vdwg.mxu0
        %v8543 = vrot.slane %v8461, 7
        %v8544 = vsel %vm8469, %v8543, %v8460
        %v8545 = vrot.slane %v8462, 6
        %v8546 = vsel %vm8472, %v8545, %v8544
        %v8547 = vrot.slane %v8463, 5
        %v8548 = vsel %vm8475, %v8547, %v8546
        %v8549 = vrot.slane %v8464, 4
        %v8550 = vsel %vm8478, %v8549, %v8548
        %v8551 = vrot.slane %v8465, 3
        %v8552 = vsel %vm8481, %v8551, %v8550
        %v8553 = vrot.slane %v8466, 2
        %v8554 = vsel %vm8484, %v8553, %v8552
        %v8555 = vrot.slane %v8467, 1
        %v8556 = vsel %vm8487, %v8555, %v8554
        %v8557 = vpack.c.b16 %v8556, %v8556
        %v8569 = vunpack.c.l.b16 %v8413
        %v8570 = vunpack.c.l.b16 %v8414
        %v8571 = vunpack.c.l.b16 %v8415
        %v8572 = vunpack.c.l.b16 %v8416
        %v8573 = vunpack.c.l.b16 %v8417
        %v8574 = vunpack.c.l.b16 %v8418
        %v8575 = vunpack.c.l.b16 %v8419
        %v8576 = vunpack.c.l.b16 %v8420
        %v8577 = vunpack.c.l.b16 %v8421
        %v8578 = vunpack.c.l.b16 %v8422
        %v8579 = vunpack.c.l.b16 %v8423
        %v8580 = vpack.c.b16 %v8570, %v8569
        %v8581 = vpack.c.b16 %v8572, %v8571
        %v8582 = vpack.c.b16 %v8574, %v8573
        %v8583 = vpack.c.b16 %v8576, %v8575
        %v8584 = vpack.c.b16 %v8578, %v8577
        %v8585 = vpack.c.b16 %v8579, %v8579
        %v8592 = vsel %vm8523, %v8557, 0
        %v8595 = vand.u32 %v8585, %v5143
        %8597 = vmatpush.bf16.msra.mxu0 0
        %8598 = vmatpush.bf16.msra.mxu0 0
        %8599 = vmatpush.bf16.msra.mxu0 %v8595
        %8600 = vmatpush.bf16.msra.mxu0 %v8584
        %8601 = vmatpush.bf16.msra.mxu0 %v8583
        %8602 = vmatpush.bf16.msra.mxu0 %v8582
        %8603 = vmatpush.bf16.msra.mxu0 %v8581
        %8604 = vmatpush.bf16.msra.mxu0 %v8580
        %8605 = vmatmul.bf16.gmra.mxu0 %v8592
        %v8606 = vpop.f32.mrf.mxu0
        %v8607 = vadd.f32 %v8540, %v8606
        %v8608 = vpop.f32.mrf.mxu0
        %8609 = vdwg.mxu0
        %s8610 = scalar_lea.vmem %s6, 88
        %v8611 = vld [vmem:[%s8610] sm:$0xf]
        %v8612 = vld [vmem:[%s8610 + $0x4] sm:$0xf]
        %v8613 = vld [vmem:[%s8610 + $0x8] sm:$0xf]
        %v8614 = vld [vmem:[%s8610 + $0xc] sm:$0xf]
        %v8615 = vld [vmem:[%s8610 + $0x10] sm:$0xf]
        %v8616 = vld [vmem:[%s8610 + $0x14] sm:$0xf]
        %v8617 = vld [vmem:[%s8610 + $0x18] sm:$0xf]
        %v8618 = vld [vmem:[%s8610 + $0x1c] sm:$0xf]
        %v8619 = vld [vmem:[%s8610 + $0x20] sm:$0xf]
        %v8620 = vld [vmem:[%s8610 + $0x24] sm:$0xf]
        %v8621 = vld [vmem:[%s8610 + $0x28] sm:$0x3]
        %v8622 = vrot.slane %v8460, 2
        %v8623 = vrot.slane %v8461, 1
        %v8624 = vsel %vm8469, %v8623, %v8622
        %v8625 = vsel %vm8472, %v8462, %v8624
        %v8626 = vrot.slane %v8463, 7
        %v8627 = vsel %vm8475, %v8626, %v8625
        %v8628 = vrot.slane %v8464, 6
        %v8629 = vsel %vm8478, %v8628, %v8627
        %v8630 = vrot.slane %v8465, 5
        %v8631 = vsel %vm8481, %v8630, %v8629
        %v8632 = vrot.slane %v8466, 4
        %v8633 = vsel %vm8484, %v8632, %v8631
        %v8634 = vrot.slane %v8467, 3
        %v8635 = vsel %vm8487, %v8634, %v8633
        %v8636 = vpack.c.b16 %v8635, %v8635
        %v8648 = vunpack.c.l.b16 %v8611
        %v8649 = vunpack.c.l.b16 %v8612
        %v8650 = vunpack.c.l.b16 %v8613
        %v8651 = vunpack.c.l.b16 %v8614
        %v8652 = vunpack.c.l.b16 %v8615
        %v8653 = vunpack.c.l.b16 %v8616
        %v8654 = vunpack.c.l.b16 %v8617
        %v8655 = vunpack.c.l.b16 %v8618
        %v8656 = vunpack.c.l.b16 %v8619
        %v8657 = vunpack.c.l.b16 %v8620
        %v8658 = vunpack.c.l.b16 %v8621
        %v8659 = vpack.c.b16 %v8649, %v8648
        %v8660 = vpack.c.b16 %v8651, %v8650
        %v8661 = vpack.c.b16 %v8653, %v8652
        %v8662 = vpack.c.b16 %v8655, %v8654
        %v8663 = vpack.c.b16 %v8657, %v8656
        %v8664 = vpack.c.b16 %v8658, %v8658
        %v8671 = vsel %vm8523, %v8636, 0
        %v8674 = vand.u32 %v8664, %v5143
        %8676 = vmatpush.bf16.msra.mxu0 0
        %8677 = vmatpush.bf16.msra.mxu0 0
        %8678 = vmatpush.bf16.msra.mxu0 %v8674
        %8679 = vmatpush.bf16.msra.mxu0 %v8663
        %8680 = vmatpush.bf16.msra.mxu0 %v8662
        %8681 = vmatpush.bf16.msra.mxu0 %v8661
        %8682 = vmatpush.bf16.msra.mxu0 %v8660
        %8683 = vmatpush.bf16.msra.mxu0 %v8659
        %8684 = vmatmul.bf16.gmra.mxu0 %v8671
        %v8685 = vpop.f32.mrf.mxu0
        %v8686 = vadd.f32 0.0, %v8685
        %v8687 = vpop.f32.mrf.mxu0
        %8688 = vdwg.mxu0
        %v8689 = vadd.f32 %v8607, %v8686
        %s8690 = scalar_lea.vmem %s6, 132
        %v8691 = vld [vmem:[%s8690] sm:$0xf]
        %v8692 = vld [vmem:[%s8690 + $0x4] sm:$0xf]
        %v8693 = vld [vmem:[%s8690 + $0x8] sm:$0xf]
        %v8694 = vld [vmem:[%s8690 + $0xc] sm:$0xf]
        %v8695 = vld [vmem:[%s8690 + $0x10] sm:$0xf]
        %v8696 = vld [vmem:[%s8690 + $0x14] sm:$0xf]
        %v8697 = vld [vmem:[%s8690 + $0x18] sm:$0xf]
        %v8698 = vld [vmem:[%s8690 + $0x1c] sm:$0xf]
        %v8699 = vld [vmem:[%s8690 + $0x20] sm:$0xf]
        %v8700 = vld [vmem:[%s8690 + $0x24] sm:$0xf]
        %v8701 = vld [vmem:[%s8690 + $0x28] sm:$0x3]
        %v8702 = vrot.slane %v8460, 3
        %v8703 = vrot.slane %v8461, 2
        %v8704 = vsel %vm8469, %v8703, %v8702
        %v8705 = vrot.slane %v8462, 1
        %v8706 = vsel %vm8472, %v8705, %v8704
        %v8707 = vsel %vm8475, %v8463, %v8706
        %v8708 = vrot.slane %v8464, 7
        %v8709 = vsel %vm8478, %v8708, %v8707
        %v8710 = vrot.slane %v8465, 6
        %v8711 = vsel %vm8481, %v8710, %v8709
        %v8712 = vrot.slane %v8466, 5
        %v8713 = vsel %vm8484, %v8712, %v8711
        %v8714 = vrot.slane %v8467, 4
        %v8715 = vsel %vm8487, %v8714, %v8713
        %v8716 = vpack.c.b16 %v8715, %v8715
        %v8728 = vunpack.c.l.b16 %v8691
        %v8729 = vunpack.c.l.b16 %v8692
        %v8730 = vunpack.c.l.b16 %v8693
        %v8731 = vunpack.c.l.b16 %v8694
        %v8732 = vunpack.c.l.b16 %v8695
        %v8733 = vunpack.c.l.b16 %v8696
        %v8734 = vunpack.c.l.b16 %v8697
        %v8735 = vunpack.c.l.b16 %v8698
        %v8736 = vunpack.c.l.b16 %v8699
        %v8737 = vunpack.c.l.b16 %v8700
        %v8738 = vunpack.c.l.b16 %v8701
        %v8739 = vpack.c.b16 %v8729, %v8728
        %v8740 = vpack.c.b16 %v8731, %v8730
        %v8741 = vpack.c.b16 %v8733, %v8732
        %v8742 = vpack.c.b16 %v8735, %v8734
        %v8743 = vpack.c.b16 %v8737, %v8736
        %v8744 = vpack.c.b16 %v8738, %v8738
        %v8751 = vsel %vm8523, %v8716, 0
        %v8754 = vand.u32 %v8744, %v5143
        %8756 = vmatpush.bf16.msra.mxu0 0
        %8757 = vmatpush.bf16.msra.mxu0 0
        %8758 = vmatpush.bf16.msra.mxu0 %v8754
        %8759 = vmatpush.bf16.msra.mxu0 %v8743
        %8760 = vmatpush.bf16.msra.mxu0 %v8742
        %8761 = vmatpush.bf16.msra.mxu0 %v8741
        %8762 = vmatpush.bf16.msra.mxu0 %v8740
        %8763 = vmatpush.bf16.msra.mxu0 %v8739
        %8764 = vmatmul.bf16.gmra.mxu0 %v8751
        %v8765 = vpop.f32.mrf.mxu0
        %v8766 = vadd.f32 0.0, %v8765
        %v8767 = vpop.f32.mrf.mxu0
        %8768 = vdwg.mxu0
        %v8769 = vadd.f32 %v8689, %v8766
        %s8770 = scalar_lea.vmem %s6, 176
        %v8771 = vld [vmem:[%s8770] sm:$0xf]
        %v8772 = vld [vmem:[%s8770 + $0x4] sm:$0xf]
        %v8773 = vld [vmem:[%s8770 + $0x8] sm:$0xf]
        %v8774 = vld [vmem:[%s8770 + $0xc] sm:$0xf]
        %v8775 = vld [vmem:[%s8770 + $0x10] sm:$0xf]
        %v8776 = vld [vmem:[%s8770 + $0x14] sm:$0xf]
        %v8777 = vld [vmem:[%s8770 + $0x18] sm:$0xf]
        %v8778 = vld [vmem:[%s8770 + $0x1c] sm:$0xf]
        %v8779 = vld [vmem:[%s8770 + $0x20] sm:$0xf]
        %v8780 = vld [vmem:[%s8770 + $0x24] sm:$0xf]
        %v8781 = vld [vmem:[%s8770 + $0x28] sm:$0x3]
        %v8782 = vrot.slane %v8460, 4
        %v8783 = vrot.slane %v8461, 3
        %v8784 = vsel %vm8469, %v8783, %v8782
        %v8785 = vrot.slane %v8462, 2
        %v8786 = vsel %vm8472, %v8785, %v8784
        %v8787 = vrot.slane %v8463, 1
        %v8788 = vsel %vm8475, %v8787, %v8786
        %v8789 = vsel %vm8478, %v8464, %v8788
        %v8790 = vrot.slane %v8465, 7
        %v8791 = vsel %vm8481, %v8790, %v8789
        %v8792 = vrot.slane %v8466, 6
        %v8793 = vsel %vm8484, %v8792, %v8791
        %v8794 = vrot.slane %v8467, 5
        %v8795 = vsel %vm8487, %v8794, %v8793
        %v8796 = vpack.c.b16 %v8795, %v8795
        %v8808 = vunpack.c.l.b16 %v8771
        %v8809 = vunpack.c.l.b16 %v8772
        %v8810 = vunpack.c.l.b16 %v8773
        %v8811 = vunpack.c.l.b16 %v8774
        %v8812 = vunpack.c.l.b16 %v8775
        %v8813 = vunpack.c.l.b16 %v8776
        %v8814 = vunpack.c.l.b16 %v8777
        %v8815 = vunpack.c.l.b16 %v8778
        %v8816 = vunpack.c.l.b16 %v8779
        %v8817 = vunpack.c.l.b16 %v8780
        %v8818 = vunpack.c.l.b16 %v8781
        %v8819 = vpack.c.b16 %v8809, %v8808
        %v8820 = vpack.c.b16 %v8811, %v8810
        %v8821 = vpack.c.b16 %v8813, %v8812
        %v8822 = vpack.c.b16 %v8815, %v8814
        %v8823 = vpack.c.b16 %v8817, %v8816
        %v8824 = vpack.c.b16 %v8818, %v8818
        %v8831 = vsel %vm8523, %v8796, 0
        %v8834 = vand.u32 %v8824, %v5143
        %8836 = vmatpush.bf16.msra.mxu0 0
        %8837 = vmatpush.bf16.msra.mxu0 0
        %8838 = vmatpush.bf16.msra.mxu0 %v8834
        %8839 = vmatpush.bf16.msra.mxu0 %v8823
        %8840 = vmatpush.bf16.msra.mxu0 %v8822
        %8841 = vmatpush.bf16.msra.mxu0 %v8821
        %8842 = vmatpush.bf16.msra.mxu0 %v8820
        %8843 = vmatpush.bf16.msra.mxu0 %v8819
        %8844 = vmatmul.bf16.gmra.mxu0 %v8831
        %v8845 = vpop.f32.mrf.mxu0
        %v8846 = vadd.f32 0.0, %v8845
        %v8847 = vpop.f32.mrf.mxu0
        %8848 = vdwg.mxu0
        %v8849 = vadd.f32 %v8769, %v8846
        %s8850 = scalar_lea.vmem %s6, 220
        %v8851 = vld [vmem:[%s8850] sm:$0xf]
        %v8852 = vld [vmem:[%s8850 + $0x4] sm:$0xf]
        %v8853 = vld [vmem:[%s8850 + $0x8] sm:$0xf]
        %v8854 = vld [vmem:[%s8850 + $0xc] sm:$0xf]
        %v8855 = vld [vmem:[%s8850 + $0x10] sm:$0xf]
        %v8856 = vld [vmem:[%s8850 + $0x14] sm:$0xf]
        %v8857 = vld [vmem:[%s8850 + $0x18] sm:$0xf]
        %v8858 = vld [vmem:[%s8850 + $0x1c] sm:$0xf]
        %v8859 = vld [vmem:[%s8850 + $0x20] sm:$0xf]
        %v8860 = vld [vmem:[%s8850 + $0x24] sm:$0xf]
        %v8861 = vld [vmem:[%s8850 + $0x28] sm:$0x3]
        %v8862 = vrot.slane %v8460, 5
        %v8863 = vrot.slane %v8461, 4
        %v8864 = vsel %vm8469, %v8863, %v8862
        %v8865 = vrot.slane %v8462, 3
        %v8866 = vsel %vm8472, %v8865, %v8864
        %v8867 = vrot.slane %v8463, 2
        %v8868 = vsel %vm8475, %v8867, %v8866
        %v8869 = vrot.slane %v8464, 1
        %v8870 = vsel %vm8478, %v8869, %v8868
        %v8871 = vsel %vm8481, %v8465, %v8870
        %v8872 = vrot.slane %v8466, 7
        %v8873 = vsel %vm8484, %v8872, %v8871
        %v8874 = vrot.slane %v8467, 6
        %v8875 = vsel %vm8487, %v8874, %v8873
        %v8876 = vpack.c.b16 %v8875, %v8875
        %v8888 = vunpack.c.l.b16 %v8851
        %v8889 = vunpack.c.l.b16 %v8852
        %v8890 = vunpack.c.l.b16 %v8853
        %v8891 = vunpack.c.l.b16 %v8854
        %v8892 = vunpack.c.l.b16 %v8855
        %v8893 = vunpack.c.l.b16 %v8856
        %v8894 = vunpack.c.l.b16 %v8857
        %v8895 = vunpack.c.l.b16 %v8858
        %v8896 = vunpack.c.l.b16 %v8859
        %v8897 = vunpack.c.l.b16 %v8860
        %v8898 = vunpack.c.l.b16 %v8861
        %v8899 = vpack.c.b16 %v8889, %v8888
        %v8900 = vpack.c.b16 %v8891, %v8890
        %v8901 = vpack.c.b16 %v8893, %v8892
        %v8902 = vpack.c.b16 %v8895, %v8894
        %v8903 = vpack.c.b16 %v8897, %v8896
        %v8904 = vpack.c.b16 %v8898, %v8898
        %v8911 = vsel %vm8523, %v8876, 0
        %v8914 = vand.u32 %v8904, %v5143
        %8916 = vmatpush.bf16.msra.mxu0 0
        %8917 = vmatpush.bf16.msra.mxu0 0
        %8918 = vmatpush.bf16.msra.mxu0 %v8914
        %8919 = vmatpush.bf16.msra.mxu0 %v8903
        %8920 = vmatpush.bf16.msra.mxu0 %v8902
        %8921 = vmatpush.bf16.msra.mxu0 %v8901
        %8922 = vmatpush.bf16.msra.mxu0 %v8900
        %8923 = vmatpush.bf16.msra.mxu0 %v8899
        %8924 = vmatmul.bf16.gmra.mxu0 %v8911
        %v8925 = vpop.f32.mrf.mxu0
        %v8926 = vadd.f32 0.0, %v8925
        %v8927 = vpop.f32.mrf.mxu0
        %8928 = vdwg.mxu0
        %v8929 = vadd.f32 %v8849, %v8926
        %s8930 = scalar_lea.vmem %s6, 264
        %v8931 = vld [vmem:[%s8930] sm:$0xf]
        %v8932 = vld [vmem:[%s8930 + $0x4] sm:$0xf]
        %v8933 = vld [vmem:[%s8930 + $0x8] sm:$0xf]
        %v8934 = vld [vmem:[%s8930 + $0xc] sm:$0xf]
        %v8935 = vld [vmem:[%s8930 + $0x10] sm:$0xf]
        %v8936 = vld [vmem:[%s8930 + $0x14] sm:$0xf]
        %v8937 = vld [vmem:[%s8930 + $0x18] sm:$0xf]
        %v8938 = vld [vmem:[%s8930 + $0x1c] sm:$0xf]
        %v8939 = vld [vmem:[%s8930 + $0x20] sm:$0xf]
        %v8940 = vld [vmem:[%s8930 + $0x24] sm:$0xf]
        %v8941 = vld [vmem:[%s8930 + $0x28] sm:$0x3]
        %v8942 = vrot.slane %v8460, 6
        %v8943 = vrot.slane %v8461, 5
        %v8944 = vsel %vm8469, %v8943, %v8942
        %v8945 = vrot.slane %v8462, 4
        %v8946 = vsel %vm8472, %v8945, %v8944
        %v8947 = vrot.slane %v8463, 3
        %v8948 = vsel %vm8475, %v8947, %v8946
        %v8949 = vrot.slane %v8464, 2
        %v8950 = vsel %vm8478, %v8949, %v8948
        %v8951 = vrot.slane %v8465, 1
        %v8952 = vsel %vm8481, %v8951, %v8950
        %v8953 = vsel %vm8484, %v8466, %v8952
        %v8954 = vrot.slane %v8467, 7
        %v8955 = vsel %vm8487, %v8954, %v8953
        %v8956 = vpack.c.b16 %v8955, %v8955
        %v8968 = vunpack.c.l.b16 %v8931
        %v8969 = vunpack.c.l.b16 %v8932
        %v8970 = vunpack.c.l.b16 %v8933
        %v8971 = vunpack.c.l.b16 %v8934
        %v8972 = vunpack.c.l.b16 %v8935
        %v8973 = vunpack.c.l.b16 %v8936
        %v8974 = vunpack.c.l.b16 %v8937
        %v8975 = vunpack.c.l.b16 %v8938
        %v8976 = vunpack.c.l.b16 %v8939
        %v8977 = vunpack.c.l.b16 %v8940
        %v8978 = vunpack.c.l.b16 %v8941
        %v8979 = vpack.c.b16 %v8969, %v8968
        %v8980 = vpack.c.b16 %v8971, %v8970
        %v8981 = vpack.c.b16 %v8973, %v8972
        %v8982 = vpack.c.b16 %v8975, %v8974
        %v8983 = vpack.c.b16 %v8977, %v8976
        %v8984 = vpack.c.b16 %v8978, %v8978
        %v8991 = vsel %vm8523, %v8956, 0
        %v8994 = vand.u32 %v8984, %v5143
        %8996 = vmatpush.bf16.msra.mxu0 0
        %8997 = vmatpush.bf16.msra.mxu0 0
        %8998 = vmatpush.bf16.msra.mxu0 %v8994
        %8999 = vmatpush.bf16.msra.mxu0 %v8983
        %9000 = vmatpush.bf16.msra.mxu0 %v8982
        %9001 = vmatpush.bf16.msra.mxu0 %v8981
        %9002 = vmatpush.bf16.msra.mxu0 %v8980
        %9003 = vmatpush.bf16.msra.mxu0 %v8979
        %9004 = vmatmul.bf16.gmra.mxu0 %v8991
        %v9005 = vpop.f32.mrf.mxu0
        %v9006 = vadd.f32 0.0, %v9005
        %v9007 = vpop.f32.mrf.mxu0
        %9008 = vdwg.mxu0
        %v9009 = vadd.f32 %v8929, %v9006
        %s9010 = scalar_lea.vmem %s6, 308
        %v9011 = vld [vmem:[%s9010] sm:$0xf]
        %v9012 = vld [vmem:[%s9010 + $0x4] sm:$0xf]
        %v9013 = vld [vmem:[%s9010 + $0x8] sm:$0xf]
        %v9014 = vld [vmem:[%s9010 + $0xc] sm:$0xf]
        %v9015 = vld [vmem:[%s9010 + $0x10] sm:$0xf]
        %v9016 = vld [vmem:[%s9010 + $0x14] sm:$0xf]
        %v9017 = vld [vmem:[%s9010 + $0x18] sm:$0xf]
        %v9018 = vld [vmem:[%s9010 + $0x1c] sm:$0xf]
        %v9019 = vld [vmem:[%s9010 + $0x20] sm:$0xf]
        %v9020 = vld [vmem:[%s9010 + $0x24] sm:$0xf]
        %v9021 = vld [vmem:[%s9010 + $0x28] sm:$0x3]
        %v9022 = vrot.slane %v8460, 7
        %v9023 = vrot.slane %v8461, 6
        %v9024 = vsel %vm8469, %v9023, %v9022
        %v9025 = vrot.slane %v8462, 5
        %v9026 = vsel %vm8472, %v9025, %v9024
        %v9027 = vrot.slane %v8463, 4
        %v9028 = vsel %vm8475, %v9027, %v9026
        %v9029 = vrot.slane %v8464, 3
        %v9030 = vsel %vm8478, %v9029, %v9028
        %v9031 = vrot.slane %v8465, 2
        %v9032 = vsel %vm8481, %v9031, %v9030
        %v9033 = vrot.slane %v8466, 1
        %v9034 = vsel %vm8484, %v9033, %v9032
        %v9035 = vsel %vm8487, %v8467, %v9034
        %v9036 = vpack.c.b16 %v9035, %v9035
        %v9048 = vunpack.c.l.b16 %v9011
        %v9049 = vunpack.c.l.b16 %v9012
        %v9050 = vunpack.c.l.b16 %v9013
        %v9051 = vunpack.c.l.b16 %v9014
        %v9052 = vunpack.c.l.b16 %v9015
        %v9053 = vunpack.c.l.b16 %v9016
        %v9054 = vunpack.c.l.b16 %v9017
        %v9055 = vunpack.c.l.b16 %v9018
        %v9056 = vunpack.c.l.b16 %v9019
        %v9057 = vunpack.c.l.b16 %v9020
        %v9058 = vunpack.c.l.b16 %v9021
        %v9059 = vpack.c.b16 %v9049, %v9048
        %v9060 = vpack.c.b16 %v9051, %v9050
        %v9061 = vpack.c.b16 %v9053, %v9052
        %v9062 = vpack.c.b16 %v9055, %v9054
        %v9063 = vpack.c.b16 %v9057, %v9056
        %v9064 = vpack.c.b16 %v9058, %v9058
        %v9071 = vsel %vm8523, %v9036, 0
        %v9074 = vand.u32 %v9064, %v5143
        %9076 = vmatpush.bf16.msra.mxu0 0
        %9077 = vmatpush.bf16.msra.mxu0 0
        %9078 = vmatpush.bf16.msra.mxu0 %v9074
        %9079 = vmatpush.bf16.msra.mxu0 %v9063
        %9080 = vmatpush.bf16.msra.mxu0 %v9062
        %9081 = vmatpush.bf16.msra.mxu0 %v9061
        %9082 = vmatpush.bf16.msra.mxu0 %v9060
        %9083 = vmatpush.bf16.msra.mxu0 %v9059
        %9084 = vmatmul.bf16.gmra.mxu0 %v9071
        %v9085 = vpop.f32.mrf.mxu0
        %v9086 = vadd.f32 0.0, %v9085
        %v9087 = vpop.f32.mrf.mxu0
        %9088 = vdwg.mxu0
        %v9089 = vadd.f32 %v9009, %v9086
        %s9090 = scalar_lea.vmem %s6, 352
        %v9091 = vld [vmem:[%s9090] sm:$0xf]
        %v9092 = vld [vmem:[%s9090 + $0x4] sm:$0xf]
        %v9093 = vld [vmem:[%s9090 + $0x8] sm:$0xf]
        %v9094 = vld [vmem:[%s9090 + $0xc] sm:$0xf]
        %v9095 = vld [vmem:[%s9090 + $0x10] sm:$0xf]
        %v9096 = vld [vmem:[%s9090 + $0x14] sm:$0xf]
        %v9097 = vld [vmem:[%s9090 + $0x18] sm:$0xf]
        %v9098 = vld [vmem:[%s9090 + $0x1c] sm:$0xf]
        %v9099 = vld [vmem:[%s9090 + $0x20] sm:$0xf]
        %v9100 = vld [vmem:[%s9090 + $0x24] sm:$0xf]
        %v9101 = vld [vmem:[%s9090 + $0x28] sm:$0x3]
        %v9110 = vunpack.c.l.b16 %v8398
        %v9111 = vunpack.c.l.b16 %v8400
        %v9112 = vunpack.c.l.b16 %v8402
        %v9113 = vunpack.c.l.b16 %v8404
        %v9114 = vunpack.c.l.b16 %v8406
        %v9115 = vunpack.c.l.b16 %v8408
        %v9116 = vunpack.c.l.b16 %v8410
        %v9117 = vunpack.c.l.b16 %v8412
        %v9118 = vpack.c.b16 %v9110, %v9110
        %v9119 = vpack.c.b16 %v9111, %v9111
        %v9120 = vpack.c.b16 %v9112, %v9112
        %v9121 = vpack.c.b16 %v9113, %v9113
        %v9122 = vpack.c.b16 %v9114, %v9114
        %v9123 = vpack.c.b16 %v9115, %v9115
        %v9124 = vpack.c.b16 %v9116, %v9116
        %v9125 = vpack.c.b16 %v9117, %v9117
        %v9126 = vunpack.c.l.b16 %v9118
        %v9127 = vunpack.c.l.b16 %v9119
        %v9128 = vunpack.c.l.b16 %v9120
        %v9129 = vunpack.c.l.b16 %v9121
        %v9130 = vunpack.c.l.b16 %v9122
        %v9131 = vunpack.c.l.b16 %v9123
        %v9132 = vunpack.c.l.b16 %v9124
        %v9133 = vunpack.c.l.b16 %v9125
        %v9134 = vrot.slane %v9127, 7
        %v9135 = vsel %vm8469, %v9134, %v9126
        %v9136 = vrot.slane %v9128, 6
        %v9137 = vsel %vm8472, %v9136, %v9135
        %v9138 = vrot.slane %v9129, 5
        %v9139 = vsel %vm8475, %v9138, %v9137
        %v9140 = vrot.slane %v9130, 4
        %v9141 = vsel %vm8478, %v9140, %v9139
        %v9142 = vrot.slane %v9131, 3
        %v9143 = vsel %vm8481, %v9142, %v9141
        %v9144 = vrot.slane %v9132, 2
        %v9145 = vsel %vm8484, %v9144, %v9143
        %v9146 = vrot.slane %v9133, 1
        %v9147 = vsel %vm8487, %v9146, %v9145
        %v9148 = vpack.c.b16 %v9147, %v9147
        %v9160 = vunpack.c.l.b16 %v9091
        %v9161 = vunpack.c.l.b16 %v9092
        %v9162 = vunpack.c.l.b16 %v9093
        %v9163 = vunpack.c.l.b16 %v9094
        %v9164 = vunpack.c.l.b16 %v9095
        %v9165 = vunpack.c.l.b16 %v9096
        %v9166 = vunpack.c.l.b16 %v9097
        %v9167 = vunpack.c.l.b16 %v9098
        %v9168 = vunpack.c.l.b16 %v9099
        %v9169 = vunpack.c.l.b16 %v9100
        %v9170 = vunpack.c.l.b16 %v9101
        %v9171 = vpack.c.b16 %v9161, %v9160
        %v9172 = vpack.c.b16 %v9163, %v9162
        %v9173 = vpack.c.b16 %v9165, %v9164
        %v9174 = vpack.c.b16 %v9167, %v9166
        %v9175 = vpack.c.b16 %v9169, %v9168
        %v9176 = vpack.c.b16 %v9170, %v9170
        %v9183 = vsel %vm8523, %v9148, 0
        %v9186 = vand.u32 %v9176, %v5143
        %9188 = vmatpush.bf16.msra.mxu0 0
        %9189 = vmatpush.bf16.msra.mxu0 0
        %9190 = vmatpush.bf16.msra.mxu0 %v9186
        %9191 = vmatpush.bf16.msra.mxu0 %v9175
        %9192 = vmatpush.bf16.msra.mxu0 %v9174
        %9193 = vmatpush.bf16.msra.mxu0 %v9173
        %9194 = vmatpush.bf16.msra.mxu0 %v9172
        %9195 = vmatpush.bf16.msra.mxu0 %v9171
        %9196 = vmatmul.bf16.gmra.mxu0 %v9183
        %v9197 = vpop.f32.mrf.mxu0
        %v9198 = vadd.f32 0.0, %v9197
        %v9199 = vpop.f32.mrf.mxu0
        %9200 = vdwg.mxu0
        %v9201 = vadd.f32 %v9089, %v9198
        %s9202 = scalar_lea.vmem %s6, 396
        %v9203 = vld [vmem:[%s9202] sm:$0xf]
        %v9204 = vld [vmem:[%s9202 + $0x4] sm:$0xf]
        %v9205 = vld [vmem:[%s9202 + $0x8] sm:$0xf]
        %v9206 = vld [vmem:[%s9202 + $0xc] sm:$0xf]
        %v9207 = vld [vmem:[%s9202 + $0x10] sm:$0xf]
        %v9208 = vld [vmem:[%s9202 + $0x14] sm:$0xf]
        %v9209 = vld [vmem:[%s9202 + $0x18] sm:$0xf]
        %v9210 = vld [vmem:[%s9202 + $0x1c] sm:$0xf]
        %v9211 = vld [vmem:[%s9202 + $0x20] sm:$0xf]
        %v9212 = vld [vmem:[%s9202 + $0x24] sm:$0xf]
        %v9213 = vld [vmem:[%s9202 + $0x28] sm:$0x3]
        %v9214 = vrot.slane %v9126, 1
        %v9215 = vsel %vm8469, %v9127, %v9214
        %v9216 = vrot.slane %v9128, 7
        %v9217 = vsel %vm8472, %v9216, %v9215
        %v9218 = vrot.slane %v9129, 6
        %v9219 = vsel %vm8475, %v9218, %v9217
        %v9220 = vrot.slane %v9130, 5
        %v9221 = vsel %vm8478, %v9220, %v9219
        %v9222 = vrot.slane %v9131, 4
        %v9223 = vsel %vm8481, %v9222, %v9221
        %v9224 = vrot.slane %v9132, 3
        %v9225 = vsel %vm8484, %v9224, %v9223
        %v9226 = vrot.slane %v9133, 2
        %v9227 = vsel %vm8487, %v9226, %v9225
        %v9228 = vpack.c.b16 %v9227, %v9227
        %v9240 = vunpack.c.l.b16 %v9203
        %v9241 = vunpack.c.l.b16 %v9204
        %v9242 = vunpack.c.l.b16 %v9205
        %v9243 = vunpack.c.l.b16 %v9206
        %v9244 = vunpack.c.l.b16 %v9207
        %v9245 = vunpack.c.l.b16 %v9208
        %v9246 = vunpack.c.l.b16 %v9209
        %v9247 = vunpack.c.l.b16 %v9210
        %v9248 = vunpack.c.l.b16 %v9211
        %v9249 = vunpack.c.l.b16 %v9212
        %v9250 = vunpack.c.l.b16 %v9213
        %v9251 = vpack.c.b16 %v9241, %v9240
        %v9252 = vpack.c.b16 %v9243, %v9242
        %v9253 = vpack.c.b16 %v9245, %v9244
        %v9254 = vpack.c.b16 %v9247, %v9246
        %v9255 = vpack.c.b16 %v9249, %v9248
        %v9256 = vpack.c.b16 %v9250, %v9250
        %v9263 = vsel %vm8523, %v9228, 0
        %v9266 = vand.u32 %v9256, %v5143
        %9268 = vmatpush.bf16.msra.mxu0 0
        %9269 = vmatpush.bf16.msra.mxu0 0
        %9270 = vmatpush.bf16.msra.mxu0 %v9266
        %9271 = vmatpush.bf16.msra.mxu0 %v9255
        %9272 = vmatpush.bf16.msra.mxu0 %v9254
        %9273 = vmatpush.bf16.msra.mxu0 %v9253
        %9274 = vmatpush.bf16.msra.mxu0 %v9252
        %9275 = vmatpush.bf16.msra.mxu0 %v9251
        %9276 = vmatmul.bf16.gmra.mxu0 %v9263
        %v9277 = vpop.f32.mrf.mxu0
        %v9278 = vadd.f32 0.0, %v9277
        %v9279 = vpop.f32.mrf.mxu0
        %9280 = vdwg.mxu0
        %v9281 = vadd.f32 %v9201, %v9278
        %s9282 = scalar_lea.vmem %s6, 440
        %v9283 = vld [vmem:[%s9282] sm:$0xf]
        %v9284 = vld [vmem:[%s9282 + $0x4] sm:$0xf]
        %v9285 = vld [vmem:[%s9282 + $0x8] sm:$0xf]
        %v9286 = vld [vmem:[%s9282 + $0xc] sm:$0xf]
        %v9287 = vld [vmem:[%s9282 + $0x10] sm:$0xf]
        %v9288 = vld [vmem:[%s9282 + $0x14] sm:$0xf]
        %v9289 = vld [vmem:[%s9282 + $0x18] sm:$0xf]
        %v9290 = vld [vmem:[%s9282 + $0x1c] sm:$0xf]
        %v9291 = vld [vmem:[%s9282 + $0x20] sm:$0xf]
        %v9292 = vld [vmem:[%s9282 + $0x24] sm:$0xf]
        %v9293 = vld [vmem:[%s9282 + $0x28] sm:$0x3]
        %v9294 = vrot.slane %v9126, 2
        %v9295 = vrot.slane %v9127, 1
        %v9296 = vsel %vm8469, %v9295, %v9294
        %v9297 = vsel %vm8472, %v9128, %v9296
        %v9298 = vrot.slane %v9129, 7
        %v9299 = vsel %vm8475, %v9298, %v9297
        %v9300 = vrot.slane %v9130, 6
        %v9301 = vsel %vm8478, %v9300, %v9299
        %v9302 = vrot.slane %v9131, 5
        %v9303 = vsel %vm8481, %v9302, %v9301
        %v9304 = vrot.slane %v9132, 4
        %v9305 = vsel %vm8484, %v9304, %v9303
        %v9306 = vrot.slane %v9133, 3
        %v9307 = vsel %vm8487, %v9306, %v9305
        %v9308 = vpack.c.b16 %v9307, %v9307
        %v9320 = vunpack.c.l.b16 %v9283
        %v9321 = vunpack.c.l.b16 %v9284
        %v9322 = vunpack.c.l.b16 %v9285
        %v9323 = vunpack.c.l.b16 %v9286
        %v9324 = vunpack.c.l.b16 %v9287
        %v9325 = vunpack.c.l.b16 %v9288
        %v9326 = vunpack.c.l.b16 %v9289
        %v9327 = vunpack.c.l.b16 %v9290
        %v9328 = vunpack.c.l.b16 %v9291
        %v9329 = vunpack.c.l.b16 %v9292
        %v9330 = vunpack.c.l.b16 %v9293
        %v9331 = vpack.c.b16 %v9321, %v9320
        %v9332 = vpack.c.b16 %v9323, %v9322
        %v9333 = vpack.c.b16 %v9325, %v9324
        %v9334 = vpack.c.b16 %v9327, %v9326
        %v9335 = vpack.c.b16 %v9329, %v9328
        %v9336 = vpack.c.b16 %v9330, %v9330
        %v9343 = vsel %vm8523, %v9308, 0
        %v9346 = vand.u32 %v9336, %v5143
        %9348 = vmatpush.bf16.msra.mxu0 0
        %9349 = vmatpush.bf16.msra.mxu0 0
        %9350 = vmatpush.bf16.msra.mxu0 %v9346
        %9351 = vmatpush.bf16.msra.mxu0 %v9335
        %9352 = vmatpush.bf16.msra.mxu0 %v9334
        %9353 = vmatpush.bf16.msra.mxu0 %v9333
        %9354 = vmatpush.bf16.msra.mxu0 %v9332
        %9355 = vmatpush.bf16.msra.mxu0 %v9331
        %9356 = vmatmul.bf16.gmra.mxu0 %v9343
        %v9357 = vpop.f32.mrf.mxu0
        %v9358 = vadd.f32 0.0, %v9357
        %v9359 = vpop.f32.mrf.mxu0
        %9360 = vdwg.mxu0
        %v9361 = vadd.f32 %v9281, %v9358
        %s9362 = scalar_lea.vmem %s6, 484
        %v9363 = vld [vmem:[%s9362] sm:$0xf]
        %v9364 = vld [vmem:[%s9362 + $0x4] sm:$0xf]
        %v9365 = vld [vmem:[%s9362 + $0x8] sm:$0xf]
        %v9366 = vld [vmem:[%s9362 + $0xc] sm:$0xf]
        %v9367 = vld [vmem:[%s9362 + $0x10] sm:$0xf]
        %v9368 = vld [vmem:[%s9362 + $0x14] sm:$0xf]
        %v9369 = vld [vmem:[%s9362 + $0x18] sm:$0xf]
        %v9370 = vld [vmem:[%s9362 + $0x1c] sm:$0xf]
        %v9371 = vld [vmem:[%s9362 + $0x20] sm:$0xf]
        %v9372 = vld [vmem:[%s9362 + $0x24] sm:$0xf]
        %v9373 = vld [vmem:[%s9362 + $0x28] sm:$0x3]
        %v9374 = vrot.slane %v9126, 3
        %v9375 = vrot.slane %v9127, 2
        %v9376 = vsel %vm8469, %v9375, %v9374
        %v9377 = vrot.slane %v9128, 1
        %v9378 = vsel %vm8472, %v9377, %v9376
        %v9379 = vsel %vm8475, %v9129, %v9378
        %v9380 = vrot.slane %v9130, 7
        %v9381 = vsel %vm8478, %v9380, %v9379
        %v9382 = vrot.slane %v9131, 6
        %v9383 = vsel %vm8481, %v9382, %v9381
        %v9384 = vrot.slane %v9132, 5
        %v9385 = vsel %vm8484, %v9384, %v9383
        %v9386 = vrot.slane %v9133, 4
        %v9387 = vsel %vm8487, %v9386, %v9385
        %v9388 = vpack.c.b16 %v9387, %v9387
        %v9400 = vunpack.c.l.b16 %v9363
        %v9401 = vunpack.c.l.b16 %v9364
        %v9402 = vunpack.c.l.b16 %v9365
        %v9403 = vunpack.c.l.b16 %v9366
        %v9404 = vunpack.c.l.b16 %v9367
        %v9405 = vunpack.c.l.b16 %v9368
        %v9406 = vunpack.c.l.b16 %v9369
        %v9407 = vunpack.c.l.b16 %v9370
        %v9408 = vunpack.c.l.b16 %v9371
        %v9409 = vunpack.c.l.b16 %v9372
        %v9410 = vunpack.c.l.b16 %v9373
        %v9411 = vpack.c.b16 %v9401, %v9400
        %v9412 = vpack.c.b16 %v9403, %v9402
        %v9413 = vpack.c.b16 %v9405, %v9404
        %v9414 = vpack.c.b16 %v9407, %v9406
        %v9415 = vpack.c.b16 %v9409, %v9408
        %v9416 = vpack.c.b16 %v9410, %v9410
        %v9423 = vsel %vm8523, %v9388, 0
        %v9426 = vand.u32 %v9416, %v5143
        %9428 = vmatpush.bf16.msra.mxu0 0
        %9429 = vmatpush.bf16.msra.mxu0 0
        %9430 = vmatpush.bf16.msra.mxu0 %v9426
        %9431 = vmatpush.bf16.msra.mxu0 %v9415
        %9432 = vmatpush.bf16.msra.mxu0 %v9414
        %9433 = vmatpush.bf16.msra.mxu0 %v9413
        %9434 = vmatpush.bf16.msra.mxu0 %v9412
        %9435 = vmatpush.bf16.msra.mxu0 %v9411
        %9436 = vmatmul.bf16.gmra.mxu0 %v9423
        %v9437 = vpop.f32.mrf.mxu0
        %v9438 = vadd.f32 0.0, %v9437
        %v9439 = vpop.f32.mrf.mxu0
        %9440 = vdwg.mxu0
        %v9441 = vadd.f32 %v9361, %v9438
        %s9442 = scalar_lea.vmem %s6, 528
        %v9443 = vld [vmem:[%s9442] sm:$0xf]
        %v9444 = vld [vmem:[%s9442 + $0x4] sm:$0xf]
        %v9445 = vld [vmem:[%s9442 + $0x8] sm:$0xf]
        %v9446 = vld [vmem:[%s9442 + $0xc] sm:$0xf]
        %v9447 = vld [vmem:[%s9442 + $0x10] sm:$0xf]
        %v9448 = vld [vmem:[%s9442 + $0x14] sm:$0xf]
        %v9449 = vld [vmem:[%s9442 + $0x18] sm:$0xf]
        %v9450 = vld [vmem:[%s9442 + $0x1c] sm:$0xf]
        %v9451 = vld [vmem:[%s9442 + $0x20] sm:$0xf]
        %v9452 = vld [vmem:[%s9442 + $0x24] sm:$0xf]
        %v9453 = vld [vmem:[%s9442 + $0x28] sm:$0x3]
        %v9454 = vrot.slane %v9126, 4
        %v9455 = vrot.slane %v9127, 3
        %v9456 = vsel %vm8469, %v9455, %v9454
        %v9457 = vrot.slane %v9128, 2
        %v9458 = vsel %vm8472, %v9457, %v9456
        %v9459 = vrot.slane %v9129, 1
        %v9460 = vsel %vm8475, %v9459, %v9458
        %v9461 = vsel %vm8478, %v9130, %v9460
        %v9462 = vrot.slane %v9131, 7
        %v9463 = vsel %vm8481, %v9462, %v9461
        %v9464 = vrot.slane %v9132, 6
        %v9465 = vsel %vm8484, %v9464, %v9463
        %v9466 = vrot.slane %v9133, 5
        %v9467 = vsel %vm8487, %v9466, %v9465
        %v9468 = vpack.c.b16 %v9467, %v9467
        %v9480 = vunpack.c.l.b16 %v9443
        %v9481 = vunpack.c.l.b16 %v9444
        %v9482 = vunpack.c.l.b16 %v9445
        %v9483 = vunpack.c.l.b16 %v9446
        %v9484 = vunpack.c.l.b16 %v9447
        %v9485 = vunpack.c.l.b16 %v9448
        %v9486 = vunpack.c.l.b16 %v9449
        %v9487 = vunpack.c.l.b16 %v9450
        %v9488 = vunpack.c.l.b16 %v9451
        %v9489 = vunpack.c.l.b16 %v9452
        %v9490 = vunpack.c.l.b16 %v9453
        %v9491 = vpack.c.b16 %v9481, %v9480
        %v9492 = vpack.c.b16 %v9483, %v9482
        %v9493 = vpack.c.b16 %v9485, %v9484
        %v9494 = vpack.c.b16 %v9487, %v9486
        %v9495 = vpack.c.b16 %v9489, %v9488
        %v9496 = vpack.c.b16 %v9490, %v9490
        %v9503 = vsel %vm8523, %v9468, 0
        %v9506 = vand.u32 %v9496, %v5143
        %9508 = vmatpush.bf16.msra.mxu0 0
        %9509 = vmatpush.bf16.msra.mxu0 0
        %9510 = vmatpush.bf16.msra.mxu0 %v9506
        %9511 = vmatpush.bf16.msra.mxu0 %v9495
        %9512 = vmatpush.bf16.msra.mxu0 %v9494
        %9513 = vmatpush.bf16.msra.mxu0 %v9493
        %9514 = vmatpush.bf16.msra.mxu0 %v9492
        %9515 = vmatpush.bf16.msra.mxu0 %v9491
        %9516 = vmatmul.bf16.gmra.mxu0 %v9503
        %v9517 = vpop.f32.mrf.mxu0
        %v9518 = vadd.f32 0.0, %v9517
        %v9519 = vpop.f32.mrf.mxu0
        %9520 = vdwg.mxu0
        %v9521 = vadd.f32 %v9441, %v9518
        %s9522 = scalar_lea.vmem %s6, 572
        %v9523 = vld [vmem:[%s9522] sm:$0xf]
        %v9524 = vld [vmem:[%s9522 + $0x4] sm:$0xf]
        %v9525 = vld [vmem:[%s9522 + $0x8] sm:$0xf]
        %v9526 = vld [vmem:[%s9522 + $0xc] sm:$0xf]
        %v9527 = vld [vmem:[%s9522 + $0x10] sm:$0xf]
        %v9528 = vld [vmem:[%s9522 + $0x14] sm:$0xf]
        %v9529 = vld [vmem:[%s9522 + $0x18] sm:$0xf]
        %v9530 = vld [vmem:[%s9522 + $0x1c] sm:$0xf]
        %v9531 = vld [vmem:[%s9522 + $0x20] sm:$0xf]
        %v9532 = vld [vmem:[%s9522 + $0x24] sm:$0xf]
        %v9533 = vld [vmem:[%s9522 + $0x28] sm:$0x3]
        %v9534 = vrot.slane %v9126, 5
        %v9535 = vrot.slane %v9127, 4
        %v9536 = vsel %vm8469, %v9535, %v9534
        %v9537 = vrot.slane %v9128, 3
        %v9538 = vsel %vm8472, %v9537, %v9536
        %v9539 = vrot.slane %v9129, 2
        %v9540 = vsel %vm8475, %v9539, %v9538
        %v9541 = vrot.slane %v9130, 1
        %v9542 = vsel %vm8478, %v9541, %v9540
        %v9543 = vsel %vm8481, %v9131, %v9542
        %v9544 = vrot.slane %v9132, 7
        %v9545 = vsel %vm8484, %v9544, %v9543
        %v9546 = vrot.slane %v9133, 6
        %v9547 = vsel %vm8487, %v9546, %v9545
        %v9548 = vpack.c.b16 %v9547, %v9547
        %v9560 = vunpack.c.l.b16 %v9523
        %v9561 = vunpack.c.l.b16 %v9524
        %v9562 = vunpack.c.l.b16 %v9525
        %v9563 = vunpack.c.l.b16 %v9526
        %v9564 = vunpack.c.l.b16 %v9527
        %v9565 = vunpack.c.l.b16 %v9528
        %v9566 = vunpack.c.l.b16 %v9529
        %v9567 = vunpack.c.l.b16 %v9530
        %v9568 = vunpack.c.l.b16 %v9531
        %v9569 = vunpack.c.l.b16 %v9532
        %v9570 = vunpack.c.l.b16 %v9533
        %v9571 = vpack.c.b16 %v9561, %v9560
        %v9572 = vpack.c.b16 %v9563, %v9562
        %v9573 = vpack.c.b16 %v9565, %v9564
        %v9574 = vpack.c.b16 %v9567, %v9566
        %v9575 = vpack.c.b16 %v9569, %v9568
        %v9576 = vpack.c.b16 %v9570, %v9570
        %v9583 = vsel %vm8523, %v9548, 0
        %v9586 = vand.u32 %v9576, %v5143
        %9588 = vmatpush.bf16.msra.mxu0 0
        %9589 = vmatpush.bf16.msra.mxu0 0
        %9590 = vmatpush.bf16.msra.mxu0 %v9586
        %9591 = vmatpush.bf16.msra.mxu0 %v9575
        %9592 = vmatpush.bf16.msra.mxu0 %v9574
        %9593 = vmatpush.bf16.msra.mxu0 %v9573
        %9594 = vmatpush.bf16.msra.mxu0 %v9572
        %9595 = vmatpush.bf16.msra.mxu0 %v9571
        %9596 = vmatmul.bf16.gmra.mxu0 %v9583
        %v9597 = vpop.f32.mrf.mxu0
        %v9598 = vadd.f32 0.0, %v9597
        %v9599 = vpop.f32.mrf.mxu0
        %9600 = vdwg.mxu0
        %v9601 = vadd.f32 %v9521, %v9598
        %s9602 = scalar_lea.vmem %s6, 616
        %v9603 = vld [vmem:[%s9602] sm:$0xf]
        %v9604 = vld [vmem:[%s9602 + $0x4] sm:$0xf]
        %v9605 = vld [vmem:[%s9602 + $0x8] sm:$0xf]
        %v9606 = vld [vmem:[%s9602 + $0xc] sm:$0xf]
        %v9607 = vld [vmem:[%s9602 + $0x10] sm:$0xf]
        %v9608 = vld [vmem:[%s9602 + $0x14] sm:$0xf]
        %v9609 = vld [vmem:[%s9602 + $0x18] sm:$0xf]
        %v9610 = vld [vmem:[%s9602 + $0x1c] sm:$0xf]
        %v9611 = vld [vmem:[%s9602 + $0x20] sm:$0xf]
        %v9612 = vld [vmem:[%s9602 + $0x24] sm:$0xf]
        %v9613 = vld [vmem:[%s9602 + $0x28] sm:$0x3]
        %v9614 = vrot.slane %v9126, 6
        %v9615 = vrot.slane %v9127, 5
        %v9616 = vsel %vm8469, %v9615, %v9614
        %v9617 = vrot.slane %v9128, 4
        %v9618 = vsel %vm8472, %v9617, %v9616
        %v9619 = vrot.slane %v9129, 3
        %v9620 = vsel %vm8475, %v9619, %v9618
        %v9621 = vrot.slane %v9130, 2
        %v9622 = vsel %vm8478, %v9621, %v9620
        %v9623 = vrot.slane %v9131, 1
        %v9624 = vsel %vm8481, %v9623, %v9622
        %v9625 = vsel %vm8484, %v9132, %v9624
        %v9626 = vrot.slane %v9133, 7
        %v9627 = vsel %vm8487, %v9626, %v9625
        %v9628 = vpack.c.b16 %v9627, %v9627
        %v9640 = vunpack.c.l.b16 %v9603
        %v9641 = vunpack.c.l.b16 %v9604
        %v9642 = vunpack.c.l.b16 %v9605
        %v9643 = vunpack.c.l.b16 %v9606
        %v9644 = vunpack.c.l.b16 %v9607
        %v9645 = vunpack.c.l.b16 %v9608
        %v9646 = vunpack.c.l.b16 %v9609
        %v9647 = vunpack.c.l.b16 %v9610
        %v9648 = vunpack.c.l.b16 %v9611
        %v9649 = vunpack.c.l.b16 %v9612
        %v9650 = vunpack.c.l.b16 %v9613
        %v9651 = vpack.c.b16 %v9641, %v9640
        %v9652 = vpack.c.b16 %v9643, %v9642
        %v9653 = vpack.c.b16 %v9645, %v9644
        %v9654 = vpack.c.b16 %v9647, %v9646
        %v9655 = vpack.c.b16 %v9649, %v9648
        %v9656 = vpack.c.b16 %v9650, %v9650
        %v9663 = vsel %vm8523, %v9628, 0
        %v9666 = vand.u32 %v9656, %v5143
        %9668 = vmatpush.bf16.msra.mxu0 0
        %9669 = vmatpush.bf16.msra.mxu0 0
        %9670 = vmatpush.bf16.msra.mxu0 %v9666
        %9671 = vmatpush.bf16.msra.mxu0 %v9655
        %9672 = vmatpush.bf16.msra.mxu0 %v9654
        %9673 = vmatpush.bf16.msra.mxu0 %v9653
        %9674 = vmatpush.bf16.msra.mxu0 %v9652
        %9675 = vmatpush.bf16.msra.mxu0 %v9651
        %9676 = vmatmul.bf16.gmra.mxu0 %v9663
        %v9677 = vpop.f32.mrf.mxu0
        %v9678 = vadd.f32 0.0, %v9677
        %v9679 = vpop.f32.mrf.mxu0
        %9680 = vdwg.mxu0
        %v9681 = vadd.f32 %v9601, %v9678
        %s9682 = scalar_lea.vmem %s6, 660
        %v9683 = vld [vmem:[%s9682] sm:$0xf]
        %v9684 = vld [vmem:[%s9682 + $0x4] sm:$0xf]
        %v9685 = vld [vmem:[%s9682 + $0x8] sm:$0xf]
        %v9686 = vld [vmem:[%s9682 + $0xc] sm:$0xf]
        %v9687 = vld [vmem:[%s9682 + $0x10] sm:$0xf]
        %v9688 = vld [vmem:[%s9682 + $0x14] sm:$0xf]
        %v9689 = vld [vmem:[%s9682 + $0x18] sm:$0xf]
        %v9690 = vld [vmem:[%s9682 + $0x1c] sm:$0xf]
        %v9691 = vld [vmem:[%s9682 + $0x20] sm:$0xf]
        %v9692 = vld [vmem:[%s9682 + $0x24] sm:$0xf]
        %v9693 = vld [vmem:[%s9682 + $0x28] sm:$0x3]
        %v9694 = vrot.slane %v9126, 7
        %v9695 = vrot.slane %v9127, 6
        %v9696 = vsel %vm8469, %v9695, %v9694
        %v9697 = vrot.slane %v9128, 5
        %v9698 = vsel %vm8472, %v9697, %v9696
        %v9699 = vrot.slane %v9129, 4
        %v9700 = vsel %vm8475, %v9699, %v9698
        %v9701 = vrot.slane %v9130, 3
        %v9702 = vsel %vm8478, %v9701, %v9700
        %v9703 = vrot.slane %v9131, 2
        %v9704 = vsel %vm8481, %v9703, %v9702
        %v9705 = vrot.slane %v9132, 1
        %v9706 = vsel %vm8484, %v9705, %v9704
        %v9707 = vsel %vm8487, %v9133, %v9706
        %v9708 = vpack.c.b16 %v9707, %v9707
        %v9720 = vunpack.c.l.b16 %v9683
        %v9721 = vunpack.c.l.b16 %v9684
        %v9722 = vunpack.c.l.b16 %v9685
        %v9723 = vunpack.c.l.b16 %v9686
        %v9724 = vunpack.c.l.b16 %v9687
        %v9725 = vunpack.c.l.b16 %v9688
        %v9726 = vunpack.c.l.b16 %v9689
        %v9727 = vunpack.c.l.b16 %v9690
        %v9728 = vunpack.c.l.b16 %v9691
        %v9729 = vunpack.c.l.b16 %v9692
        %v9730 = vunpack.c.l.b16 %v9693
        %v9731 = vpack.c.b16 %v9721, %v9720
        %v9732 = vpack.c.b16 %v9723, %v9722
        %v9733 = vpack.c.b16 %v9725, %v9724
        %v9734 = vpack.c.b16 %v9727, %v9726
        %v9735 = vpack.c.b16 %v9729, %v9728
        %v9736 = vpack.c.b16 %v9730, %v9730
        %v9743 = vsel %vm8523, %v9708, 0
        %v9746 = vand.u32 %v9736, %v5143
        %9748 = vmatpush.bf16.msra.mxu0 0
        %9749 = vmatpush.bf16.msra.mxu0 0
        %9750 = vmatpush.bf16.msra.mxu0 %v9746
        %9751 = vmatpush.bf16.msra.mxu0 %v9735
        %9752 = vmatpush.bf16.msra.mxu0 %v9734
        %9753 = vmatpush.bf16.msra.mxu0 %v9733
        %9754 = vmatpush.bf16.msra.mxu0 %v9732
        %9755 = vmatpush.bf16.msra.mxu0 %v9731
        %9756 = vmatmul.bf16.gmra.mxu0 %v9743
        %v9757 = vpop.f32.mrf.mxu0
        %v9758 = vadd.f32 0.0, %v9757
        %v9759 = vpop.f32.mrf.mxu0
        %9760 = vdwg.mxu0
        %v9761 = vadd.f32 %v9681, %v9758
        %v9762 = vld [vmem:[%s7] sm:$0x1]
        %v9764 = vperm.slane %v9762, 0
        %v9766 = vadd.f32 %v9761, %v9764
        %v9767 = vmax.f32 %v9766, 0.0
        %v9768 = vpack.c.bf16 %v9767, %v9767
        %v9769 = vld [vmem:[%s8] sm:$0xf]
        %v9770 = vld [vmem:[%s8 + $0x4] sm:$0xf]
        %v9771 = vld [vmem:[%s8 + $0x8] sm:$0xf]
        %v9772 = vld [vmem:[%s8 + $0xc] sm:$0xf]
        %v9773 = vld [vmem:[%s8 + $0x10] sm:$0xf]
        %v9774 = vld [vmem:[%s8 + $0x14] sm:$0xf]
        %v9775 = vld [vmem:[%s8 + $0x18] sm:$0xf]
        %v9776 = vld [vmem:[%s8 + $0x1c] sm:$0xf]
        %v9777 = vld [vmem:[%s8 + $0x20] sm:$0xf]
        %v9778 = vld [vmem:[%s8 + $0x24] sm:$0xf]
        %v9779 = vld [vmem:[%s8 + $0x28] sm:$0xf]
        %v9780 = vld [vmem:[%s8 + $0x2c] sm:$0xf]
        %v9781 = vld [vmem:[%s8 + $0x30] sm:$0xf]
        %v9782 = vld [vmem:[%s8 + $0x34] sm:$0xf]
        %v9783 = vld [vmem:[%s8 + $0x38] sm:$0xf]
        %v9784 = vld [vmem:[%s9] sm:$0x1]
        %v9786 = vperm.slane %v9784, 0
        %v9803 = vunpack.c.l.b16 %v9769
        %v9804 = vunpack.c.l.b16 %v9770
        %v9805 = vunpack.c.l.b16 %v9771
        %v9806 = vunpack.c.l.b16 %v9772
        %v9807 = vunpack.c.l.b16 %v9773
        %v9808 = vunpack.c.l.b16 %v9774
        %v9809 = vunpack.c.l.b16 %v9775
        %v9810 = vunpack.c.l.b16 %v9776
        %v9811 = vunpack.c.l.b16 %v9777
        %v9812 = vunpack.c.l.b16 %v9778
        %v9813 = vunpack.c.l.b16 %v9779
        %v9814 = vunpack.c.l.b16 %v9780
        %v9815 = vunpack.c.l.b16 %v9781
        %v9816 = vunpack.c.l.b16 %v9782
        %v9817 = vunpack.c.l.b16 %v9783
        %v9818 = vpack.c.b16 %v9804, %v9803
        %v9819 = vpack.c.b16 %v9806, %v9805
        %v9820 = vpack.c.b16 %v9808, %v9807
        %v9821 = vpack.c.b16 %v9810, %v9809
        %v9822 = vpack.c.b16 %v9812, %v9811
        %v9823 = vpack.c.b16 %v9814, %v9813
        %v9824 = vpack.c.b16 %v9816, %v9815
        %v9825 = vpack.c.b16 %v9817, %v9817
        %vm9833 = vcmask 982016
        %v9835 = vsel %vm9833, %v9768, 0
        %v9838 = vsel %vm2608, %v9825, 0
        %9840 = vmatpush.bf16.msra.mxu0 %v9838
        %9841 = vmatpush.bf16.msra.mxu0 %v9824
        %9842 = vmatpush.bf16.msra.mxu0 %v9823
        %9843 = vmatpush.bf16.msra.mxu0 %v9822
        %9844 = vmatpush.bf16.msra.mxu0 %v9821
        %9845 = vmatpush.bf16.msra.mxu0 %v9820
        %9846 = vmatpush.bf16.msra.mxu0 %v9819
        %9847 = vmatpush.bf16.msra.mxu0 %v9818
        %9848 = vmatmul.bf16.gmra.mxu0 %v9835
        %v9849 = vpop.f32.mrf.mxu0
        %v9850 = vadd.f32 %v9786, %v9849
        %v9851 = vpop.f32.mrf.mxu0
        %9852 = vdwg.mxu0
        %v9853 = vmax.f32 %v9850, 0.0
        %v9854 = vpack.c.bf16 %v9853, %v9853
        %v9855 = vld [vmem:[%s10] sm:$0xf]
        %v9856 = vld [vmem:[%s10 + $0x4] sm:$0xf]
        %v9857 = vld [vmem:[%s10 + $0x8] sm:$0xf]
        %v9858 = vld [vmem:[%s10 + $0xc] sm:$0xf]
        %v9859 = vld [vmem:[%s10 + $0x10] sm:$0xf]
        %v9860 = vld [vmem:[%s10 + $0x14] sm:$0xf]
        %v9861 = vld [vmem:[%s10 + $0x18] sm:$0xf]
        %v9862 = vld [vmem:[%s10 + $0x1c] sm:$0xf]
        %v9863 = vld [vmem:[%s10 + $0x20] sm:$0xf]
        %v9864 = vld [vmem:[%s10 + $0x24] sm:$0xf]
        %v9865 = vld [vmem:[%s10 + $0x28] sm:$0x3]
        %v9866 = vld [vmem:[%s11] sm:$0x1]
        %v9868 = vperm.slane %v9866, 0
        %v9881 = vunpack.c.l.b16 %v9855
        %v9882 = vunpack.c.l.b16 %v9856
        %v9883 = vunpack.c.l.b16 %v9857
        %v9884 = vunpack.c.l.b16 %v9858
        %v9885 = vunpack.c.l.b16 %v9859
        %v9886 = vunpack.c.l.b16 %v9860
        %v9887 = vunpack.c.l.b16 %v9861
        %v9888 = vunpack.c.l.b16 %v9862
        %v9889 = vunpack.c.l.b16 %v9863
        %v9890 = vunpack.c.l.b16 %v9864
        %v9891 = vunpack.c.l.b16 %v9865
        %v9892 = vpack.c.b16 %v9882, %v9881
        %v9893 = vpack.c.b16 %v9884, %v9883
        %v9894 = vpack.c.b16 %v9886, %v9885
        %v9895 = vpack.c.b16 %v9888, %v9887
        %v9896 = vpack.c.b16 %v9890, %v9889
        %v9897 = vpack.c.b16 %v9891, %v9891
        %vm9903 = vcmask 687104
        %v9905 = vsel %vm9903, %v9854, 0
        %v9908 = vsel %vm5141, %v9897, 0
        %9910 = vmatpush.bf16.msra.mxu0 0
        %9911 = vmatpush.bf16.msra.mxu0 0
        %9912 = vmatpush.bf16.msra.mxu0 %v9908
        %9913 = vmatpush.bf16.msra.mxu0 %v9896
        %9914 = vmatpush.bf16.msra.mxu0 %v9895
        %9915 = vmatpush.bf16.msra.mxu0 %v9894
        %9916 = vmatpush.bf16.msra.mxu0 %v9893
        %9917 = vmatpush.bf16.msra.mxu0 %v9892
        %9918 = vmatmul.bf16.gmra.mxu0 %v9905
        %v9919 = vpop.f32.mrf.mxu0
        %v9920 = vadd.f32 %v9868, %v9919
        %v9921 = vpop.f32.mrf.mxu0
        %9922 = vdwg.mxu0
        %vm9923 = vcmask 80896
        %9924 = vst.msk [vmem:[%s407] sm:$0xff] %vm9923, %v9920
        %s9925 = sand.u32 %s291, 1
        %s9926 = scalar_lea.sflag [#allocation9], %s9925
        %s9927 = sand.u32 %s291, 1
        %s9928 = smul.addr %s9927, 8
        %s9929 = scalar_lea.vmem [#allocation8], %s9928
        // Predicated region
        $region69: #{lenet_forward.1} parent=67 // pred_check
          %p9930 = pneg %p301
        $region70: #{lenet_forward.1} parent=67 // pred_check_branch
          %9932 = sbr.rel (%p9930) target = $region72
        $region71: #{lenet_forward.1} parent=67 // pred_region
          %9934 = vsyncadd %s9926, 0
          %s9935 = smul.addr %s26, 8
          %s9936 = scalar_lea.hbm %s12, %s9935
          %s9938 = sshll.u32 %s9929, 4
          %s9939 = int_to_ptr.vmem [resolvable:$true] %s9938
          %s9940 = sshll.u32 %s9936, 4
          %s9941 = int_to_ptr.hbm [resolvable:$true] %s9940
          %9943 = dma.vmem_to_hbm [thread:$0]  %s9939, 128, %s9941, %s9926
        $region72: #{lenet_forward.1} parent=67 // pred_fallthru
          _
      $region68: #{lenet_forward.1} parent=5 // pred_fallthru
        _
      %p9944 = scmp.le.s32.totalorder 2, %s21
      // Predicated region
      $region73: #{lenet_forward.1} parent=5 // pred_check
        %p9945 = pneg %p9944
      $region74: #{lenet_forward.1} parent=5 // pred_check_branch
        %9947 = sbr.rel (%p9945) target = $region76
      $region75: #{lenet_forward.1} parent=5 // pred_region
        %s9948 = ssub.s32 %s21, 2
        // Predicated region
        $region77: #{lenet_forward.1} parent=75 // pred_check
          %p9949 = pneg %p307
        $region78: #{lenet_forward.1} parent=75 // pred_check_branch
          %9951 = sbr.rel (%p9949) target = $region80
        $region79: #{lenet_forward.1} parent=75 // pred_region
          %s9952 = sand.u32 %s292, 1
          %s9953 = scalar_lea.sflag [#allocation9], %s9952
          %s9954 = sand.u32 %s292, 1
          %s9955 = smul.addr %s9954, 8
          %s9956 = scalar_lea.vmem [#allocation8], %s9955
          %9958 = dma.done %s9953, 128
        $region80: #{lenet_forward.1} parent=75 // pred_fallthru
          _
      $region76: #{lenet_forward.1} parent=5 // pred_fallthru
        _
    $region6: #{lenet_forward.1} parent=1 // loop_footer
      %s25 = sadd.s32 1, %s21
    $region7: #{lenet_forward.1} parent=1 // loop_footer_branch
      %20 = sbr.rel target = $region3
    $region8: #{lenet_forward.1} parent=1 // loop_exit
      _
    %9959 = vsyncpa [#allocation9], 1
    %s9960 = scalar_lea.sflag [#allocation9], 1
    %9961 = vsyncpa %s9960, 1

</llo_original>
